<compile_context>
chip_gen: v6e
topology: v6e:2x2x1
jax: 0.10.0
libtpu: 0.0.40
codegen_flags: <defaults>
</compile_context>

<pallas_src>
import functools

import jax
import jax.numpy as jnp
import numpy as np
from jax.experimental import pallas as pl
from jax.experimental.pallas import tpu as pltpu

LANES = 128           # lane width of the packed input / output slabs
PARAM_AUX_ROWS = 8    # bias / layernorm rows at the top of the parameter slab


def _rup8(x):
    return ((x + 7) // 8) * 8


def hcl_kernel(g_ref, p_ref, out_ref, *, n_nodes, in_feats, d_k, d_v, hidden,
               gpb, r_qkv, r_o, r_1, r_2):
    N = n_nodes
    F = in_feats
    qkv_w = 2 * d_k + d_v

    blk = g_ref[...]                              # (GPB, N, LANES)
    A = blk[:, :, 0:N]                            # (GPB, N, N) normalized adjacency
    X = blk[:, :, N:N + F]                        # (GPB, N, F) node features
    Xf = X.reshape(gpb * N, F)

    # Hoisted LayerNorm parameters (shared self.ln, reused twice).
    gamma = p_ref[6:7, 0:F]
    beta = p_ref[7:8, 0:F]

    def layer_norm(h):                            # h: (rows, F), eps=1e-5
        mu = jnp.mean(h, axis=-1, keepdims=True)
        var = jnp.mean((h - mu) ** 2, axis=-1, keepdims=True)
        return (h - mu) * jax.lax.rsqrt(var + 1e-5) * gamma + beta

    # ---- Self_Attention: fused Q/K/V GraphConvs ----
    # A_hat @ (X @ W) == (A_hat @ X) @ W : aggregate once per graph, then one
    # wide projection over the GPB*N stacked rows. Wq/bq were pre-scaled by
    # 1/sqrt(d_k) at pack time, so no explicit score scaling below.
    AX = jnp.einsum('gij,gjf->gif', A, X, preferred_element_type=jnp.float32)
    QKV = jnp.dot(AX.reshape(gpb * N, F), p_ref[r_qkv:r_qkv + F, 0:qkv_w],
                  preferred_element_type=jnp.float32) + p_ref[0:1, 0:qkv_w]
    QKV = QKV.reshape(gpb, N, qkv_w)
    Q = QKV[:, :, 0:d_k]                          # carries 1/sqrt(d_k)
    K = QKV[:, :, d_k:2 * d_k]
    V = QKV[:, :, 2 * d_k:qkv_w]

    # scores = Q @ K^T per graph (contract last axes; no transpose materialized)
    scores = jnp.einsum('gqd,gkd->gqk', Q, K, preferred_element_type=jnp.float32)

    # softmax over last dim (attn argument is None -> no additive bias)
    m = jnp.max(scores, axis=-1, keepdims=True)
    e = jnp.exp(scores - m)
    attn = e * pl.reciprocal(jnp.sum(e, axis=-1, keepdims=True), approx=True)

    attn_v = jnp.einsum('gqk,gkd->gqd', attn, V,
                        preferred_element_type=jnp.float32)   # (GPB, N, d_v)
    # W_O GraphConv: (A_hat @ (attn @ V)) @ Wo + bo (same math, cheaper assoc.)
    ao = jnp.einsum('gij,gjd->gid', A, attn_v,
                    preferred_element_type=jnp.float32)
    attn_out = jnp.dot(ao.reshape(gpb * N, d_v), p_ref[r_o:r_o + d_v, 0:F],
                       preferred_element_type=jnp.float32) + p_ref[1:2, 0:F]

    # ---- LayerNorm then residual (matches PyTorch: ln(attn_out) + inputs) ----
    ff_in = layer_norm(attn_out) + Xf             # (GPB*N, F)

    # ---- GCNFeedforwardLayer ----
    # TODO(synk): nn.Dropout is identity here (eval mode / deterministic kernel).
    h1 = jnp.dot(ff_in, p_ref[r_1:r_1 + F, 0:hidden],
                 preferred_element_type=jnp.float32)
    h1 = jnp.einsum('gij,gjh->gih', A, h1.reshape(gpb, N, hidden),
                    preferred_element_type=jnp.float32) + p_ref[2:3, 0:hidden]
    h1 = jnp.maximum(h1, 0.0)                     # relu
    h2 = jnp.dot(h1.reshape(gpb * N, hidden), p_ref[r_2:r_2 + hidden, 0:F],
                 preferred_element_type=jnp.float32)
    h2 = jnp.einsum('gij,gjf->gif', A, h2.reshape(gpb, N, F),
                    preferred_element_type=jnp.float32) + p_ref[3:4, 0:F]

    out = layer_norm(h2.reshape(gpb * N, F)).reshape(gpb, N, F)

    # Single lane-dense (..., 128) store: [ out | attn | zero pad ].
    lanes = out_ref.shape[-1]
    parts = [out, attn]
    rem = lanes - F - N
    if rem:
        parts.append(jnp.zeros((gpb, N, rem), jnp.float32))
    out_ref[...] = jnp.concatenate(parts, axis=-1)


def pack_params(params, in_feats, d_k, d_v, hidden, lane_width=LANES):
    """Pack all 14 small parameter tensors into ONE (rows, 128) VMEM slab."""
    qkv_w = 2 * d_k + d_v
    assert max(qkv_w, in_feats, hidden) <= lane_width
    scale = 1.0 / float(np.sqrt(d_k))             # folded into Wq / bq

    r_qkv = PARAM_AUX_ROWS
    r_o = r_qkv + _rup8(in_feats)
    r_1 = r_o + _rup8(d_v)
    r_2 = r_1 + _rup8(in_feats)
    total = r_2 + _rup8(hidden)

    slab = jnp.zeros((total, lane_width), jnp.float32)
    # bias / layernorm rows
    slab = slab.at[0, 0:d_k].set(params["bq"][0] * scale)
    slab = slab.at[0, d_k:2 * d_k].set(params["bk"][0])
    slab = slab.at[0, 2 * d_k:qkv_w].set(params["bv"][0])
    slab = slab.at[1, 0:in_feats].set(params["bo"][0])
    slab = slab.at[2, 0:hidden].set(params["b1"][0])
    slab = slab.at[3, 0:in_feats].set(params["b2"][0])
    slab = slab.at[6, 0:in_feats].set(params["ln_g"][0])
    slab = slab.at[7, 0:in_feats].set(params["ln_b"][0])
    # weight blocks
    slab = slab.at[r_qkv:r_qkv + in_feats, 0:d_k].set(params["wq"] * scale)
    slab = slab.at[r_qkv:r_qkv + in_feats, d_k:2 * d_k].set(params["wk"])
    slab = slab.at[r_qkv:r_qkv + in_feats, 2 * d_k:qkv_w].set(params["wv"])
    slab = slab.at[r_o:r_o + d_v, 0:in_feats].set(params["wo"])
    slab = slab.at[r_1:r_1 + in_feats, 0:hidden].set(params["w1"])
    slab = slab.at[r_2:r_2 + hidden, 0:in_feats].set(params["w2"])

    return slab, dict(r_qkv=r_qkv, r_o=r_o, r_1=r_1, r_2=r_2)


def pack_graphs(a_hat, x, lane_width=LANES):
    """Pack A_hat (B,N,N) and X (B,N,F) into one lane-dense (B,N,128) slab."""
    B, N, _ = a_hat.shape
    F = x.shape[-1]
    assert N + F <= lane_width
    slab = jnp.zeros((B, N, lane_width), jnp.float32)
    slab = slab.at[:, :, 0:N].set(a_hat)
    slab = slab.at[:, :, N:N + F].set(x)
    return slab


def hcl_layer_batched(a_hat, x, param_slab, offsets, *, d_k, d_v, hidden,
                      graphs_per_block=16, lane_width=LANES):
    B, N, F = x.shape
    gpb = min(graphs_per_block, B)
    assert B % gpb == 0, "batch must be divisible by graphs_per_block"

    gslab = pack_graphs(a_hat, x, lane_width)
    kern = functools.partial(hcl_kernel, n_nodes=N, in_feats=F, d_k=d_k,
                             d_v=d_v, hidden=hidden, gpb=gpb, **offsets)

    packed = pl.pallas_call(
        kern,
        out_shape=jax.ShapeDtypeStruct((B, N, lane_width), jnp.float32),
        grid_spec=pltpu.PrefetchScalarGridSpec(
            num_scalar_prefetch=0,
            grid=(B // gpb,),
            in_specs=[
                pl.BlockSpec((gpb, N, lane_width), lambda b: (b, 0, 0)),
                pl.BlockSpec(param_slab.shape, lambda b: (0, 0)),  # reused
            ],
            out_specs=pl.BlockSpec((gpb, N, lane_width), lambda b: (b, 0, 0)),
        ),
        compiler_params=pltpu.CompilerParams(
            dimension_semantics=("parallel",)),    # v7x: shard across both TCs
    )(gslab, param_slab)

    out = packed[:, :, 0:F]
    attn = packed[:, :, F:F + N]
    return out, attn


def make_params(key, in_feats, d_k, d_v, hidden):
    def xavier(k, fan_in, fan_out):
        limit = (6.0 / (fan_in + fan_out)) ** 0.5
        return jax.random.uniform(k, (fan_in, fan_out), jnp.float32, -limit, limit)

    ks = jax.random.split(key, 6)
    return {
        # Self_Attention GraphConvs (xavier weights, zero biases like DGL)
        "wq": xavier(ks[0], in_feats, d_k), "bq": jnp.zeros((1, d_k), jnp.float32),
        "wk": xavier(ks[1], in_feats, d_k), "bk": jnp.zeros((1, d_k), jnp.float32),
        "wv": xavier(ks[2], in_feats, d_v), "bv": jnp.zeros((1, d_v), jnp.float32),
        "wo": xavier(ks[3], d_v, in_feats), "bo": jnp.zeros((1, in_feats), jnp.float32),
        # shared LayerNorm (PyTorch default init: gamma=1, beta=0)
        "ln_g": jnp.ones((1, in_feats), jnp.float32),
        "ln_b": jnp.zeros((1, in_feats), jnp.float32),
        # GCNFeedforwardLayer GraphConvs
        "w1": xavier(ks[4], in_feats, hidden), "b1": jnp.zeros((1, hidden), jnp.float32),
        "w2": xavier(ks[5], hidden, in_feats), "b2": jnp.zeros((1, in_feats), jnp.float32),
    }


def make_norm_adj(key, n_nodes):
    # Deterministic random symmetric graph with self-loops,
    # A_hat = D^-1/2 (A + I) D^-1/2  (DGL GraphConv norm='both').
    a = (jax.random.uniform(key, (n_nodes, n_nodes)) > 0.5).astype(jnp.float32)
    a = jnp.maximum(a, a.T)
    a = jnp.maximum(a, jnp.eye(n_nodes, dtype=jnp.float32))  # self loops
    deg = jnp.sum(a, axis=-1)
    d_inv_sqrt = 1.0 / jnp.sqrt(deg)
    return a * d_inv_sqrt[:, None] * d_inv_sqrt[None, :]


def hcl_reference(a_hat, x, params, d_k):
    # Pure-JAX reference mirroring the PyTorch HCLLayer forward, vmapped over
    # the batch of independent graphs.
    def single(a, xi):
        def gconv(h, w, b):
            return a @ (h @ w) + b

        Q = gconv(xi, params["wq"], params["bq"])
        K = gconv(xi, params["wk"], params["bk"])
        V = gconv(xi, params["wv"], params["bv"])
        scores = (Q @ K.T) / jnp.sqrt(jnp.float32(d_k))
        attn = jax.nn.softmax(scores, axis=-1)
        attn_out = gconv(attn @ V, params["wo"], params["bo"])

        def ln(h):
            mu = h.mean(-1, keepdims=True)
            var = ((h - mu) ** 2).mean(-1, keepdims=True)
            return (h - mu) / jnp.sqrt(var + 1e-5) * params["ln_g"] + params["ln_b"]

        ff_in = ln(attn_out) + xi
        h1 = jnp.maximum(gconv(ff_in, params["w1"], params["b1"]), 0.0)
        h2 = gconv(h1, params["w2"], params["b2"])
        return ln(h2), attn

    return jax.vmap(single)(a_hat, x)


if __name__ == "__main__":
    B = 32          # graphs batched through one pallas_call
    N = 8           # nodes per graph
    IN_FEATS = 32
    D_K = 16
    D_V = 16
    HIDDEN = 32
    GPB = 16        # graphs per grid step -> 128 stacked rows per MXU push

    root = jax.random.PRNGKey(0)
    k_x, k_a, k_p = jax.random.split(root, 3)

    x = jax.random.normal(k_x, (B, N, IN_FEATS), jnp.float32)
    a_hat = jax.vmap(lambda k: make_norm_adj(k, N))(jax.random.split(k_a, B))
    params = make_params(k_p, IN_FEATS, D_K, D_V, HIDDEN)
    param_slab, offsets = pack_params(params, IN_FEATS, D_K, D_V, HIDDEN)

    out, attn = hcl_layer_batched(a_hat, x, param_slab, offsets,
                                  d_k=D_K, d_v=D_V, hidden=HIDDEN,
                                  graphs_per_block=GPB)
    jax.block_until_ready((out, attn))

    ref_out, ref_attn = hcl_reference(a_hat, x, params, D_K)
    np.testing.assert_allclose(np.asarray(attn), np.asarray(ref_attn),
                               rtol=2e-3, atol=2e-3)
    np.testing.assert_allclose(np.asarray(out), np.asarray(ref_out),
                               rtol=2e-3, atol=2e-3)

    assert out.shape == (B, N, IN_FEATS) and attn.shape == (B, N, N)
    print("KERNEL_OK")
</pallas_src>

<mosaic_0001>
module attributes {stable_mosaic.version = 11 : i64} {
  func.func @hcl_kernel(%arg0: i32, %arg1: memref<16x8x128xf32, #tpu.memory_space<vmem>>, %arg2: memref<120x128xf32, #tpu.memory_space<vmem>>, %arg3: memref<16x8x128xf32, #tpu.memory_space<vmem>>) attributes {dimension_semantics = [#tpu.dimension_semantics<parallel>], iteration_bounds = array<i64: 2>, scalar_prefetch = 0 : i64, scratch_operands = 0 : i64, tpu.core_type = #tpu.core_type<tc>, window_params = [{transform_indices = @transform_0, window_bounds = array<i64: 16, 8, 128>}, {pipeline_mode = #tpu.pipeline_mode<synchronous>, transform_indices = @transform_1, window_bounds = array<i64: 120, 128>}, {transform_indices = @transform_2, window_bounds = array<i64: 16, 8, 128>}]} {
    %c0 = arith.constant 0 : index
    %c0_0 = arith.constant 0 : index
    %c0_1 = arith.constant 0 : index
    %0 = vector.load %arg1[%c0, %c0_0, %c0_1] : memref<16x8x128xf32, #tpu.memory_space<vmem>>, vector<16x8x128xf32>
    %1 = vector.extract_strided_slice %0 {offsets = [0, 0, 0], sizes = [16, 8, 8], strides = [1, 1, 1]} : vector<16x8x128xf32> to vector<16x8x8xf32>
    %2 = vector.extract_strided_slice %0 {offsets = [0, 0, 8], sizes = [16, 8, 32], strides = [1, 1, 1]} : vector<16x8x128xf32> to vector<16x8x32xf32>
    %3 = vector.shape_cast %2 : vector<16x8x32xf32> to vector<128x32xf32>
    %c6 = arith.constant 6 : index
    %c0_2 = arith.constant 0 : index
    %4 = vector.load %arg2[%c6, %c0_2] : memref<120x128xf32, #tpu.memory_space<vmem>>, vector<1x32xf32>
    %c7 = arith.constant 7 : index
    %c0_3 = arith.constant 0 : index
    %5 = vector.load %arg2[%c7, %c0_3] : memref<120x128xf32, #tpu.memory_space<vmem>>, vector<1x32xf32>
    "tpu.trace_start"() <{level = 10 : i32, message = "gij,gjf->gif"}> : () -> ()
    %cst = arith.constant dense<0.000000e+00> : vector<16x8x32xf32>
    %6 = tpu.matmul %1, %2, %cst {dimension_numbers = #tpu.dot_dimension_numbers<[2], [1], [1], [2], [0, 0, 0, 1, 1, 2], [0], [0]>} : vector<16x8x8xf32>, vector<16x8x32xf32>, vector<16x8x32xf32> -> vector<16x8x32xf32>
    "tpu.trace_stop"() : () -> ()
    %7 = vector.shape_cast %6 : vector<16x8x32xf32> to vector<128x32xf32>
    %c8 = arith.constant 8 : index
    %c0_4 = arith.constant 0 : index
    %8 = vector.load %arg2[%c8, %c0_4] : memref<120x128xf32, #tpu.memory_space<vmem>>, vector<32x48xf32>
    %cst_5 = arith.constant dense<0.000000e+00> : vector<128x48xf32>
    %9 = tpu.matmul %7, %8, %cst_5 {dimension_numbers = #tpu.dot_dimension_numbers<[1], [0], [0], [1], [0, 0, 1, 1], [], []>} : vector<128x32xf32>, vector<32x48xf32>, vector<128x48xf32> -> vector<128x48xf32>
    %c0_6 = arith.constant 0 : index
    %c0_7 = arith.constant 0 : index
    %10 = vector.load %arg2[%c0_6, %c0_7] : memref<120x128xf32, #tpu.memory_space<vmem>>, vector<1x48xf32>
    %11 = vector.broadcast %10 : vector<1x48xf32> to vector<128x48xf32>
    %12 = arith.addf %9, %11 : vector<128x48xf32>
    %13 = vector.shape_cast %12 : vector<128x48xf32> to vector<16x8x48xf32>
    %14 = vector.extract_strided_slice %13 {offsets = [0, 0, 0], sizes = [16, 8, 16], strides = [1, 1, 1]} : vector<16x8x48xf32> to vector<16x8x16xf32>
    %15 = vector.extract_strided_slice %13 {offsets = [0, 0, 16], sizes = [16, 8, 16], strides = [1, 1, 1]} : vector<16x8x48xf32> to vector<16x8x16xf32>
    %16 = vector.extract_strided_slice %13 {offsets = [0, 0, 32], sizes = [16, 8, 16], strides = [1, 1, 1]} : vector<16x8x48xf32> to vector<16x8x16xf32>
    "tpu.trace_start"() <{level = 10 : i32, message = "gqd,gkd->gqk"}> : () -> ()
    %cst_8 = arith.constant dense<0.000000e+00> : vector<16x8x8xf32>
    %17 = tpu.matmul %14, %15, %cst_8 {dimension_numbers = #tpu.dot_dimension_numbers<[2], [2], [1], [1], [0, 0, 0, 1, 1, 1], [0], [0]>} : vector<16x8x16xf32>, vector<16x8x16xf32>, vector<16x8x8xf32> -> vector<16x8x8xf32>
    "tpu.trace_stop"() : () -> ()
    %cst_9 = arith.constant dense<0xFF800000> : vector<16x8xf32>
    %18 = vector.multi_reduction <maximumf>, %17, %cst_9 [2] : vector<16x8x8xf32> to vector<16x8xf32>
    %19 = vector.shape_cast %18 : vector<16x8xf32> to vector<16x8x1xf32>
    %20 = vector.broadcast %19 : vector<16x8x1xf32> to vector<16x8x8xf32>
    %21 = arith.subf %17, %20 : vector<16x8x8xf32>
    %22 = math.exp %21 : vector<16x8x8xf32>
    %cst_10 = arith.constant dense<0.000000e+00> : vector<16x8xf32>
    %23 = vector.multi_reduction <add>, %22, %cst_10 [2] : vector<16x8x8xf32> to vector<16x8xf32>
    %24 = vector.shape_cast %23 : vector<16x8xf32> to vector<16x8x1xf32>
    %25 = tpu.reciprocal %24 {approx = true} : vector<16x8x1xf32> -> vector<16x8x1xf32>
    %26 = vector.broadcast %25 : vector<16x8x1xf32> to vector<16x8x8xf32>
    %27 = arith.mulf %22, %26 : vector<16x8x8xf32>
    "tpu.trace_start"() <{level = 10 : i32, message = "gqk,gkd->gqd"}> : () -> ()
    %cst_11 = arith.constant dense<0.000000e+00> : vector<16x8x16xf32>
    %28 = tpu.matmul %27, %16, %cst_11 {dimension_numbers = #tpu.dot_dimension_numbers<[2], [1], [1], [2], [0, 0, 0, 1, 1, 2], [0], [0]>} : vector<16x8x8xf32>, vector<16x8x16xf32>, vector<16x8x16xf32> -> vector<16x8x16xf32>
    "tpu.trace_stop"() : () -> ()
    "tpu.trace_start"() <{level = 10 : i32, message = "gij,gjd->gid"}> : () -> ()
    %cst_12 = arith.constant dense<0.000000e+00> : vector<16x8x16xf32>
    %29 = tpu.matmul %1, %28, %cst_12 {dimension_numbers = #tpu.dot_dimension_numbers<[2], [1], [1], [2], [0, 0, 0, 1, 1, 2], [0], [0]>} : vector<16x8x8xf32>, vector<16x8x16xf32>, vector<16x8x16xf32> -> vector<16x8x16xf32>
    "tpu.trace_stop"() : () -> ()
    %30 = vector.shape_cast %29 : vector<16x8x16xf32> to vector<128x16xf32>
    %c40 = arith.constant 40 : index
    %c0_13 = arith.constant 0 : index
    %31 = vector.load %arg2[%c40, %c0_13] : memref<120x128xf32, #tpu.memory_space<vmem>>, vector<16x32xf32>
    %cst_14 = arith.constant dense<0.000000e+00> : vector<128x32xf32>
    %32 = tpu.matmul %30, %31, %cst_14 {dimension_numbers = #tpu.dot_dimension_numbers<[1], [0], [0], [1], [0, 0, 1, 1], [], []>} : vector<128x16xf32>, vector<16x32xf32>, vector<128x32xf32> -> vector<128x32xf32>
    %c1 = arith.constant 1 : index
    %c0_15 = arith.constant 0 : index
    %33 = vector.load %arg2[%c1, %c0_15] : memref<120x128xf32, #tpu.memory_space<vmem>>, vector<1x32xf32>
    %34 = vector.broadcast %33 : vector<1x32xf32> to vector<128x32xf32>
    %35 = arith.addf %32, %34 : vector<128x32xf32>
    %cst_16 = arith.constant dense<0.000000e+00> : vector<128xf32>
    %36 = vector.multi_reduction <add>, %35, %cst_16 [1] : vector<128x32xf32> to vector<128xf32>
    %37 = vector.shape_cast %36 : vector<128xf32> to vector<128x1xf32>
    %cst_17 = arith.constant 3.200000e+01 : f32
    %38 = vector.broadcast %cst_17 : f32 to vector<128x1xf32>
    %39 = arith.divf %37, %38 : vector<128x1xf32>
    %40 = vector.broadcast %39 : vector<128x1xf32> to vector<128x32xf32>
    %41 = arith.subf %35, %40 : vector<128x32xf32>
    %42 = arith.mulf %41, %41 : vector<128x32xf32>
    %cst_18 = arith.constant dense<0.000000e+00> : vector<128xf32>
    %43 = vector.multi_reduction <add>, %42, %cst_18 [1] : vector<128x32xf32> to vector<128xf32>
    %44 = vector.shape_cast %43 : vector<128xf32> to vector<128x1xf32>
    %cst_19 = arith.constant 3.200000e+01 : f32
    %45 = vector.broadcast %cst_19 : f32 to vector<128x1xf32>
    %46 = arith.divf %44, %45 : vector<128x1xf32>
    %47 = vector.broadcast %39 : vector<128x1xf32> to vector<128x32xf32>
    %48 = arith.subf %35, %47 : vector<128x32xf32>
    %cst_20 = arith.constant 9.99999974E-6 : f32
    %49 = vector.broadcast %cst_20 : f32 to vector<128x1xf32>
    %50 = arith.addf %46, %49 : vector<128x1xf32>
    %51 = math.rsqrt %50 : vector<128x1xf32>
    %52 = vector.broadcast %51 : vector<128x1xf32> to vector<128x32xf32>
    %53 = arith.mulf %48, %52 : vector<128x32xf32>
    %54 = vector.broadcast %4 : vector<1x32xf32> to vector<128x32xf32>
    %55 = arith.mulf %53, %54 : vector<128x32xf32>
    %56 = vector.broadcast %5 : vector<1x32xf32> to vector<128x32xf32>
    %57 = arith.addf %55, %56 : vector<128x32xf32>
    %58 = arith.addf %57, %3 : vector<128x32xf32>
    %c56 = arith.constant 56 : index
    %c0_21 = arith.constant 0 : index
    %59 = vector.load %arg2[%c56, %c0_21] : memref<120x128xf32, #tpu.memory_space<vmem>>, vector<32x32xf32>
    %cst_22 = arith.constant dense<0.000000e+00> : vector<128x32xf32>
    %60 = tpu.matmul %58, %59, %cst_22 {dimension_numbers = #tpu.dot_dimension_numbers<[1], [0], [0], [1], [0, 0, 1, 1], [], []>} : vector<128x32xf32>, vector<32x32xf32>, vector<128x32xf32> -> vector<128x32xf32>
    %61 = vector.shape_cast %60 : vector<128x32xf32> to vector<16x8x32xf32>
    "tpu.trace_start"() <{level = 10 : i32, message = "gij,gjh->gih"}> : () -> ()
    %cst_23 = arith.constant dense<0.000000e+00> : vector<16x8x32xf32>
    %62 = tpu.matmul %1, %61, %cst_23 {dimension_numbers = #tpu.dot_dimension_numbers<[2], [1], [1], [2], [0, 0, 0, 1, 1, 2], [0], [0]>} : vector<16x8x8xf32>, vector<16x8x32xf32>, vector<16x8x32xf32> -> vector<16x8x32xf32>
    "tpu.trace_stop"() : () -> ()
    %c2 = arith.constant 2 : index
    %c0_24 = arith.constant 0 : index
    %63 = vector.load %arg2[%c2, %c0_24] : memref<120x128xf32, #tpu.memory_space<vmem>>, vector<1x32xf32>
    %64 = vector.shape_cast %63 : vector<1x32xf32> to vector<1x1x32xf32>
    %65 = vector.broadcast %64 : vector<1x1x32xf32> to vector<16x8x32xf32>
    %66 = arith.addf %62, %65 : vector<16x8x32xf32>
    %cst_25 = arith.constant 0.000000e+00 : f32
    %67 = vector.broadcast %cst_25 : f32 to vector<16x8x32xf32>
    %68 = arith.maximumf %66, %67 : vector<16x8x32xf32>
    %69 = vector.shape_cast %68 : vector<16x8x32xf32> to vector<128x32xf32>
    %c88 = arith.constant 88 : index
    %c0_26 = arith.constant 0 : index
    %70 = vector.load %arg2[%c88, %c0_26] : memref<120x128xf32, #tpu.memory_space<vmem>>, vector<32x32xf32>
    %cst_27 = arith.constant dense<0.000000e+00> : vector<128x32xf32>
    %71 = tpu.matmul %69, %70, %cst_27 {dimension_numbers = #tpu.dot_dimension_numbers<[1], [0], [0], [1], [0, 0, 1, 1], [], []>} : vector<128x32xf32>, vector<32x32xf32>, vector<128x32xf32> -> vector<128x32xf32>
    %72 = vector.shape_cast %71 : vector<128x32xf32> to vector<16x8x32xf32>
    "tpu.trace_start"() <{level = 10 : i32, message = "gij,gjf->gif"}> : () -> ()
    %cst_28 = arith.constant dense<0.000000e+00> : vector<16x8x32xf32>
    %73 = tpu.matmul %1, %72, %cst_28 {dimension_numbers = #tpu.dot_dimension_numbers<[2], [1], [1], [2], [0, 0, 0, 1, 1, 2], [0], [0]>} : vector<16x8x8xf32>, vector<16x8x32xf32>, vector<16x8x32xf32> -> vector<16x8x32xf32>
    "tpu.trace_stop"() : () -> ()
    %c3 = arith.constant 3 : index
    %c0_29 = arith.constant 0 : index
    %74 = vector.load %arg2[%c3, %c0_29] : memref<120x128xf32, #tpu.memory_space<vmem>>, vector<1x32xf32>
    %75 = vector.shape_cast %74 : vector<1x32xf32> to vector<1x1x32xf32>
    %76 = vector.broadcast %75 : vector<1x1x32xf32> to vector<16x8x32xf32>
    %77 = arith.addf %73, %76 : vector<16x8x32xf32>
    %78 = vector.shape_cast %77 : vector<16x8x32xf32> to vector<128x32xf32>
    %cst_30 = arith.constant dense<0.000000e+00> : vector<128xf32>
    %79 = vector.multi_reduction <add>, %78, %cst_30 [1] : vector<128x32xf32> to vector<128xf32>
    %80 = vector.shape_cast %79 : vector<128xf32> to vector<128x1xf32>
    %cst_31 = arith.constant 3.200000e+01 : f32
    %81 = vector.broadcast %cst_31 : f32 to vector<128x1xf32>
    %82 = arith.divf %80, %81 : vector<128x1xf32>
    %83 = vector.broadcast %82 : vector<128x1xf32> to vector<128x32xf32>
    %84 = arith.subf %78, %83 : vector<128x32xf32>
    %85 = arith.mulf %84, %84 : vector<128x32xf32>
    %cst_32 = arith.constant dense<0.000000e+00> : vector<128xf32>
    %86 = vector.multi_reduction <add>, %85, %cst_32 [1] : vector<128x32xf32> to vector<128xf32>
    %87 = vector.shape_cast %86 : vector<128xf32> to vector<128x1xf32>
    %cst_33 = arith.constant 3.200000e+01 : f32
    %88 = vector.broadcast %cst_33 : f32 to vector<128x1xf32>
    %89 = arith.divf %87, %88 : vector<128x1xf32>
    %90 = vector.broadcast %82 : vector<128x1xf32> to vector<128x32xf32>
    %91 = arith.subf %78, %90 : vector<128x32xf32>
    %cst_34 = arith.constant 9.99999974E-6 : f32
    %92 = vector.broadcast %cst_34 : f32 to vector<128x1xf32>
    %93 = arith.addf %89, %92 : vector<128x1xf32>
    %94 = math.rsqrt %93 : vector<128x1xf32>
    %95 = vector.broadcast %94 : vector<128x1xf32> to vector<128x32xf32>
    %96 = arith.mulf %91, %95 : vector<128x32xf32>
    %97 = vector.broadcast %4 : vector<1x32xf32> to vector<128x32xf32>
    %98 = arith.mulf %96, %97 : vector<128x32xf32>
    %99 = vector.broadcast %5 : vector<1x32xf32> to vector<128x32xf32>
    %100 = arith.addf %98, %99 : vector<128x32xf32>
    %101 = vector.shape_cast %100 : vector<128x32xf32> to vector<16x8x32xf32>
    %cst_35 = arith.constant 0.000000e+00 : f32
    %102 = vector.broadcast %cst_35 : f32 to vector<16x8x88xf32>
    %103 = tpu.concatenate %101, %27, %102 in 2 : vector<16x8x32xf32>, vector<16x8x8xf32>, vector<16x8x88xf32> -> vector<16x8x128xf32>
    %c0_36 = arith.constant 0 : index
    %c0_37 = arith.constant 0 : index
    %c0_38 = arith.constant 0 : index
    %104 = vector.load %arg3[%c0_36, %c0_37, %c0_38] : memref<16x8x128xf32, #tpu.memory_space<vmem>>, vector<16x8x128xf32>
    tpu.vector_store %arg3[%c0_36, %c0_37, %c0_38], %103 {strides = array<i32>} : memref<16x8x128xf32, #tpu.memory_space<vmem>>, vector<16x8x128xf32>,
    return
  }
  func.func @transform_0(%arg0: i32) -> (i32, i32, i32) {
    %c0_i32 = arith.constant 0 : i32
    %c0_i32_0 = arith.constant 0 : i32
    %c0_i32_1 = arith.constant 0 : i32
    return %arg0, %c0_i32, %c0_i32_0 : i32, i32, i32
  }
  func.func @transform_1(%arg0: i32) -> (i32, i32) {
    %c0_i32 = arith.constant 0 : i32
    %c0_i32_0 = arith.constant 0 : i32
    %c0_i32_1 = arith.constant 0 : i32
    return %c0_i32, %c0_i32_0 : i32, i32
  }
  func.func @transform_2(%arg0: i32) -> (i32, i32, i32) {
    %c0_i32 = arith.constant 0 : i32
    %c0_i32_0 = arith.constant 0 : i32
    %c0_i32_1 = arith.constant 0 : i32
    return %arg0, %c0_i32, %c0_i32_0 : i32, i32, i32
  }
}

</mosaic_0001>

<llo_original>
// kernel: tpu_custom_call.1
$region0: #{tpu_custom_call.1}
  #allocation0 [shape = 'u32[]', space=smem, size = 0x4, offset = 0x4, fixed_abs, tag = 'smem constant byte address 0x4 - core index']
  #allocation1 [shape = 'u32[144,128]{1,0:T(1,128)}', space=vmem, size = 0x12000, scoped, tag = 'internal scratch']
  %s0 = inlined_call_operand.hbm [shape: f32[32,8,128], index: 0, kind: input, shape index: {}]
  %s1 = inlined_call_operand.hbm [shape: f32[120,128], index: 1, kind: input, shape index: {}]
  %s2 = inlined_call_operand.hbm [shape: f32[32,8,128], index: 2, kind: output, shape index: {}]
  %s3 = sld [smem:[#allocation0]]
  $region49: #{tpu_custom_call.1} parent=0
    _
  %s5 = ssub.s32 1, %s3
  %s6 = scalar_select 0, %s5, %s3
  $region1: #{tpu_custom_call.1} parent=0
    #allocation2 [shape = 'u8[131072]{0}', space=vmem, size = 0x20000, scoped, tag = 'input window, operand 0']
    #allocation3 [shape = 's32[2]{0}', space=sflag, size = 0x8, scoped, tag = 'scoped memory for tpu_custom_call.1']
    #allocation4 [shape = 's32[2]{0}', space=sflag, size = 0x8, scoped, tag = 'scoped memory for tpu_custom_call.1']
    #allocation5 [shape = 'u8[61440]{0}', space=vmem, size = 0xf000, scoped, tag = 'input window, operand 1, single buffered']
    #allocation6 [shape = 's32[1]{0}', space=sflag, size = 0x4, scoped, tag = 'scoped memory for tpu_custom_call.1']
    #allocation7 [shape = 'u8[131072]{0}', space=vmem, size = 0x20000, scoped, tag = 'output window, operand 0']
    %7 = vsyncpa [#allocation3], 0
    %s8 = scalar_lea.sflag [#allocation3], 1
    %9 = vsyncpa %s8, 0
    %10 = vsyncpa [#allocation6], 0
    %11 = vsyncpa [#allocation4], 0
    %s12 = scalar_lea.sflag [#allocation4], 1
    %13 = vsyncpa %s12, 0
    loop: start=0, step=1, limit=4
    $region2: #{tpu_custom_call.1} parent=1 // loop_pre_header
      _
    $region3: #{tpu_custom_call.1} parent=1 // loop_header
      %s15 = sphi 0, %s19
      %p16 = scmp.ge.s32.totalorder %s15, 4
      %s25 = sphi 0, %s27
      %s28 = sphi 0, %s25
      %s29 = sphi 0, %s28
      %s45 = sphi 0, %s29
      %s49 = sphi 0, %s49
      %s51 = sphi 0, %s49
      %s52 = sphi 0, %s51
      %s66 = sphi 0, %s52
      %s72 = sphi 0, %s74
      %s75 = sphi 0, %s72
      %s76 = sphi 0, %s75
      %s92 = sphi 0, %s76
    $region4: #{tpu_custom_call.1} parent=1 // loop_header_branch
      %18 = sbr.rel (%p16) target = $region8
    $region5: #{tpu_custom_call.1} parent=1 // loop_body
      %s20 = ssub.s32 %s15, 1
      %s21 = ssub.s32 %s15, 2
      %s22 = sadd.s32 %s15, 1
      %s23 = ssub.s32 %s15, %s22
      %p24 = scmp.eq.s32.totalorder %s23, 0
      %s26 = sadd.s32 %s25, 1
      %s27 = scalar_select %p24, %s25, %s26
      %p30 = pneg %p24
      %p31 = scmp.eq.s32.totalorder %s15, 1
      %p32 = por %p30, %p31
      %p33 = scmp.ne.s32.totalorder %s25, %s28
      %p34 = scmp.eq.s32.totalorder %s15, 0
      %p35 = por %p33, %p34
      %p36 = scmp.ne.s32.totalorder %s25, %s28
      %p37 = scmp.eq.s32.totalorder %s20, 1
      %p38 = por %p36, %p37
      %p39 = scmp.ne.s32.totalorder %s28, %s29
      %p40 = scmp.eq.s32.totalorder %s20, 0
      %p41 = por %p39, %p40
      %p42 = scmp.ne.s32.totalorder %s28, %s29
      %p43 = scmp.eq.s32.totalorder %s21, 1
      %p44 = por %p42, %p43
      %p46 = scmp.ne.s32.totalorder %s29, %s45
      %p47 = scmp.eq.s32.totalorder %s21, 0
      %p48 = por %p46, %p47
      %s50 = sadd.s32 %s49, 1
      %p53 = scmp.eq.s32.totalorder %s15, 1
      %p54 = scmp.ne.s32.totalorder %s49, %s51
      %p55 = scmp.eq.s32.totalorder %s15, 0
      %p56 = por %p54, %p55
      %p57 = scmp.ne.s32.totalorder %s49, %s51
      %p58 = scmp.eq.s32.totalorder %s20, 1
      %p59 = por %p57, %p58
      %p60 = scmp.ne.s32.totalorder %s51, %s52
      %p61 = scmp.eq.s32.totalorder %s20, 0
      %p62 = por %p60, %p61
      %p63 = scmp.ne.s32.totalorder %s51, %s52
      %p64 = scmp.eq.s32.totalorder %s21, 1
      %p65 = por %p63, %p64
      %p67 = scmp.ne.s32.totalorder %s52, %s66
      %p68 = scmp.eq.s32.totalorder %s21, 0
      %p69 = por %p67, %p68
      %s70 = ssub.s32 %s15, %s22
      %p71 = scmp.eq.s32.totalorder %s70, 0
      %s73 = sadd.s32 %s72, 1
      %s74 = scalar_select %p71, %s72, %s73
      %p77 = pneg %p71
      %p78 = scmp.eq.s32.totalorder %s15, 1
      %p79 = por %p77, %p78
      %p80 = scmp.ne.s32.totalorder %s72, %s75
      %p81 = scmp.eq.s32.totalorder %s15, 0
      %p82 = por %p80, %p81
      %p83 = scmp.ne.s32.totalorder %s72, %s75
      %p84 = scmp.eq.s32.totalorder %s20, 1
      %p85 = por %p83, %p84
      %p86 = scmp.ne.s32.totalorder %s75, %s76
      %p87 = scmp.eq.s32.totalorder %s20, 0
      %p88 = por %p86, %p87
      %p89 = scmp.ne.s32.totalorder %s75, %s76
      %p90 = scmp.eq.s32.totalorder %s21, 1
      %p91 = por %p89, %p90
      %p93 = scmp.ne.s32.totalorder %s76, %s92
      %p94 = scmp.eq.s32.totalorder %s21, 0
      %p95 = por %p93, %p94
      %p96 = scmp.le.s32.totalorder 1, %s15
      %p97 = scmp.lt.s32.totalorder %s15, 3
      %p98 = pnand %p96, %p97
      %p99 = pneg %p98
      // Predicated region
      $region9: #{tpu_custom_call.1} parent=5 // pred_check
        _
      $region10: #{tpu_custom_call.1} parent=5 // pred_check_branch
        %101 = sbr.rel (%p98) target = $region12
      $region11: #{tpu_custom_call.1} parent=5 // pred_region
        %s102 = ssub.s32 %s15, 1
        // Predicated region
        $region13: #{tpu_custom_call.1} parent=11 // pred_check
          %p103 = pneg %p62
        $region14: #{tpu_custom_call.1} parent=11 // pred_check_branch
          %105 = sbr.rel (%p103) target = $region16
        $region15: #{tpu_custom_call.1} parent=11 // pred_region
          %s107 = ssub.s32 1920, 1920
          %108 = vsyncadd [#allocation6], %s107
          %s109 = sshll.u32 [#allocation5], 4
          %s110 = int_to_ptr.vmem [resolvable:$true] %s109
          %115 = dma.hbm_to_vmem [thread:$0]  %s1, 1920, %s110, [#allocation6], 128, 128, 8
        $region16: #{tpu_custom_call.1} parent=11 // pred_fallthru
          _
      $region12: #{tpu_custom_call.1} parent=5 // pred_fallthru
        _
      %p116 = scmp.lt.s32.totalorder %s15, 2
      // Predicated region
      $region17: #{tpu_custom_call.1} parent=5 // pred_check
        %p117 = pneg %p116
      $region18: #{tpu_custom_call.1} parent=5 // pred_check_branch
        %119 = sbr.rel (%p117) target = $region20
      $region19: #{tpu_custom_call.1} parent=5 // pred_region
        // Predicated region
        $region21: #{tpu_custom_call.1} parent=19 // pred_check
          %p120 = pneg %p35
        $region22: #{tpu_custom_call.1} parent=19 // pred_check_branch
          %122 = sbr.rel (%p120) target = $region24
        $region23: #{tpu_custom_call.1} parent=19 // pred_region
          %s123 = sand.u32 %s25, 1
          %s124 = scalar_lea.sflag [#allocation3], %s123
          %s125 = sand.u32 %s25, 1
          %s126 = smul.addr %s125, 128
          %s127 = scalar_lea.vmem [#allocation2], %s126
          %s128 = smul.u32 16, %s15
          %s130 = ssub.s32 2048, 2048
          %131 = vsyncadd %s124, %s130
          %s132 = smul.addr %s128, 128
          %s133 = scalar_lea.hbm %s0, %s132
          %s134 = sshll.u32 %s127, 4
          %s135 = int_to_ptr.vmem [resolvable:$true] %s134
          %140 = dma.hbm_to_vmem [thread:$0]  %s133, 2048, %s135, %s124, 128, 128, 8
        $region24: #{tpu_custom_call.1} parent=19 // pred_fallthru
          _
      $region20: #{tpu_custom_call.1} parent=5 // pred_fallthru
        _
      %p141 = scmp.le.s32.totalorder 1, %s15
      %p142 = scmp.lt.s32.totalorder %s15, 3
      %p143 = pnand %p141, %p142
      %p144 = pneg %p143
      // Predicated region
      $region25: #{tpu_custom_call.1} parent=5 // pred_check
        _
      $region26: #{tpu_custom_call.1} parent=5 // pred_check_branch
        %146 = sbr.rel (%p143) target = $region28
      $region27: #{tpu_custom_call.1} parent=5 // pred_region
        %s147 = ssub.s32 %s15, 1
        %s148 = sand.u32 %s28, 1
        %s149 = scalar_lea.sflag [#allocation3], %s148
        %s150 = sand.u32 %s28, 1
        %s151 = smul.addr %s150, 128
        %s152 = scalar_lea.vmem [#allocation2], %s151
        // Predicated region
        $region29: #{tpu_custom_call.1} parent=27 // pred_check
          %p153 = pneg %p41
        $region30: #{tpu_custom_call.1} parent=27 // pred_check_branch
          %155 = sbr.rel (%p153) target = $region32
        $region31: #{tpu_custom_call.1} parent=27 // pred_region
          %156 = dma.done %s149, 2048
        $region32: #{tpu_custom_call.1} parent=27 // pred_fallthru
          _
        // Predicated region
        $region33: #{tpu_custom_call.1} parent=27 // pred_check
          %p157 = pneg %p62
        $region34: #{tpu_custom_call.1} parent=27 // pred_check_branch
          %159 = sbr.rel (%p157) target = $region36
        $region35: #{tpu_custom_call.1} parent=27 // pred_region
          %160 = dma.done [#allocation6], 1920
        $region36: #{tpu_custom_call.1} parent=27 // pred_fallthru
          _
        %s161 = sand.u32 %s28, 1
        %s162 = scalar_lea.sflag [#allocation3], %s161
        %s163 = sand.u32 %s28, 1
        %s164 = smul.addr %s163, 128
        %s165 = scalar_lea.vmem [#allocation2], %s164
        %p166 = pneg %p41
        %p167 = pneg %p38
        %p168 = pneg %p62
        %p169 = pneg %p59
        %p170 = pneg %p88
        %p171 = pneg %p85
        %s172 = sand.u32 %s75, 1
        %s173 = scalar_lea.sflag [#allocation4], %s172
        %s174 = sand.u32 %s75, 1
        %s175 = smul.addr %s174, 128
        %s176 = scalar_lea.vmem [#allocation7], %s175
        %s177 = smul.u32 16, %s20
        %s178 = smul.u32 16, %s20
        %v179 = vld [vmem:[%s152] sm:$0xff]
        %v180 = vld [vmem:[%s152 + $0x8] sm:$0xff]
        %v181 = vld [vmem:[%s152 + $0x10] sm:$0xff]
        %v182 = vld [vmem:[%s152 + $0x18] sm:$0xff]
        %v183 = vld [vmem:[%s152 + $0x20] sm:$0xff]
        %v184 = vld [vmem:[%s152 + $0x28] sm:$0xff]
        %v185 = vld [vmem:[%s152 + $0x30] sm:$0xff]
        %v186 = vld [vmem:[%s152 + $0x38] sm:$0xff]
        %v187 = vld [vmem:[%s152 + $0x40] sm:$0xff]
        %v188 = vld [vmem:[%s152 + $0x48] sm:$0xff]
        %v189 = vld [vmem:[%s152 + $0x50] sm:$0xff]
        %v190 = vld [vmem:[%s152 + $0x58] sm:$0xff]
        %v191 = vld [vmem:[%s152 + $0x60] sm:$0xff]
        %v192 = vld [vmem:[%s152 + $0x68] sm:$0xff]
        %v193 = vld [vmem:[%s152 + $0x70] sm:$0xff]
        %v194 = vld [vmem:[%s152 + $0x78] sm:$0xff]
        %v195 = vld [vmem:[#allocation5 + $0x6] sm:$0x1]
        %v196 = vld [vmem:[#allocation5 + $0x7] sm:$0x1]
        %198 = vrot.lane.b32.xlu0 %v179, 120
        %v199 = vpop.permute.xlu0 %198
        %vm201 = vcmask 64512
        %v202 = vsel %vm201, %v179, 0
        %204 = vmatprep.subr.mxu0 0.0
        %205 = vmatpush1.msra.mxu0 0.0
        %206 = vmatprep.subr.mxu0 0.0
        %207 = vmatpush1.msra.mxu0 0.0
        %208 = vmatprep.subr.mxu0 0.0
        %209 = vmatpush1.msra.mxu0 0.0
        %210 = vmatprep.subr.mxu0 0.0
        %211 = vmatpush1.msra.mxu0 0.0
        %212 = vmatprep.subr.mxu0 0.0
        %213 = vmatpush1.msra.mxu0 0.0
        %214 = vmatprep.subr.mxu0 0.0
        %215 = vmatpush1.msra.mxu0 0.0
        %216 = vmatprep.subr.mxu0 0.0
        %217 = vmatpush1.msra.mxu0 0.0
        %218 = vmatprep.subr.mxu0 0.0
        %219 = vmatpush1.msra.mxu0 0.0
        %220 = vmatprep.subr.mxu0 0.0
        %221 = vmatpush1.msra.mxu0 0.0
        %222 = vmatprep.subr.mxu0 0.0
        %223 = vmatpush1.msra.mxu0 0.0
        %224 = vmatprep.subr.mxu0 0.0
        %225 = vmatpush1.msra.mxu0 0.0
        %226 = vmatprep.subr.mxu0 0.0
        %227 = vmatpush1.msra.mxu0 0.0
        %228 = vmatprep.subr.mxu0 0.0
        %229 = vmatpush1.msra.mxu0 0.0
        %230 = vmatprep.subr.mxu0 0.0
        %231 = vmatpush1.msra.mxu0 0.0
        %232 = vmatprep.subr.mxu0 0.0
        %233 = vmatpush1.msra.mxu0 0.0
        %234 = vmatprep.subr.mxu0 0.0
        %235 = vmatpush1.msra.mxu0 %v199
        %236 = vmatprep.subr.mxu0 0.0
        %237 = vmatpush2.msra.mxu0 0.0
        %238 = vmatprep.subr.mxu0 0.0
        %239 = vmatpush2.msra.mxu0 0.0
        %240 = vmatprep.subr.mxu0 0.0
        %241 = vmatpush2.msra.mxu0 0.0
        %242 = vmatprep.subr.mxu0 0.0
        %243 = vmatpush2.msra.mxu0 0.0
        %244 = vmatprep.subr.mxu0 0.0
        %245 = vmatpush2.msra.mxu0 0.0
        %246 = vmatprep.subr.mxu0 0.0
        %247 = vmatpush2.msra.mxu0 0.0
        %248 = vmatprep.subr.mxu0 0.0
        %249 = vmatpush2.msra.mxu0 0.0
        %250 = vmatprep.subr.mxu0 0.0
        %251 = vmatpush2.msra.mxu0 0.0
        %252 = vmatprep.subr.mxu0 0.0
        %253 = vmatpush2.msra.mxu0 0.0
        %254 = vmatprep.subr.mxu0 0.0
        %255 = vmatpush2.msra.mxu0 0.0
        %256 = vmatprep.subr.mxu0 0.0
        %257 = vmatpush2.msra.mxu0 0.0
        %258 = vmatprep.subr.mxu0 0.0
        %259 = vmatpush2.msra.mxu0 0.0
        %260 = vmatprep.subr.mxu0 0.0
        %261 = vmatpush2.msra.mxu0 0.0
        %262 = vmatprep.subr.mxu0 0.0
        %263 = vmatpush2.msra.mxu0 0.0
        %264 = vmatprep.subr.mxu0 0.0
        %265 = vmatpush2.msra.mxu0 0.0
        %266 = vmatprep.subr.mxu0 0.0
        %267 = vmatpush2.msra.mxu0 0.0
        %268 = vmatprep.mubr.f32.mxu0 0.0
        %269 = vmatmul.mubr.f32.gmra.mxu0 %v202
        %v270 = vpop.f32.mrf.mxu0
        %v271 = vadd.f32 0.0, %v270
        %v272 = vpop.f32.mrf.mxu0
        %273 = vdwg.mxu0
        %275 = vrot.lane.b32.xlu0 %v180, 120
        %v276 = vpop.permute.xlu0 %275
        %v278 = vsel %vm201, %v180, 0
        %280 = vmatprep.subr.mxu0 0.0
        %281 = vmatpush1.msra.mxu0 0.0
        %282 = vmatprep.subr.mxu0 0.0
        %283 = vmatpush1.msra.mxu0 0.0
        %284 = vmatprep.subr.mxu0 0.0
        %285 = vmatpush1.msra.mxu0 0.0
        %286 = vmatprep.subr.mxu0 0.0
        %287 = vmatpush1.msra.mxu0 0.0
        %288 = vmatprep.subr.mxu0 0.0
        %289 = vmatpush1.msra.mxu0 0.0
        %290 = vmatprep.subr.mxu0 0.0
        %291 = vmatpush1.msra.mxu0 0.0
        %292 = vmatprep.subr.mxu0 0.0
        %293 = vmatpush1.msra.mxu0 0.0
        %294 = vmatprep.subr.mxu0 0.0
        %295 = vmatpush1.msra.mxu0 0.0
        %296 = vmatprep.subr.mxu0 0.0
        %297 = vmatpush1.msra.mxu0 0.0
        %298 = vmatprep.subr.mxu0 0.0
        %299 = vmatpush1.msra.mxu0 0.0
        %300 = vmatprep.subr.mxu0 0.0
        %301 = vmatpush1.msra.mxu0 0.0
        %302 = vmatprep.subr.mxu0 0.0
        %303 = vmatpush1.msra.mxu0 0.0
        %304 = vmatprep.subr.mxu0 0.0
        %305 = vmatpush1.msra.mxu0 0.0
        %306 = vmatprep.subr.mxu0 0.0
        %307 = vmatpush1.msra.mxu0 0.0
        %308 = vmatprep.subr.mxu0 0.0
        %309 = vmatpush1.msra.mxu0 0.0
        %310 = vmatprep.subr.mxu0 0.0
        %311 = vmatpush1.msra.mxu0 %v276
        %312 = vmatprep.subr.mxu0 0.0
        %313 = vmatpush2.msra.mxu0 0.0
        %314 = vmatprep.subr.mxu0 0.0
        %315 = vmatpush2.msra.mxu0 0.0
        %316 = vmatprep.subr.mxu0 0.0
        %317 = vmatpush2.msra.mxu0 0.0
        %318 = vmatprep.subr.mxu0 0.0
        %319 = vmatpush2.msra.mxu0 0.0
        %320 = vmatprep.subr.mxu0 0.0
        %321 = vmatpush2.msra.mxu0 0.0
        %322 = vmatprep.subr.mxu0 0.0
        %323 = vmatpush2.msra.mxu0 0.0
        %324 = vmatprep.subr.mxu0 0.0
        %325 = vmatpush2.msra.mxu0 0.0
        %326 = vmatprep.subr.mxu0 0.0
        %327 = vmatpush2.msra.mxu0 0.0
        %328 = vmatprep.subr.mxu0 0.0
        %329 = vmatpush2.msra.mxu0 0.0
        %330 = vmatprep.subr.mxu0 0.0
        %331 = vmatpush2.msra.mxu0 0.0
        %332 = vmatprep.subr.mxu0 0.0
        %333 = vmatpush2.msra.mxu0 0.0
        %334 = vmatprep.subr.mxu0 0.0
        %335 = vmatpush2.msra.mxu0 0.0
        %336 = vmatprep.subr.mxu0 0.0
        %337 = vmatpush2.msra.mxu0 0.0
        %338 = vmatprep.subr.mxu0 0.0
        %339 = vmatpush2.msra.mxu0 0.0
        %340 = vmatprep.subr.mxu0 0.0
        %341 = vmatpush2.msra.mxu0 0.0
        %342 = vmatprep.subr.mxu0 0.0
        %343 = vmatpush2.msra.mxu0 0.0
        %344 = vmatprep.mubr.f32.mxu0 0.0
        %345 = vmatmul.mubr.f32.gmra.mxu0 %v278
        %v346 = vpop.f32.mrf.mxu0
        %v347 = vadd.f32 0.0, %v346
        %v348 = vpop.f32.mrf.mxu0
        %349 = vdwg.mxu0
        %351 = vrot.lane.b32.xlu0 %v181, 120
        %v352 = vpop.permute.xlu0 %351
        %v354 = vsel %vm201, %v181, 0
        %356 = vmatprep.subr.mxu0 0.0
        %357 = vmatpush1.msra.mxu0 0.0
        %358 = vmatprep.subr.mxu0 0.0
        %359 = vmatpush1.msra.mxu0 0.0
        %360 = vmatprep.subr.mxu0 0.0
        %361 = vmatpush1.msra.mxu0 0.0
        %362 = vmatprep.subr.mxu0 0.0
        %363 = vmatpush1.msra.mxu0 0.0
        %364 = vmatprep.subr.mxu0 0.0
        %365 = vmatpush1.msra.mxu0 0.0
        %366 = vmatprep.subr.mxu0 0.0
        %367 = vmatpush1.msra.mxu0 0.0
        %368 = vmatprep.subr.mxu0 0.0
        %369 = vmatpush1.msra.mxu0 0.0
        %370 = vmatprep.subr.mxu0 0.0
        %371 = vmatpush1.msra.mxu0 0.0
        %372 = vmatprep.subr.mxu0 0.0
        %373 = vmatpush1.msra.mxu0 0.0
        %374 = vmatprep.subr.mxu0 0.0
        %375 = vmatpush1.msra.mxu0 0.0
        %376 = vmatprep.subr.mxu0 0.0
        %377 = vmatpush1.msra.mxu0 0.0
        %378 = vmatprep.subr.mxu0 0.0
        %379 = vmatpush1.msra.mxu0 0.0
        %380 = vmatprep.subr.mxu0 0.0
        %381 = vmatpush1.msra.mxu0 0.0
        %382 = vmatprep.subr.mxu0 0.0
        %383 = vmatpush1.msra.mxu0 0.0
        %384 = vmatprep.subr.mxu0 0.0
        %385 = vmatpush1.msra.mxu0 0.0
        %386 = vmatprep.subr.mxu0 0.0
        %387 = vmatpush1.msra.mxu0 %v352
        %388 = vmatprep.subr.mxu0 0.0
        %389 = vmatpush2.msra.mxu0 0.0
        %390 = vmatprep.subr.mxu0 0.0
        %391 = vmatpush2.msra.mxu0 0.0
        %392 = vmatprep.subr.mxu0 0.0
        %393 = vmatpush2.msra.mxu0 0.0
        %394 = vmatprep.subr.mxu0 0.0
        %395 = vmatpush2.msra.mxu0 0.0
        %396 = vmatprep.subr.mxu0 0.0
        %397 = vmatpush2.msra.mxu0 0.0
        %398 = vmatprep.subr.mxu0 0.0
        %399 = vmatpush2.msra.mxu0 0.0
        %400 = vmatprep.subr.mxu0 0.0
        %401 = vmatpush2.msra.mxu0 0.0
        %402 = vmatprep.subr.mxu0 0.0
        %403 = vmatpush2.msra.mxu0 0.0
        %404 = vmatprep.subr.mxu0 0.0
        %405 = vmatpush2.msra.mxu0 0.0
        %406 = vmatprep.subr.mxu0 0.0
        %407 = vmatpush2.msra.mxu0 0.0
        %408 = vmatprep.subr.mxu0 0.0
        %409 = vmatpush2.msra.mxu0 0.0
        %410 = vmatprep.subr.mxu0 0.0
        %411 = vmatpush2.msra.mxu0 0.0
        %412 = vmatprep.subr.mxu0 0.0
        %413 = vmatpush2.msra.mxu0 0.0
        %414 = vmatprep.subr.mxu0 0.0
        %415 = vmatpush2.msra.mxu0 0.0
        %416 = vmatprep.subr.mxu0 0.0
        %417 = vmatpush2.msra.mxu0 0.0
        %418 = vmatprep.subr.mxu0 0.0
        %419 = vmatpush2.msra.mxu0 0.0
        %420 = vmatprep.mubr.f32.mxu0 0.0
        %421 = vmatmul.mubr.f32.gmra.mxu0 %v354
        %v422 = vpop.f32.mrf.mxu0
        %v423 = vadd.f32 0.0, %v422
        %v424 = vpop.f32.mrf.mxu0
        %425 = vdwg.mxu0
        %427 = vrot.lane.b32.xlu0 %v182, 120
        %v428 = vpop.permute.xlu0 %427
        %v430 = vsel %vm201, %v182, 0
        %432 = vmatprep.subr.mxu0 0.0
        %433 = vmatpush1.msra.mxu0 0.0
        %434 = vmatprep.subr.mxu0 0.0
        %435 = vmatpush1.msra.mxu0 0.0
        %436 = vmatprep.subr.mxu0 0.0
        %437 = vmatpush1.msra.mxu0 0.0
        %438 = vmatprep.subr.mxu0 0.0
        %439 = vmatpush1.msra.mxu0 0.0
        %440 = vmatprep.subr.mxu0 0.0
        %441 = vmatpush1.msra.mxu0 0.0
        %442 = vmatprep.subr.mxu0 0.0
        %443 = vmatpush1.msra.mxu0 0.0
        %444 = vmatprep.subr.mxu0 0.0
        %445 = vmatpush1.msra.mxu0 0.0
        %446 = vmatprep.subr.mxu0 0.0
        %447 = vmatpush1.msra.mxu0 0.0
        %448 = vmatprep.subr.mxu0 0.0
        %449 = vmatpush1.msra.mxu0 0.0
        %450 = vmatprep.subr.mxu0 0.0
        %451 = vmatpush1.msra.mxu0 0.0
        %452 = vmatprep.subr.mxu0 0.0
        %453 = vmatpush1.msra.mxu0 0.0
        %454 = vmatprep.subr.mxu0 0.0
        %455 = vmatpush1.msra.mxu0 0.0
        %456 = vmatprep.subr.mxu0 0.0
        %457 = vmatpush1.msra.mxu0 0.0
        %458 = vmatprep.subr.mxu0 0.0
        %459 = vmatpush1.msra.mxu0 0.0
        %460 = vmatprep.subr.mxu0 0.0
        %461 = vmatpush1.msra.mxu0 0.0
        %462 = vmatprep.subr.mxu0 0.0
        %463 = vmatpush1.msra.mxu0 %v428
        %464 = vmatprep.subr.mxu0 0.0
        %465 = vmatpush2.msra.mxu0 0.0
        %466 = vmatprep.subr.mxu0 0.0
        %467 = vmatpush2.msra.mxu0 0.0
        %468 = vmatprep.subr.mxu0 0.0
        %469 = vmatpush2.msra.mxu0 0.0
        %470 = vmatprep.subr.mxu0 0.0
        %471 = vmatpush2.msra.mxu0 0.0
        %472 = vmatprep.subr.mxu0 0.0
        %473 = vmatpush2.msra.mxu0 0.0
        %474 = vmatprep.subr.mxu0 0.0
        %475 = vmatpush2.msra.mxu0 0.0
        %476 = vmatprep.subr.mxu0 0.0
        %477 = vmatpush2.msra.mxu0 0.0
        %478 = vmatprep.subr.mxu0 0.0
        %479 = vmatpush2.msra.mxu0 0.0
        %480 = vmatprep.subr.mxu0 0.0
        %481 = vmatpush2.msra.mxu0 0.0
        %482 = vmatprep.subr.mxu0 0.0
        %483 = vmatpush2.msra.mxu0 0.0
        %484 = vmatprep.subr.mxu0 0.0
        %485 = vmatpush2.msra.mxu0 0.0
        %486 = vmatprep.subr.mxu0 0.0
        %487 = vmatpush2.msra.mxu0 0.0
        %488 = vmatprep.subr.mxu0 0.0
        %489 = vmatpush2.msra.mxu0 0.0
        %490 = vmatprep.subr.mxu0 0.0
        %491 = vmatpush2.msra.mxu0 0.0
        %492 = vmatprep.subr.mxu0 0.0
        %493 = vmatpush2.msra.mxu0 0.0
        %494 = vmatprep.subr.mxu0 0.0
        %495 = vmatpush2.msra.mxu0 0.0
        %496 = vmatprep.mubr.f32.mxu0 0.0
        %497 = vmatmul.mubr.f32.gmra.mxu0 %v430
        %v498 = vpop.f32.mrf.mxu0
        %v499 = vadd.f32 0.0, %v498
        %v500 = vpop.f32.mrf.mxu0
        %501 = vdwg.mxu0
        %503 = vrot.lane.b32.xlu0 %v183, 120
        %v504 = vpop.permute.xlu0 %503
        %v506 = vsel %vm201, %v183, 0
        %508 = vmatprep.subr.mxu0 0.0
        %509 = vmatpush1.msra.mxu0 0.0
        %510 = vmatprep.subr.mxu0 0.0
        %511 = vmatpush1.msra.mxu0 0.0
        %512 = vmatprep.subr.mxu0 0.0
        %513 = vmatpush1.msra.mxu0 0.0
        %514 = vmatprep.subr.mxu0 0.0
        %515 = vmatpush1.msra.mxu0 0.0
        %516 = vmatprep.subr.mxu0 0.0
        %517 = vmatpush1.msra.mxu0 0.0
        %518 = vmatprep.subr.mxu0 0.0
        %519 = vmatpush1.msra.mxu0 0.0
        %520 = vmatprep.subr.mxu0 0.0
        %521 = vmatpush1.msra.mxu0 0.0
        %522 = vmatprep.subr.mxu0 0.0
        %523 = vmatpush1.msra.mxu0 0.0
        %524 = vmatprep.subr.mxu0 0.0
        %525 = vmatpush1.msra.mxu0 0.0
        %526 = vmatprep.subr.mxu0 0.0
        %527 = vmatpush1.msra.mxu0 0.0
        %528 = vmatprep.subr.mxu0 0.0
        %529 = vmatpush1.msra.mxu0 0.0
        %530 = vmatprep.subr.mxu0 0.0
        %531 = vmatpush1.msra.mxu0 0.0
        %532 = vmatprep.subr.mxu0 0.0
        %533 = vmatpush1.msra.mxu0 0.0
        %534 = vmatprep.subr.mxu0 0.0
        %535 = vmatpush1.msra.mxu0 0.0
        %536 = vmatprep.subr.mxu0 0.0
        %537 = vmatpush1.msra.mxu0 0.0
        %538 = vmatprep.subr.mxu0 0.0
        %539 = vmatpush1.msra.mxu0 %v504
        %540 = vmatprep.subr.mxu0 0.0
        %541 = vmatpush2.msra.mxu0 0.0
        %542 = vmatprep.subr.mxu0 0.0
        %543 = vmatpush2.msra.mxu0 0.0
        %544 = vmatprep.subr.mxu0 0.0
        %545 = vmatpush2.msra.mxu0 0.0
        %546 = vmatprep.subr.mxu0 0.0
        %547 = vmatpush2.msra.mxu0 0.0
        %548 = vmatprep.subr.mxu0 0.0
        %549 = vmatpush2.msra.mxu0 0.0
        %550 = vmatprep.subr.mxu0 0.0
        %551 = vmatpush2.msra.mxu0 0.0
        %552 = vmatprep.subr.mxu0 0.0
        %553 = vmatpush2.msra.mxu0 0.0
        %554 = vmatprep.subr.mxu0 0.0
        %555 = vmatpush2.msra.mxu0 0.0
        %556 = vmatprep.subr.mxu0 0.0
        %557 = vmatpush2.msra.mxu0 0.0
        %558 = vmatprep.subr.mxu0 0.0
        %559 = vmatpush2.msra.mxu0 0.0
        %560 = vmatprep.subr.mxu0 0.0
        %561 = vmatpush2.msra.mxu0 0.0
        %562 = vmatprep.subr.mxu0 0.0
        %563 = vmatpush2.msra.mxu0 0.0
        %564 = vmatprep.subr.mxu0 0.0
        %565 = vmatpush2.msra.mxu0 0.0
        %566 = vmatprep.subr.mxu0 0.0
        %567 = vmatpush2.msra.mxu0 0.0
        %568 = vmatprep.subr.mxu0 0.0
        %569 = vmatpush2.msra.mxu0 0.0
        %570 = vmatprep.subr.mxu0 0.0
        %571 = vmatpush2.msra.mxu0 0.0
        %572 = vmatprep.mubr.f32.mxu0 0.0
        %573 = vmatmul.mubr.f32.gmra.mxu0 %v506
        %v574 = vpop.f32.mrf.mxu0
        %v575 = vadd.f32 0.0, %v574
        %v576 = vpop.f32.mrf.mxu0
        %577 = vdwg.mxu0
        %579 = vrot.lane.b32.xlu0 %v184, 120
        %v580 = vpop.permute.xlu0 %579
        %v582 = vsel %vm201, %v184, 0
        %584 = vmatprep.subr.mxu0 0.0
        %585 = vmatpush1.msra.mxu0 0.0
        %586 = vmatprep.subr.mxu0 0.0
        %587 = vmatpush1.msra.mxu0 0.0
        %588 = vmatprep.subr.mxu0 0.0
        %589 = vmatpush1.msra.mxu0 0.0
        %590 = vmatprep.subr.mxu0 0.0
        %591 = vmatpush1.msra.mxu0 0.0
        %592 = vmatprep.subr.mxu0 0.0
        %593 = vmatpush1.msra.mxu0 0.0
        %594 = vmatprep.subr.mxu0 0.0
        %595 = vmatpush1.msra.mxu0 0.0
        %596 = vmatprep.subr.mxu0 0.0
        %597 = vmatpush1.msra.mxu0 0.0
        %598 = vmatprep.subr.mxu0 0.0
        %599 = vmatpush1.msra.mxu0 0.0
        %600 = vmatprep.subr.mxu0 0.0
        %601 = vmatpush1.msra.mxu0 0.0
        %602 = vmatprep.subr.mxu0 0.0
        %603 = vmatpush1.msra.mxu0 0.0
        %604 = vmatprep.subr.mxu0 0.0
        %605 = vmatpush1.msra.mxu0 0.0
        %606 = vmatprep.subr.mxu0 0.0
        %607 = vmatpush1.msra.mxu0 0.0
        %608 = vmatprep.subr.mxu0 0.0
        %609 = vmatpush1.msra.mxu0 0.0
        %610 = vmatprep.subr.mxu0 0.0
        %611 = vmatpush1.msra.mxu0 0.0
        %612 = vmatprep.subr.mxu0 0.0
        %613 = vmatpush1.msra.mxu0 0.0
        %614 = vmatprep.subr.mxu0 0.0
        %615 = vmatpush1.msra.mxu0 %v580
        %616 = vmatprep.subr.mxu0 0.0
        %617 = vmatpush2.msra.mxu0 0.0
        %618 = vmatprep.subr.mxu0 0.0
        %619 = vmatpush2.msra.mxu0 0.0
        %620 = vmatprep.subr.mxu0 0.0
        %621 = vmatpush2.msra.mxu0 0.0
        %622 = vmatprep.subr.mxu0 0.0
        %623 = vmatpush2.msra.mxu0 0.0
        %624 = vmatprep.subr.mxu0 0.0
        %625 = vmatpush2.msra.mxu0 0.0
        %626 = vmatprep.subr.mxu0 0.0
        %627 = vmatpush2.msra.mxu0 0.0
        %628 = vmatprep.subr.mxu0 0.0
        %629 = vmatpush2.msra.mxu0 0.0
        %630 = vmatprep.subr.mxu0 0.0
        %631 = vmatpush2.msra.mxu0 0.0
        %632 = vmatprep.subr.mxu0 0.0
        %633 = vmatpush2.msra.mxu0 0.0
        %634 = vmatprep.subr.mxu0 0.0
        %635 = vmatpush2.msra.mxu0 0.0
        %636 = vmatprep.subr.mxu0 0.0
        %637 = vmatpush2.msra.mxu0 0.0
        %638 = vmatprep.subr.mxu0 0.0
        %639 = vmatpush2.msra.mxu0 0.0
        %640 = vmatprep.subr.mxu0 0.0
        %641 = vmatpush2.msra.mxu0 0.0
        %642 = vmatprep.subr.mxu0 0.0
        %643 = vmatpush2.msra.mxu0 0.0
        %644 = vmatprep.subr.mxu0 0.0
        %645 = vmatpush2.msra.mxu0 0.0
        %646 = vmatprep.subr.mxu0 0.0
        %647 = vmatpush2.msra.mxu0 0.0
        %648 = vmatprep.mubr.f32.mxu0 0.0
        %649 = vmatmul.mubr.f32.gmra.mxu0 %v582
        %v650 = vpop.f32.mrf.mxu0
        %v651 = vadd.f32 0.0, %v650
        %v652 = vpop.f32.mrf.mxu0
        %653 = vdwg.mxu0
        %655 = vrot.lane.b32.xlu0 %v185, 120
        %v656 = vpop.permute.xlu0 %655
        %v658 = vsel %vm201, %v185, 0
        %660 = vmatprep.subr.mxu0 0.0
        %661 = vmatpush1.msra.mxu0 0.0
        %662 = vmatprep.subr.mxu0 0.0
        %663 = vmatpush1.msra.mxu0 0.0
        %664 = vmatprep.subr.mxu0 0.0
        %665 = vmatpush1.msra.mxu0 0.0
        %666 = vmatprep.subr.mxu0 0.0
        %667 = vmatpush1.msra.mxu0 0.0
        %668 = vmatprep.subr.mxu0 0.0
        %669 = vmatpush1.msra.mxu0 0.0
        %670 = vmatprep.subr.mxu0 0.0
        %671 = vmatpush1.msra.mxu0 0.0
        %672 = vmatprep.subr.mxu0 0.0
        %673 = vmatpush1.msra.mxu0 0.0
        %674 = vmatprep.subr.mxu0 0.0
        %675 = vmatpush1.msra.mxu0 0.0
        %676 = vmatprep.subr.mxu0 0.0
        %677 = vmatpush1.msra.mxu0 0.0
        %678 = vmatprep.subr.mxu0 0.0
        %679 = vmatpush1.msra.mxu0 0.0
        %680 = vmatprep.subr.mxu0 0.0
        %681 = vmatpush1.msra.mxu0 0.0
        %682 = vmatprep.subr.mxu0 0.0
        %683 = vmatpush1.msra.mxu0 0.0
        %684 = vmatprep.subr.mxu0 0.0
        %685 = vmatpush1.msra.mxu0 0.0
        %686 = vmatprep.subr.mxu0 0.0
        %687 = vmatpush1.msra.mxu0 0.0
        %688 = vmatprep.subr.mxu0 0.0
        %689 = vmatpush1.msra.mxu0 0.0
        %690 = vmatprep.subr.mxu0 0.0
        %691 = vmatpush1.msra.mxu0 %v656
        %692 = vmatprep.subr.mxu0 0.0
        %693 = vmatpush2.msra.mxu0 0.0
        %694 = vmatprep.subr.mxu0 0.0
        %695 = vmatpush2.msra.mxu0 0.0
        %696 = vmatprep.subr.mxu0 0.0
        %697 = vmatpush2.msra.mxu0 0.0
        %698 = vmatprep.subr.mxu0 0.0
        %699 = vmatpush2.msra.mxu0 0.0
        %700 = vmatprep.subr.mxu0 0.0
        %701 = vmatpush2.msra.mxu0 0.0
        %702 = vmatprep.subr.mxu0 0.0
        %703 = vmatpush2.msra.mxu0 0.0
        %704 = vmatprep.subr.mxu0 0.0
        %705 = vmatpush2.msra.mxu0 0.0
        %706 = vmatprep.subr.mxu0 0.0
        %707 = vmatpush2.msra.mxu0 0.0
        %708 = vmatprep.subr.mxu0 0.0
        %709 = vmatpush2.msra.mxu0 0.0
        %710 = vmatprep.subr.mxu0 0.0
        %711 = vmatpush2.msra.mxu0 0.0
        %712 = vmatprep.subr.mxu0 0.0
        %713 = vmatpush2.msra.mxu0 0.0
        %714 = vmatprep.subr.mxu0 0.0
        %715 = vmatpush2.msra.mxu0 0.0
        %716 = vmatprep.subr.mxu0 0.0
        %717 = vmatpush2.msra.mxu0 0.0
        %718 = vmatprep.subr.mxu0 0.0
        %719 = vmatpush2.msra.mxu0 0.0
        %720 = vmatprep.subr.mxu0 0.0
        %721 = vmatpush2.msra.mxu0 0.0
        %722 = vmatprep.subr.mxu0 0.0
        %723 = vmatpush2.msra.mxu0 0.0
        %724 = vmatprep.mubr.f32.mxu0 0.0
        %725 = vmatmul.mubr.f32.gmra.mxu0 %v658
        %v726 = vpop.f32.mrf.mxu0
        %v727 = vadd.f32 0.0, %v726
        %v728 = vpop.f32.mrf.mxu0
        %729 = vdwg.mxu0
        %731 = vrot.lane.b32.xlu0 %v186, 120
        %v732 = vpop.permute.xlu0 %731
        %v734 = vsel %vm201, %v186, 0
        %736 = vmatprep.subr.mxu0 0.0
        %737 = vmatpush1.msra.mxu0 0.0
        %738 = vmatprep.subr.mxu0 0.0
        %739 = vmatpush1.msra.mxu0 0.0
        %740 = vmatprep.subr.mxu0 0.0
        %741 = vmatpush1.msra.mxu0 0.0
        %742 = vmatprep.subr.mxu0 0.0
        %743 = vmatpush1.msra.mxu0 0.0
        %744 = vmatprep.subr.mxu0 0.0
        %745 = vmatpush1.msra.mxu0 0.0
        %746 = vmatprep.subr.mxu0 0.0
        %747 = vmatpush1.msra.mxu0 0.0
        %748 = vmatprep.subr.mxu0 0.0
        %749 = vmatpush1.msra.mxu0 0.0
        %750 = vmatprep.subr.mxu0 0.0
        %751 = vmatpush1.msra.mxu0 0.0
        %752 = vmatprep.subr.mxu0 0.0
        %753 = vmatpush1.msra.mxu0 0.0
        %754 = vmatprep.subr.mxu0 0.0
        %755 = vmatpush1.msra.mxu0 0.0
        %756 = vmatprep.subr.mxu0 0.0
        %757 = vmatpush1.msra.mxu0 0.0
        %758 = vmatprep.subr.mxu0 0.0
        %759 = vmatpush1.msra.mxu0 0.0
        %760 = vmatprep.subr.mxu0 0.0
        %761 = vmatpush1.msra.mxu0 0.0
        %762 = vmatprep.subr.mxu0 0.0
        %763 = vmatpush1.msra.mxu0 0.0
        %764 = vmatprep.subr.mxu0 0.0
        %765 = vmatpush1.msra.mxu0 0.0
        %766 = vmatprep.subr.mxu0 0.0
        %767 = vmatpush1.msra.mxu0 %v732
        %768 = vmatprep.subr.mxu0 0.0
        %769 = vmatpush2.msra.mxu0 0.0
        %770 = vmatprep.subr.mxu0 0.0
        %771 = vmatpush2.msra.mxu0 0.0
        %772 = vmatprep.subr.mxu0 0.0
        %773 = vmatpush2.msra.mxu0 0.0
        %774 = vmatprep.subr.mxu0 0.0
        %775 = vmatpush2.msra.mxu0 0.0
        %776 = vmatprep.subr.mxu0 0.0
        %777 = vmatpush2.msra.mxu0 0.0
        %778 = vmatprep.subr.mxu0 0.0
        %779 = vmatpush2.msra.mxu0 0.0
        %780 = vmatprep.subr.mxu0 0.0
        %781 = vmatpush2.msra.mxu0 0.0
        %782 = vmatprep.subr.mxu0 0.0
        %783 = vmatpush2.msra.mxu0 0.0
        %784 = vmatprep.subr.mxu0 0.0
        %785 = vmatpush2.msra.mxu0 0.0
        %786 = vmatprep.subr.mxu0 0.0
        %787 = vmatpush2.msra.mxu0 0.0
        %788 = vmatprep.subr.mxu0 0.0
        %789 = vmatpush2.msra.mxu0 0.0
        %790 = vmatprep.subr.mxu0 0.0
        %791 = vmatpush2.msra.mxu0 0.0
        %792 = vmatprep.subr.mxu0 0.0
        %793 = vmatpush2.msra.mxu0 0.0
        %794 = vmatprep.subr.mxu0 0.0
        %795 = vmatpush2.msra.mxu0 0.0
        %796 = vmatprep.subr.mxu0 0.0
        %797 = vmatpush2.msra.mxu0 0.0
        %798 = vmatprep.subr.mxu0 0.0
        %799 = vmatpush2.msra.mxu0 0.0
        %800 = vmatprep.mubr.f32.mxu0 0.0
        %801 = vmatmul.mubr.f32.gmra.mxu0 %v734
        %v802 = vpop.f32.mrf.mxu0
        %v803 = vadd.f32 0.0, %v802
        %v804 = vpop.f32.mrf.mxu0
        %805 = vdwg.mxu0
        %807 = vrot.lane.b32.xlu0 %v187, 120
        %v808 = vpop.permute.xlu0 %807
        %v810 = vsel %vm201, %v187, 0
        %812 = vmatprep.subr.mxu0 0.0
        %813 = vmatpush1.msra.mxu0 0.0
        %814 = vmatprep.subr.mxu0 0.0
        %815 = vmatpush1.msra.mxu0 0.0
        %816 = vmatprep.subr.mxu0 0.0
        %817 = vmatpush1.msra.mxu0 0.0
        %818 = vmatprep.subr.mxu0 0.0
        %819 = vmatpush1.msra.mxu0 0.0
        %820 = vmatprep.subr.mxu0 0.0
        %821 = vmatpush1.msra.mxu0 0.0
        %822 = vmatprep.subr.mxu0 0.0
        %823 = vmatpush1.msra.mxu0 0.0
        %824 = vmatprep.subr.mxu0 0.0
        %825 = vmatpush1.msra.mxu0 0.0
        %826 = vmatprep.subr.mxu0 0.0
        %827 = vmatpush1.msra.mxu0 0.0
        %828 = vmatprep.subr.mxu0 0.0
        %829 = vmatpush1.msra.mxu0 0.0
        %830 = vmatprep.subr.mxu0 0.0
        %831 = vmatpush1.msra.mxu0 0.0
        %832 = vmatprep.subr.mxu0 0.0
        %833 = vmatpush1.msra.mxu0 0.0
        %834 = vmatprep.subr.mxu0 0.0
        %835 = vmatpush1.msra.mxu0 0.0
        %836 = vmatprep.subr.mxu0 0.0
        %837 = vmatpush1.msra.mxu0 0.0
        %838 = vmatprep.subr.mxu0 0.0
        %839 = vmatpush1.msra.mxu0 0.0
        %840 = vmatprep.subr.mxu0 0.0
        %841 = vmatpush1.msra.mxu0 0.0
        %842 = vmatprep.subr.mxu0 0.0
        %843 = vmatpush1.msra.mxu0 %v808
        %844 = vmatprep.subr.mxu0 0.0
        %845 = vmatpush2.msra.mxu0 0.0
        %846 = vmatprep.subr.mxu0 0.0
        %847 = vmatpush2.msra.mxu0 0.0
        %848 = vmatprep.subr.mxu0 0.0
        %849 = vmatpush2.msra.mxu0 0.0
        %850 = vmatprep.subr.mxu0 0.0
        %851 = vmatpush2.msra.mxu0 0.0
        %852 = vmatprep.subr.mxu0 0.0
        %853 = vmatpush2.msra.mxu0 0.0
        %854 = vmatprep.subr.mxu0 0.0
        %855 = vmatpush2.msra.mxu0 0.0
        %856 = vmatprep.subr.mxu0 0.0
        %857 = vmatpush2.msra.mxu0 0.0
        %858 = vmatprep.subr.mxu0 0.0
        %859 = vmatpush2.msra.mxu0 0.0
        %860 = vmatprep.subr.mxu0 0.0
        %861 = vmatpush2.msra.mxu0 0.0
        %862 = vmatprep.subr.mxu0 0.0
        %863 = vmatpush2.msra.mxu0 0.0
        %864 = vmatprep.subr.mxu0 0.0
        %865 = vmatpush2.msra.mxu0 0.0
        %866 = vmatprep.subr.mxu0 0.0
        %867 = vmatpush2.msra.mxu0 0.0
        %868 = vmatprep.subr.mxu0 0.0
        %869 = vmatpush2.msra.mxu0 0.0
        %870 = vmatprep.subr.mxu0 0.0
        %871 = vmatpush2.msra.mxu0 0.0
        %872 = vmatprep.subr.mxu0 0.0
        %873 = vmatpush2.msra.mxu0 0.0
        %874 = vmatprep.subr.mxu0 0.0
        %875 = vmatpush2.msra.mxu0 0.0
        %876 = vmatprep.mubr.f32.mxu0 0.0
        %877 = vmatmul.mubr.f32.gmra.mxu0 %v810
        %v878 = vpop.f32.mrf.mxu0
        %v879 = vadd.f32 0.0, %v878
        %v880 = vpop.f32.mrf.mxu0
        %881 = vdwg.mxu0
        %883 = vrot.lane.b32.xlu0 %v188, 120
        %v884 = vpop.permute.xlu0 %883
        %v886 = vsel %vm201, %v188, 0
        %888 = vmatprep.subr.mxu0 0.0
        %889 = vmatpush1.msra.mxu0 0.0
        %890 = vmatprep.subr.mxu0 0.0
        %891 = vmatpush1.msra.mxu0 0.0
        %892 = vmatprep.subr.mxu0 0.0
        %893 = vmatpush1.msra.mxu0 0.0
        %894 = vmatprep.subr.mxu0 0.0
        %895 = vmatpush1.msra.mxu0 0.0
        %896 = vmatprep.subr.mxu0 0.0
        %897 = vmatpush1.msra.mxu0 0.0
        %898 = vmatprep.subr.mxu0 0.0
        %899 = vmatpush1.msra.mxu0 0.0
        %900 = vmatprep.subr.mxu0 0.0
        %901 = vmatpush1.msra.mxu0 0.0
        %902 = vmatprep.subr.mxu0 0.0
        %903 = vmatpush1.msra.mxu0 0.0
        %904 = vmatprep.subr.mxu0 0.0
        %905 = vmatpush1.msra.mxu0 0.0
        %906 = vmatprep.subr.mxu0 0.0
        %907 = vmatpush1.msra.mxu0 0.0
        %908 = vmatprep.subr.mxu0 0.0
        %909 = vmatpush1.msra.mxu0 0.0
        %910 = vmatprep.subr.mxu0 0.0
        %911 = vmatpush1.msra.mxu0 0.0
        %912 = vmatprep.subr.mxu0 0.0
        %913 = vmatpush1.msra.mxu0 0.0
        %914 = vmatprep.subr.mxu0 0.0
        %915 = vmatpush1.msra.mxu0 0.0
        %916 = vmatprep.subr.mxu0 0.0
        %917 = vmatpush1.msra.mxu0 0.0
        %918 = vmatprep.subr.mxu0 0.0
        %919 = vmatpush1.msra.mxu0 %v884
        %920 = vmatprep.subr.mxu0 0.0
        %921 = vmatpush2.msra.mxu0 0.0
        %922 = vmatprep.subr.mxu0 0.0
        %923 = vmatpush2.msra.mxu0 0.0
        %924 = vmatprep.subr.mxu0 0.0
        %925 = vmatpush2.msra.mxu0 0.0
        %926 = vmatprep.subr.mxu0 0.0
        %927 = vmatpush2.msra.mxu0 0.0
        %928 = vmatprep.subr.mxu0 0.0
        %929 = vmatpush2.msra.mxu0 0.0
        %930 = vmatprep.subr.mxu0 0.0
        %931 = vmatpush2.msra.mxu0 0.0
        %932 = vmatprep.subr.mxu0 0.0
        %933 = vmatpush2.msra.mxu0 0.0
        %934 = vmatprep.subr.mxu0 0.0
        %935 = vmatpush2.msra.mxu0 0.0
        %936 = vmatprep.subr.mxu0 0.0
        %937 = vmatpush2.msra.mxu0 0.0
        %938 = vmatprep.subr.mxu0 0.0
        %939 = vmatpush2.msra.mxu0 0.0
        %940 = vmatprep.subr.mxu0 0.0
        %941 = vmatpush2.msra.mxu0 0.0
        %942 = vmatprep.subr.mxu0 0.0
        %943 = vmatpush2.msra.mxu0 0.0
        %944 = vmatprep.subr.mxu0 0.0
        %945 = vmatpush2.msra.mxu0 0.0
        %946 = vmatprep.subr.mxu0 0.0
        %947 = vmatpush2.msra.mxu0 0.0
        %948 = vmatprep.subr.mxu0 0.0
        %949 = vmatpush2.msra.mxu0 0.0
        %950 = vmatprep.subr.mxu0 0.0
        %951 = vmatpush2.msra.mxu0 0.0
        %952 = vmatprep.mubr.f32.mxu0 0.0
        %953 = vmatmul.mubr.f32.gmra.mxu0 %v886
        %v954 = vpop.f32.mrf.mxu0
        %v955 = vadd.f32 0.0, %v954
        %v956 = vpop.f32.mrf.mxu0
        %957 = vdwg.mxu0
        %959 = vrot.lane.b32.xlu0 %v189, 120
        %v960 = vpop.permute.xlu0 %959
        %v962 = vsel %vm201, %v189, 0
        %964 = vmatprep.subr.mxu0 0.0
        %965 = vmatpush1.msra.mxu0 0.0
        %966 = vmatprep.subr.mxu0 0.0
        %967 = vmatpush1.msra.mxu0 0.0
        %968 = vmatprep.subr.mxu0 0.0
        %969 = vmatpush1.msra.mxu0 0.0
        %970 = vmatprep.subr.mxu0 0.0
        %971 = vmatpush1.msra.mxu0 0.0
        %972 = vmatprep.subr.mxu0 0.0
        %973 = vmatpush1.msra.mxu0 0.0
        %974 = vmatprep.subr.mxu0 0.0
        %975 = vmatpush1.msra.mxu0 0.0
        %976 = vmatprep.subr.mxu0 0.0
        %977 = vmatpush1.msra.mxu0 0.0
        %978 = vmatprep.subr.mxu0 0.0
        %979 = vmatpush1.msra.mxu0 0.0
        %980 = vmatprep.subr.mxu0 0.0
        %981 = vmatpush1.msra.mxu0 0.0
        %982 = vmatprep.subr.mxu0 0.0
        %983 = vmatpush1.msra.mxu0 0.0
        %984 = vmatprep.subr.mxu0 0.0
        %985 = vmatpush1.msra.mxu0 0.0
        %986 = vmatprep.subr.mxu0 0.0
        %987 = vmatpush1.msra.mxu0 0.0
        %988 = vmatprep.subr.mxu0 0.0
        %989 = vmatpush1.msra.mxu0 0.0
        %990 = vmatprep.subr.mxu0 0.0
        %991 = vmatpush1.msra.mxu0 0.0
        %992 = vmatprep.subr.mxu0 0.0
        %993 = vmatpush1.msra.mxu0 0.0
        %994 = vmatprep.subr.mxu0 0.0
        %995 = vmatpush1.msra.mxu0 %v960
        %996 = vmatprep.subr.mxu0 0.0
        %997 = vmatpush2.msra.mxu0 0.0
        %998 = vmatprep.subr.mxu0 0.0
        %999 = vmatpush2.msra.mxu0 0.0
        %1000 = vmatprep.subr.mxu0 0.0
        %1001 = vmatpush2.msra.mxu0 0.0
        %1002 = vmatprep.subr.mxu0 0.0
        %1003 = vmatpush2.msra.mxu0 0.0
        %1004 = vmatprep.subr.mxu0 0.0
        %1005 = vmatpush2.msra.mxu0 0.0
        %1006 = vmatprep.subr.mxu0 0.0
        %1007 = vmatpush2.msra.mxu0 0.0
        %1008 = vmatprep.subr.mxu0 0.0
        %1009 = vmatpush2.msra.mxu0 0.0
        %1010 = vmatprep.subr.mxu0 0.0
        %1011 = vmatpush2.msra.mxu0 0.0
        %1012 = vmatprep.subr.mxu0 0.0
        %1013 = vmatpush2.msra.mxu0 0.0
        %1014 = vmatprep.subr.mxu0 0.0
        %1015 = vmatpush2.msra.mxu0 0.0
        %1016 = vmatprep.subr.mxu0 0.0
        %1017 = vmatpush2.msra.mxu0 0.0
        %1018 = vmatprep.subr.mxu0 0.0
        %1019 = vmatpush2.msra.mxu0 0.0
        %1020 = vmatprep.subr.mxu0 0.0
        %1021 = vmatpush2.msra.mxu0 0.0
        %1022 = vmatprep.subr.mxu0 0.0
        %1023 = vmatpush2.msra.mxu0 0.0
        %1024 = vmatprep.subr.mxu0 0.0
        %1025 = vmatpush2.msra.mxu0 0.0
        %1026 = vmatprep.subr.mxu0 0.0
        %1027 = vmatpush2.msra.mxu0 0.0
        %1028 = vmatprep.mubr.f32.mxu0 0.0
        %1029 = vmatmul.mubr.f32.gmra.mxu0 %v962
        %v1030 = vpop.f32.mrf.mxu0
        %v1031 = vadd.f32 0.0, %v1030
        %v1032 = vpop.f32.mrf.mxu0
        %1033 = vdwg.mxu0
        %1035 = vrot.lane.b32.xlu0 %v190, 120
        %v1036 = vpop.permute.xlu0 %1035
        %v1038 = vsel %vm201, %v190, 0
        %1040 = vmatprep.subr.mxu0 0.0
        %1041 = vmatpush1.msra.mxu0 0.0
        %1042 = vmatprep.subr.mxu0 0.0
        %1043 = vmatpush1.msra.mxu0 0.0
        %1044 = vmatprep.subr.mxu0 0.0
        %1045 = vmatpush1.msra.mxu0 0.0
        %1046 = vmatprep.subr.mxu0 0.0
        %1047 = vmatpush1.msra.mxu0 0.0
        %1048 = vmatprep.subr.mxu0 0.0
        %1049 = vmatpush1.msra.mxu0 0.0
        %1050 = vmatprep.subr.mxu0 0.0
        %1051 = vmatpush1.msra.mxu0 0.0
        %1052 = vmatprep.subr.mxu0 0.0
        %1053 = vmatpush1.msra.mxu0 0.0
        %1054 = vmatprep.subr.mxu0 0.0
        %1055 = vmatpush1.msra.mxu0 0.0
        %1056 = vmatprep.subr.mxu0 0.0
        %1057 = vmatpush1.msra.mxu0 0.0
        %1058 = vmatprep.subr.mxu0 0.0
        %1059 = vmatpush1.msra.mxu0 0.0
        %1060 = vmatprep.subr.mxu0 0.0
        %1061 = vmatpush1.msra.mxu0 0.0
        %1062 = vmatprep.subr.mxu0 0.0
        %1063 = vmatpush1.msra.mxu0 0.0
        %1064 = vmatprep.subr.mxu0 0.0
        %1065 = vmatpush1.msra.mxu0 0.0
        %1066 = vmatprep.subr.mxu0 0.0
        %1067 = vmatpush1.msra.mxu0 0.0
        %1068 = vmatprep.subr.mxu0 0.0
        %1069 = vmatpush1.msra.mxu0 0.0
        %1070 = vmatprep.subr.mxu0 0.0
        %1071 = vmatpush1.msra.mxu0 %v1036
        %1072 = vmatprep.subr.mxu0 0.0
        %1073 = vmatpush2.msra.mxu0 0.0
        %1074 = vmatprep.subr.mxu0 0.0
        %1075 = vmatpush2.msra.mxu0 0.0
        %1076 = vmatprep.subr.mxu0 0.0
        %1077 = vmatpush2.msra.mxu0 0.0
        %1078 = vmatprep.subr.mxu0 0.0
        %1079 = vmatpush2.msra.mxu0 0.0
        %1080 = vmatprep.subr.mxu0 0.0
        %1081 = vmatpush2.msra.mxu0 0.0
        %1082 = vmatprep.subr.mxu0 0.0
        %1083 = vmatpush2.msra.mxu0 0.0
        %1084 = vmatprep.subr.mxu0 0.0
        %1085 = vmatpush2.msra.mxu0 0.0
        %1086 = vmatprep.subr.mxu0 0.0
        %1087 = vmatpush2.msra.mxu0 0.0
        %1088 = vmatprep.subr.mxu0 0.0
        %1089 = vmatpush2.msra.mxu0 0.0
        %1090 = vmatprep.subr.mxu0 0.0
        %1091 = vmatpush2.msra.mxu0 0.0
        %1092 = vmatprep.subr.mxu0 0.0
        %1093 = vmatpush2.msra.mxu0 0.0
        %1094 = vmatprep.subr.mxu0 0.0
        %1095 = vmatpush2.msra.mxu0 0.0
        %1096 = vmatprep.subr.mxu0 0.0
        %1097 = vmatpush2.msra.mxu0 0.0
        %1098 = vmatprep.subr.mxu0 0.0
        %1099 = vmatpush2.msra.mxu0 0.0
        %1100 = vmatprep.subr.mxu0 0.0
        %1101 = vmatpush2.msra.mxu0 0.0
        %1102 = vmatprep.subr.mxu0 0.0
        %1103 = vmatpush2.msra.mxu0 0.0
        %1104 = vmatprep.mubr.f32.mxu0 0.0
        %1105 = vmatmul.mubr.f32.gmra.mxu0 %v1038
        %v1106 = vpop.f32.mrf.mxu0
        %v1107 = vadd.f32 0.0, %v1106
        %v1108 = vpop.f32.mrf.mxu0
        %1109 = vdwg.mxu0
        %1111 = vrot.lane.b32.xlu0 %v191, 120
        %v1112 = vpop.permute.xlu0 %1111
        %v1114 = vsel %vm201, %v191, 0
        %1116 = vmatprep.subr.mxu0 0.0
        %1117 = vmatpush1.msra.mxu0 0.0
        %1118 = vmatprep.subr.mxu0 0.0
        %1119 = vmatpush1.msra.mxu0 0.0
        %1120 = vmatprep.subr.mxu0 0.0
        %1121 = vmatpush1.msra.mxu0 0.0
        %1122 = vmatprep.subr.mxu0 0.0
        %1123 = vmatpush1.msra.mxu0 0.0
        %1124 = vmatprep.subr.mxu0 0.0
        %1125 = vmatpush1.msra.mxu0 0.0
        %1126 = vmatprep.subr.mxu0 0.0
        %1127 = vmatpush1.msra.mxu0 0.0
        %1128 = vmatprep.subr.mxu0 0.0
        %1129 = vmatpush1.msra.mxu0 0.0
        %1130 = vmatprep.subr.mxu0 0.0
        %1131 = vmatpush1.msra.mxu0 0.0
        %1132 = vmatprep.subr.mxu0 0.0
        %1133 = vmatpush1.msra.mxu0 0.0
        %1134 = vmatprep.subr.mxu0 0.0
        %1135 = vmatpush1.msra.mxu0 0.0
        %1136 = vmatprep.subr.mxu0 0.0
        %1137 = vmatpush1.msra.mxu0 0.0
        %1138 = vmatprep.subr.mxu0 0.0
        %1139 = vmatpush1.msra.mxu0 0.0
        %1140 = vmatprep.subr.mxu0 0.0
        %1141 = vmatpush1.msra.mxu0 0.0
        %1142 = vmatprep.subr.mxu0 0.0
        %1143 = vmatpush1.msra.mxu0 0.0
        %1144 = vmatprep.subr.mxu0 0.0
        %1145 = vmatpush1.msra.mxu0 0.0
        %1146 = vmatprep.subr.mxu0 0.0
        %1147 = vmatpush1.msra.mxu0 %v1112
        %1148 = vmatprep.subr.mxu0 0.0
        %1149 = vmatpush2.msra.mxu0 0.0
        %1150 = vmatprep.subr.mxu0 0.0
        %1151 = vmatpush2.msra.mxu0 0.0
        %1152 = vmatprep.subr.mxu0 0.0
        %1153 = vmatpush2.msra.mxu0 0.0
        %1154 = vmatprep.subr.mxu0 0.0
        %1155 = vmatpush2.msra.mxu0 0.0
        %1156 = vmatprep.subr.mxu0 0.0
        %1157 = vmatpush2.msra.mxu0 0.0
        %1158 = vmatprep.subr.mxu0 0.0
        %1159 = vmatpush2.msra.mxu0 0.0
        %1160 = vmatprep.subr.mxu0 0.0
        %1161 = vmatpush2.msra.mxu0 0.0
        %1162 = vmatprep.subr.mxu0 0.0
        %1163 = vmatpush2.msra.mxu0 0.0
        %1164 = vmatprep.subr.mxu0 0.0
        %1165 = vmatpush2.msra.mxu0 0.0
        %1166 = vmatprep.subr.mxu0 0.0
        %1167 = vmatpush2.msra.mxu0 0.0
        %1168 = vmatprep.subr.mxu0 0.0
        %1169 = vmatpush2.msra.mxu0 0.0
        %1170 = vmatprep.subr.mxu0 0.0
        %1171 = vmatpush2.msra.mxu0 0.0
        %1172 = vmatprep.subr.mxu0 0.0
        %1173 = vmatpush2.msra.mxu0 0.0
        %1174 = vmatprep.subr.mxu0 0.0
        %1175 = vmatpush2.msra.mxu0 0.0
        %1176 = vmatprep.subr.mxu0 0.0
        %1177 = vmatpush2.msra.mxu0 0.0
        %1178 = vmatprep.subr.mxu0 0.0
        %1179 = vmatpush2.msra.mxu0 0.0
        %1180 = vmatprep.mubr.f32.mxu0 0.0
        %1181 = vmatmul.mubr.f32.gmra.mxu0 %v1114
        %v1182 = vpop.f32.mrf.mxu0
        %v1183 = vadd.f32 0.0, %v1182
        %v1184 = vpop.f32.mrf.mxu0
        %1185 = vdwg.mxu0
        %1187 = vrot.lane.b32.xlu0 %v192, 120
        %v1188 = vpop.permute.xlu0 %1187
        %v1190 = vsel %vm201, %v192, 0
        %1192 = vmatprep.subr.mxu0 0.0
        %1193 = vmatpush1.msra.mxu0 0.0
        %1194 = vmatprep.subr.mxu0 0.0
        %1195 = vmatpush1.msra.mxu0 0.0
        %1196 = vmatprep.subr.mxu0 0.0
        %1197 = vmatpush1.msra.mxu0 0.0
        %1198 = vmatprep.subr.mxu0 0.0
        %1199 = vmatpush1.msra.mxu0 0.0
        %1200 = vmatprep.subr.mxu0 0.0
        %1201 = vmatpush1.msra.mxu0 0.0
        %1202 = vmatprep.subr.mxu0 0.0
        %1203 = vmatpush1.msra.mxu0 0.0
        %1204 = vmatprep.subr.mxu0 0.0
        %1205 = vmatpush1.msra.mxu0 0.0
        %1206 = vmatprep.subr.mxu0 0.0
        %1207 = vmatpush1.msra.mxu0 0.0
        %1208 = vmatprep.subr.mxu0 0.0
        %1209 = vmatpush1.msra.mxu0 0.0
        %1210 = vmatprep.subr.mxu0 0.0
        %1211 = vmatpush1.msra.mxu0 0.0
        %1212 = vmatprep.subr.mxu0 0.0
        %1213 = vmatpush1.msra.mxu0 0.0
        %1214 = vmatprep.subr.mxu0 0.0
        %1215 = vmatpush1.msra.mxu0 0.0
        %1216 = vmatprep.subr.mxu0 0.0
        %1217 = vmatpush1.msra.mxu0 0.0
        %1218 = vmatprep.subr.mxu0 0.0
        %1219 = vmatpush1.msra.mxu0 0.0
        %1220 = vmatprep.subr.mxu0 0.0
        %1221 = vmatpush1.msra.mxu0 0.0
        %1222 = vmatprep.subr.mxu0 0.0
        %1223 = vmatpush1.msra.mxu0 %v1188
        %1224 = vmatprep.subr.mxu0 0.0
        %1225 = vmatpush2.msra.mxu0 0.0
        %1226 = vmatprep.subr.mxu0 0.0
        %1227 = vmatpush2.msra.mxu0 0.0
        %1228 = vmatprep.subr.mxu0 0.0
        %1229 = vmatpush2.msra.mxu0 0.0
        %1230 = vmatprep.subr.mxu0 0.0
        %1231 = vmatpush2.msra.mxu0 0.0
        %1232 = vmatprep.subr.mxu0 0.0
        %1233 = vmatpush2.msra.mxu0 0.0
        %1234 = vmatprep.subr.mxu0 0.0
        %1235 = vmatpush2.msra.mxu0 0.0
        %1236 = vmatprep.subr.mxu0 0.0
        %1237 = vmatpush2.msra.mxu0 0.0
        %1238 = vmatprep.subr.mxu0 0.0
        %1239 = vmatpush2.msra.mxu0 0.0
        %1240 = vmatprep.subr.mxu0 0.0
        %1241 = vmatpush2.msra.mxu0 0.0
        %1242 = vmatprep.subr.mxu0 0.0
        %1243 = vmatpush2.msra.mxu0 0.0
        %1244 = vmatprep.subr.mxu0 0.0
        %1245 = vmatpush2.msra.mxu0 0.0
        %1246 = vmatprep.subr.mxu0 0.0
        %1247 = vmatpush2.msra.mxu0 0.0
        %1248 = vmatprep.subr.mxu0 0.0
        %1249 = vmatpush2.msra.mxu0 0.0
        %1250 = vmatprep.subr.mxu0 0.0
        %1251 = vmatpush2.msra.mxu0 0.0
        %1252 = vmatprep.subr.mxu0 0.0
        %1253 = vmatpush2.msra.mxu0 0.0
        %1254 = vmatprep.subr.mxu0 0.0
        %1255 = vmatpush2.msra.mxu0 0.0
        %1256 = vmatprep.mubr.f32.mxu0 0.0
        %1257 = vmatmul.mubr.f32.gmra.mxu0 %v1190
        %v1258 = vpop.f32.mrf.mxu0
        %v1259 = vadd.f32 0.0, %v1258
        %v1260 = vpop.f32.mrf.mxu0
        %1261 = vdwg.mxu0
        %1263 = vrot.lane.b32.xlu0 %v193, 120
        %v1264 = vpop.permute.xlu0 %1263
        %v1266 = vsel %vm201, %v193, 0
        %1268 = vmatprep.subr.mxu0 0.0
        %1269 = vmatpush1.msra.mxu0 0.0
        %1270 = vmatprep.subr.mxu0 0.0
        %1271 = vmatpush1.msra.mxu0 0.0
        %1272 = vmatprep.subr.mxu0 0.0
        %1273 = vmatpush1.msra.mxu0 0.0
        %1274 = vmatprep.subr.mxu0 0.0
        %1275 = vmatpush1.msra.mxu0 0.0
        %1276 = vmatprep.subr.mxu0 0.0
        %1277 = vmatpush1.msra.mxu0 0.0
        %1278 = vmatprep.subr.mxu0 0.0
        %1279 = vmatpush1.msra.mxu0 0.0
        %1280 = vmatprep.subr.mxu0 0.0
        %1281 = vmatpush1.msra.mxu0 0.0
        %1282 = vmatprep.subr.mxu0 0.0
        %1283 = vmatpush1.msra.mxu0 0.0
        %1284 = vmatprep.subr.mxu0 0.0
        %1285 = vmatpush1.msra.mxu0 0.0
        %1286 = vmatprep.subr.mxu0 0.0
        %1287 = vmatpush1.msra.mxu0 0.0
        %1288 = vmatprep.subr.mxu0 0.0
        %1289 = vmatpush1.msra.mxu0 0.0
        %1290 = vmatprep.subr.mxu0 0.0
        %1291 = vmatpush1.msra.mxu0 0.0
        %1292 = vmatprep.subr.mxu0 0.0
        %1293 = vmatpush1.msra.mxu0 0.0
        %1294 = vmatprep.subr.mxu0 0.0
        %1295 = vmatpush1.msra.mxu0 0.0
        %1296 = vmatprep.subr.mxu0 0.0
        %1297 = vmatpush1.msra.mxu0 0.0
        %1298 = vmatprep.subr.mxu0 0.0
        %1299 = vmatpush1.msra.mxu0 %v1264
        %1300 = vmatprep.subr.mxu0 0.0
        %1301 = vmatpush2.msra.mxu0 0.0
        %1302 = vmatprep.subr.mxu0 0.0
        %1303 = vmatpush2.msra.mxu0 0.0
        %1304 = vmatprep.subr.mxu0 0.0
        %1305 = vmatpush2.msra.mxu0 0.0
        %1306 = vmatprep.subr.mxu0 0.0
        %1307 = vmatpush2.msra.mxu0 0.0
        %1308 = vmatprep.subr.mxu0 0.0
        %1309 = vmatpush2.msra.mxu0 0.0
        %1310 = vmatprep.subr.mxu0 0.0
        %1311 = vmatpush2.msra.mxu0 0.0
        %1312 = vmatprep.subr.mxu0 0.0
        %1313 = vmatpush2.msra.mxu0 0.0
        %1314 = vmatprep.subr.mxu0 0.0
        %1315 = vmatpush2.msra.mxu0 0.0
        %1316 = vmatprep.subr.mxu0 0.0
        %1317 = vmatpush2.msra.mxu0 0.0
        %1318 = vmatprep.subr.mxu0 0.0
        %1319 = vmatpush2.msra.mxu0 0.0
        %1320 = vmatprep.subr.mxu0 0.0
        %1321 = vmatpush2.msra.mxu0 0.0
        %1322 = vmatprep.subr.mxu0 0.0
        %1323 = vmatpush2.msra.mxu0 0.0
        %1324 = vmatprep.subr.mxu0 0.0
        %1325 = vmatpush2.msra.mxu0 0.0
        %1326 = vmatprep.subr.mxu0 0.0
        %1327 = vmatpush2.msra.mxu0 0.0
        %1328 = vmatprep.subr.mxu0 0.0
        %1329 = vmatpush2.msra.mxu0 0.0
        %1330 = vmatprep.subr.mxu0 0.0
        %1331 = vmatpush2.msra.mxu0 0.0
        %1332 = vmatprep.mubr.f32.mxu0 0.0
        %1333 = vmatmul.mubr.f32.gmra.mxu0 %v1266
        %v1334 = vpop.f32.mrf.mxu0
        %v1335 = vadd.f32 0.0, %v1334
        %v1336 = vpop.f32.mrf.mxu0
        %1337 = vdwg.mxu0
        %1339 = vrot.lane.b32.xlu0 %v194, 120
        %v1340 = vpop.permute.xlu0 %1339
        %v1342 = vsel %vm201, %v194, 0
        %1344 = vmatprep.subr.mxu0 0.0
        %1345 = vmatpush1.msra.mxu0 0.0
        %1346 = vmatprep.subr.mxu0 0.0
        %1347 = vmatpush1.msra.mxu0 0.0
        %1348 = vmatprep.subr.mxu0 0.0
        %1349 = vmatpush1.msra.mxu0 0.0
        %1350 = vmatprep.subr.mxu0 0.0
        %1351 = vmatpush1.msra.mxu0 0.0
        %1352 = vmatprep.subr.mxu0 0.0
        %1353 = vmatpush1.msra.mxu0 0.0
        %1354 = vmatprep.subr.mxu0 0.0
        %1355 = vmatpush1.msra.mxu0 0.0
        %1356 = vmatprep.subr.mxu0 0.0
        %1357 = vmatpush1.msra.mxu0 0.0
        %1358 = vmatprep.subr.mxu0 0.0
        %1359 = vmatpush1.msra.mxu0 0.0
        %1360 = vmatprep.subr.mxu0 0.0
        %1361 = vmatpush1.msra.mxu0 0.0
        %1362 = vmatprep.subr.mxu0 0.0
        %1363 = vmatpush1.msra.mxu0 0.0
        %1364 = vmatprep.subr.mxu0 0.0
        %1365 = vmatpush1.msra.mxu0 0.0
        %1366 = vmatprep.subr.mxu0 0.0
        %1367 = vmatpush1.msra.mxu0 0.0
        %1368 = vmatprep.subr.mxu0 0.0
        %1369 = vmatpush1.msra.mxu0 0.0
        %1370 = vmatprep.subr.mxu0 0.0
        %1371 = vmatpush1.msra.mxu0 0.0
        %1372 = vmatprep.subr.mxu0 0.0
        %1373 = vmatpush1.msra.mxu0 0.0
        %1374 = vmatprep.subr.mxu0 0.0
        %1375 = vmatpush1.msra.mxu0 %v1340
        %1376 = vmatprep.subr.mxu0 0.0
        %1377 = vmatpush2.msra.mxu0 0.0
        %1378 = vmatprep.subr.mxu0 0.0
        %1379 = vmatpush2.msra.mxu0 0.0
        %1380 = vmatprep.subr.mxu0 0.0
        %1381 = vmatpush2.msra.mxu0 0.0
        %1382 = vmatprep.subr.mxu0 0.0
        %1383 = vmatpush2.msra.mxu0 0.0
        %1384 = vmatprep.subr.mxu0 0.0
        %1385 = vmatpush2.msra.mxu0 0.0
        %1386 = vmatprep.subr.mxu0 0.0
        %1387 = vmatpush2.msra.mxu0 0.0
        %1388 = vmatprep.subr.mxu0 0.0
        %1389 = vmatpush2.msra.mxu0 0.0
        %1390 = vmatprep.subr.mxu0 0.0
        %1391 = vmatpush2.msra.mxu0 0.0
        %1392 = vmatprep.subr.mxu0 0.0
        %1393 = vmatpush2.msra.mxu0 0.0
        %1394 = vmatprep.subr.mxu0 0.0
        %1395 = vmatpush2.msra.mxu0 0.0
        %1396 = vmatprep.subr.mxu0 0.0
        %1397 = vmatpush2.msra.mxu0 0.0
        %1398 = vmatprep.subr.mxu0 0.0
        %1399 = vmatpush2.msra.mxu0 0.0
        %1400 = vmatprep.subr.mxu0 0.0
        %1401 = vmatpush2.msra.mxu0 0.0
        %1402 = vmatprep.subr.mxu0 0.0
        %1403 = vmatpush2.msra.mxu0 0.0
        %1404 = vmatprep.subr.mxu0 0.0
        %1405 = vmatpush2.msra.mxu0 0.0
        %1406 = vmatprep.subr.mxu0 0.0
        %1407 = vmatpush2.msra.mxu0 0.0
        %1408 = vmatprep.mubr.f32.mxu0 0.0
        %1409 = vmatmul.mubr.f32.gmra.mxu0 %v1342
        %v1410 = vpop.f32.mrf.mxu0
        %v1411 = vadd.f32 0.0, %v1410
        %v1412 = vpop.f32.mrf.mxu0
        %1413 = vdwg.mxu0
        %v1414 = vld [vmem:[#allocation5 + $0x8] sm:$0xff]
        %v1415 = vld [vmem:[#allocation5 + $0x10] sm:$0xff]
        %v1416 = vld [vmem:[#allocation5 + $0x18] sm:$0xff]
        %v1417 = vld [vmem:[#allocation5 + $0x20] sm:$0xff]
        %v1418 = vld [vmem:[#allocation5] sm:$0x1]
        %v1419 = vlaneseq
        %v1420 = vshrl.u32 %v1419, 7
        %v1421 = vsub.s32 0, %v1420
        %v1422 = vrot.slane %v1418, %v1421
        %vm1423 = vcmask 261120
        %v1425 = vsel %vm1423, %v271, 0
        %v1428 = vsel %vm1423, %v347, 0
        %v1431 = vsel %vm1423, %v423, 0
        %v1434 = vsel %vm1423, %v499, 0
        %v1437 = vsel %vm1423, %v575, 0
        %v1440 = vsel %vm1423, %v651, 0
        %v1443 = vsel %vm1423, %v727, 0
        %v1446 = vsel %vm1423, %v803, 0
        %v1449 = vsel %vm1423, %v879, 0
        %v1452 = vsel %vm1423, %v955, 0
        %v1455 = vsel %vm1423, %v1031, 0
        %v1458 = vsel %vm1423, %v1107, 0
        %v1461 = vsel %vm1423, %v1183, 0
        %v1464 = vsel %vm1423, %v1259, 0
        %v1467 = vsel %vm1423, %v1335, 0
        %v1470 = vsel %vm1423, %v1411, 0
        %1472 = vmatprep.subr.mxu0 0.0
        %1473 = vmatpush1.msra.mxu0 0.0
        %1474 = vmatprep.subr.mxu0 0.0
        %1475 = vmatpush1.msra.mxu0 0.0
        %1476 = vmatprep.subr.mxu0 0.0
        %1477 = vmatpush1.msra.mxu0 0.0
        %1478 = vmatprep.subr.mxu0 0.0
        %1479 = vmatpush1.msra.mxu0 0.0
        %1480 = vmatprep.subr.mxu0 0.0
        %1481 = vmatpush1.msra.mxu0 0.0
        %1482 = vmatprep.subr.mxu0 0.0
        %1483 = vmatpush1.msra.mxu0 0.0
        %1484 = vmatprep.subr.mxu0 0.0
        %1485 = vmatpush1.msra.mxu0 0.0
        %1486 = vmatprep.subr.mxu0 0.0
        %1487 = vmatpush1.msra.mxu0 0.0
        %1488 = vmatprep.subr.mxu0 0.0
        %1489 = vmatpush1.msra.mxu0 0.0
        %1490 = vmatprep.subr.mxu0 0.0
        %1491 = vmatpush1.msra.mxu0 0.0
        %1492 = vmatprep.subr.mxu0 0.0
        %1493 = vmatpush1.msra.mxu0 0.0
        %1494 = vmatprep.subr.mxu0 0.0
        %1495 = vmatpush1.msra.mxu0 0.0
        %1496 = vmatprep.subr.mxu0 0.0
        %1497 = vmatpush1.msra.mxu0 %v1417
        %1498 = vmatprep.subr.mxu0 0.0
        %1499 = vmatpush1.msra.mxu0 %v1416
        %1500 = vmatprep.subr.mxu0 0.0
        %1501 = vmatpush1.msra.mxu0 %v1415
        %1502 = vmatprep.subr.mxu0 0.0
        %1503 = vmatpush1.msra.mxu0 %v1414
        %1504 = vmatprep.subr.mxu0 0.0
        %1505 = vmatpush2.msra.mxu0 0.0
        %1506 = vmatprep.subr.mxu0 0.0
        %1507 = vmatpush2.msra.mxu0 0.0
        %1508 = vmatprep.subr.mxu0 0.0
        %1509 = vmatpush2.msra.mxu0 0.0
        %1510 = vmatprep.subr.mxu0 0.0
        %1511 = vmatpush2.msra.mxu0 0.0
        %1512 = vmatprep.subr.mxu0 0.0
        %1513 = vmatpush2.msra.mxu0 0.0
        %1514 = vmatprep.subr.mxu0 0.0
        %1515 = vmatpush2.msra.mxu0 0.0
        %1516 = vmatprep.subr.mxu0 0.0
        %1517 = vmatpush2.msra.mxu0 0.0
        %1518 = vmatprep.subr.mxu0 0.0
        %1519 = vmatpush2.msra.mxu0 0.0
        %1520 = vmatprep.subr.mxu0 0.0
        %1521 = vmatpush2.msra.mxu0 0.0
        %1522 = vmatprep.subr.mxu0 0.0
        %1523 = vmatpush2.msra.mxu0 0.0
        %1524 = vmatprep.subr.mxu0 0.0
        %1525 = vmatpush2.msra.mxu0 0.0
        %1526 = vmatprep.subr.mxu0 0.0
        %1527 = vmatpush2.msra.mxu0 0.0
        %1528 = vmatprep.subr.mxu0 0.0
        %1529 = vmatpush2.msra.mxu0 0.0
        %1530 = vmatprep.subr.mxu0 0.0
        %1531 = vmatpush2.msra.mxu0 0.0
        %1532 = vmatprep.subr.mxu0 0.0
        %1533 = vmatpush2.msra.mxu0 0.0
        %1534 = vmatprep.subr.mxu0 0.0
        %1535 = vmatpush2.msra.mxu0 0.0
        %1536 = vmatprep.mubr.f32.mxu0 0.0
        %1537 = vmatmul.mubr.f32.gmra.mxu0 %v1425
        %v1538 = vpop.f32.mrf.mxu0
        %v1539 = vadd.f32 %v1422, %v1538
        %v1540 = vpop.f32.mrf.mxu0
        %1541 = vmatprep.mubr.f32.mxu0 0.0
        %1542 = vmatmul.mubr.f32.gmra.mxu0 %v1428
        %v1543 = vpop.f32.mrf.mxu0
        %v1544 = vadd.f32 %v1422, %v1543
        %v1545 = vpop.f32.mrf.mxu0
        %1546 = vmatprep.mubr.f32.mxu0 0.0
        %1547 = vmatmul.mubr.f32.gmra.mxu0 %v1431
        %v1548 = vpop.f32.mrf.mxu0
        %v1549 = vadd.f32 %v1422, %v1548
        %v1550 = vpop.f32.mrf.mxu0
        %1551 = vmatprep.mubr.f32.mxu0 0.0
        %1552 = vmatmul.mubr.f32.gmra.mxu0 %v1434
        %v1553 = vpop.f32.mrf.mxu0
        %v1554 = vadd.f32 %v1422, %v1553
        %v1555 = vpop.f32.mrf.mxu0
        %1556 = vmatprep.mubr.f32.mxu0 0.0
        %1557 = vmatmul.mubr.f32.gmra.mxu0 %v1437
        %v1558 = vpop.f32.mrf.mxu0
        %v1559 = vadd.f32 %v1422, %v1558
        %v1560 = vpop.f32.mrf.mxu0
        %1561 = vmatprep.mubr.f32.mxu0 0.0
        %1562 = vmatmul.mubr.f32.gmra.mxu0 %v1440
        %v1563 = vpop.f32.mrf.mxu0
        %v1564 = vadd.f32 %v1422, %v1563
        %v1565 = vpop.f32.mrf.mxu0
        %1566 = vmatprep.mubr.f32.mxu0 0.0
        %1567 = vmatmul.mubr.f32.gmra.mxu0 %v1443
        %v1568 = vpop.f32.mrf.mxu0
        %v1569 = vadd.f32 %v1422, %v1568
        %v1570 = vpop.f32.mrf.mxu0
        %1571 = vmatprep.mubr.f32.mxu0 0.0
        %1572 = vmatmul.mubr.f32.gmra.mxu0 %v1446
        %v1573 = vpop.f32.mrf.mxu0
        %v1574 = vadd.f32 %v1422, %v1573
        %v1575 = vpop.f32.mrf.mxu0
        %1576 = vmatprep.mubr.f32.mxu0 0.0
        %1577 = vmatmul.mubr.f32.gmra.mxu0 %v1449
        %v1578 = vpop.f32.mrf.mxu0
        %v1579 = vadd.f32 %v1422, %v1578
        %v1580 = vpop.f32.mrf.mxu0
        %1581 = vmatprep.mubr.f32.mxu0 0.0
        %1582 = vmatmul.mubr.f32.gmra.mxu0 %v1452
        %v1583 = vpop.f32.mrf.mxu0
        %v1584 = vadd.f32 %v1422, %v1583
        %v1585 = vpop.f32.mrf.mxu0
        %1586 = vmatprep.mubr.f32.mxu0 0.0
        %1587 = vmatmul.mubr.f32.gmra.mxu0 %v1455
        %v1588 = vpop.f32.mrf.mxu0
        %v1589 = vadd.f32 %v1422, %v1588
        %v1590 = vpop.f32.mrf.mxu0
        %1591 = vmatprep.mubr.f32.mxu0 0.0
        %1592 = vmatmul.mubr.f32.gmra.mxu0 %v1458
        %v1593 = vpop.f32.mrf.mxu0
        %v1594 = vadd.f32 %v1422, %v1593
        %v1595 = vpop.f32.mrf.mxu0
        %1596 = vmatprep.mubr.f32.mxu0 0.0
        %1597 = vmatmul.mubr.f32.gmra.mxu0 %v1461
        %v1598 = vpop.f32.mrf.mxu0
        %v1599 = vadd.f32 %v1422, %v1598
        %v1600 = vpop.f32.mrf.mxu0
        %1601 = vmatprep.mubr.f32.mxu0 0.0
        %1602 = vmatmul.mubr.f32.gmra.mxu0 %v1464
        %v1603 = vpop.f32.mrf.mxu0
        %v1604 = vadd.f32 %v1422, %v1603
        %v1605 = vpop.f32.mrf.mxu0
        %1606 = vmatprep.mubr.f32.mxu0 0.0
        %1607 = vmatmul.mubr.f32.gmra.mxu0 %v1467
        %v1608 = vpop.f32.mrf.mxu0
        %v1609 = vadd.f32 %v1422, %v1608
        %v1610 = vpop.f32.mrf.mxu0
        %1611 = vmatprep.mubr.f32.mxu0 0.0
        %1612 = vmatmul.mubr.f32.gmra.mxu0 %v1470
        %v1613 = vpop.f32.mrf.mxu0
        %v1614 = vadd.f32 %v1422, %v1613
        %v1615 = vpop.f32.mrf.mxu0
        %1616 = vdwg.mxu0
        %1618 = vrot.lane.b32.xlu0 %v1539, 112
        %v1619 = vpop.permute.xlu0 %1618
        %vm1620 = vcmask 130048
        %v1621 = vsel %vm1620, %v1539, 0
        %v1623 = vsel %vm1620, %v1619, 0
        %1625 = vmatprep.subr.mxu0 0.0
        %1626 = vmatpush1.xpose.msra.mxu0 0.0
        %1627 = vmatprep.subr.mxu0 0.0
        %1628 = vmatpush1.xpose.msra.mxu0 0.0
        %1629 = vmatprep.subr.mxu0 0.0
        %1630 = vmatpush1.xpose.msra.mxu0 0.0
        %1631 = vmatprep.subr.mxu0 0.0
        %1632 = vmatpush1.xpose.msra.mxu0 0.0
        %1633 = vmatprep.subr.mxu0 0.0
        %1634 = vmatpush1.xpose.msra.mxu0 0.0
        %1635 = vmatprep.subr.mxu0 0.0
        %1636 = vmatpush1.xpose.msra.mxu0 0.0
        %1637 = vmatprep.subr.mxu0 0.0
        %1638 = vmatpush1.xpose.msra.mxu0 0.0
        %1639 = vmatprep.subr.mxu0 0.0
        %1640 = vmatpush1.xpose.msra.mxu0 0.0
        %1641 = vmatprep.subr.mxu0 0.0
        %1642 = vmatpush1.xpose.msra.mxu0 0.0
        %1643 = vmatprep.subr.mxu0 0.0
        %1644 = vmatpush1.xpose.msra.mxu0 0.0
        %1645 = vmatprep.subr.mxu0 0.0
        %1646 = vmatpush1.xpose.msra.mxu0 0.0
        %1647 = vmatprep.subr.mxu0 0.0
        %1648 = vmatpush1.xpose.msra.mxu0 0.0
        %1649 = vmatprep.subr.mxu0 0.0
        %1650 = vmatpush1.xpose.msra.mxu0 0.0
        %1651 = vmatprep.subr.mxu0 0.0
        %1652 = vmatpush1.xpose.msra.mxu0 0.0
        %1653 = vmatprep.subr.mxu0 0.0
        %1654 = vmatpush1.xpose.msra.mxu0 0.0
        %1655 = vmatprep.subr.mxu0 0.0
        %1656 = vmatpush1.xpose.msra.mxu0 %v1623
        %1657 = vmatprep.subr.mxu0 0.0
        %1658 = vmatpush2.xpose.msra.mxu0 0.0
        %1659 = vmatprep.subr.mxu0 0.0
        %1660 = vmatpush2.xpose.msra.mxu0 0.0
        %1661 = vmatprep.subr.mxu0 0.0
        %1662 = vmatpush2.xpose.msra.mxu0 0.0
        %1663 = vmatprep.subr.mxu0 0.0
        %1664 = vmatpush2.xpose.msra.mxu0 0.0
        %1665 = vmatprep.subr.mxu0 0.0
        %1666 = vmatpush2.xpose.msra.mxu0 0.0
        %1667 = vmatprep.subr.mxu0 0.0
        %1668 = vmatpush2.xpose.msra.mxu0 0.0
        %1669 = vmatprep.subr.mxu0 0.0
        %1670 = vmatpush2.xpose.msra.mxu0 0.0
        %1671 = vmatprep.subr.mxu0 0.0
        %1672 = vmatpush2.xpose.msra.mxu0 0.0
        %1673 = vmatprep.subr.mxu0 0.0
        %1674 = vmatpush2.xpose.msra.mxu0 0.0
        %1675 = vmatprep.subr.mxu0 0.0
        %1676 = vmatpush2.xpose.msra.mxu0 0.0
        %1677 = vmatprep.subr.mxu0 0.0
        %1678 = vmatpush2.xpose.msra.mxu0 0.0
        %1679 = vmatprep.subr.mxu0 0.0
        %1680 = vmatpush2.xpose.msra.mxu0 0.0
        %1681 = vmatprep.subr.mxu0 0.0
        %1682 = vmatpush2.xpose.msra.mxu0 0.0
        %1683 = vmatprep.subr.mxu0 0.0
        %1684 = vmatpush2.xpose.msra.mxu0 0.0
        %1685 = vmatprep.subr.mxu0 0.0
        %1686 = vmatpush2.xpose.msra.mxu0 0.0
        %1687 = vmatprep.subr.mxu0 0.0
        %1688 = vmatpush2.xpose.msra.mxu0 0.0
        %1689 = vmatprep.mubr.f32.mxu0 0.0
        %1690 = vmatmul.mubr.f32.gmra.mxu0 %v1621
        %v1691 = vpop.f32.mrf.mxu0
        %v1692 = vadd.f32 0.0, %v1691
        %v1693 = vpop.f32.mrf.mxu0
        %1694 = vdwg.mxu0
        %1696 = vrot.lane.b32.xlu0 %v1544, 112
        %v1697 = vpop.permute.xlu0 %1696
        %v1698 = vsel %vm1620, %v1544, 0
        %v1700 = vsel %vm1620, %v1697, 0
        %1702 = vmatprep.subr.mxu0 0.0
        %1703 = vmatpush1.xpose.msra.mxu0 0.0
        %1704 = vmatprep.subr.mxu0 0.0
        %1705 = vmatpush1.xpose.msra.mxu0 0.0
        %1706 = vmatprep.subr.mxu0 0.0
        %1707 = vmatpush1.xpose.msra.mxu0 0.0
        %1708 = vmatprep.subr.mxu0 0.0
        %1709 = vmatpush1.xpose.msra.mxu0 0.0
        %1710 = vmatprep.subr.mxu0 0.0
        %1711 = vmatpush1.xpose.msra.mxu0 0.0
        %1712 = vmatprep.subr.mxu0 0.0
        %1713 = vmatpush1.xpose.msra.mxu0 0.0
        %1714 = vmatprep.subr.mxu0 0.0
        %1715 = vmatpush1.xpose.msra.mxu0 0.0
        %1716 = vmatprep.subr.mxu0 0.0
        %1717 = vmatpush1.xpose.msra.mxu0 0.0
        %1718 = vmatprep.subr.mxu0 0.0
        %1719 = vmatpush1.xpose.msra.mxu0 0.0
        %1720 = vmatprep.subr.mxu0 0.0
        %1721 = vmatpush1.xpose.msra.mxu0 0.0
        %1722 = vmatprep.subr.mxu0 0.0
        %1723 = vmatpush1.xpose.msra.mxu0 0.0
        %1724 = vmatprep.subr.mxu0 0.0
        %1725 = vmatpush1.xpose.msra.mxu0 0.0
        %1726 = vmatprep.subr.mxu0 0.0
        %1727 = vmatpush1.xpose.msra.mxu0 0.0
        %1728 = vmatprep.subr.mxu0 0.0
        %1729 = vmatpush1.xpose.msra.mxu0 0.0
        %1730 = vmatprep.subr.mxu0 0.0
        %1731 = vmatpush1.xpose.msra.mxu0 0.0
        %1732 = vmatprep.subr.mxu0 0.0
        %1733 = vmatpush1.xpose.msra.mxu0 %v1700
        %1734 = vmatprep.subr.mxu0 0.0
        %1735 = vmatpush2.xpose.msra.mxu0 0.0
        %1736 = vmatprep.subr.mxu0 0.0
        %1737 = vmatpush2.xpose.msra.mxu0 0.0
        %1738 = vmatprep.subr.mxu0 0.0
        %1739 = vmatpush2.xpose.msra.mxu0 0.0
        %1740 = vmatprep.subr.mxu0 0.0
        %1741 = vmatpush2.xpose.msra.mxu0 0.0
        %1742 = vmatprep.subr.mxu0 0.0
        %1743 = vmatpush2.xpose.msra.mxu0 0.0
        %1744 = vmatprep.subr.mxu0 0.0
        %1745 = vmatpush2.xpose.msra.mxu0 0.0
        %1746 = vmatprep.subr.mxu0 0.0
        %1747 = vmatpush2.xpose.msra.mxu0 0.0
        %1748 = vmatprep.subr.mxu0 0.0
        %1749 = vmatpush2.xpose.msra.mxu0 0.0
        %1750 = vmatprep.subr.mxu0 0.0
        %1751 = vmatpush2.xpose.msra.mxu0 0.0
        %1752 = vmatprep.subr.mxu0 0.0
        %1753 = vmatpush2.xpose.msra.mxu0 0.0
        %1754 = vmatprep.subr.mxu0 0.0
        %1755 = vmatpush2.xpose.msra.mxu0 0.0
        %1756 = vmatprep.subr.mxu0 0.0
        %1757 = vmatpush2.xpose.msra.mxu0 0.0
        %1758 = vmatprep.subr.mxu0 0.0
        %1759 = vmatpush2.xpose.msra.mxu0 0.0
        %1760 = vmatprep.subr.mxu0 0.0
        %1761 = vmatpush2.xpose.msra.mxu0 0.0
        %1762 = vmatprep.subr.mxu0 0.0
        %1763 = vmatpush2.xpose.msra.mxu0 0.0
        %1764 = vmatprep.subr.mxu0 0.0
        %1765 = vmatpush2.xpose.msra.mxu0 0.0
        %1766 = vmatprep.mubr.f32.mxu0 0.0
        %1767 = vmatmul.mubr.f32.gmra.mxu0 %v1698
        %v1768 = vpop.f32.mrf.mxu0
        %v1769 = vadd.f32 0.0, %v1768
        %v1770 = vpop.f32.mrf.mxu0
        %1771 = vdwg.mxu0
        %1773 = vrot.lane.b32.xlu0 %v1549, 112
        %v1774 = vpop.permute.xlu0 %1773
        %v1775 = vsel %vm1620, %v1549, 0
        %v1777 = vsel %vm1620, %v1774, 0
        %1779 = vmatprep.subr.mxu0 0.0
        %1780 = vmatpush1.xpose.msra.mxu0 0.0
        %1781 = vmatprep.subr.mxu0 0.0
        %1782 = vmatpush1.xpose.msra.mxu0 0.0
        %1783 = vmatprep.subr.mxu0 0.0
        %1784 = vmatpush1.xpose.msra.mxu0 0.0
        %1785 = vmatprep.subr.mxu0 0.0
        %1786 = vmatpush1.xpose.msra.mxu0 0.0
        %1787 = vmatprep.subr.mxu0 0.0
        %1788 = vmatpush1.xpose.msra.mxu0 0.0
        %1789 = vmatprep.subr.mxu0 0.0
        %1790 = vmatpush1.xpose.msra.mxu0 0.0
        %1791 = vmatprep.subr.mxu0 0.0
        %1792 = vmatpush1.xpose.msra.mxu0 0.0
        %1793 = vmatprep.subr.mxu0 0.0
        %1794 = vmatpush1.xpose.msra.mxu0 0.0
        %1795 = vmatprep.subr.mxu0 0.0
        %1796 = vmatpush1.xpose.msra.mxu0 0.0
        %1797 = vmatprep.subr.mxu0 0.0
        %1798 = vmatpush1.xpose.msra.mxu0 0.0
        %1799 = vmatprep.subr.mxu0 0.0
        %1800 = vmatpush1.xpose.msra.mxu0 0.0
        %1801 = vmatprep.subr.mxu0 0.0
        %1802 = vmatpush1.xpose.msra.mxu0 0.0
        %1803 = vmatprep.subr.mxu0 0.0
        %1804 = vmatpush1.xpose.msra.mxu0 0.0
        %1805 = vmatprep.subr.mxu0 0.0
        %1806 = vmatpush1.xpose.msra.mxu0 0.0
        %1807 = vmatprep.subr.mxu0 0.0
        %1808 = vmatpush1.xpose.msra.mxu0 0.0
        %1809 = vmatprep.subr.mxu0 0.0
        %1810 = vmatpush1.xpose.msra.mxu0 %v1777
        %1811 = vmatprep.subr.mxu0 0.0
        %1812 = vmatpush2.xpose.msra.mxu0 0.0
        %1813 = vmatprep.subr.mxu0 0.0
        %1814 = vmatpush2.xpose.msra.mxu0 0.0
        %1815 = vmatprep.subr.mxu0 0.0
        %1816 = vmatpush2.xpose.msra.mxu0 0.0
        %1817 = vmatprep.subr.mxu0 0.0
        %1818 = vmatpush2.xpose.msra.mxu0 0.0
        %1819 = vmatprep.subr.mxu0 0.0
        %1820 = vmatpush2.xpose.msra.mxu0 0.0
        %1821 = vmatprep.subr.mxu0 0.0
        %1822 = vmatpush2.xpose.msra.mxu0 0.0
        %1823 = vmatprep.subr.mxu0 0.0
        %1824 = vmatpush2.xpose.msra.mxu0 0.0
        %1825 = vmatprep.subr.mxu0 0.0
        %1826 = vmatpush2.xpose.msra.mxu0 0.0
        %1827 = vmatprep.subr.mxu0 0.0
        %1828 = vmatpush2.xpose.msra.mxu0 0.0
        %1829 = vmatprep.subr.mxu0 0.0
        %1830 = vmatpush2.xpose.msra.mxu0 0.0
        %1831 = vmatprep.subr.mxu0 0.0
        %1832 = vmatpush2.xpose.msra.mxu0 0.0
        %1833 = vmatprep.subr.mxu0 0.0
        %1834 = vmatpush2.xpose.msra.mxu0 0.0
        %1835 = vmatprep.subr.mxu0 0.0
        %1836 = vmatpush2.xpose.msra.mxu0 0.0
        %1837 = vmatprep.subr.mxu0 0.0
        %1838 = vmatpush2.xpose.msra.mxu0 0.0
        %1839 = vmatprep.subr.mxu0 0.0
        %1840 = vmatpush2.xpose.msra.mxu0 0.0
        %1841 = vmatprep.subr.mxu0 0.0
        %1842 = vmatpush2.xpose.msra.mxu0 0.0
        %1843 = vmatprep.mubr.f32.mxu0 0.0
        %1844 = vmatmul.mubr.f32.gmra.mxu0 %v1775
        %v1845 = vpop.f32.mrf.mxu0
        %v1846 = vadd.f32 0.0, %v1845
        %v1847 = vpop.f32.mrf.mxu0
        %1848 = vdwg.mxu0
        %1850 = vrot.lane.b32.xlu0 %v1554, 112
        %v1851 = vpop.permute.xlu0 %1850
        %v1852 = vsel %vm1620, %v1554, 0
        %v1854 = vsel %vm1620, %v1851, 0
        %1856 = vmatprep.subr.mxu0 0.0
        %1857 = vmatpush1.xpose.msra.mxu0 0.0
        %1858 = vmatprep.subr.mxu0 0.0
        %1859 = vmatpush1.xpose.msra.mxu0 0.0
        %1860 = vmatprep.subr.mxu0 0.0
        %1861 = vmatpush1.xpose.msra.mxu0 0.0
        %1862 = vmatprep.subr.mxu0 0.0
        %1863 = vmatpush1.xpose.msra.mxu0 0.0
        %1864 = vmatprep.subr.mxu0 0.0
        %1865 = vmatpush1.xpose.msra.mxu0 0.0
        %1866 = vmatprep.subr.mxu0 0.0
        %1867 = vmatpush1.xpose.msra.mxu0 0.0
        %1868 = vmatprep.subr.mxu0 0.0
        %1869 = vmatpush1.xpose.msra.mxu0 0.0
        %1870 = vmatprep.subr.mxu0 0.0
        %1871 = vmatpush1.xpose.msra.mxu0 0.0
        %1872 = vmatprep.subr.mxu0 0.0
        %1873 = vmatpush1.xpose.msra.mxu0 0.0
        %1874 = vmatprep.subr.mxu0 0.0
        %1875 = vmatpush1.xpose.msra.mxu0 0.0
        %1876 = vmatprep.subr.mxu0 0.0
        %1877 = vmatpush1.xpose.msra.mxu0 0.0
        %1878 = vmatprep.subr.mxu0 0.0
        %1879 = vmatpush1.xpose.msra.mxu0 0.0
        %1880 = vmatprep.subr.mxu0 0.0
        %1881 = vmatpush1.xpose.msra.mxu0 0.0
        %1882 = vmatprep.subr.mxu0 0.0
        %1883 = vmatpush1.xpose.msra.mxu0 0.0
        %1884 = vmatprep.subr.mxu0 0.0
        %1885 = vmatpush1.xpose.msra.mxu0 0.0
        %1886 = vmatprep.subr.mxu0 0.0
        %1887 = vmatpush1.xpose.msra.mxu0 %v1854
        %1888 = vmatprep.subr.mxu0 0.0
        %1889 = vmatpush2.xpose.msra.mxu0 0.0
        %1890 = vmatprep.subr.mxu0 0.0
        %1891 = vmatpush2.xpose.msra.mxu0 0.0
        %1892 = vmatprep.subr.mxu0 0.0
        %1893 = vmatpush2.xpose.msra.mxu0 0.0
        %1894 = vmatprep.subr.mxu0 0.0
        %1895 = vmatpush2.xpose.msra.mxu0 0.0
        %1896 = vmatprep.subr.mxu0 0.0
        %1897 = vmatpush2.xpose.msra.mxu0 0.0
        %1898 = vmatprep.subr.mxu0 0.0
        %1899 = vmatpush2.xpose.msra.mxu0 0.0
        %1900 = vmatprep.subr.mxu0 0.0
        %1901 = vmatpush2.xpose.msra.mxu0 0.0
        %1902 = vmatprep.subr.mxu0 0.0
        %1903 = vmatpush2.xpose.msra.mxu0 0.0
        %1904 = vmatprep.subr.mxu0 0.0
        %1905 = vmatpush2.xpose.msra.mxu0 0.0
        %1906 = vmatprep.subr.mxu0 0.0
        %1907 = vmatpush2.xpose.msra.mxu0 0.0
        %1908 = vmatprep.subr.mxu0 0.0
        %1909 = vmatpush2.xpose.msra.mxu0 0.0
        %1910 = vmatprep.subr.mxu0 0.0
        %1911 = vmatpush2.xpose.msra.mxu0 0.0
        %1912 = vmatprep.subr.mxu0 0.0
        %1913 = vmatpush2.xpose.msra.mxu0 0.0
        %1914 = vmatprep.subr.mxu0 0.0
        %1915 = vmatpush2.xpose.msra.mxu0 0.0
        %1916 = vmatprep.subr.mxu0 0.0
        %1917 = vmatpush2.xpose.msra.mxu0 0.0
        %1918 = vmatprep.subr.mxu0 0.0
        %1919 = vmatpush2.xpose.msra.mxu0 0.0
        %1920 = vmatprep.mubr.f32.mxu0 0.0
        %1921 = vmatmul.mubr.f32.gmra.mxu0 %v1852
        %v1922 = vpop.f32.mrf.mxu0
        %v1923 = vadd.f32 0.0, %v1922
        %v1924 = vpop.f32.mrf.mxu0
        %1925 = vdwg.mxu0
        %1927 = vrot.lane.b32.xlu0 %v1559, 112
        %v1928 = vpop.permute.xlu0 %1927
        %v1929 = vsel %vm1620, %v1559, 0
        %v1931 = vsel %vm1620, %v1928, 0
        %1933 = vmatprep.subr.mxu0 0.0
        %1934 = vmatpush1.xpose.msra.mxu0 0.0
        %1935 = vmatprep.subr.mxu0 0.0
        %1936 = vmatpush1.xpose.msra.mxu0 0.0
        %1937 = vmatprep.subr.mxu0 0.0
        %1938 = vmatpush1.xpose.msra.mxu0 0.0
        %1939 = vmatprep.subr.mxu0 0.0
        %1940 = vmatpush1.xpose.msra.mxu0 0.0
        %1941 = vmatprep.subr.mxu0 0.0
        %1942 = vmatpush1.xpose.msra.mxu0 0.0
        %1943 = vmatprep.subr.mxu0 0.0
        %1944 = vmatpush1.xpose.msra.mxu0 0.0
        %1945 = vmatprep.subr.mxu0 0.0
        %1946 = vmatpush1.xpose.msra.mxu0 0.0
        %1947 = vmatprep.subr.mxu0 0.0
        %1948 = vmatpush1.xpose.msra.mxu0 0.0
        %1949 = vmatprep.subr.mxu0 0.0
        %1950 = vmatpush1.xpose.msra.mxu0 0.0
        %1951 = vmatprep.subr.mxu0 0.0
        %1952 = vmatpush1.xpose.msra.mxu0 0.0
        %1953 = vmatprep.subr.mxu0 0.0
        %1954 = vmatpush1.xpose.msra.mxu0 0.0
        %1955 = vmatprep.subr.mxu0 0.0
        %1956 = vmatpush1.xpose.msra.mxu0 0.0
        %1957 = vmatprep.subr.mxu0 0.0
        %1958 = vmatpush1.xpose.msra.mxu0 0.0
        %1959 = vmatprep.subr.mxu0 0.0
        %1960 = vmatpush1.xpose.msra.mxu0 0.0
        %1961 = vmatprep.subr.mxu0 0.0
        %1962 = vmatpush1.xpose.msra.mxu0 0.0
        %1963 = vmatprep.subr.mxu0 0.0
        %1964 = vmatpush1.xpose.msra.mxu0 %v1931
        %1965 = vmatprep.subr.mxu0 0.0
        %1966 = vmatpush2.xpose.msra.mxu0 0.0
        %1967 = vmatprep.subr.mxu0 0.0
        %1968 = vmatpush2.xpose.msra.mxu0 0.0
        %1969 = vmatprep.subr.mxu0 0.0
        %1970 = vmatpush2.xpose.msra.mxu0 0.0
        %1971 = vmatprep.subr.mxu0 0.0
        %1972 = vmatpush2.xpose.msra.mxu0 0.0
        %1973 = vmatprep.subr.mxu0 0.0
        %1974 = vmatpush2.xpose.msra.mxu0 0.0
        %1975 = vmatprep.subr.mxu0 0.0
        %1976 = vmatpush2.xpose.msra.mxu0 0.0
        %1977 = vmatprep.subr.mxu0 0.0
        %1978 = vmatpush2.xpose.msra.mxu0 0.0
        %1979 = vmatprep.subr.mxu0 0.0
        %1980 = vmatpush2.xpose.msra.mxu0 0.0
        %1981 = vmatprep.subr.mxu0 0.0
        %1982 = vmatpush2.xpose.msra.mxu0 0.0
        %1983 = vmatprep.subr.mxu0 0.0
        %1984 = vmatpush2.xpose.msra.mxu0 0.0
        %1985 = vmatprep.subr.mxu0 0.0
        %1986 = vmatpush2.xpose.msra.mxu0 0.0
        %1987 = vmatprep.subr.mxu0 0.0
        %1988 = vmatpush2.xpose.msra.mxu0 0.0
        %1989 = vmatprep.subr.mxu0 0.0
        %1990 = vmatpush2.xpose.msra.mxu0 0.0
        %1991 = vmatprep.subr.mxu0 0.0
        %1992 = vmatpush2.xpose.msra.mxu0 0.0
        %1993 = vmatprep.subr.mxu0 0.0
        %1994 = vmatpush2.xpose.msra.mxu0 0.0
        %1995 = vmatprep.subr.mxu0 0.0
        %1996 = vmatpush2.xpose.msra.mxu0 0.0
        %1997 = vmatprep.mubr.f32.mxu0 0.0
        %1998 = vmatmul.mubr.f32.gmra.mxu0 %v1929
        %v1999 = vpop.f32.mrf.mxu0
        %v2000 = vadd.f32 0.0, %v1999
        %v2001 = vpop.f32.mrf.mxu0
        %2002 = vdwg.mxu0
        %2004 = vrot.lane.b32.xlu0 %v1564, 112
        %v2005 = vpop.permute.xlu0 %2004
        %v2006 = vsel %vm1620, %v1564, 0
        %v2008 = vsel %vm1620, %v2005, 0
        %2010 = vmatprep.subr.mxu0 0.0
        %2011 = vmatpush1.xpose.msra.mxu0 0.0
        %2012 = vmatprep.subr.mxu0 0.0
        %2013 = vmatpush1.xpose.msra.mxu0 0.0
        %2014 = vmatprep.subr.mxu0 0.0
        %2015 = vmatpush1.xpose.msra.mxu0 0.0
        %2016 = vmatprep.subr.mxu0 0.0
        %2017 = vmatpush1.xpose.msra.mxu0 0.0
        %2018 = vmatprep.subr.mxu0 0.0
        %2019 = vmatpush1.xpose.msra.mxu0 0.0
        %2020 = vmatprep.subr.mxu0 0.0
        %2021 = vmatpush1.xpose.msra.mxu0 0.0
        %2022 = vmatprep.subr.mxu0 0.0
        %2023 = vmatpush1.xpose.msra.mxu0 0.0
        %2024 = vmatprep.subr.mxu0 0.0
        %2025 = vmatpush1.xpose.msra.mxu0 0.0
        %2026 = vmatprep.subr.mxu0 0.0
        %2027 = vmatpush1.xpose.msra.mxu0 0.0
        %2028 = vmatprep.subr.mxu0 0.0
        %2029 = vmatpush1.xpose.msra.mxu0 0.0
        %2030 = vmatprep.subr.mxu0 0.0
        %2031 = vmatpush1.xpose.msra.mxu0 0.0
        %2032 = vmatprep.subr.mxu0 0.0
        %2033 = vmatpush1.xpose.msra.mxu0 0.0
        %2034 = vmatprep.subr.mxu0 0.0
        %2035 = vmatpush1.xpose.msra.mxu0 0.0
        %2036 = vmatprep.subr.mxu0 0.0
        %2037 = vmatpush1.xpose.msra.mxu0 0.0
        %2038 = vmatprep.subr.mxu0 0.0
        %2039 = vmatpush1.xpose.msra.mxu0 0.0
        %2040 = vmatprep.subr.mxu0 0.0
        %2041 = vmatpush1.xpose.msra.mxu0 %v2008
        %2042 = vmatprep.subr.mxu0 0.0
        %2043 = vmatpush2.xpose.msra.mxu0 0.0
        %2044 = vmatprep.subr.mxu0 0.0
        %2045 = vmatpush2.xpose.msra.mxu0 0.0
        %2046 = vmatprep.subr.mxu0 0.0
        %2047 = vmatpush2.xpose.msra.mxu0 0.0
        %2048 = vmatprep.subr.mxu0 0.0
        %2049 = vmatpush2.xpose.msra.mxu0 0.0
        %2050 = vmatprep.subr.mxu0 0.0
        %2051 = vmatpush2.xpose.msra.mxu0 0.0
        %2052 = vmatprep.subr.mxu0 0.0
        %2053 = vmatpush2.xpose.msra.mxu0 0.0
        %2054 = vmatprep.subr.mxu0 0.0
        %2055 = vmatpush2.xpose.msra.mxu0 0.0
        %2056 = vmatprep.subr.mxu0 0.0
        %2057 = vmatpush2.xpose.msra.mxu0 0.0
        %2058 = vmatprep.subr.mxu0 0.0
        %2059 = vmatpush2.xpose.msra.mxu0 0.0
        %2060 = vmatprep.subr.mxu0 0.0
        %2061 = vmatpush2.xpose.msra.mxu0 0.0
        %2062 = vmatprep.subr.mxu0 0.0
        %2063 = vmatpush2.xpose.msra.mxu0 0.0
        %2064 = vmatprep.subr.mxu0 0.0
        %2065 = vmatpush2.xpose.msra.mxu0 0.0
        %2066 = vmatprep.subr.mxu0 0.0
        %2067 = vmatpush2.xpose.msra.mxu0 0.0
        %2068 = vmatprep.subr.mxu0 0.0
        %2069 = vmatpush2.xpose.msra.mxu0 0.0
        %2070 = vmatprep.subr.mxu0 0.0
        %2071 = vmatpush2.xpose.msra.mxu0 0.0
        %2072 = vmatprep.subr.mxu0 0.0
        %2073 = vmatpush2.xpose.msra.mxu0 0.0
        %2074 = vmatprep.mubr.f32.mxu0 0.0
        %2075 = vmatmul.mubr.f32.gmra.mxu0 %v2006
        %v2076 = vpop.f32.mrf.mxu0
        %v2077 = vadd.f32 0.0, %v2076
        %v2078 = vpop.f32.mrf.mxu0
        %2079 = vdwg.mxu0
        %2081 = vrot.lane.b32.xlu0 %v1569, 112
        %v2082 = vpop.permute.xlu0 %2081
        %v2083 = vsel %vm1620, %v1569, 0
        %v2085 = vsel %vm1620, %v2082, 0
        %2087 = vmatprep.subr.mxu0 0.0
        %2088 = vmatpush1.xpose.msra.mxu0 0.0
        %2089 = vmatprep.subr.mxu0 0.0
        %2090 = vmatpush1.xpose.msra.mxu0 0.0
        %2091 = vmatprep.subr.mxu0 0.0
        %2092 = vmatpush1.xpose.msra.mxu0 0.0
        %2093 = vmatprep.subr.mxu0 0.0
        %2094 = vmatpush1.xpose.msra.mxu0 0.0
        %2095 = vmatprep.subr.mxu0 0.0
        %2096 = vmatpush1.xpose.msra.mxu0 0.0
        %2097 = vmatprep.subr.mxu0 0.0
        %2098 = vmatpush1.xpose.msra.mxu0 0.0
        %2099 = vmatprep.subr.mxu0 0.0
        %2100 = vmatpush1.xpose.msra.mxu0 0.0
        %2101 = vmatprep.subr.mxu0 0.0
        %2102 = vmatpush1.xpose.msra.mxu0 0.0
        %2103 = vmatprep.subr.mxu0 0.0
        %2104 = vmatpush1.xpose.msra.mxu0 0.0
        %2105 = vmatprep.subr.mxu0 0.0
        %2106 = vmatpush1.xpose.msra.mxu0 0.0
        %2107 = vmatprep.subr.mxu0 0.0
        %2108 = vmatpush1.xpose.msra.mxu0 0.0
        %2109 = vmatprep.subr.mxu0 0.0
        %2110 = vmatpush1.xpose.msra.mxu0 0.0
        %2111 = vmatprep.subr.mxu0 0.0
        %2112 = vmatpush1.xpose.msra.mxu0 0.0
        %2113 = vmatprep.subr.mxu0 0.0
        %2114 = vmatpush1.xpose.msra.mxu0 0.0
        %2115 = vmatprep.subr.mxu0 0.0
        %2116 = vmatpush1.xpose.msra.mxu0 0.0
        %2117 = vmatprep.subr.mxu0 0.0
        %2118 = vmatpush1.xpose.msra.mxu0 %v2085
        %2119 = vmatprep.subr.mxu0 0.0
        %2120 = vmatpush2.xpose.msra.mxu0 0.0
        %2121 = vmatprep.subr.mxu0 0.0
        %2122 = vmatpush2.xpose.msra.mxu0 0.0
        %2123 = vmatprep.subr.mxu0 0.0
        %2124 = vmatpush2.xpose.msra.mxu0 0.0
        %2125 = vmatprep.subr.mxu0 0.0
        %2126 = vmatpush2.xpose.msra.mxu0 0.0
        %2127 = vmatprep.subr.mxu0 0.0
        %2128 = vmatpush2.xpose.msra.mxu0 0.0
        %2129 = vmatprep.subr.mxu0 0.0
        %2130 = vmatpush2.xpose.msra.mxu0 0.0
        %2131 = vmatprep.subr.mxu0 0.0
        %2132 = vmatpush2.xpose.msra.mxu0 0.0
        %2133 = vmatprep.subr.mxu0 0.0
        %2134 = vmatpush2.xpose.msra.mxu0 0.0
        %2135 = vmatprep.subr.mxu0 0.0
        %2136 = vmatpush2.xpose.msra.mxu0 0.0
        %2137 = vmatprep.subr.mxu0 0.0
        %2138 = vmatpush2.xpose.msra.mxu0 0.0
        %2139 = vmatprep.subr.mxu0 0.0
        %2140 = vmatpush2.xpose.msra.mxu0 0.0
        %2141 = vmatprep.subr.mxu0 0.0
        %2142 = vmatpush2.xpose.msra.mxu0 0.0
        %2143 = vmatprep.subr.mxu0 0.0
        %2144 = vmatpush2.xpose.msra.mxu0 0.0
        %2145 = vmatprep.subr.mxu0 0.0
        %2146 = vmatpush2.xpose.msra.mxu0 0.0
        %2147 = vmatprep.subr.mxu0 0.0
        %2148 = vmatpush2.xpose.msra.mxu0 0.0
        %2149 = vmatprep.subr.mxu0 0.0
        %2150 = vmatpush2.xpose.msra.mxu0 0.0
        %2151 = vmatprep.mubr.f32.mxu0 0.0
        %2152 = vmatmul.mubr.f32.gmra.mxu0 %v2083
        %v2153 = vpop.f32.mrf.mxu0
        %v2154 = vadd.f32 0.0, %v2153
        %v2155 = vpop.f32.mrf.mxu0
        %2156 = vdwg.mxu0
        %2158 = vrot.lane.b32.xlu0 %v1574, 112
        %v2159 = vpop.permute.xlu0 %2158
        %v2160 = vsel %vm1620, %v1574, 0
        %v2162 = vsel %vm1620, %v2159, 0
        %2164 = vmatprep.subr.mxu0 0.0
        %2165 = vmatpush1.xpose.msra.mxu0 0.0
        %2166 = vmatprep.subr.mxu0 0.0
        %2167 = vmatpush1.xpose.msra.mxu0 0.0
        %2168 = vmatprep.subr.mxu0 0.0
        %2169 = vmatpush1.xpose.msra.mxu0 0.0
        %2170 = vmatprep.subr.mxu0 0.0
        %2171 = vmatpush1.xpose.msra.mxu0 0.0
        %2172 = vmatprep.subr.mxu0 0.0
        %2173 = vmatpush1.xpose.msra.mxu0 0.0
        %2174 = vmatprep.subr.mxu0 0.0
        %2175 = vmatpush1.xpose.msra.mxu0 0.0
        %2176 = vmatprep.subr.mxu0 0.0
        %2177 = vmatpush1.xpose.msra.mxu0 0.0
        %2178 = vmatprep.subr.mxu0 0.0
        %2179 = vmatpush1.xpose.msra.mxu0 0.0
        %2180 = vmatprep.subr.mxu0 0.0
        %2181 = vmatpush1.xpose.msra.mxu0 0.0
        %2182 = vmatprep.subr.mxu0 0.0
        %2183 = vmatpush1.xpose.msra.mxu0 0.0
        %2184 = vmatprep.subr.mxu0 0.0
        %2185 = vmatpush1.xpose.msra.mxu0 0.0
        %2186 = vmatprep.subr.mxu0 0.0
        %2187 = vmatpush1.xpose.msra.mxu0 0.0
        %2188 = vmatprep.subr.mxu0 0.0
        %2189 = vmatpush1.xpose.msra.mxu0 0.0
        %2190 = vmatprep.subr.mxu0 0.0
        %2191 = vmatpush1.xpose.msra.mxu0 0.0
        %2192 = vmatprep.subr.mxu0 0.0
        %2193 = vmatpush1.xpose.msra.mxu0 0.0
        %2194 = vmatprep.subr.mxu0 0.0
        %2195 = vmatpush1.xpose.msra.mxu0 %v2162
        %2196 = vmatprep.subr.mxu0 0.0
        %2197 = vmatpush2.xpose.msra.mxu0 0.0
        %2198 = vmatprep.subr.mxu0 0.0
        %2199 = vmatpush2.xpose.msra.mxu0 0.0
        %2200 = vmatprep.subr.mxu0 0.0
        %2201 = vmatpush2.xpose.msra.mxu0 0.0
        %2202 = vmatprep.subr.mxu0 0.0
        %2203 = vmatpush2.xpose.msra.mxu0 0.0
        %2204 = vmatprep.subr.mxu0 0.0
        %2205 = vmatpush2.xpose.msra.mxu0 0.0
        %2206 = vmatprep.subr.mxu0 0.0
        %2207 = vmatpush2.xpose.msra.mxu0 0.0
        %2208 = vmatprep.subr.mxu0 0.0
        %2209 = vmatpush2.xpose.msra.mxu0 0.0
        %2210 = vmatprep.subr.mxu0 0.0
        %2211 = vmatpush2.xpose.msra.mxu0 0.0
        %2212 = vmatprep.subr.mxu0 0.0
        %2213 = vmatpush2.xpose.msra.mxu0 0.0
        %2214 = vmatprep.subr.mxu0 0.0
        %2215 = vmatpush2.xpose.msra.mxu0 0.0
        %2216 = vmatprep.subr.mxu0 0.0
        %2217 = vmatpush2.xpose.msra.mxu0 0.0
        %2218 = vmatprep.subr.mxu0 0.0
        %2219 = vmatpush2.xpose.msra.mxu0 0.0
        %2220 = vmatprep.subr.mxu0 0.0
        %2221 = vmatpush2.xpose.msra.mxu0 0.0
        %2222 = vmatprep.subr.mxu0 0.0
        %2223 = vmatpush2.xpose.msra.mxu0 0.0
        %2224 = vmatprep.subr.mxu0 0.0
        %2225 = vmatpush2.xpose.msra.mxu0 0.0
        %2226 = vmatprep.subr.mxu0 0.0
        %2227 = vmatpush2.xpose.msra.mxu0 0.0
        %2228 = vmatprep.mubr.f32.mxu0 0.0
        %2229 = vmatmul.mubr.f32.gmra.mxu0 %v2160
        %v2230 = vpop.f32.mrf.mxu0
        %v2231 = vadd.f32 0.0, %v2230
        %v2232 = vpop.f32.mrf.mxu0
        %2233 = vdwg.mxu0
        %2235 = vrot.lane.b32.xlu0 %v1579, 112
        %v2236 = vpop.permute.xlu0 %2235
        %v2237 = vsel %vm1620, %v1579, 0
        %v2239 = vsel %vm1620, %v2236, 0
        %2241 = vmatprep.subr.mxu0 0.0
        %2242 = vmatpush1.xpose.msra.mxu0 0.0
        %2243 = vmatprep.subr.mxu0 0.0
        %2244 = vmatpush1.xpose.msra.mxu0 0.0
        %2245 = vmatprep.subr.mxu0 0.0
        %2246 = vmatpush1.xpose.msra.mxu0 0.0
        %2247 = vmatprep.subr.mxu0 0.0
        %2248 = vmatpush1.xpose.msra.mxu0 0.0
        %2249 = vmatprep.subr.mxu0 0.0
        %2250 = vmatpush1.xpose.msra.mxu0 0.0
        %2251 = vmatprep.subr.mxu0 0.0
        %2252 = vmatpush1.xpose.msra.mxu0 0.0
        %2253 = vmatprep.subr.mxu0 0.0
        %2254 = vmatpush1.xpose.msra.mxu0 0.0
        %2255 = vmatprep.subr.mxu0 0.0
        %2256 = vmatpush1.xpose.msra.mxu0 0.0
        %2257 = vmatprep.subr.mxu0 0.0
        %2258 = vmatpush1.xpose.msra.mxu0 0.0
        %2259 = vmatprep.subr.mxu0 0.0
        %2260 = vmatpush1.xpose.msra.mxu0 0.0
        %2261 = vmatprep.subr.mxu0 0.0
        %2262 = vmatpush1.xpose.msra.mxu0 0.0
        %2263 = vmatprep.subr.mxu0 0.0
        %2264 = vmatpush1.xpose.msra.mxu0 0.0
        %2265 = vmatprep.subr.mxu0 0.0
        %2266 = vmatpush1.xpose.msra.mxu0 0.0
        %2267 = vmatprep.subr.mxu0 0.0
        %2268 = vmatpush1.xpose.msra.mxu0 0.0
        %2269 = vmatprep.subr.mxu0 0.0
        %2270 = vmatpush1.xpose.msra.mxu0 0.0
        %2271 = vmatprep.subr.mxu0 0.0
        %2272 = vmatpush1.xpose.msra.mxu0 %v2239
        %2273 = vmatprep.subr.mxu0 0.0
        %2274 = vmatpush2.xpose.msra.mxu0 0.0
        %2275 = vmatprep.subr.mxu0 0.0
        %2276 = vmatpush2.xpose.msra.mxu0 0.0
        %2277 = vmatprep.subr.mxu0 0.0
        %2278 = vmatpush2.xpose.msra.mxu0 0.0
        %2279 = vmatprep.subr.mxu0 0.0
        %2280 = vmatpush2.xpose.msra.mxu0 0.0
        %2281 = vmatprep.subr.mxu0 0.0
        %2282 = vmatpush2.xpose.msra.mxu0 0.0
        %2283 = vmatprep.subr.mxu0 0.0
        %2284 = vmatpush2.xpose.msra.mxu0 0.0
        %2285 = vmatprep.subr.mxu0 0.0
        %2286 = vmatpush2.xpose.msra.mxu0 0.0
        %2287 = vmatprep.subr.mxu0 0.0
        %2288 = vmatpush2.xpose.msra.mxu0 0.0
        %2289 = vmatprep.subr.mxu0 0.0
        %2290 = vmatpush2.xpose.msra.mxu0 0.0
        %2291 = vmatprep.subr.mxu0 0.0
        %2292 = vmatpush2.xpose.msra.mxu0 0.0
        %2293 = vmatprep.subr.mxu0 0.0
        %2294 = vmatpush2.xpose.msra.mxu0 0.0
        %2295 = vmatprep.subr.mxu0 0.0
        %2296 = vmatpush2.xpose.msra.mxu0 0.0
        %2297 = vmatprep.subr.mxu0 0.0
        %2298 = vmatpush2.xpose.msra.mxu0 0.0
        %2299 = vmatprep.subr.mxu0 0.0
        %2300 = vmatpush2.xpose.msra.mxu0 0.0
        %2301 = vmatprep.subr.mxu0 0.0
        %2302 = vmatpush2.xpose.msra.mxu0 0.0
        %2303 = vmatprep.subr.mxu0 0.0
        %2304 = vmatpush2.xpose.msra.mxu0 0.0
        %2305 = vmatprep.mubr.f32.mxu0 0.0
        %2306 = vmatmul.mubr.f32.gmra.mxu0 %v2237
        %v2307 = vpop.f32.mrf.mxu0
        %v2308 = vadd.f32 0.0, %v2307
        %v2309 = vpop.f32.mrf.mxu0
        %2310 = vdwg.mxu0
        %2312 = vrot.lane.b32.xlu0 %v1584, 112
        %v2313 = vpop.permute.xlu0 %2312
        %v2314 = vsel %vm1620, %v1584, 0
        %v2316 = vsel %vm1620, %v2313, 0
        %2318 = vmatprep.subr.mxu0 0.0
        %2319 = vmatpush1.xpose.msra.mxu0 0.0
        %2320 = vmatprep.subr.mxu0 0.0
        %2321 = vmatpush1.xpose.msra.mxu0 0.0
        %2322 = vmatprep.subr.mxu0 0.0
        %2323 = vmatpush1.xpose.msra.mxu0 0.0
        %2324 = vmatprep.subr.mxu0 0.0
        %2325 = vmatpush1.xpose.msra.mxu0 0.0
        %2326 = vmatprep.subr.mxu0 0.0
        %2327 = vmatpush1.xpose.msra.mxu0 0.0
        %2328 = vmatprep.subr.mxu0 0.0
        %2329 = vmatpush1.xpose.msra.mxu0 0.0
        %2330 = vmatprep.subr.mxu0 0.0
        %2331 = vmatpush1.xpose.msra.mxu0 0.0
        %2332 = vmatprep.subr.mxu0 0.0
        %2333 = vmatpush1.xpose.msra.mxu0 0.0
        %2334 = vmatprep.subr.mxu0 0.0
        %2335 = vmatpush1.xpose.msra.mxu0 0.0
        %2336 = vmatprep.subr.mxu0 0.0
        %2337 = vmatpush1.xpose.msra.mxu0 0.0
        %2338 = vmatprep.subr.mxu0 0.0
        %2339 = vmatpush1.xpose.msra.mxu0 0.0
        %2340 = vmatprep.subr.mxu0 0.0
        %2341 = vmatpush1.xpose.msra.mxu0 0.0
        %2342 = vmatprep.subr.mxu0 0.0
        %2343 = vmatpush1.xpose.msra.mxu0 0.0
        %2344 = vmatprep.subr.mxu0 0.0
        %2345 = vmatpush1.xpose.msra.mxu0 0.0
        %2346 = vmatprep.subr.mxu0 0.0
        %2347 = vmatpush1.xpose.msra.mxu0 0.0
        %2348 = vmatprep.subr.mxu0 0.0
        %2349 = vmatpush1.xpose.msra.mxu0 %v2316
        %2350 = vmatprep.subr.mxu0 0.0
        %2351 = vmatpush2.xpose.msra.mxu0 0.0
        %2352 = vmatprep.subr.mxu0 0.0
        %2353 = vmatpush2.xpose.msra.mxu0 0.0
        %2354 = vmatprep.subr.mxu0 0.0
        %2355 = vmatpush2.xpose.msra.mxu0 0.0
        %2356 = vmatprep.subr.mxu0 0.0
        %2357 = vmatpush2.xpose.msra.mxu0 0.0
        %2358 = vmatprep.subr.mxu0 0.0
        %2359 = vmatpush2.xpose.msra.mxu0 0.0
        %2360 = vmatprep.subr.mxu0 0.0
        %2361 = vmatpush2.xpose.msra.mxu0 0.0
        %2362 = vmatprep.subr.mxu0 0.0
        %2363 = vmatpush2.xpose.msra.mxu0 0.0
        %2364 = vmatprep.subr.mxu0 0.0
        %2365 = vmatpush2.xpose.msra.mxu0 0.0
        %2366 = vmatprep.subr.mxu0 0.0
        %2367 = vmatpush2.xpose.msra.mxu0 0.0
        %2368 = vmatprep.subr.mxu0 0.0
        %2369 = vmatpush2.xpose.msra.mxu0 0.0
        %2370 = vmatprep.subr.mxu0 0.0
        %2371 = vmatpush2.xpose.msra.mxu0 0.0
        %2372 = vmatprep.subr.mxu0 0.0
        %2373 = vmatpush2.xpose.msra.mxu0 0.0
        %2374 = vmatprep.subr.mxu0 0.0
        %2375 = vmatpush2.xpose.msra.mxu0 0.0
        %2376 = vmatprep.subr.mxu0 0.0
        %2377 = vmatpush2.xpose.msra.mxu0 0.0
        %2378 = vmatprep.subr.mxu0 0.0
        %2379 = vmatpush2.xpose.msra.mxu0 0.0
        %2380 = vmatprep.subr.mxu0 0.0
        %2381 = vmatpush2.xpose.msra.mxu0 0.0
        %2382 = vmatprep.mubr.f32.mxu0 0.0
        %2383 = vmatmul.mubr.f32.gmra.mxu0 %v2314
        %v2384 = vpop.f32.mrf.mxu0
        %v2385 = vadd.f32 0.0, %v2384
        %v2386 = vpop.f32.mrf.mxu0
        %2387 = vdwg.mxu0
        %2389 = vrot.lane.b32.xlu0 %v1589, 112
        %v2390 = vpop.permute.xlu0 %2389
        %v2391 = vsel %vm1620, %v1589, 0
        %v2393 = vsel %vm1620, %v2390, 0
        %2395 = vmatprep.subr.mxu0 0.0
        %2396 = vmatpush1.xpose.msra.mxu0 0.0
        %2397 = vmatprep.subr.mxu0 0.0
        %2398 = vmatpush1.xpose.msra.mxu0 0.0
        %2399 = vmatprep.subr.mxu0 0.0
        %2400 = vmatpush1.xpose.msra.mxu0 0.0
        %2401 = vmatprep.subr.mxu0 0.0
        %2402 = vmatpush1.xpose.msra.mxu0 0.0
        %2403 = vmatprep.subr.mxu0 0.0
        %2404 = vmatpush1.xpose.msra.mxu0 0.0
        %2405 = vmatprep.subr.mxu0 0.0
        %2406 = vmatpush1.xpose.msra.mxu0 0.0
        %2407 = vmatprep.subr.mxu0 0.0
        %2408 = vmatpush1.xpose.msra.mxu0 0.0
        %2409 = vmatprep.subr.mxu0 0.0
        %2410 = vmatpush1.xpose.msra.mxu0 0.0
        %2411 = vmatprep.subr.mxu0 0.0
        %2412 = vmatpush1.xpose.msra.mxu0 0.0
        %2413 = vmatprep.subr.mxu0 0.0
        %2414 = vmatpush1.xpose.msra.mxu0 0.0
        %2415 = vmatprep.subr.mxu0 0.0
        %2416 = vmatpush1.xpose.msra.mxu0 0.0
        %2417 = vmatprep.subr.mxu0 0.0
        %2418 = vmatpush1.xpose.msra.mxu0 0.0
        %2419 = vmatprep.subr.mxu0 0.0
        %2420 = vmatpush1.xpose.msra.mxu0 0.0
        %2421 = vmatprep.subr.mxu0 0.0
        %2422 = vmatpush1.xpose.msra.mxu0 0.0
        %2423 = vmatprep.subr.mxu0 0.0
        %2424 = vmatpush1.xpose.msra.mxu0 0.0
        %2425 = vmatprep.subr.mxu0 0.0
        %2426 = vmatpush1.xpose.msra.mxu0 %v2393
        %2427 = vmatprep.subr.mxu0 0.0
        %2428 = vmatpush2.xpose.msra.mxu0 0.0
        %2429 = vmatprep.subr.mxu0 0.0
        %2430 = vmatpush2.xpose.msra.mxu0 0.0
        %2431 = vmatprep.subr.mxu0 0.0
        %2432 = vmatpush2.xpose.msra.mxu0 0.0
        %2433 = vmatprep.subr.mxu0 0.0
        %2434 = vmatpush2.xpose.msra.mxu0 0.0
        %2435 = vmatprep.subr.mxu0 0.0
        %2436 = vmatpush2.xpose.msra.mxu0 0.0
        %2437 = vmatprep.subr.mxu0 0.0
        %2438 = vmatpush2.xpose.msra.mxu0 0.0
        %2439 = vmatprep.subr.mxu0 0.0
        %2440 = vmatpush2.xpose.msra.mxu0 0.0
        %2441 = vmatprep.subr.mxu0 0.0
        %2442 = vmatpush2.xpose.msra.mxu0 0.0
        %2443 = vmatprep.subr.mxu0 0.0
        %2444 = vmatpush2.xpose.msra.mxu0 0.0
        %2445 = vmatprep.subr.mxu0 0.0
        %2446 = vmatpush2.xpose.msra.mxu0 0.0
        %2447 = vmatprep.subr.mxu0 0.0
        %2448 = vmatpush2.xpose.msra.mxu0 0.0
        %2449 = vmatprep.subr.mxu0 0.0
        %2450 = vmatpush2.xpose.msra.mxu0 0.0
        %2451 = vmatprep.subr.mxu0 0.0
        %2452 = vmatpush2.xpose.msra.mxu0 0.0
        %2453 = vmatprep.subr.mxu0 0.0
        %2454 = vmatpush2.xpose.msra.mxu0 0.0
        %2455 = vmatprep.subr.mxu0 0.0
        %2456 = vmatpush2.xpose.msra.mxu0 0.0
        %2457 = vmatprep.subr.mxu0 0.0
        %2458 = vmatpush2.xpose.msra.mxu0 0.0
        %2459 = vmatprep.mubr.f32.mxu0 0.0
        %2460 = vmatmul.mubr.f32.gmra.mxu0 %v2391
        %v2461 = vpop.f32.mrf.mxu0
        %v2462 = vadd.f32 0.0, %v2461
        %v2463 = vpop.f32.mrf.mxu0
        %2464 = vdwg.mxu0
        %2466 = vrot.lane.b32.xlu0 %v1594, 112
        %v2467 = vpop.permute.xlu0 %2466
        %v2468 = vsel %vm1620, %v1594, 0
        %v2470 = vsel %vm1620, %v2467, 0
        %2472 = vmatprep.subr.mxu0 0.0
        %2473 = vmatpush1.xpose.msra.mxu0 0.0
        %2474 = vmatprep.subr.mxu0 0.0
        %2475 = vmatpush1.xpose.msra.mxu0 0.0
        %2476 = vmatprep.subr.mxu0 0.0
        %2477 = vmatpush1.xpose.msra.mxu0 0.0
        %2478 = vmatprep.subr.mxu0 0.0
        %2479 = vmatpush1.xpose.msra.mxu0 0.0
        %2480 = vmatprep.subr.mxu0 0.0
        %2481 = vmatpush1.xpose.msra.mxu0 0.0
        %2482 = vmatprep.subr.mxu0 0.0
        %2483 = vmatpush1.xpose.msra.mxu0 0.0
        %2484 = vmatprep.subr.mxu0 0.0
        %2485 = vmatpush1.xpose.msra.mxu0 0.0
        %2486 = vmatprep.subr.mxu0 0.0
        %2487 = vmatpush1.xpose.msra.mxu0 0.0
        %2488 = vmatprep.subr.mxu0 0.0
        %2489 = vmatpush1.xpose.msra.mxu0 0.0
        %2490 = vmatprep.subr.mxu0 0.0
        %2491 = vmatpush1.xpose.msra.mxu0 0.0
        %2492 = vmatprep.subr.mxu0 0.0
        %2493 = vmatpush1.xpose.msra.mxu0 0.0
        %2494 = vmatprep.subr.mxu0 0.0
        %2495 = vmatpush1.xpose.msra.mxu0 0.0
        %2496 = vmatprep.subr.mxu0 0.0
        %2497 = vmatpush1.xpose.msra.mxu0 0.0
        %2498 = vmatprep.subr.mxu0 0.0
        %2499 = vmatpush1.xpose.msra.mxu0 0.0
        %2500 = vmatprep.subr.mxu0 0.0
        %2501 = vmatpush1.xpose.msra.mxu0 0.0
        %2502 = vmatprep.subr.mxu0 0.0
        %2503 = vmatpush1.xpose.msra.mxu0 %v2470
        %2504 = vmatprep.subr.mxu0 0.0
        %2505 = vmatpush2.xpose.msra.mxu0 0.0
        %2506 = vmatprep.subr.mxu0 0.0
        %2507 = vmatpush2.xpose.msra.mxu0 0.0
        %2508 = vmatprep.subr.mxu0 0.0
        %2509 = vmatpush2.xpose.msra.mxu0 0.0
        %2510 = vmatprep.subr.mxu0 0.0
        %2511 = vmatpush2.xpose.msra.mxu0 0.0
        %2512 = vmatprep.subr.mxu0 0.0
        %2513 = vmatpush2.xpose.msra.mxu0 0.0
        %2514 = vmatprep.subr.mxu0 0.0
        %2515 = vmatpush2.xpose.msra.mxu0 0.0
        %2516 = vmatprep.subr.mxu0 0.0
        %2517 = vmatpush2.xpose.msra.mxu0 0.0
        %2518 = vmatprep.subr.mxu0 0.0
        %2519 = vmatpush2.xpose.msra.mxu0 0.0
        %2520 = vmatprep.subr.mxu0 0.0
        %2521 = vmatpush2.xpose.msra.mxu0 0.0
        %2522 = vmatprep.subr.mxu0 0.0
        %2523 = vmatpush2.xpose.msra.mxu0 0.0
        %2524 = vmatprep.subr.mxu0 0.0
        %2525 = vmatpush2.xpose.msra.mxu0 0.0
        %2526 = vmatprep.subr.mxu0 0.0
        %2527 = vmatpush2.xpose.msra.mxu0 0.0
        %2528 = vmatprep.subr.mxu0 0.0
        %2529 = vmatpush2.xpose.msra.mxu0 0.0
        %2530 = vmatprep.subr.mxu0 0.0
        %2531 = vmatpush2.xpose.msra.mxu0 0.0
        %2532 = vmatprep.subr.mxu0 0.0
        %2533 = vmatpush2.xpose.msra.mxu0 0.0
        %2534 = vmatprep.subr.mxu0 0.0
        %2535 = vmatpush2.xpose.msra.mxu0 0.0
        %2536 = vmatprep.mubr.f32.mxu0 0.0
        %2537 = vmatmul.mubr.f32.gmra.mxu0 %v2468
        %v2538 = vpop.f32.mrf.mxu0
        %v2539 = vadd.f32 0.0, %v2538
        %v2540 = vpop.f32.mrf.mxu0
        %2541 = vdwg.mxu0
        %2543 = vrot.lane.b32.xlu0 %v1599, 112
        %v2544 = vpop.permute.xlu0 %2543
        %v2545 = vsel %vm1620, %v1599, 0
        %v2547 = vsel %vm1620, %v2544, 0
        %2549 = vmatprep.subr.mxu0 0.0
        %2550 = vmatpush1.xpose.msra.mxu0 0.0
        %2551 = vmatprep.subr.mxu0 0.0
        %2552 = vmatpush1.xpose.msra.mxu0 0.0
        %2553 = vmatprep.subr.mxu0 0.0
        %2554 = vmatpush1.xpose.msra.mxu0 0.0
        %2555 = vmatprep.subr.mxu0 0.0
        %2556 = vmatpush1.xpose.msra.mxu0 0.0
        %2557 = vmatprep.subr.mxu0 0.0
        %2558 = vmatpush1.xpose.msra.mxu0 0.0
        %2559 = vmatprep.subr.mxu0 0.0
        %2560 = vmatpush1.xpose.msra.mxu0 0.0
        %2561 = vmatprep.subr.mxu0 0.0
        %2562 = vmatpush1.xpose.msra.mxu0 0.0
        %2563 = vmatprep.subr.mxu0 0.0
        %2564 = vmatpush1.xpose.msra.mxu0 0.0
        %2565 = vmatprep.subr.mxu0 0.0
        %2566 = vmatpush1.xpose.msra.mxu0 0.0
        %2567 = vmatprep.subr.mxu0 0.0
        %2568 = vmatpush1.xpose.msra.mxu0 0.0
        %2569 = vmatprep.subr.mxu0 0.0
        %2570 = vmatpush1.xpose.msra.mxu0 0.0
        %2571 = vmatprep.subr.mxu0 0.0
        %2572 = vmatpush1.xpose.msra.mxu0 0.0
        %2573 = vmatprep.subr.mxu0 0.0
        %2574 = vmatpush1.xpose.msra.mxu0 0.0
        %2575 = vmatprep.subr.mxu0 0.0
        %2576 = vmatpush1.xpose.msra.mxu0 0.0
        %2577 = vmatprep.subr.mxu0 0.0
        %2578 = vmatpush1.xpose.msra.mxu0 0.0
        %2579 = vmatprep.subr.mxu0 0.0
        %2580 = vmatpush1.xpose.msra.mxu0 %v2547
        %2581 = vmatprep.subr.mxu0 0.0
        %2582 = vmatpush2.xpose.msra.mxu0 0.0
        %2583 = vmatprep.subr.mxu0 0.0
        %2584 = vmatpush2.xpose.msra.mxu0 0.0
        %2585 = vmatprep.subr.mxu0 0.0
        %2586 = vmatpush2.xpose.msra.mxu0 0.0
        %2587 = vmatprep.subr.mxu0 0.0
        %2588 = vmatpush2.xpose.msra.mxu0 0.0
        %2589 = vmatprep.subr.mxu0 0.0
        %2590 = vmatpush2.xpose.msra.mxu0 0.0
        %2591 = vmatprep.subr.mxu0 0.0
        %2592 = vmatpush2.xpose.msra.mxu0 0.0
        %2593 = vmatprep.subr.mxu0 0.0
        %2594 = vmatpush2.xpose.msra.mxu0 0.0
        %2595 = vmatprep.subr.mxu0 0.0
        %2596 = vmatpush2.xpose.msra.mxu0 0.0
        %2597 = vmatprep.subr.mxu0 0.0
        %2598 = vmatpush2.xpose.msra.mxu0 0.0
        %2599 = vmatprep.subr.mxu0 0.0
        %2600 = vmatpush2.xpose.msra.mxu0 0.0
        %2601 = vmatprep.subr.mxu0 0.0
        %2602 = vmatpush2.xpose.msra.mxu0 0.0
        %2603 = vmatprep.subr.mxu0 0.0
        %2604 = vmatpush2.xpose.msra.mxu0 0.0
        %2605 = vmatprep.subr.mxu0 0.0
        %2606 = vmatpush2.xpose.msra.mxu0 0.0
        %2607 = vmatprep.subr.mxu0 0.0
        %2608 = vmatpush2.xpose.msra.mxu0 0.0
        %2609 = vmatprep.subr.mxu0 0.0
        %2610 = vmatpush2.xpose.msra.mxu0 0.0
        %2611 = vmatprep.subr.mxu0 0.0
        %2612 = vmatpush2.xpose.msra.mxu0 0.0
        %2613 = vmatprep.mubr.f32.mxu0 0.0
        %2614 = vmatmul.mubr.f32.gmra.mxu0 %v2545
        %v2615 = vpop.f32.mrf.mxu0
        %v2616 = vadd.f32 0.0, %v2615
        %v2617 = vpop.f32.mrf.mxu0
        %2618 = vdwg.mxu0
        %2620 = vrot.lane.b32.xlu0 %v1604, 112
        %v2621 = vpop.permute.xlu0 %2620
        %v2622 = vsel %vm1620, %v1604, 0
        %v2624 = vsel %vm1620, %v2621, 0
        %2626 = vmatprep.subr.mxu0 0.0
        %2627 = vmatpush1.xpose.msra.mxu0 0.0
        %2628 = vmatprep.subr.mxu0 0.0
        %2629 = vmatpush1.xpose.msra.mxu0 0.0
        %2630 = vmatprep.subr.mxu0 0.0
        %2631 = vmatpush1.xpose.msra.mxu0 0.0
        %2632 = vmatprep.subr.mxu0 0.0
        %2633 = vmatpush1.xpose.msra.mxu0 0.0
        %2634 = vmatprep.subr.mxu0 0.0
        %2635 = vmatpush1.xpose.msra.mxu0 0.0
        %2636 = vmatprep.subr.mxu0 0.0
        %2637 = vmatpush1.xpose.msra.mxu0 0.0
        %2638 = vmatprep.subr.mxu0 0.0
        %2639 = vmatpush1.xpose.msra.mxu0 0.0
        %2640 = vmatprep.subr.mxu0 0.0
        %2641 = vmatpush1.xpose.msra.mxu0 0.0
        %2642 = vmatprep.subr.mxu0 0.0
        %2643 = vmatpush1.xpose.msra.mxu0 0.0
        %2644 = vmatprep.subr.mxu0 0.0
        %2645 = vmatpush1.xpose.msra.mxu0 0.0
        %2646 = vmatprep.subr.mxu0 0.0
        %2647 = vmatpush1.xpose.msra.mxu0 0.0
        %2648 = vmatprep.subr.mxu0 0.0
        %2649 = vmatpush1.xpose.msra.mxu0 0.0
        %2650 = vmatprep.subr.mxu0 0.0
        %2651 = vmatpush1.xpose.msra.mxu0 0.0
        %2652 = vmatprep.subr.mxu0 0.0
        %2653 = vmatpush1.xpose.msra.mxu0 0.0
        %2654 = vmatprep.subr.mxu0 0.0
        %2655 = vmatpush1.xpose.msra.mxu0 0.0
        %2656 = vmatprep.subr.mxu0 0.0
        %2657 = vmatpush1.xpose.msra.mxu0 %v2624
        %2658 = vmatprep.subr.mxu0 0.0
        %2659 = vmatpush2.xpose.msra.mxu0 0.0
        %2660 = vmatprep.subr.mxu0 0.0
        %2661 = vmatpush2.xpose.msra.mxu0 0.0
        %2662 = vmatprep.subr.mxu0 0.0
        %2663 = vmatpush2.xpose.msra.mxu0 0.0
        %2664 = vmatprep.subr.mxu0 0.0
        %2665 = vmatpush2.xpose.msra.mxu0 0.0
        %2666 = vmatprep.subr.mxu0 0.0
        %2667 = vmatpush2.xpose.msra.mxu0 0.0
        %2668 = vmatprep.subr.mxu0 0.0
        %2669 = vmatpush2.xpose.msra.mxu0 0.0
        %2670 = vmatprep.subr.mxu0 0.0
        %2671 = vmatpush2.xpose.msra.mxu0 0.0
        %2672 = vmatprep.subr.mxu0 0.0
        %2673 = vmatpush2.xpose.msra.mxu0 0.0
        %2674 = vmatprep.subr.mxu0 0.0
        %2675 = vmatpush2.xpose.msra.mxu0 0.0
        %2676 = vmatprep.subr.mxu0 0.0
        %2677 = vmatpush2.xpose.msra.mxu0 0.0
        %2678 = vmatprep.subr.mxu0 0.0
        %2679 = vmatpush2.xpose.msra.mxu0 0.0
        %2680 = vmatprep.subr.mxu0 0.0
        %2681 = vmatpush2.xpose.msra.mxu0 0.0
        %2682 = vmatprep.subr.mxu0 0.0
        %2683 = vmatpush2.xpose.msra.mxu0 0.0
        %2684 = vmatprep.subr.mxu0 0.0
        %2685 = vmatpush2.xpose.msra.mxu0 0.0
        %2686 = vmatprep.subr.mxu0 0.0
        %2687 = vmatpush2.xpose.msra.mxu0 0.0
        %2688 = vmatprep.subr.mxu0 0.0
        %2689 = vmatpush2.xpose.msra.mxu0 0.0
        %2690 = vmatprep.mubr.f32.mxu0 0.0
        %2691 = vmatmul.mubr.f32.gmra.mxu0 %v2622
        %v2692 = vpop.f32.mrf.mxu0
        %v2693 = vadd.f32 0.0, %v2692
        %v2694 = vpop.f32.mrf.mxu0
        %2695 = vdwg.mxu0
        %2697 = vrot.lane.b32.xlu0 %v1609, 112
        %v2698 = vpop.permute.xlu0 %2697
        %v2699 = vsel %vm1620, %v1609, 0
        %v2701 = vsel %vm1620, %v2698, 0
        %2703 = vmatprep.subr.mxu0 0.0
        %2704 = vmatpush1.xpose.msra.mxu0 0.0
        %2705 = vmatprep.subr.mxu0 0.0
        %2706 = vmatpush1.xpose.msra.mxu0 0.0
        %2707 = vmatprep.subr.mxu0 0.0
        %2708 = vmatpush1.xpose.msra.mxu0 0.0
        %2709 = vmatprep.subr.mxu0 0.0
        %2710 = vmatpush1.xpose.msra.mxu0 0.0
        %2711 = vmatprep.subr.mxu0 0.0
        %2712 = vmatpush1.xpose.msra.mxu0 0.0
        %2713 = vmatprep.subr.mxu0 0.0
        %2714 = vmatpush1.xpose.msra.mxu0 0.0
        %2715 = vmatprep.subr.mxu0 0.0
        %2716 = vmatpush1.xpose.msra.mxu0 0.0
        %2717 = vmatprep.subr.mxu0 0.0
        %2718 = vmatpush1.xpose.msra.mxu0 0.0
        %2719 = vmatprep.subr.mxu0 0.0
        %2720 = vmatpush1.xpose.msra.mxu0 0.0
        %2721 = vmatprep.subr.mxu0 0.0
        %2722 = vmatpush1.xpose.msra.mxu0 0.0
        %2723 = vmatprep.subr.mxu0 0.0
        %2724 = vmatpush1.xpose.msra.mxu0 0.0
        %2725 = vmatprep.subr.mxu0 0.0
        %2726 = vmatpush1.xpose.msra.mxu0 0.0
        %2727 = vmatprep.subr.mxu0 0.0
        %2728 = vmatpush1.xpose.msra.mxu0 0.0
        %2729 = vmatprep.subr.mxu0 0.0
        %2730 = vmatpush1.xpose.msra.mxu0 0.0
        %2731 = vmatprep.subr.mxu0 0.0
        %2732 = vmatpush1.xpose.msra.mxu0 0.0
        %2733 = vmatprep.subr.mxu0 0.0
        %2734 = vmatpush1.xpose.msra.mxu0 %v2701
        %2735 = vmatprep.subr.mxu0 0.0
        %2736 = vmatpush2.xpose.msra.mxu0 0.0
        %2737 = vmatprep.subr.mxu0 0.0
        %2738 = vmatpush2.xpose.msra.mxu0 0.0
        %2739 = vmatprep.subr.mxu0 0.0
        %2740 = vmatpush2.xpose.msra.mxu0 0.0
        %2741 = vmatprep.subr.mxu0 0.0
        %2742 = vmatpush2.xpose.msra.mxu0 0.0
        %2743 = vmatprep.subr.mxu0 0.0
        %2744 = vmatpush2.xpose.msra.mxu0 0.0
        %2745 = vmatprep.subr.mxu0 0.0
        %2746 = vmatpush2.xpose.msra.mxu0 0.0
        %2747 = vmatprep.subr.mxu0 0.0
        %2748 = vmatpush2.xpose.msra.mxu0 0.0
        %2749 = vmatprep.subr.mxu0 0.0
        %2750 = vmatpush2.xpose.msra.mxu0 0.0
        %2751 = vmatprep.subr.mxu0 0.0
        %2752 = vmatpush2.xpose.msra.mxu0 0.0
        %2753 = vmatprep.subr.mxu0 0.0
        %2754 = vmatpush2.xpose.msra.mxu0 0.0
        %2755 = vmatprep.subr.mxu0 0.0
        %2756 = vmatpush2.xpose.msra.mxu0 0.0
        %2757 = vmatprep.subr.mxu0 0.0
        %2758 = vmatpush2.xpose.msra.mxu0 0.0
        %2759 = vmatprep.subr.mxu0 0.0
        %2760 = vmatpush2.xpose.msra.mxu0 0.0
        %2761 = vmatprep.subr.mxu0 0.0
        %2762 = vmatpush2.xpose.msra.mxu0 0.0
        %2763 = vmatprep.subr.mxu0 0.0
        %2764 = vmatpush2.xpose.msra.mxu0 0.0
        %2765 = vmatprep.subr.mxu0 0.0
        %2766 = vmatpush2.xpose.msra.mxu0 0.0
        %2767 = vmatprep.mubr.f32.mxu0 0.0
        %2768 = vmatmul.mubr.f32.gmra.mxu0 %v2699
        %v2769 = vpop.f32.mrf.mxu0
        %v2770 = vadd.f32 0.0, %v2769
        %v2771 = vpop.f32.mrf.mxu0
        %2772 = vdwg.mxu0
        %2774 = vrot.lane.b32.xlu0 %v1614, 112
        %v2775 = vpop.permute.xlu0 %2774
        %v2776 = vsel %vm1620, %v1614, 0
        %v2778 = vsel %vm1620, %v2775, 0
        %2780 = vmatprep.subr.mxu0 0.0
        %2781 = vmatpush1.xpose.msra.mxu0 0.0
        %2782 = vmatprep.subr.mxu0 0.0
        %2783 = vmatpush1.xpose.msra.mxu0 0.0
        %2784 = vmatprep.subr.mxu0 0.0
        %2785 = vmatpush1.xpose.msra.mxu0 0.0
        %2786 = vmatprep.subr.mxu0 0.0
        %2787 = vmatpush1.xpose.msra.mxu0 0.0
        %2788 = vmatprep.subr.mxu0 0.0
        %2789 = vmatpush1.xpose.msra.mxu0 0.0
        %2790 = vmatprep.subr.mxu0 0.0
        %2791 = vmatpush1.xpose.msra.mxu0 0.0
        %2792 = vmatprep.subr.mxu0 0.0
        %2793 = vmatpush1.xpose.msra.mxu0 0.0
        %2794 = vmatprep.subr.mxu0 0.0
        %2795 = vmatpush1.xpose.msra.mxu0 0.0
        %2796 = vmatprep.subr.mxu0 0.0
        %2797 = vmatpush1.xpose.msra.mxu0 0.0
        %2798 = vmatprep.subr.mxu0 0.0
        %2799 = vmatpush1.xpose.msra.mxu0 0.0
        %2800 = vmatprep.subr.mxu0 0.0
        %2801 = vmatpush1.xpose.msra.mxu0 0.0
        %2802 = vmatprep.subr.mxu0 0.0
        %2803 = vmatpush1.xpose.msra.mxu0 0.0
        %2804 = vmatprep.subr.mxu0 0.0
        %2805 = vmatpush1.xpose.msra.mxu0 0.0
        %2806 = vmatprep.subr.mxu0 0.0
        %2807 = vmatpush1.xpose.msra.mxu0 0.0
        %2808 = vmatprep.subr.mxu0 0.0
        %2809 = vmatpush1.xpose.msra.mxu0 0.0
        %2810 = vmatprep.subr.mxu0 0.0
        %2811 = vmatpush1.xpose.msra.mxu0 %v2778
        %2812 = vmatprep.subr.mxu0 0.0
        %2813 = vmatpush2.xpose.msra.mxu0 0.0
        %2814 = vmatprep.subr.mxu0 0.0
        %2815 = vmatpush2.xpose.msra.mxu0 0.0
        %2816 = vmatprep.subr.mxu0 0.0
        %2817 = vmatpush2.xpose.msra.mxu0 0.0
        %2818 = vmatprep.subr.mxu0 0.0
        %2819 = vmatpush2.xpose.msra.mxu0 0.0
        %2820 = vmatprep.subr.mxu0 0.0
        %2821 = vmatpush2.xpose.msra.mxu0 0.0
        %2822 = vmatprep.subr.mxu0 0.0
        %2823 = vmatpush2.xpose.msra.mxu0 0.0
        %2824 = vmatprep.subr.mxu0 0.0
        %2825 = vmatpush2.xpose.msra.mxu0 0.0
        %2826 = vmatprep.subr.mxu0 0.0
        %2827 = vmatpush2.xpose.msra.mxu0 0.0
        %2828 = vmatprep.subr.mxu0 0.0
        %2829 = vmatpush2.xpose.msra.mxu0 0.0
        %2830 = vmatprep.subr.mxu0 0.0
        %2831 = vmatpush2.xpose.msra.mxu0 0.0
        %2832 = vmatprep.subr.mxu0 0.0
        %2833 = vmatpush2.xpose.msra.mxu0 0.0
        %2834 = vmatprep.subr.mxu0 0.0
        %2835 = vmatpush2.xpose.msra.mxu0 0.0
        %2836 = vmatprep.subr.mxu0 0.0
        %2837 = vmatpush2.xpose.msra.mxu0 0.0
        %2838 = vmatprep.subr.mxu0 0.0
        %2839 = vmatpush2.xpose.msra.mxu0 0.0
        %2840 = vmatprep.subr.mxu0 0.0
        %2841 = vmatpush2.xpose.msra.mxu0 0.0
        %2842 = vmatprep.subr.mxu0 0.0
        %2843 = vmatpush2.xpose.msra.mxu0 0.0
        %2844 = vmatprep.mubr.f32.mxu0 0.0
        %2845 = vmatmul.mubr.f32.gmra.mxu0 %v2776
        %v2846 = vpop.f32.mrf.mxu0
        %v2847 = vadd.f32 0.0, %v2846
        %v2848 = vpop.f32.mrf.mxu0
        %2849 = vdwg.mxu0
        %v2850 = vsel %vm201, %v1692, -inf
        %2851 = vmax.xlane.f32.xlu0 %v2850
        %v2852 = vpop.xlane.xlu0 %2851
        %v2853 = vsel %vm201, %v1769, -inf
        %2854 = vmax.xlane.f32.xlu0 %v2853
        %v2855 = vpop.xlane.xlu0 %2854
        %v2856 = vsel %vm201, %v1846, -inf
        %2857 = vmax.xlane.f32.xlu0 %v2856
        %v2858 = vpop.xlane.xlu0 %2857
        %v2859 = vsel %vm201, %v1923, -inf
        %2860 = vmax.xlane.f32.xlu0 %v2859
        %v2861 = vpop.xlane.xlu0 %2860
        %v2862 = vsel %vm201, %v2000, -inf
        %2863 = vmax.xlane.f32.xlu0 %v2862
        %v2864 = vpop.xlane.xlu0 %2863
        %v2865 = vsel %vm201, %v2077, -inf
        %2866 = vmax.xlane.f32.xlu0 %v2865
        %v2867 = vpop.xlane.xlu0 %2866
        %v2868 = vsel %vm201, %v2154, -inf
        %2869 = vmax.xlane.f32.xlu0 %v2868
        %v2870 = vpop.xlane.xlu0 %2869
        %v2871 = vsel %vm201, %v2231, -inf
        %2872 = vmax.xlane.f32.xlu0 %v2871
        %v2873 = vpop.xlane.xlu0 %2872
        %v2874 = vsel %vm201, %v2308, -inf
        %2875 = vmax.xlane.f32.xlu0 %v2874
        %v2876 = vpop.xlane.xlu0 %2875
        %v2877 = vsel %vm201, %v2385, -inf
        %2878 = vmax.xlane.f32.xlu0 %v2877
        %v2879 = vpop.xlane.xlu0 %2878
        %v2880 = vsel %vm201, %v2462, -inf
        %2881 = vmax.xlane.f32.xlu0 %v2880
        %v2882 = vpop.xlane.xlu0 %2881
        %v2883 = vsel %vm201, %v2539, -inf
        %2884 = vmax.xlane.f32.xlu0 %v2883
        %v2885 = vpop.xlane.xlu0 %2884
        %v2886 = vsel %vm201, %v2616, -inf
        %2887 = vmax.xlane.f32.xlu0 %v2886
        %v2888 = vpop.xlane.xlu0 %2887
        %v2889 = vsel %vm201, %v2693, -inf
        %2890 = vmax.xlane.f32.xlu0 %v2889
        %v2891 = vpop.xlane.xlu0 %2890
        %v2892 = vsel %vm201, %v2770, -inf
        %2893 = vmax.xlane.f32.xlu0 %v2892
        %v2894 = vpop.xlane.xlu0 %2893
        %v2895 = vsel %vm201, %v2847, -inf
        %2896 = vmax.xlane.f32.xlu0 %v2895
        %v2897 = vpop.xlane.xlu0 %2896
        %v2898 = vsub.f32 %v1692, %v2852
        %v2899 = vsub.f32 %v1769, %v2855
        %v2900 = vsub.f32 %v1846, %v2858
        %v2901 = vsub.f32 %v1923, %v2861
        %v2902 = vsub.f32 %v2000, %v2864
        %v2903 = vsub.f32 %v2077, %v2867
        %v2904 = vsub.f32 %v2154, %v2870
        %v2905 = vsub.f32 %v2231, %v2873
        %v2906 = vsub.f32 %v2308, %v2876
        %v2907 = vsub.f32 %v2385, %v2879
        %v2908 = vsub.f32 %v2462, %v2882
        %v2909 = vsub.f32 %v2539, %v2885
        %v2910 = vsub.f32 %v2616, %v2888
        %v2911 = vsub.f32 %v2693, %v2891
        %v2912 = vsub.f32 %v2770, %v2894
        %v2913 = vsub.f32 %v2847, %v2897
        %v2914 = vmul.f32 %v2898, 1.442695
        %v2915 = vpow.pop %v2914
        %v2916 = vmul.f32 %v2899, 1.442695
        %v2917 = vpow.pop %v2916
        %v2918 = vmul.f32 %v2900, 1.442695
        %v2919 = vpow.pop %v2918
        %v2920 = vmul.f32 %v2901, 1.442695
        %v2921 = vpow.pop %v2920
        %v2922 = vmul.f32 %v2902, 1.442695
        %v2923 = vpow.pop %v2922
        %v2924 = vmul.f32 %v2903, 1.442695
        %v2925 = vpow.pop %v2924
        %v2926 = vmul.f32 %v2904, 1.442695
        %v2927 = vpow.pop %v2926
        %v2928 = vmul.f32 %v2905, 1.442695
        %v2929 = vpow.pop %v2928
        %v2930 = vmul.f32 %v2906, 1.442695
        %v2931 = vpow.pop %v2930
        %v2932 = vmul.f32 %v2907, 1.442695
        %v2933 = vpow.pop %v2932
        %v2934 = vmul.f32 %v2908, 1.442695
        %v2935 = vpow.pop %v2934
        %v2936 = vmul.f32 %v2909, 1.442695
        %v2937 = vpow.pop %v2936
        %v2938 = vmul.f32 %v2910, 1.442695
        %v2939 = vpow.pop %v2938
        %v2940 = vmul.f32 %v2911, 1.442695
        %v2941 = vpow.pop %v2940
        %v2942 = vmul.f32 %v2912, 1.442695
        %v2943 = vpow.pop %v2942
        %v2944 = vmul.f32 %v2913, 1.442695
        %v2945 = vpow.pop %v2944
        %v2946 = vsel %vm201, %v2915, 0.0
        %2947 = vadd.xlane.f32.xlu0 %v2946
        %v2948 = vpop.xlane.xlu0 %2947
        %v2949 = vsel %vm201, %v2917, 0.0
        %2950 = vadd.xlane.f32.xlu0 %v2949
        %v2951 = vpop.xlane.xlu0 %2950
        %v2952 = vsel %vm201, %v2919, 0.0
        %2953 = vadd.xlane.f32.xlu0 %v2952
        %v2954 = vpop.xlane.xlu0 %2953
        %v2955 = vsel %vm201, %v2921, 0.0
        %2956 = vadd.xlane.f32.xlu0 %v2955
        %v2957 = vpop.xlane.xlu0 %2956
        %v2958 = vsel %vm201, %v2923, 0.0
        %2959 = vadd.xlane.f32.xlu0 %v2958
        %v2960 = vpop.xlane.xlu0 %2959
        %v2961 = vsel %vm201, %v2925, 0.0
        %2962 = vadd.xlane.f32.xlu0 %v2961
        %v2963 = vpop.xlane.xlu0 %2962
        %v2964 = vsel %vm201, %v2927, 0.0
        %2965 = vadd.xlane.f32.xlu0 %v2964
        %v2966 = vpop.xlane.xlu0 %2965
        %v2967 = vsel %vm201, %v2929, 0.0
        %2968 = vadd.xlane.f32.xlu0 %v2967
        %v2969 = vpop.xlane.xlu0 %2968
        %v2970 = vsel %vm201, %v2931, 0.0
        %2971 = vadd.xlane.f32.xlu0 %v2970
        %v2972 = vpop.xlane.xlu0 %2971
        %v2973 = vsel %vm201, %v2933, 0.0
        %2974 = vadd.xlane.f32.xlu0 %v2973
        %v2975 = vpop.xlane.xlu0 %2974
        %v2976 = vsel %vm201, %v2935, 0.0
        %2977 = vadd.xlane.f32.xlu0 %v2976
        %v2978 = vpop.xlane.xlu0 %2977
        %v2979 = vsel %vm201, %v2937, 0.0
        %2980 = vadd.xlane.f32.xlu0 %v2979
        %v2981 = vpop.xlane.xlu0 %2980
        %v2982 = vsel %vm201, %v2939, 0.0
        %2983 = vadd.xlane.f32.xlu0 %v2982
        %v2984 = vpop.xlane.xlu0 %2983
        %v2985 = vsel %vm201, %v2941, 0.0
        %2986 = vadd.xlane.f32.xlu0 %v2985
        %v2987 = vpop.xlane.xlu0 %2986
        %v2988 = vsel %vm201, %v2943, 0.0
        %2989 = vadd.xlane.f32.xlu0 %v2988
        %v2990 = vpop.xlane.xlu0 %2989
        %v2991 = vsel %vm201, %v2945, 0.0
        %2992 = vadd.xlane.f32.xlu0 %v2991
        %v2993 = vpop.xlane.xlu0 %2992
        %v2994 = vrcp.pop %v2948
        %v2995 = vrcp.pop %v2951
        %v2996 = vrcp.pop %v2954
        %v2997 = vrcp.pop %v2957
        %v2998 = vrcp.pop %v2960
        %v2999 = vrcp.pop %v2963
        %v3000 = vrcp.pop %v2966
        %v3001 = vrcp.pop %v2969
        %v3002 = vrcp.pop %v2972
        %v3003 = vrcp.pop %v2975
        %v3004 = vrcp.pop %v2978
        %v3005 = vrcp.pop %v2981
        %v3006 = vrcp.pop %v2984
        %v3007 = vrcp.pop %v2987
        %v3008 = vrcp.pop %v2990
        %v3009 = vrcp.pop %v2993
        %v3010 = vmul.f32 %v2915, %v2994
        %v3011 = vmul.f32 %v2917, %v2995
        %v3012 = vmul.f32 %v2919, %v2996
        %v3013 = vmul.f32 %v2921, %v2997
        %v3014 = vmul.f32 %v2923, %v2998
        %v3015 = vmul.f32 %v2925, %v2999
        %v3016 = vmul.f32 %v2927, %v3000
        %v3017 = vmul.f32 %v2929, %v3001
        %v3018 = vmul.f32 %v2931, %v3002
        %v3019 = vmul.f32 %v2933, %v3003
        %v3020 = vmul.f32 %v2935, %v3004
        %v3021 = vmul.f32 %v2937, %v3005
        %v3022 = vmul.f32 %v2939, %v3006
        %v3023 = vmul.f32 %v2941, %v3007
        %v3024 = vmul.f32 %v2943, %v3008
        %v3025 = vmul.f32 %v2945, %v3009
        %3026 = vrot.lane.b32.xlu0 %v1539, 96
        %v3027 = vpop.permute.xlu0 %3026
        %v3030 = vsel %vm201, %v3010, 0
        %3032 = vmatprep.subr.mxu0 0.0
        %3033 = vmatpush1.msra.mxu0 0.0
        %3034 = vmatprep.subr.mxu0 0.0
        %3035 = vmatpush1.msra.mxu0 0.0
        %3036 = vmatprep.subr.mxu0 0.0
        %3037 = vmatpush1.msra.mxu0 0.0
        %3038 = vmatprep.subr.mxu0 0.0
        %3039 = vmatpush1.msra.mxu0 0.0
        %3040 = vmatprep.subr.mxu0 0.0
        %3041 = vmatpush1.msra.mxu0 0.0
        %3042 = vmatprep.subr.mxu0 0.0
        %3043 = vmatpush1.msra.mxu0 0.0
        %3044 = vmatprep.subr.mxu0 0.0
        %3045 = vmatpush1.msra.mxu0 0.0
        %3046 = vmatprep.subr.mxu0 0.0
        %3047 = vmatpush1.msra.mxu0 0.0
        %3048 = vmatprep.subr.mxu0 0.0
        %3049 = vmatpush1.msra.mxu0 0.0
        %3050 = vmatprep.subr.mxu0 0.0
        %3051 = vmatpush1.msra.mxu0 0.0
        %3052 = vmatprep.subr.mxu0 0.0
        %3053 = vmatpush1.msra.mxu0 0.0
        %3054 = vmatprep.subr.mxu0 0.0
        %3055 = vmatpush1.msra.mxu0 0.0
        %3056 = vmatprep.subr.mxu0 0.0
        %3057 = vmatpush1.msra.mxu0 0.0
        %3058 = vmatprep.subr.mxu0 0.0
        %3059 = vmatpush1.msra.mxu0 0.0
        %3060 = vmatprep.subr.mxu0 0.0
        %3061 = vmatpush1.msra.mxu0 0.0
        %3062 = vmatprep.subr.mxu0 0.0
        %3063 = vmatpush1.msra.mxu0 %v3027
        %3064 = vmatprep.subr.mxu0 0.0
        %3065 = vmatpush2.msra.mxu0 0.0
        %3066 = vmatprep.subr.mxu0 0.0
        %3067 = vmatpush2.msra.mxu0 0.0
        %3068 = vmatprep.subr.mxu0 0.0
        %3069 = vmatpush2.msra.mxu0 0.0
        %3070 = vmatprep.subr.mxu0 0.0
        %3071 = vmatpush2.msra.mxu0 0.0
        %3072 = vmatprep.subr.mxu0 0.0
        %3073 = vmatpush2.msra.mxu0 0.0
        %3074 = vmatprep.subr.mxu0 0.0
        %3075 = vmatpush2.msra.mxu0 0.0
        %3076 = vmatprep.subr.mxu0 0.0
        %3077 = vmatpush2.msra.mxu0 0.0
        %3078 = vmatprep.subr.mxu0 0.0
        %3079 = vmatpush2.msra.mxu0 0.0
        %3080 = vmatprep.subr.mxu0 0.0
        %3081 = vmatpush2.msra.mxu0 0.0
        %3082 = vmatprep.subr.mxu0 0.0
        %3083 = vmatpush2.msra.mxu0 0.0
        %3084 = vmatprep.subr.mxu0 0.0
        %3085 = vmatpush2.msra.mxu0 0.0
        %3086 = vmatprep.subr.mxu0 0.0
        %3087 = vmatpush2.msra.mxu0 0.0
        %3088 = vmatprep.subr.mxu0 0.0
        %3089 = vmatpush2.msra.mxu0 0.0
        %3090 = vmatprep.subr.mxu0 0.0
        %3091 = vmatpush2.msra.mxu0 0.0
        %3092 = vmatprep.subr.mxu0 0.0
        %3093 = vmatpush2.msra.mxu0 0.0
        %3094 = vmatprep.subr.mxu0 0.0
        %3095 = vmatpush2.msra.mxu0 0.0
        %3096 = vmatprep.mubr.f32.mxu0 0.0
        %3097 = vmatmul.mubr.f32.gmra.mxu0 %v3030
        %v3098 = vpop.f32.mrf.mxu0
        %v3099 = vadd.f32 0.0, %v3098
        %v3100 = vpop.f32.mrf.mxu0
        %3101 = vdwg.mxu0
        %3102 = vrot.lane.b32.xlu0 %v1544, 96
        %v3103 = vpop.permute.xlu0 %3102
        %v3106 = vsel %vm201, %v3011, 0
        %3108 = vmatprep.subr.mxu0 0.0
        %3109 = vmatpush1.msra.mxu0 0.0
        %3110 = vmatprep.subr.mxu0 0.0
        %3111 = vmatpush1.msra.mxu0 0.0
        %3112 = vmatprep.subr.mxu0 0.0
        %3113 = vmatpush1.msra.mxu0 0.0
        %3114 = vmatprep.subr.mxu0 0.0
        %3115 = vmatpush1.msra.mxu0 0.0
        %3116 = vmatprep.subr.mxu0 0.0
        %3117 = vmatpush1.msra.mxu0 0.0
        %3118 = vmatprep.subr.mxu0 0.0
        %3119 = vmatpush1.msra.mxu0 0.0
        %3120 = vmatprep.subr.mxu0 0.0
        %3121 = vmatpush1.msra.mxu0 0.0
        %3122 = vmatprep.subr.mxu0 0.0
        %3123 = vmatpush1.msra.mxu0 0.0
        %3124 = vmatprep.subr.mxu0 0.0
        %3125 = vmatpush1.msra.mxu0 0.0
        %3126 = vmatprep.subr.mxu0 0.0
        %3127 = vmatpush1.msra.mxu0 0.0
        %3128 = vmatprep.subr.mxu0 0.0
        %3129 = vmatpush1.msra.mxu0 0.0
        %3130 = vmatprep.subr.mxu0 0.0
        %3131 = vmatpush1.msra.mxu0 0.0
        %3132 = vmatprep.subr.mxu0 0.0
        %3133 = vmatpush1.msra.mxu0 0.0
        %3134 = vmatprep.subr.mxu0 0.0
        %3135 = vmatpush1.msra.mxu0 0.0
        %3136 = vmatprep.subr.mxu0 0.0
        %3137 = vmatpush1.msra.mxu0 0.0
        %3138 = vmatprep.subr.mxu0 0.0
        %3139 = vmatpush1.msra.mxu0 %v3103
        %3140 = vmatprep.subr.mxu0 0.0
        %3141 = vmatpush2.msra.mxu0 0.0
        %3142 = vmatprep.subr.mxu0 0.0
        %3143 = vmatpush2.msra.mxu0 0.0
        %3144 = vmatprep.subr.mxu0 0.0
        %3145 = vmatpush2.msra.mxu0 0.0
        %3146 = vmatprep.subr.mxu0 0.0
        %3147 = vmatpush2.msra.mxu0 0.0
        %3148 = vmatprep.subr.mxu0 0.0
        %3149 = vmatpush2.msra.mxu0 0.0
        %3150 = vmatprep.subr.mxu0 0.0
        %3151 = vmatpush2.msra.mxu0 0.0
        %3152 = vmatprep.subr.mxu0 0.0
        %3153 = vmatpush2.msra.mxu0 0.0
        %3154 = vmatprep.subr.mxu0 0.0
        %3155 = vmatpush2.msra.mxu0 0.0
        %3156 = vmatprep.subr.mxu0 0.0
        %3157 = vmatpush2.msra.mxu0 0.0
        %3158 = vmatprep.subr.mxu0 0.0
        %3159 = vmatpush2.msra.mxu0 0.0
        %3160 = vmatprep.subr.mxu0 0.0
        %3161 = vmatpush2.msra.mxu0 0.0
        %3162 = vmatprep.subr.mxu0 0.0
        %3163 = vmatpush2.msra.mxu0 0.0
        %3164 = vmatprep.subr.mxu0 0.0
        %3165 = vmatpush2.msra.mxu0 0.0
        %3166 = vmatprep.subr.mxu0 0.0
        %3167 = vmatpush2.msra.mxu0 0.0
        %3168 = vmatprep.subr.mxu0 0.0
        %3169 = vmatpush2.msra.mxu0 0.0
        %3170 = vmatprep.subr.mxu0 0.0
        %3171 = vmatpush2.msra.mxu0 0.0
        %3172 = vmatprep.mubr.f32.mxu0 0.0
        %3173 = vmatmul.mubr.f32.gmra.mxu0 %v3106
        %v3174 = vpop.f32.mrf.mxu0
        %v3175 = vadd.f32 0.0, %v3174
        %v3176 = vpop.f32.mrf.mxu0
        %3177 = vdwg.mxu0
        %3178 = vrot.lane.b32.xlu0 %v1549, 96
        %v3179 = vpop.permute.xlu0 %3178
        %v3182 = vsel %vm201, %v3012, 0
        %3184 = vmatprep.subr.mxu0 0.0
        %3185 = vmatpush1.msra.mxu0 0.0
        %3186 = vmatprep.subr.mxu0 0.0
        %3187 = vmatpush1.msra.mxu0 0.0
        %3188 = vmatprep.subr.mxu0 0.0
        %3189 = vmatpush1.msra.mxu0 0.0
        %3190 = vmatprep.subr.mxu0 0.0
        %3191 = vmatpush1.msra.mxu0 0.0
        %3192 = vmatprep.subr.mxu0 0.0
        %3193 = vmatpush1.msra.mxu0 0.0
        %3194 = vmatprep.subr.mxu0 0.0
        %3195 = vmatpush1.msra.mxu0 0.0
        %3196 = vmatprep.subr.mxu0 0.0
        %3197 = vmatpush1.msra.mxu0 0.0
        %3198 = vmatprep.subr.mxu0 0.0
        %3199 = vmatpush1.msra.mxu0 0.0
        %3200 = vmatprep.subr.mxu0 0.0
        %3201 = vmatpush1.msra.mxu0 0.0
        %3202 = vmatprep.subr.mxu0 0.0
        %3203 = vmatpush1.msra.mxu0 0.0
        %3204 = vmatprep.subr.mxu0 0.0
        %3205 = vmatpush1.msra.mxu0 0.0
        %3206 = vmatprep.subr.mxu0 0.0
        %3207 = vmatpush1.msra.mxu0 0.0
        %3208 = vmatprep.subr.mxu0 0.0
        %3209 = vmatpush1.msra.mxu0 0.0
        %3210 = vmatprep.subr.mxu0 0.0
        %3211 = vmatpush1.msra.mxu0 0.0
        %3212 = vmatprep.subr.mxu0 0.0
        %3213 = vmatpush1.msra.mxu0 0.0
        %3214 = vmatprep.subr.mxu0 0.0
        %3215 = vmatpush1.msra.mxu0 %v3179
        %3216 = vmatprep.subr.mxu0 0.0
        %3217 = vmatpush2.msra.mxu0 0.0
        %3218 = vmatprep.subr.mxu0 0.0
        %3219 = vmatpush2.msra.mxu0 0.0
        %3220 = vmatprep.subr.mxu0 0.0
        %3221 = vmatpush2.msra.mxu0 0.0
        %3222 = vmatprep.subr.mxu0 0.0
        %3223 = vmatpush2.msra.mxu0 0.0
        %3224 = vmatprep.subr.mxu0 0.0
        %3225 = vmatpush2.msra.mxu0 0.0
        %3226 = vmatprep.subr.mxu0 0.0
        %3227 = vmatpush2.msra.mxu0 0.0
        %3228 = vmatprep.subr.mxu0 0.0
        %3229 = vmatpush2.msra.mxu0 0.0
        %3230 = vmatprep.subr.mxu0 0.0
        %3231 = vmatpush2.msra.mxu0 0.0
        %3232 = vmatprep.subr.mxu0 0.0
        %3233 = vmatpush2.msra.mxu0 0.0
        %3234 = vmatprep.subr.mxu0 0.0
        %3235 = vmatpush2.msra.mxu0 0.0
        %3236 = vmatprep.subr.mxu0 0.0
        %3237 = vmatpush2.msra.mxu0 0.0
        %3238 = vmatprep.subr.mxu0 0.0
        %3239 = vmatpush2.msra.mxu0 0.0
        %3240 = vmatprep.subr.mxu0 0.0
        %3241 = vmatpush2.msra.mxu0 0.0
        %3242 = vmatprep.subr.mxu0 0.0
        %3243 = vmatpush2.msra.mxu0 0.0
        %3244 = vmatprep.subr.mxu0 0.0
        %3245 = vmatpush2.msra.mxu0 0.0
        %3246 = vmatprep.subr.mxu0 0.0
        %3247 = vmatpush2.msra.mxu0 0.0
        %3248 = vmatprep.mubr.f32.mxu0 0.0
        %3249 = vmatmul.mubr.f32.gmra.mxu0 %v3182
        %v3250 = vpop.f32.mrf.mxu0
        %v3251 = vadd.f32 0.0, %v3250
        %v3252 = vpop.f32.mrf.mxu0
        %3253 = vdwg.mxu0
        %3254 = vrot.lane.b32.xlu0 %v1554, 96
        %v3255 = vpop.permute.xlu0 %3254
        %v3258 = vsel %vm201, %v3013, 0
        %3260 = vmatprep.subr.mxu0 0.0
        %3261 = vmatpush1.msra.mxu0 0.0
        %3262 = vmatprep.subr.mxu0 0.0
        %3263 = vmatpush1.msra.mxu0 0.0
        %3264 = vmatprep.subr.mxu0 0.0
        %3265 = vmatpush1.msra.mxu0 0.0
        %3266 = vmatprep.subr.mxu0 0.0
        %3267 = vmatpush1.msra.mxu0 0.0
        %3268 = vmatprep.subr.mxu0 0.0
        %3269 = vmatpush1.msra.mxu0 0.0
        %3270 = vmatprep.subr.mxu0 0.0
        %3271 = vmatpush1.msra.mxu0 0.0
        %3272 = vmatprep.subr.mxu0 0.0
        %3273 = vmatpush1.msra.mxu0 0.0
        %3274 = vmatprep.subr.mxu0 0.0
        %3275 = vmatpush1.msra.mxu0 0.0
        %3276 = vmatprep.subr.mxu0 0.0
        %3277 = vmatpush1.msra.mxu0 0.0
        %3278 = vmatprep.subr.mxu0 0.0
        %3279 = vmatpush1.msra.mxu0 0.0
        %3280 = vmatprep.subr.mxu0 0.0
        %3281 = vmatpush1.msra.mxu0 0.0
        %3282 = vmatprep.subr.mxu0 0.0
        %3283 = vmatpush1.msra.mxu0 0.0
        %3284 = vmatprep.subr.mxu0 0.0
        %3285 = vmatpush1.msra.mxu0 0.0
        %3286 = vmatprep.subr.mxu0 0.0
        %3287 = vmatpush1.msra.mxu0 0.0
        %3288 = vmatprep.subr.mxu0 0.0
        %3289 = vmatpush1.msra.mxu0 0.0
        %3290 = vmatprep.subr.mxu0 0.0
        %3291 = vmatpush1.msra.mxu0 %v3255
        %3292 = vmatprep.subr.mxu0 0.0
        %3293 = vmatpush2.msra.mxu0 0.0
        %3294 = vmatprep.subr.mxu0 0.0
        %3295 = vmatpush2.msra.mxu0 0.0
        %3296 = vmatprep.subr.mxu0 0.0
        %3297 = vmatpush2.msra.mxu0 0.0
        %3298 = vmatprep.subr.mxu0 0.0
        %3299 = vmatpush2.msra.mxu0 0.0
        %3300 = vmatprep.subr.mxu0 0.0
        %3301 = vmatpush2.msra.mxu0 0.0
        %3302 = vmatprep.subr.mxu0 0.0
        %3303 = vmatpush2.msra.mxu0 0.0
        %3304 = vmatprep.subr.mxu0 0.0
        %3305 = vmatpush2.msra.mxu0 0.0
        %3306 = vmatprep.subr.mxu0 0.0
        %3307 = vmatpush2.msra.mxu0 0.0
        %3308 = vmatprep.subr.mxu0 0.0
        %3309 = vmatpush2.msra.mxu0 0.0
        %3310 = vmatprep.subr.mxu0 0.0
        %3311 = vmatpush2.msra.mxu0 0.0
        %3312 = vmatprep.subr.mxu0 0.0
        %3313 = vmatpush2.msra.mxu0 0.0
        %3314 = vmatprep.subr.mxu0 0.0
        %3315 = vmatpush2.msra.mxu0 0.0
        %3316 = vmatprep.subr.mxu0 0.0
        %3317 = vmatpush2.msra.mxu0 0.0
        %3318 = vmatprep.subr.mxu0 0.0
        %3319 = vmatpush2.msra.mxu0 0.0
        %3320 = vmatprep.subr.mxu0 0.0
        %3321 = vmatpush2.msra.mxu0 0.0
        %3322 = vmatprep.subr.mxu0 0.0
        %3323 = vmatpush2.msra.mxu0 0.0
        %3324 = vmatprep.mubr.f32.mxu0 0.0
        %3325 = vmatmul.mubr.f32.gmra.mxu0 %v3258
        %v3326 = vpop.f32.mrf.mxu0
        %v3327 = vadd.f32 0.0, %v3326
        %v3328 = vpop.f32.mrf.mxu0
        %3329 = vdwg.mxu0
        %3330 = vrot.lane.b32.xlu0 %v1559, 96
        %v3331 = vpop.permute.xlu0 %3330
        %v3334 = vsel %vm201, %v3014, 0
        %3336 = vmatprep.subr.mxu0 0.0
        %3337 = vmatpush1.msra.mxu0 0.0
        %3338 = vmatprep.subr.mxu0 0.0
        %3339 = vmatpush1.msra.mxu0 0.0
        %3340 = vmatprep.subr.mxu0 0.0
        %3341 = vmatpush1.msra.mxu0 0.0
        %3342 = vmatprep.subr.mxu0 0.0
        %3343 = vmatpush1.msra.mxu0 0.0
        %3344 = vmatprep.subr.mxu0 0.0
        %3345 = vmatpush1.msra.mxu0 0.0
        %3346 = vmatprep.subr.mxu0 0.0
        %3347 = vmatpush1.msra.mxu0 0.0
        %3348 = vmatprep.subr.mxu0 0.0
        %3349 = vmatpush1.msra.mxu0 0.0
        %3350 = vmatprep.subr.mxu0 0.0
        %3351 = vmatpush1.msra.mxu0 0.0
        %3352 = vmatprep.subr.mxu0 0.0
        %3353 = vmatpush1.msra.mxu0 0.0
        %3354 = vmatprep.subr.mxu0 0.0
        %3355 = vmatpush1.msra.mxu0 0.0
        %3356 = vmatprep.subr.mxu0 0.0
        %3357 = vmatpush1.msra.mxu0 0.0
        %3358 = vmatprep.subr.mxu0 0.0
        %3359 = vmatpush1.msra.mxu0 0.0
        %3360 = vmatprep.subr.mxu0 0.0
        %3361 = vmatpush1.msra.mxu0 0.0
        %3362 = vmatprep.subr.mxu0 0.0
        %3363 = vmatpush1.msra.mxu0 0.0
        %3364 = vmatprep.subr.mxu0 0.0
        %3365 = vmatpush1.msra.mxu0 0.0
        %3366 = vmatprep.subr.mxu0 0.0
        %3367 = vmatpush1.msra.mxu0 %v3331
        %3368 = vmatprep.subr.mxu0 0.0
        %3369 = vmatpush2.msra.mxu0 0.0
        %3370 = vmatprep.subr.mxu0 0.0
        %3371 = vmatpush2.msra.mxu0 0.0
        %3372 = vmatprep.subr.mxu0 0.0
        %3373 = vmatpush2.msra.mxu0 0.0
        %3374 = vmatprep.subr.mxu0 0.0
        %3375 = vmatpush2.msra.mxu0 0.0
        %3376 = vmatprep.subr.mxu0 0.0
        %3377 = vmatpush2.msra.mxu0 0.0
        %3378 = vmatprep.subr.mxu0 0.0
        %3379 = vmatpush2.msra.mxu0 0.0
        %3380 = vmatprep.subr.mxu0 0.0
        %3381 = vmatpush2.msra.mxu0 0.0
        %3382 = vmatprep.subr.mxu0 0.0
        %3383 = vmatpush2.msra.mxu0 0.0
        %3384 = vmatprep.subr.mxu0 0.0
        %3385 = vmatpush2.msra.mxu0 0.0
        %3386 = vmatprep.subr.mxu0 0.0
        %3387 = vmatpush2.msra.mxu0 0.0
        %3388 = vmatprep.subr.mxu0 0.0
        %3389 = vmatpush2.msra.mxu0 0.0
        %3390 = vmatprep.subr.mxu0 0.0
        %3391 = vmatpush2.msra.mxu0 0.0
        %3392 = vmatprep.subr.mxu0 0.0
        %3393 = vmatpush2.msra.mxu0 0.0
        %3394 = vmatprep.subr.mxu0 0.0
        %3395 = vmatpush2.msra.mxu0 0.0
        %3396 = vmatprep.subr.mxu0 0.0
        %3397 = vmatpush2.msra.mxu0 0.0
        %3398 = vmatprep.subr.mxu0 0.0
        %3399 = vmatpush2.msra.mxu0 0.0
        %3400 = vmatprep.mubr.f32.mxu0 0.0
        %3401 = vmatmul.mubr.f32.gmra.mxu0 %v3334
        %v3402 = vpop.f32.mrf.mxu0
        %v3403 = vadd.f32 0.0, %v3402
        %v3404 = vpop.f32.mrf.mxu0
        %3405 = vdwg.mxu0
        %3406 = vrot.lane.b32.xlu0 %v1564, 96
        %v3407 = vpop.permute.xlu0 %3406
        %v3410 = vsel %vm201, %v3015, 0
        %3412 = vmatprep.subr.mxu0 0.0
        %3413 = vmatpush1.msra.mxu0 0.0
        %3414 = vmatprep.subr.mxu0 0.0
        %3415 = vmatpush1.msra.mxu0 0.0
        %3416 = vmatprep.subr.mxu0 0.0
        %3417 = vmatpush1.msra.mxu0 0.0
        %3418 = vmatprep.subr.mxu0 0.0
        %3419 = vmatpush1.msra.mxu0 0.0
        %3420 = vmatprep.subr.mxu0 0.0
        %3421 = vmatpush1.msra.mxu0 0.0
        %3422 = vmatprep.subr.mxu0 0.0
        %3423 = vmatpush1.msra.mxu0 0.0
        %3424 = vmatprep.subr.mxu0 0.0
        %3425 = vmatpush1.msra.mxu0 0.0
        %3426 = vmatprep.subr.mxu0 0.0
        %3427 = vmatpush1.msra.mxu0 0.0
        %3428 = vmatprep.subr.mxu0 0.0
        %3429 = vmatpush1.msra.mxu0 0.0
        %3430 = vmatprep.subr.mxu0 0.0
        %3431 = vmatpush1.msra.mxu0 0.0
        %3432 = vmatprep.subr.mxu0 0.0
        %3433 = vmatpush1.msra.mxu0 0.0
        %3434 = vmatprep.subr.mxu0 0.0
        %3435 = vmatpush1.msra.mxu0 0.0
        %3436 = vmatprep.subr.mxu0 0.0
        %3437 = vmatpush1.msra.mxu0 0.0
        %3438 = vmatprep.subr.mxu0 0.0
        %3439 = vmatpush1.msra.mxu0 0.0
        %3440 = vmatprep.subr.mxu0 0.0
        %3441 = vmatpush1.msra.mxu0 0.0
        %3442 = vmatprep.subr.mxu0 0.0
        %3443 = vmatpush1.msra.mxu0 %v3407
        %3444 = vmatprep.subr.mxu0 0.0
        %3445 = vmatpush2.msra.mxu0 0.0
        %3446 = vmatprep.subr.mxu0 0.0
        %3447 = vmatpush2.msra.mxu0 0.0
        %3448 = vmatprep.subr.mxu0 0.0
        %3449 = vmatpush2.msra.mxu0 0.0
        %3450 = vmatprep.subr.mxu0 0.0
        %3451 = vmatpush2.msra.mxu0 0.0
        %3452 = vmatprep.subr.mxu0 0.0
        %3453 = vmatpush2.msra.mxu0 0.0
        %3454 = vmatprep.subr.mxu0 0.0
        %3455 = vmatpush2.msra.mxu0 0.0
        %3456 = vmatprep.subr.mxu0 0.0
        %3457 = vmatpush2.msra.mxu0 0.0
        %3458 = vmatprep.subr.mxu0 0.0
        %3459 = vmatpush2.msra.mxu0 0.0
        %3460 = vmatprep.subr.mxu0 0.0
        %3461 = vmatpush2.msra.mxu0 0.0
        %3462 = vmatprep.subr.mxu0 0.0
        %3463 = vmatpush2.msra.mxu0 0.0
        %3464 = vmatprep.subr.mxu0 0.0
        %3465 = vmatpush2.msra.mxu0 0.0
        %3466 = vmatprep.subr.mxu0 0.0
        %3467 = vmatpush2.msra.mxu0 0.0
        %3468 = vmatprep.subr.mxu0 0.0
        %3469 = vmatpush2.msra.mxu0 0.0
        %3470 = vmatprep.subr.mxu0 0.0
        %3471 = vmatpush2.msra.mxu0 0.0
        %3472 = vmatprep.subr.mxu0 0.0
        %3473 = vmatpush2.msra.mxu0 0.0
        %3474 = vmatprep.subr.mxu0 0.0
        %3475 = vmatpush2.msra.mxu0 0.0
        %3476 = vmatprep.mubr.f32.mxu0 0.0
        %3477 = vmatmul.mubr.f32.gmra.mxu0 %v3410
        %v3478 = vpop.f32.mrf.mxu0
        %v3479 = vadd.f32 0.0, %v3478
        %v3480 = vpop.f32.mrf.mxu0
        %3481 = vdwg.mxu0
        %3482 = vrot.lane.b32.xlu0 %v1569, 96
        %v3483 = vpop.permute.xlu0 %3482
        %v3486 = vsel %vm201, %v3016, 0
        %3488 = vmatprep.subr.mxu0 0.0
        %3489 = vmatpush1.msra.mxu0 0.0
        %3490 = vmatprep.subr.mxu0 0.0
        %3491 = vmatpush1.msra.mxu0 0.0
        %3492 = vmatprep.subr.mxu0 0.0
        %3493 = vmatpush1.msra.mxu0 0.0
        %3494 = vmatprep.subr.mxu0 0.0
        %3495 = vmatpush1.msra.mxu0 0.0
        %3496 = vmatprep.subr.mxu0 0.0
        %3497 = vmatpush1.msra.mxu0 0.0
        %3498 = vmatprep.subr.mxu0 0.0
        %3499 = vmatpush1.msra.mxu0 0.0
        %3500 = vmatprep.subr.mxu0 0.0
        %3501 = vmatpush1.msra.mxu0 0.0
        %3502 = vmatprep.subr.mxu0 0.0
        %3503 = vmatpush1.msra.mxu0 0.0
        %3504 = vmatprep.subr.mxu0 0.0
        %3505 = vmatpush1.msra.mxu0 0.0
        %3506 = vmatprep.subr.mxu0 0.0
        %3507 = vmatpush1.msra.mxu0 0.0
        %3508 = vmatprep.subr.mxu0 0.0
        %3509 = vmatpush1.msra.mxu0 0.0
        %3510 = vmatprep.subr.mxu0 0.0
        %3511 = vmatpush1.msra.mxu0 0.0
        %3512 = vmatprep.subr.mxu0 0.0
        %3513 = vmatpush1.msra.mxu0 0.0
        %3514 = vmatprep.subr.mxu0 0.0
        %3515 = vmatpush1.msra.mxu0 0.0
        %3516 = vmatprep.subr.mxu0 0.0
        %3517 = vmatpush1.msra.mxu0 0.0
        %3518 = vmatprep.subr.mxu0 0.0
        %3519 = vmatpush1.msra.mxu0 %v3483
        %3520 = vmatprep.subr.mxu0 0.0
        %3521 = vmatpush2.msra.mxu0 0.0
        %3522 = vmatprep.subr.mxu0 0.0
        %3523 = vmatpush2.msra.mxu0 0.0
        %3524 = vmatprep.subr.mxu0 0.0
        %3525 = vmatpush2.msra.mxu0 0.0
        %3526 = vmatprep.subr.mxu0 0.0
        %3527 = vmatpush2.msra.mxu0 0.0
        %3528 = vmatprep.subr.mxu0 0.0
        %3529 = vmatpush2.msra.mxu0 0.0
        %3530 = vmatprep.subr.mxu0 0.0
        %3531 = vmatpush2.msra.mxu0 0.0
        %3532 = vmatprep.subr.mxu0 0.0
        %3533 = vmatpush2.msra.mxu0 0.0
        %3534 = vmatprep.subr.mxu0 0.0
        %3535 = vmatpush2.msra.mxu0 0.0
        %3536 = vmatprep.subr.mxu0 0.0
        %3537 = vmatpush2.msra.mxu0 0.0
        %3538 = vmatprep.subr.mxu0 0.0
        %3539 = vmatpush2.msra.mxu0 0.0
        %3540 = vmatprep.subr.mxu0 0.0
        %3541 = vmatpush2.msra.mxu0 0.0
        %3542 = vmatprep.subr.mxu0 0.0
        %3543 = vmatpush2.msra.mxu0 0.0
        %3544 = vmatprep.subr.mxu0 0.0
        %3545 = vmatpush2.msra.mxu0 0.0
        %3546 = vmatprep.subr.mxu0 0.0
        %3547 = vmatpush2.msra.mxu0 0.0
        %3548 = vmatprep.subr.mxu0 0.0
        %3549 = vmatpush2.msra.mxu0 0.0
        %3550 = vmatprep.subr.mxu0 0.0
        %3551 = vmatpush2.msra.mxu0 0.0
        %3552 = vmatprep.mubr.f32.mxu0 0.0
        %3553 = vmatmul.mubr.f32.gmra.mxu0 %v3486
        %v3554 = vpop.f32.mrf.mxu0
        %v3555 = vadd.f32 0.0, %v3554
        %v3556 = vpop.f32.mrf.mxu0
        %3557 = vdwg.mxu0
        %3558 = vrot.lane.b32.xlu0 %v1574, 96
        %v3559 = vpop.permute.xlu0 %3558
        %v3562 = vsel %vm201, %v3017, 0
        %3564 = vmatprep.subr.mxu0 0.0
        %3565 = vmatpush1.msra.mxu0 0.0
        %3566 = vmatprep.subr.mxu0 0.0
        %3567 = vmatpush1.msra.mxu0 0.0
        %3568 = vmatprep.subr.mxu0 0.0
        %3569 = vmatpush1.msra.mxu0 0.0
        %3570 = vmatprep.subr.mxu0 0.0
        %3571 = vmatpush1.msra.mxu0 0.0
        %3572 = vmatprep.subr.mxu0 0.0
        %3573 = vmatpush1.msra.mxu0 0.0
        %3574 = vmatprep.subr.mxu0 0.0
        %3575 = vmatpush1.msra.mxu0 0.0
        %3576 = vmatprep.subr.mxu0 0.0
        %3577 = vmatpush1.msra.mxu0 0.0
        %3578 = vmatprep.subr.mxu0 0.0
        %3579 = vmatpush1.msra.mxu0 0.0
        %3580 = vmatprep.subr.mxu0 0.0
        %3581 = vmatpush1.msra.mxu0 0.0
        %3582 = vmatprep.subr.mxu0 0.0
        %3583 = vmatpush1.msra.mxu0 0.0
        %3584 = vmatprep.subr.mxu0 0.0
        %3585 = vmatpush1.msra.mxu0 0.0
        %3586 = vmatprep.subr.mxu0 0.0
        %3587 = vmatpush1.msra.mxu0 0.0
        %3588 = vmatprep.subr.mxu0 0.0
        %3589 = vmatpush1.msra.mxu0 0.0
        %3590 = vmatprep.subr.mxu0 0.0
        %3591 = vmatpush1.msra.mxu0 0.0
        %3592 = vmatprep.subr.mxu0 0.0
        %3593 = vmatpush1.msra.mxu0 0.0
        %3594 = vmatprep.subr.mxu0 0.0
        %3595 = vmatpush1.msra.mxu0 %v3559
        %3596 = vmatprep.subr.mxu0 0.0
        %3597 = vmatpush2.msra.mxu0 0.0
        %3598 = vmatprep.subr.mxu0 0.0
        %3599 = vmatpush2.msra.mxu0 0.0
        %3600 = vmatprep.subr.mxu0 0.0
        %3601 = vmatpush2.msra.mxu0 0.0
        %3602 = vmatprep.subr.mxu0 0.0
        %3603 = vmatpush2.msra.mxu0 0.0
        %3604 = vmatprep.subr.mxu0 0.0
        %3605 = vmatpush2.msra.mxu0 0.0
        %3606 = vmatprep.subr.mxu0 0.0
        %3607 = vmatpush2.msra.mxu0 0.0
        %3608 = vmatprep.subr.mxu0 0.0
        %3609 = vmatpush2.msra.mxu0 0.0
        %3610 = vmatprep.subr.mxu0 0.0
        %3611 = vmatpush2.msra.mxu0 0.0
        %3612 = vmatprep.subr.mxu0 0.0
        %3613 = vmatpush2.msra.mxu0 0.0
        %3614 = vmatprep.subr.mxu0 0.0
        %3615 = vmatpush2.msra.mxu0 0.0
        %3616 = vmatprep.subr.mxu0 0.0
        %3617 = vmatpush2.msra.mxu0 0.0
        %3618 = vmatprep.subr.mxu0 0.0
        %3619 = vmatpush2.msra.mxu0 0.0
        %3620 = vmatprep.subr.mxu0 0.0
        %3621 = vmatpush2.msra.mxu0 0.0
        %3622 = vmatprep.subr.mxu0 0.0
        %3623 = vmatpush2.msra.mxu0 0.0
        %3624 = vmatprep.subr.mxu0 0.0
        %3625 = vmatpush2.msra.mxu0 0.0
        %3626 = vmatprep.subr.mxu0 0.0
        %3627 = vmatpush2.msra.mxu0 0.0
        %3628 = vmatprep.mubr.f32.mxu0 0.0
        %3629 = vmatmul.mubr.f32.gmra.mxu0 %v3562
        %v3630 = vpop.f32.mrf.mxu0
        %v3631 = vadd.f32 0.0, %v3630
        %v3632 = vpop.f32.mrf.mxu0
        %3633 = vdwg.mxu0
        %3634 = vrot.lane.b32.xlu0 %v1579, 96
        %v3635 = vpop.permute.xlu0 %3634
        %v3638 = vsel %vm201, %v3018, 0
        %3640 = vmatprep.subr.mxu0 0.0
        %3641 = vmatpush1.msra.mxu0 0.0
        %3642 = vmatprep.subr.mxu0 0.0
        %3643 = vmatpush1.msra.mxu0 0.0
        %3644 = vmatprep.subr.mxu0 0.0
        %3645 = vmatpush1.msra.mxu0 0.0
        %3646 = vmatprep.subr.mxu0 0.0
        %3647 = vmatpush1.msra.mxu0 0.0
        %3648 = vmatprep.subr.mxu0 0.0
        %3649 = vmatpush1.msra.mxu0 0.0
        %3650 = vmatprep.subr.mxu0 0.0
        %3651 = vmatpush1.msra.mxu0 0.0
        %3652 = vmatprep.subr.mxu0 0.0
        %3653 = vmatpush1.msra.mxu0 0.0
        %3654 = vmatprep.subr.mxu0 0.0
        %3655 = vmatpush1.msra.mxu0 0.0
        %3656 = vmatprep.subr.mxu0 0.0
        %3657 = vmatpush1.msra.mxu0 0.0
        %3658 = vmatprep.subr.mxu0 0.0
        %3659 = vmatpush1.msra.mxu0 0.0
        %3660 = vmatprep.subr.mxu0 0.0
        %3661 = vmatpush1.msra.mxu0 0.0
        %3662 = vmatprep.subr.mxu0 0.0
        %3663 = vmatpush1.msra.mxu0 0.0
        %3664 = vmatprep.subr.mxu0 0.0
        %3665 = vmatpush1.msra.mxu0 0.0
        %3666 = vmatprep.subr.mxu0 0.0
        %3667 = vmatpush1.msra.mxu0 0.0
        %3668 = vmatprep.subr.mxu0 0.0
        %3669 = vmatpush1.msra.mxu0 0.0
        %3670 = vmatprep.subr.mxu0 0.0
        %3671 = vmatpush1.msra.mxu0 %v3635
        %3672 = vmatprep.subr.mxu0 0.0
        %3673 = vmatpush2.msra.mxu0 0.0
        %3674 = vmatprep.subr.mxu0 0.0
        %3675 = vmatpush2.msra.mxu0 0.0
        %3676 = vmatprep.subr.mxu0 0.0
        %3677 = vmatpush2.msra.mxu0 0.0
        %3678 = vmatprep.subr.mxu0 0.0
        %3679 = vmatpush2.msra.mxu0 0.0
        %3680 = vmatprep.subr.mxu0 0.0
        %3681 = vmatpush2.msra.mxu0 0.0
        %3682 = vmatprep.subr.mxu0 0.0
        %3683 = vmatpush2.msra.mxu0 0.0
        %3684 = vmatprep.subr.mxu0 0.0
        %3685 = vmatpush2.msra.mxu0 0.0
        %3686 = vmatprep.subr.mxu0 0.0
        %3687 = vmatpush2.msra.mxu0 0.0
        %3688 = vmatprep.subr.mxu0 0.0
        %3689 = vmatpush2.msra.mxu0 0.0
        %3690 = vmatprep.subr.mxu0 0.0
        %3691 = vmatpush2.msra.mxu0 0.0
        %3692 = vmatprep.subr.mxu0 0.0
        %3693 = vmatpush2.msra.mxu0 0.0
        %3694 = vmatprep.subr.mxu0 0.0
        %3695 = vmatpush2.msra.mxu0 0.0
        %3696 = vmatprep.subr.mxu0 0.0
        %3697 = vmatpush2.msra.mxu0 0.0
        %3698 = vmatprep.subr.mxu0 0.0
        %3699 = vmatpush2.msra.mxu0 0.0
        %3700 = vmatprep.subr.mxu0 0.0
        %3701 = vmatpush2.msra.mxu0 0.0
        %3702 = vmatprep.subr.mxu0 0.0
        %3703 = vmatpush2.msra.mxu0 0.0
        %3704 = vmatprep.mubr.f32.mxu0 0.0
        %3705 = vmatmul.mubr.f32.gmra.mxu0 %v3638
        %v3706 = vpop.f32.mrf.mxu0
        %v3707 = vadd.f32 0.0, %v3706
        %v3708 = vpop.f32.mrf.mxu0
        %3709 = vdwg.mxu0
        %3710 = vrot.lane.b32.xlu0 %v1584, 96
        %v3711 = vpop.permute.xlu0 %3710
        %v3714 = vsel %vm201, %v3019, 0
        %3716 = vmatprep.subr.mxu0 0.0
        %3717 = vmatpush1.msra.mxu0 0.0
        %3718 = vmatprep.subr.mxu0 0.0
        %3719 = vmatpush1.msra.mxu0 0.0
        %3720 = vmatprep.subr.mxu0 0.0
        %3721 = vmatpush1.msra.mxu0 0.0
        %3722 = vmatprep.subr.mxu0 0.0
        %3723 = vmatpush1.msra.mxu0 0.0
        %3724 = vmatprep.subr.mxu0 0.0
        %3725 = vmatpush1.msra.mxu0 0.0
        %3726 = vmatprep.subr.mxu0 0.0
        %3727 = vmatpush1.msra.mxu0 0.0
        %3728 = vmatprep.subr.mxu0 0.0
        %3729 = vmatpush1.msra.mxu0 0.0
        %3730 = vmatprep.subr.mxu0 0.0
        %3731 = vmatpush1.msra.mxu0 0.0
        %3732 = vmatprep.subr.mxu0 0.0
        %3733 = vmatpush1.msra.mxu0 0.0
        %3734 = vmatprep.subr.mxu0 0.0
        %3735 = vmatpush1.msra.mxu0 0.0
        %3736 = vmatprep.subr.mxu0 0.0
        %3737 = vmatpush1.msra.mxu0 0.0
        %3738 = vmatprep.subr.mxu0 0.0
        %3739 = vmatpush1.msra.mxu0 0.0
        %3740 = vmatprep.subr.mxu0 0.0
        %3741 = vmatpush1.msra.mxu0 0.0
        %3742 = vmatprep.subr.mxu0 0.0
        %3743 = vmatpush1.msra.mxu0 0.0
        %3744 = vmatprep.subr.mxu0 0.0
        %3745 = vmatpush1.msra.mxu0 0.0
        %3746 = vmatprep.subr.mxu0 0.0
        %3747 = vmatpush1.msra.mxu0 %v3711
        %3748 = vmatprep.subr.mxu0 0.0
        %3749 = vmatpush2.msra.mxu0 0.0
        %3750 = vmatprep.subr.mxu0 0.0
        %3751 = vmatpush2.msra.mxu0 0.0
        %3752 = vmatprep.subr.mxu0 0.0
        %3753 = vmatpush2.msra.mxu0 0.0
        %3754 = vmatprep.subr.mxu0 0.0
        %3755 = vmatpush2.msra.mxu0 0.0
        %3756 = vmatprep.subr.mxu0 0.0
        %3757 = vmatpush2.msra.mxu0 0.0
        %3758 = vmatprep.subr.mxu0 0.0
        %3759 = vmatpush2.msra.mxu0 0.0
        %3760 = vmatprep.subr.mxu0 0.0
        %3761 = vmatpush2.msra.mxu0 0.0
        %3762 = vmatprep.subr.mxu0 0.0
        %3763 = vmatpush2.msra.mxu0 0.0
        %3764 = vmatprep.subr.mxu0 0.0
        %3765 = vmatpush2.msra.mxu0 0.0
        %3766 = vmatprep.subr.mxu0 0.0
        %3767 = vmatpush2.msra.mxu0 0.0
        %3768 = vmatprep.subr.mxu0 0.0
        %3769 = vmatpush2.msra.mxu0 0.0
        %3770 = vmatprep.subr.mxu0 0.0
        %3771 = vmatpush2.msra.mxu0 0.0
        %3772 = vmatprep.subr.mxu0 0.0
        %3773 = vmatpush2.msra.mxu0 0.0
        %3774 = vmatprep.subr.mxu0 0.0
        %3775 = vmatpush2.msra.mxu0 0.0
        %3776 = vmatprep.subr.mxu0 0.0
        %3777 = vmatpush2.msra.mxu0 0.0
        %3778 = vmatprep.subr.mxu0 0.0
        %3779 = vmatpush2.msra.mxu0 0.0
        %3780 = vmatprep.mubr.f32.mxu0 0.0
        %3781 = vmatmul.mubr.f32.gmra.mxu0 %v3714
        %v3782 = vpop.f32.mrf.mxu0
        %v3783 = vadd.f32 0.0, %v3782
        %v3784 = vpop.f32.mrf.mxu0
        %3785 = vdwg.mxu0
        %3786 = vrot.lane.b32.xlu0 %v1589, 96
        %v3787 = vpop.permute.xlu0 %3786
        %v3790 = vsel %vm201, %v3020, 0
        %3792 = vmatprep.subr.mxu0 0.0
        %3793 = vmatpush1.msra.mxu0 0.0
        %3794 = vmatprep.subr.mxu0 0.0
        %3795 = vmatpush1.msra.mxu0 0.0
        %3796 = vmatprep.subr.mxu0 0.0
        %3797 = vmatpush1.msra.mxu0 0.0
        %3798 = vmatprep.subr.mxu0 0.0
        %3799 = vmatpush1.msra.mxu0 0.0
        %3800 = vmatprep.subr.mxu0 0.0
        %3801 = vmatpush1.msra.mxu0 0.0
        %3802 = vmatprep.subr.mxu0 0.0
        %3803 = vmatpush1.msra.mxu0 0.0
        %3804 = vmatprep.subr.mxu0 0.0
        %3805 = vmatpush1.msra.mxu0 0.0
        %3806 = vmatprep.subr.mxu0 0.0
        %3807 = vmatpush1.msra.mxu0 0.0
        %3808 = vmatprep.subr.mxu0 0.0
        %3809 = vmatpush1.msra.mxu0 0.0
        %3810 = vmatprep.subr.mxu0 0.0
        %3811 = vmatpush1.msra.mxu0 0.0
        %3812 = vmatprep.subr.mxu0 0.0
        %3813 = vmatpush1.msra.mxu0 0.0
        %3814 = vmatprep.subr.mxu0 0.0
        %3815 = vmatpush1.msra.mxu0 0.0
        %3816 = vmatprep.subr.mxu0 0.0
        %3817 = vmatpush1.msra.mxu0 0.0
        %3818 = vmatprep.subr.mxu0 0.0
        %3819 = vmatpush1.msra.mxu0 0.0
        %3820 = vmatprep.subr.mxu0 0.0
        %3821 = vmatpush1.msra.mxu0 0.0
        %3822 = vmatprep.subr.mxu0 0.0
        %3823 = vmatpush1.msra.mxu0 %v3787
        %3824 = vmatprep.subr.mxu0 0.0
        %3825 = vmatpush2.msra.mxu0 0.0
        %3826 = vmatprep.subr.mxu0 0.0
        %3827 = vmatpush2.msra.mxu0 0.0
        %3828 = vmatprep.subr.mxu0 0.0
        %3829 = vmatpush2.msra.mxu0 0.0
        %3830 = vmatprep.subr.mxu0 0.0
        %3831 = vmatpush2.msra.mxu0 0.0
        %3832 = vmatprep.subr.mxu0 0.0
        %3833 = vmatpush2.msra.mxu0 0.0
        %3834 = vmatprep.subr.mxu0 0.0
        %3835 = vmatpush2.msra.mxu0 0.0
        %3836 = vmatprep.subr.mxu0 0.0
        %3837 = vmatpush2.msra.mxu0 0.0
        %3838 = vmatprep.subr.mxu0 0.0
        %3839 = vmatpush2.msra.mxu0 0.0
        %3840 = vmatprep.subr.mxu0 0.0
        %3841 = vmatpush2.msra.mxu0 0.0
        %3842 = vmatprep.subr.mxu0 0.0
        %3843 = vmatpush2.msra.mxu0 0.0
        %3844 = vmatprep.subr.mxu0 0.0
        %3845 = vmatpush2.msra.mxu0 0.0
        %3846 = vmatprep.subr.mxu0 0.0
        %3847 = vmatpush2.msra.mxu0 0.0
        %3848 = vmatprep.subr.mxu0 0.0
        %3849 = vmatpush2.msra.mxu0 0.0
        %3850 = vmatprep.subr.mxu0 0.0
        %3851 = vmatpush2.msra.mxu0 0.0
        %3852 = vmatprep.subr.mxu0 0.0
        %3853 = vmatpush2.msra.mxu0 0.0
        %3854 = vmatprep.subr.mxu0 0.0
        %3855 = vmatpush2.msra.mxu0 0.0
        %3856 = vmatprep.mubr.f32.mxu0 0.0
        %3857 = vmatmul.mubr.f32.gmra.mxu0 %v3790
        %v3858 = vpop.f32.mrf.mxu0
        %v3859 = vadd.f32 0.0, %v3858
        %v3860 = vpop.f32.mrf.mxu0
        %3861 = vdwg.mxu0
        %3862 = vrot.lane.b32.xlu0 %v1594, 96
        %v3863 = vpop.permute.xlu0 %3862
        %v3866 = vsel %vm201, %v3021, 0
        %3868 = vmatprep.subr.mxu0 0.0
        %3869 = vmatpush1.msra.mxu0 0.0
        %3870 = vmatprep.subr.mxu0 0.0
        %3871 = vmatpush1.msra.mxu0 0.0
        %3872 = vmatprep.subr.mxu0 0.0
        %3873 = vmatpush1.msra.mxu0 0.0
        %3874 = vmatprep.subr.mxu0 0.0
        %3875 = vmatpush1.msra.mxu0 0.0
        %3876 = vmatprep.subr.mxu0 0.0
        %3877 = vmatpush1.msra.mxu0 0.0
        %3878 = vmatprep.subr.mxu0 0.0
        %3879 = vmatpush1.msra.mxu0 0.0
        %3880 = vmatprep.subr.mxu0 0.0
        %3881 = vmatpush1.msra.mxu0 0.0
        %3882 = vmatprep.subr.mxu0 0.0
        %3883 = vmatpush1.msra.mxu0 0.0
        %3884 = vmatprep.subr.mxu0 0.0
        %3885 = vmatpush1.msra.mxu0 0.0
        %3886 = vmatprep.subr.mxu0 0.0
        %3887 = vmatpush1.msra.mxu0 0.0
        %3888 = vmatprep.subr.mxu0 0.0
        %3889 = vmatpush1.msra.mxu0 0.0
        %3890 = vmatprep.subr.mxu0 0.0
        %3891 = vmatpush1.msra.mxu0 0.0
        %3892 = vmatprep.subr.mxu0 0.0
        %3893 = vmatpush1.msra.mxu0 0.0
        %3894 = vmatprep.subr.mxu0 0.0
        %3895 = vmatpush1.msra.mxu0 0.0
        %3896 = vmatprep.subr.mxu0 0.0
        %3897 = vmatpush1.msra.mxu0 0.0
        %3898 = vmatprep.subr.mxu0 0.0
        %3899 = vmatpush1.msra.mxu0 %v3863
        %3900 = vmatprep.subr.mxu0 0.0
        %3901 = vmatpush2.msra.mxu0 0.0
        %3902 = vmatprep.subr.mxu0 0.0
        %3903 = vmatpush2.msra.mxu0 0.0
        %3904 = vmatprep.subr.mxu0 0.0
        %3905 = vmatpush2.msra.mxu0 0.0
        %3906 = vmatprep.subr.mxu0 0.0
        %3907 = vmatpush2.msra.mxu0 0.0
        %3908 = vmatprep.subr.mxu0 0.0
        %3909 = vmatpush2.msra.mxu0 0.0
        %3910 = vmatprep.subr.mxu0 0.0
        %3911 = vmatpush2.msra.mxu0 0.0
        %3912 = vmatprep.subr.mxu0 0.0
        %3913 = vmatpush2.msra.mxu0 0.0
        %3914 = vmatprep.subr.mxu0 0.0
        %3915 = vmatpush2.msra.mxu0 0.0
        %3916 = vmatprep.subr.mxu0 0.0
        %3917 = vmatpush2.msra.mxu0 0.0
        %3918 = vmatprep.subr.mxu0 0.0
        %3919 = vmatpush2.msra.mxu0 0.0
        %3920 = vmatprep.subr.mxu0 0.0
        %3921 = vmatpush2.msra.mxu0 0.0
        %3922 = vmatprep.subr.mxu0 0.0
        %3923 = vmatpush2.msra.mxu0 0.0
        %3924 = vmatprep.subr.mxu0 0.0
        %3925 = vmatpush2.msra.mxu0 0.0
        %3926 = vmatprep.subr.mxu0 0.0
        %3927 = vmatpush2.msra.mxu0 0.0
        %3928 = vmatprep.subr.mxu0 0.0
        %3929 = vmatpush2.msra.mxu0 0.0
        %3930 = vmatprep.subr.mxu0 0.0
        %3931 = vmatpush2.msra.mxu0 0.0
        %3932 = vmatprep.mubr.f32.mxu0 0.0
        %3933 = vmatmul.mubr.f32.gmra.mxu0 %v3866
        %v3934 = vpop.f32.mrf.mxu0
        %v3935 = vadd.f32 0.0, %v3934
        %v3936 = vpop.f32.mrf.mxu0
        %3937 = vdwg.mxu0
        %3938 = vrot.lane.b32.xlu0 %v1599, 96
        %v3939 = vpop.permute.xlu0 %3938
        %v3942 = vsel %vm201, %v3022, 0
        %3944 = vmatprep.subr.mxu0 0.0
        %3945 = vmatpush1.msra.mxu0 0.0
        %3946 = vmatprep.subr.mxu0 0.0
        %3947 = vmatpush1.msra.mxu0 0.0
        %3948 = vmatprep.subr.mxu0 0.0
        %3949 = vmatpush1.msra.mxu0 0.0
        %3950 = vmatprep.subr.mxu0 0.0
        %3951 = vmatpush1.msra.mxu0 0.0
        %3952 = vmatprep.subr.mxu0 0.0
        %3953 = vmatpush1.msra.mxu0 0.0
        %3954 = vmatprep.subr.mxu0 0.0
        %3955 = vmatpush1.msra.mxu0 0.0
        %3956 = vmatprep.subr.mxu0 0.0
        %3957 = vmatpush1.msra.mxu0 0.0
        %3958 = vmatprep.subr.mxu0 0.0
        %3959 = vmatpush1.msra.mxu0 0.0
        %3960 = vmatprep.subr.mxu0 0.0
        %3961 = vmatpush1.msra.mxu0 0.0
        %3962 = vmatprep.subr.mxu0 0.0
        %3963 = vmatpush1.msra.mxu0 0.0
        %3964 = vmatprep.subr.mxu0 0.0
        %3965 = vmatpush1.msra.mxu0 0.0
        %3966 = vmatprep.subr.mxu0 0.0
        %3967 = vmatpush1.msra.mxu0 0.0
        %3968 = vmatprep.subr.mxu0 0.0
        %3969 = vmatpush1.msra.mxu0 0.0
        %3970 = vmatprep.subr.mxu0 0.0
        %3971 = vmatpush1.msra.mxu0 0.0
        %3972 = vmatprep.subr.mxu0 0.0
        %3973 = vmatpush1.msra.mxu0 0.0
        %3974 = vmatprep.subr.mxu0 0.0
        %3975 = vmatpush1.msra.mxu0 %v3939
        %3976 = vmatprep.subr.mxu0 0.0
        %3977 = vmatpush2.msra.mxu0 0.0
        %3978 = vmatprep.subr.mxu0 0.0
        %3979 = vmatpush2.msra.mxu0 0.0
        %3980 = vmatprep.subr.mxu0 0.0
        %3981 = vmatpush2.msra.mxu0 0.0
        %3982 = vmatprep.subr.mxu0 0.0
        %3983 = vmatpush2.msra.mxu0 0.0
        %3984 = vmatprep.subr.mxu0 0.0
        %3985 = vmatpush2.msra.mxu0 0.0
        %3986 = vmatprep.subr.mxu0 0.0
        %3987 = vmatpush2.msra.mxu0 0.0
        %3988 = vmatprep.subr.mxu0 0.0
        %3989 = vmatpush2.msra.mxu0 0.0
        %3990 = vmatprep.subr.mxu0 0.0
        %3991 = vmatpush2.msra.mxu0 0.0
        %3992 = vmatprep.subr.mxu0 0.0
        %3993 = vmatpush2.msra.mxu0 0.0
        %3994 = vmatprep.subr.mxu0 0.0
        %3995 = vmatpush2.msra.mxu0 0.0
        %3996 = vmatprep.subr.mxu0 0.0
        %3997 = vmatpush2.msra.mxu0 0.0
        %3998 = vmatprep.subr.mxu0 0.0
        %3999 = vmatpush2.msra.mxu0 0.0
        %4000 = vmatprep.subr.mxu0 0.0
        %4001 = vmatpush2.msra.mxu0 0.0
        %4002 = vmatprep.subr.mxu0 0.0
        %4003 = vmatpush2.msra.mxu0 0.0
        %4004 = vmatprep.subr.mxu0 0.0
        %4005 = vmatpush2.msra.mxu0 0.0
        %4006 = vmatprep.subr.mxu0 0.0
        %4007 = vmatpush2.msra.mxu0 0.0
        %4008 = vmatprep.mubr.f32.mxu0 0.0
        %4009 = vmatmul.mubr.f32.gmra.mxu0 %v3942
        %v4010 = vpop.f32.mrf.mxu0
        %v4011 = vadd.f32 0.0, %v4010
        %v4012 = vpop.f32.mrf.mxu0
        %4013 = vdwg.mxu0
        %4014 = vrot.lane.b32.xlu0 %v1604, 96
        %v4015 = vpop.permute.xlu0 %4014
        %v4018 = vsel %vm201, %v3023, 0
        %4020 = vmatprep.subr.mxu0 0.0
        %4021 = vmatpush1.msra.mxu0 0.0
        %4022 = vmatprep.subr.mxu0 0.0
        %4023 = vmatpush1.msra.mxu0 0.0
        %4024 = vmatprep.subr.mxu0 0.0
        %4025 = vmatpush1.msra.mxu0 0.0
        %4026 = vmatprep.subr.mxu0 0.0
        %4027 = vmatpush1.msra.mxu0 0.0
        %4028 = vmatprep.subr.mxu0 0.0
        %4029 = vmatpush1.msra.mxu0 0.0
        %4030 = vmatprep.subr.mxu0 0.0
        %4031 = vmatpush1.msra.mxu0 0.0
        %4032 = vmatprep.subr.mxu0 0.0
        %4033 = vmatpush1.msra.mxu0 0.0
        %4034 = vmatprep.subr.mxu0 0.0
        %4035 = vmatpush1.msra.mxu0 0.0
        %4036 = vmatprep.subr.mxu0 0.0
        %4037 = vmatpush1.msra.mxu0 0.0
        %4038 = vmatprep.subr.mxu0 0.0
        %4039 = vmatpush1.msra.mxu0 0.0
        %4040 = vmatprep.subr.mxu0 0.0
        %4041 = vmatpush1.msra.mxu0 0.0
        %4042 = vmatprep.subr.mxu0 0.0
        %4043 = vmatpush1.msra.mxu0 0.0
        %4044 = vmatprep.subr.mxu0 0.0
        %4045 = vmatpush1.msra.mxu0 0.0
        %4046 = vmatprep.subr.mxu0 0.0
        %4047 = vmatpush1.msra.mxu0 0.0
        %4048 = vmatprep.subr.mxu0 0.0
        %4049 = vmatpush1.msra.mxu0 0.0
        %4050 = vmatprep.subr.mxu0 0.0
        %4051 = vmatpush1.msra.mxu0 %v4015
        %4052 = vmatprep.subr.mxu0 0.0
        %4053 = vmatpush2.msra.mxu0 0.0
        %4054 = vmatprep.subr.mxu0 0.0
        %4055 = vmatpush2.msra.mxu0 0.0
        %4056 = vmatprep.subr.mxu0 0.0
        %4057 = vmatpush2.msra.mxu0 0.0
        %4058 = vmatprep.subr.mxu0 0.0
        %4059 = vmatpush2.msra.mxu0 0.0
        %4060 = vmatprep.subr.mxu0 0.0
        %4061 = vmatpush2.msra.mxu0 0.0
        %4062 = vmatprep.subr.mxu0 0.0
        %4063 = vmatpush2.msra.mxu0 0.0
        %4064 = vmatprep.subr.mxu0 0.0
        %4065 = vmatpush2.msra.mxu0 0.0
        %4066 = vmatprep.subr.mxu0 0.0
        %4067 = vmatpush2.msra.mxu0 0.0
        %4068 = vmatprep.subr.mxu0 0.0
        %4069 = vmatpush2.msra.mxu0 0.0
        %4070 = vmatprep.subr.mxu0 0.0
        %4071 = vmatpush2.msra.mxu0 0.0
        %4072 = vmatprep.subr.mxu0 0.0
        %4073 = vmatpush2.msra.mxu0 0.0
        %4074 = vmatprep.subr.mxu0 0.0
        %4075 = vmatpush2.msra.mxu0 0.0
        %4076 = vmatprep.subr.mxu0 0.0
        %4077 = vmatpush2.msra.mxu0 0.0
        %4078 = vmatprep.subr.mxu0 0.0
        %4079 = vmatpush2.msra.mxu0 0.0
        %4080 = vmatprep.subr.mxu0 0.0
        %4081 = vmatpush2.msra.mxu0 0.0
        %4082 = vmatprep.subr.mxu0 0.0
        %4083 = vmatpush2.msra.mxu0 0.0
        %4084 = vmatprep.mubr.f32.mxu0 0.0
        %4085 = vmatmul.mubr.f32.gmra.mxu0 %v4018
        %v4086 = vpop.f32.mrf.mxu0
        %v4087 = vadd.f32 0.0, %v4086
        %v4088 = vpop.f32.mrf.mxu0
        %4089 = vdwg.mxu0
        %4090 = vrot.lane.b32.xlu0 %v1609, 96
        %v4091 = vpop.permute.xlu0 %4090
        %v4094 = vsel %vm201, %v3024, 0
        %4096 = vmatprep.subr.mxu0 0.0
        %4097 = vmatpush1.msra.mxu0 0.0
        %4098 = vmatprep.subr.mxu0 0.0
        %4099 = vmatpush1.msra.mxu0 0.0
        %4100 = vmatprep.subr.mxu0 0.0
        %4101 = vmatpush1.msra.mxu0 0.0
        %4102 = vmatprep.subr.mxu0 0.0
        %4103 = vmatpush1.msra.mxu0 0.0
        %4104 = vmatprep.subr.mxu0 0.0
        %4105 = vmatpush1.msra.mxu0 0.0
        %4106 = vmatprep.subr.mxu0 0.0
        %4107 = vmatpush1.msra.mxu0 0.0
        %4108 = vmatprep.subr.mxu0 0.0
        %4109 = vmatpush1.msra.mxu0 0.0
        %4110 = vmatprep.subr.mxu0 0.0
        %4111 = vmatpush1.msra.mxu0 0.0
        %4112 = vmatprep.subr.mxu0 0.0
        %4113 = vmatpush1.msra.mxu0 0.0
        %4114 = vmatprep.subr.mxu0 0.0
        %4115 = vmatpush1.msra.mxu0 0.0
        %4116 = vmatprep.subr.mxu0 0.0
        %4117 = vmatpush1.msra.mxu0 0.0
        %4118 = vmatprep.subr.mxu0 0.0
        %4119 = vmatpush1.msra.mxu0 0.0
        %4120 = vmatprep.subr.mxu0 0.0
        %4121 = vmatpush1.msra.mxu0 0.0
        %4122 = vmatprep.subr.mxu0 0.0
        %4123 = vmatpush1.msra.mxu0 0.0
        %4124 = vmatprep.subr.mxu0 0.0
        %4125 = vmatpush1.msra.mxu0 0.0
        %4126 = vmatprep.subr.mxu0 0.0
        %4127 = vmatpush1.msra.mxu0 %v4091
        %4128 = vmatprep.subr.mxu0 0.0
        %4129 = vmatpush2.msra.mxu0 0.0
        %4130 = vmatprep.subr.mxu0 0.0
        %4131 = vmatpush2.msra.mxu0 0.0
        %4132 = vmatprep.subr.mxu0 0.0
        %4133 = vmatpush2.msra.mxu0 0.0
        %4134 = vmatprep.subr.mxu0 0.0
        %4135 = vmatpush2.msra.mxu0 0.0
        %4136 = vmatprep.subr.mxu0 0.0
        %4137 = vmatpush2.msra.mxu0 0.0
        %4138 = vmatprep.subr.mxu0 0.0
        %4139 = vmatpush2.msra.mxu0 0.0
        %4140 = vmatprep.subr.mxu0 0.0
        %4141 = vmatpush2.msra.mxu0 0.0
        %4142 = vmatprep.subr.mxu0 0.0
        %4143 = vmatpush2.msra.mxu0 0.0
        %4144 = vmatprep.subr.mxu0 0.0
        %4145 = vmatpush2.msra.mxu0 0.0
        %4146 = vmatprep.subr.mxu0 0.0
        %4147 = vmatpush2.msra.mxu0 0.0
        %4148 = vmatprep.subr.mxu0 0.0
        %4149 = vmatpush2.msra.mxu0 0.0
        %4150 = vmatprep.subr.mxu0 0.0
        %4151 = vmatpush2.msra.mxu0 0.0
        %4152 = vmatprep.subr.mxu0 0.0
        %4153 = vmatpush2.msra.mxu0 0.0
        %4154 = vmatprep.subr.mxu0 0.0
        %4155 = vmatpush2.msra.mxu0 0.0
        %4156 = vmatprep.subr.mxu0 0.0
        %4157 = vmatpush2.msra.mxu0 0.0
        %4158 = vmatprep.subr.mxu0 0.0
        %4159 = vmatpush2.msra.mxu0 0.0
        %4160 = vmatprep.mubr.f32.mxu0 0.0
        %4161 = vmatmul.mubr.f32.gmra.mxu0 %v4094
        %v4162 = vpop.f32.mrf.mxu0
        %v4163 = vadd.f32 0.0, %v4162
        %v4164 = vpop.f32.mrf.mxu0
        %4165 = vdwg.mxu0
        %4166 = vrot.lane.b32.xlu0 %v1614, 96
        %v4167 = vpop.permute.xlu0 %4166
        %v4170 = vsel %vm201, %v3025, 0
        %4172 = vmatprep.subr.mxu0 0.0
        %4173 = vmatpush1.msra.mxu0 0.0
        %4174 = vmatprep.subr.mxu0 0.0
        %4175 = vmatpush1.msra.mxu0 0.0
        %4176 = vmatprep.subr.mxu0 0.0
        %4177 = vmatpush1.msra.mxu0 0.0
        %4178 = vmatprep.subr.mxu0 0.0
        %4179 = vmatpush1.msra.mxu0 0.0
        %4180 = vmatprep.subr.mxu0 0.0
        %4181 = vmatpush1.msra.mxu0 0.0
        %4182 = vmatprep.subr.mxu0 0.0
        %4183 = vmatpush1.msra.mxu0 0.0
        %4184 = vmatprep.subr.mxu0 0.0
        %4185 = vmatpush1.msra.mxu0 0.0
        %4186 = vmatprep.subr.mxu0 0.0
        %4187 = vmatpush1.msra.mxu0 0.0
        %4188 = vmatprep.subr.mxu0 0.0
        %4189 = vmatpush1.msra.mxu0 0.0
        %4190 = vmatprep.subr.mxu0 0.0
        %4191 = vmatpush1.msra.mxu0 0.0
        %4192 = vmatprep.subr.mxu0 0.0
        %4193 = vmatpush1.msra.mxu0 0.0
        %4194 = vmatprep.subr.mxu0 0.0
        %4195 = vmatpush1.msra.mxu0 0.0
        %4196 = vmatprep.subr.mxu0 0.0
        %4197 = vmatpush1.msra.mxu0 0.0
        %4198 = vmatprep.subr.mxu0 0.0
        %4199 = vmatpush1.msra.mxu0 0.0
        %4200 = vmatprep.subr.mxu0 0.0
        %4201 = vmatpush1.msra.mxu0 0.0
        %4202 = vmatprep.subr.mxu0 0.0
        %4203 = vmatpush1.msra.mxu0 %v4167
        %4204 = vmatprep.subr.mxu0 0.0
        %4205 = vmatpush2.msra.mxu0 0.0
        %4206 = vmatprep.subr.mxu0 0.0
        %4207 = vmatpush2.msra.mxu0 0.0
        %4208 = vmatprep.subr.mxu0 0.0
        %4209 = vmatpush2.msra.mxu0 0.0
        %4210 = vmatprep.subr.mxu0 0.0
        %4211 = vmatpush2.msra.mxu0 0.0
        %4212 = vmatprep.subr.mxu0 0.0
        %4213 = vmatpush2.msra.mxu0 0.0
        %4214 = vmatprep.subr.mxu0 0.0
        %4215 = vmatpush2.msra.mxu0 0.0
        %4216 = vmatprep.subr.mxu0 0.0
        %4217 = vmatpush2.msra.mxu0 0.0
        %4218 = vmatprep.subr.mxu0 0.0
        %4219 = vmatpush2.msra.mxu0 0.0
        %4220 = vmatprep.subr.mxu0 0.0
        %4221 = vmatpush2.msra.mxu0 0.0
        %4222 = vmatprep.subr.mxu0 0.0
        %4223 = vmatpush2.msra.mxu0 0.0
        %4224 = vmatprep.subr.mxu0 0.0
        %4225 = vmatpush2.msra.mxu0 0.0
        %4226 = vmatprep.subr.mxu0 0.0
        %4227 = vmatpush2.msra.mxu0 0.0
        %4228 = vmatprep.subr.mxu0 0.0
        %4229 = vmatpush2.msra.mxu0 0.0
        %4230 = vmatprep.subr.mxu0 0.0
        %4231 = vmatpush2.msra.mxu0 0.0
        %4232 = vmatprep.subr.mxu0 0.0
        %4233 = vmatpush2.msra.mxu0 0.0
        %4234 = vmatprep.subr.mxu0 0.0
        %4235 = vmatpush2.msra.mxu0 0.0
        %4236 = vmatprep.mubr.f32.mxu0 0.0
        %4237 = vmatmul.mubr.f32.gmra.mxu0 %v4170
        %v4238 = vpop.f32.mrf.mxu0
        %v4239 = vadd.f32 0.0, %v4238
        %v4240 = vpop.f32.mrf.mxu0
        %4241 = vdwg.mxu0
        %4242 = vmatprep.subr.mxu0 0.0
        %4243 = vmatpush1.msra.mxu0 0.0
        %4244 = vmatprep.subr.mxu0 0.0
        %4245 = vmatpush1.msra.mxu0 0.0
        %4246 = vmatprep.subr.mxu0 0.0
        %4247 = vmatpush1.msra.mxu0 0.0
        %4248 = vmatprep.subr.mxu0 0.0
        %4249 = vmatpush1.msra.mxu0 0.0
        %4250 = vmatprep.subr.mxu0 0.0
        %4251 = vmatpush1.msra.mxu0 0.0
        %4252 = vmatprep.subr.mxu0 0.0
        %4253 = vmatpush1.msra.mxu0 0.0
        %4254 = vmatprep.subr.mxu0 0.0
        %4255 = vmatpush1.msra.mxu0 0.0
        %4256 = vmatprep.subr.mxu0 0.0
        %4257 = vmatpush1.msra.mxu0 0.0
        %4258 = vmatprep.subr.mxu0 0.0
        %4259 = vmatpush1.msra.mxu0 0.0
        %4260 = vmatprep.subr.mxu0 0.0
        %4261 = vmatpush1.msra.mxu0 0.0
        %4262 = vmatprep.subr.mxu0 0.0
        %4263 = vmatpush1.msra.mxu0 0.0
        %4264 = vmatprep.subr.mxu0 0.0
        %4265 = vmatpush1.msra.mxu0 0.0
        %4266 = vmatprep.subr.mxu0 0.0
        %4267 = vmatpush1.msra.mxu0 0.0
        %4268 = vmatprep.subr.mxu0 0.0
        %4269 = vmatpush1.msra.mxu0 0.0
        %4270 = vmatprep.subr.mxu0 0.0
        %4271 = vmatpush1.msra.mxu0 0.0
        %4272 = vmatprep.subr.mxu0 0.0
        %4273 = vmatpush1.msra.mxu0 %v3099
        %4274 = vmatprep.subr.mxu0 0.0
        %4275 = vmatpush2.msra.mxu0 0.0
        %4276 = vmatprep.subr.mxu0 0.0
        %4277 = vmatpush2.msra.mxu0 0.0
        %4278 = vmatprep.subr.mxu0 0.0
        %4279 = vmatpush2.msra.mxu0 0.0
        %4280 = vmatprep.subr.mxu0 0.0
        %4281 = vmatpush2.msra.mxu0 0.0
        %4282 = vmatprep.subr.mxu0 0.0
        %4283 = vmatpush2.msra.mxu0 0.0
        %4284 = vmatprep.subr.mxu0 0.0
        %4285 = vmatpush2.msra.mxu0 0.0
        %4286 = vmatprep.subr.mxu0 0.0
        %4287 = vmatpush2.msra.mxu0 0.0
        %4288 = vmatprep.subr.mxu0 0.0
        %4289 = vmatpush2.msra.mxu0 0.0
        %4290 = vmatprep.subr.mxu0 0.0
        %4291 = vmatpush2.msra.mxu0 0.0
        %4292 = vmatprep.subr.mxu0 0.0
        %4293 = vmatpush2.msra.mxu0 0.0
        %4294 = vmatprep.subr.mxu0 0.0
        %4295 = vmatpush2.msra.mxu0 0.0
        %4296 = vmatprep.subr.mxu0 0.0
        %4297 = vmatpush2.msra.mxu0 0.0
        %4298 = vmatprep.subr.mxu0 0.0
        %4299 = vmatpush2.msra.mxu0 0.0
        %4300 = vmatprep.subr.mxu0 0.0
        %4301 = vmatpush2.msra.mxu0 0.0
        %4302 = vmatprep.subr.mxu0 0.0
        %4303 = vmatpush2.msra.mxu0 0.0
        %4304 = vmatprep.subr.mxu0 0.0
        %4305 = vmatpush2.msra.mxu0 0.0
        %4306 = vmatprep.mubr.f32.mxu0 0.0
        %4307 = vmatmul.mubr.f32.gmra.mxu0 %v202
        %v4308 = vpop.f32.mrf.mxu0
        %v4309 = vadd.f32 0.0, %v4308
        %v4310 = vpop.f32.mrf.mxu0
        %4311 = vdwg.mxu0
        %4312 = vmatprep.subr.mxu0 0.0
        %4313 = vmatpush1.msra.mxu0 0.0
        %4314 = vmatprep.subr.mxu0 0.0
        %4315 = vmatpush1.msra.mxu0 0.0
        %4316 = vmatprep.subr.mxu0 0.0
        %4317 = vmatpush1.msra.mxu0 0.0
        %4318 = vmatprep.subr.mxu0 0.0
        %4319 = vmatpush1.msra.mxu0 0.0
        %4320 = vmatprep.subr.mxu0 0.0
        %4321 = vmatpush1.msra.mxu0 0.0
        %4322 = vmatprep.subr.mxu0 0.0
        %4323 = vmatpush1.msra.mxu0 0.0
        %4324 = vmatprep.subr.mxu0 0.0
        %4325 = vmatpush1.msra.mxu0 0.0
        %4326 = vmatprep.subr.mxu0 0.0
        %4327 = vmatpush1.msra.mxu0 0.0
        %4328 = vmatprep.subr.mxu0 0.0
        %4329 = vmatpush1.msra.mxu0 0.0
        %4330 = vmatprep.subr.mxu0 0.0
        %4331 = vmatpush1.msra.mxu0 0.0
        %4332 = vmatprep.subr.mxu0 0.0
        %4333 = vmatpush1.msra.mxu0 0.0
        %4334 = vmatprep.subr.mxu0 0.0
        %4335 = vmatpush1.msra.mxu0 0.0
        %4336 = vmatprep.subr.mxu0 0.0
        %4337 = vmatpush1.msra.mxu0 0.0
        %4338 = vmatprep.subr.mxu0 0.0
        %4339 = vmatpush1.msra.mxu0 0.0
        %4340 = vmatprep.subr.mxu0 0.0
        %4341 = vmatpush1.msra.mxu0 0.0
        %4342 = vmatprep.subr.mxu0 0.0
        %4343 = vmatpush1.msra.mxu0 %v3175
        %4344 = vmatprep.subr.mxu0 0.0
        %4345 = vmatpush2.msra.mxu0 0.0
        %4346 = vmatprep.subr.mxu0 0.0
        %4347 = vmatpush2.msra.mxu0 0.0
        %4348 = vmatprep.subr.mxu0 0.0
        %4349 = vmatpush2.msra.mxu0 0.0
        %4350 = vmatprep.subr.mxu0 0.0
        %4351 = vmatpush2.msra.mxu0 0.0
        %4352 = vmatprep.subr.mxu0 0.0
        %4353 = vmatpush2.msra.mxu0 0.0
        %4354 = vmatprep.subr.mxu0 0.0
        %4355 = vmatpush2.msra.mxu0 0.0
        %4356 = vmatprep.subr.mxu0 0.0
        %4357 = vmatpush2.msra.mxu0 0.0
        %4358 = vmatprep.subr.mxu0 0.0
        %4359 = vmatpush2.msra.mxu0 0.0
        %4360 = vmatprep.subr.mxu0 0.0
        %4361 = vmatpush2.msra.mxu0 0.0
        %4362 = vmatprep.subr.mxu0 0.0
        %4363 = vmatpush2.msra.mxu0 0.0
        %4364 = vmatprep.subr.mxu0 0.0
        %4365 = vmatpush2.msra.mxu0 0.0
        %4366 = vmatprep.subr.mxu0 0.0
        %4367 = vmatpush2.msra.mxu0 0.0
        %4368 = vmatprep.subr.mxu0 0.0
        %4369 = vmatpush2.msra.mxu0 0.0
        %4370 = vmatprep.subr.mxu0 0.0
        %4371 = vmatpush2.msra.mxu0 0.0
        %4372 = vmatprep.subr.mxu0 0.0
        %4373 = vmatpush2.msra.mxu0 0.0
        %4374 = vmatprep.subr.mxu0 0.0
        %4375 = vmatpush2.msra.mxu0 0.0
        %4376 = vmatprep.mubr.f32.mxu0 0.0
        %4377 = vmatmul.mubr.f32.gmra.mxu0 %v278
        %v4378 = vpop.f32.mrf.mxu0
        %v4379 = vadd.f32 0.0, %v4378
        %v4380 = vpop.f32.mrf.mxu0
        %4381 = vdwg.mxu0
        %4382 = vmatprep.subr.mxu0 0.0
        %4383 = vmatpush1.msra.mxu0 0.0
        %4384 = vmatprep.subr.mxu0 0.0
        %4385 = vmatpush1.msra.mxu0 0.0
        %4386 = vmatprep.subr.mxu0 0.0
        %4387 = vmatpush1.msra.mxu0 0.0
        %4388 = vmatprep.subr.mxu0 0.0
        %4389 = vmatpush1.msra.mxu0 0.0
        %4390 = vmatprep.subr.mxu0 0.0
        %4391 = vmatpush1.msra.mxu0 0.0
        %4392 = vmatprep.subr.mxu0 0.0
        %4393 = vmatpush1.msra.mxu0 0.0
        %4394 = vmatprep.subr.mxu0 0.0
        %4395 = vmatpush1.msra.mxu0 0.0
        %4396 = vmatprep.subr.mxu0 0.0
        %4397 = vmatpush1.msra.mxu0 0.0
        %4398 = vmatprep.subr.mxu0 0.0
        %4399 = vmatpush1.msra.mxu0 0.0
        %4400 = vmatprep.subr.mxu0 0.0
        %4401 = vmatpush1.msra.mxu0 0.0
        %4402 = vmatprep.subr.mxu0 0.0
        %4403 = vmatpush1.msra.mxu0 0.0
        %4404 = vmatprep.subr.mxu0 0.0
        %4405 = vmatpush1.msra.mxu0 0.0
        %4406 = vmatprep.subr.mxu0 0.0
        %4407 = vmatpush1.msra.mxu0 0.0
        %4408 = vmatprep.subr.mxu0 0.0
        %4409 = vmatpush1.msra.mxu0 0.0
        %4410 = vmatprep.subr.mxu0 0.0
        %4411 = vmatpush1.msra.mxu0 0.0
        %4412 = vmatprep.subr.mxu0 0.0
        %4413 = vmatpush1.msra.mxu0 %v3251
        %4414 = vmatprep.subr.mxu0 0.0
        %4415 = vmatpush2.msra.mxu0 0.0
        %4416 = vmatprep.subr.mxu0 0.0
        %4417 = vmatpush2.msra.mxu0 0.0
        %4418 = vmatprep.subr.mxu0 0.0
        %4419 = vmatpush2.msra.mxu0 0.0
        %4420 = vmatprep.subr.mxu0 0.0
        %4421 = vmatpush2.msra.mxu0 0.0
        %4422 = vmatprep.subr.mxu0 0.0
        %4423 = vmatpush2.msra.mxu0 0.0
        %4424 = vmatprep.subr.mxu0 0.0
        %4425 = vmatpush2.msra.mxu0 0.0
        %4426 = vmatprep.subr.mxu0 0.0
        %4427 = vmatpush2.msra.mxu0 0.0
        %4428 = vmatprep.subr.mxu0 0.0
        %4429 = vmatpush2.msra.mxu0 0.0
        %4430 = vmatprep.subr.mxu0 0.0
        %4431 = vmatpush2.msra.mxu0 0.0
        %4432 = vmatprep.subr.mxu0 0.0
        %4433 = vmatpush2.msra.mxu0 0.0
        %4434 = vmatprep.subr.mxu0 0.0
        %4435 = vmatpush2.msra.mxu0 0.0
        %4436 = vmatprep.subr.mxu0 0.0
        %4437 = vmatpush2.msra.mxu0 0.0
        %4438 = vmatprep.subr.mxu0 0.0
        %4439 = vmatpush2.msra.mxu0 0.0
        %4440 = vmatprep.subr.mxu0 0.0
        %4441 = vmatpush2.msra.mxu0 0.0
        %4442 = vmatprep.subr.mxu0 0.0
        %4443 = vmatpush2.msra.mxu0 0.0
        %4444 = vmatprep.subr.mxu0 0.0
        %4445 = vmatpush2.msra.mxu0 0.0
        %4446 = vmatprep.mubr.f32.mxu0 0.0
        %4447 = vmatmul.mubr.f32.gmra.mxu0 %v354
        %v4448 = vpop.f32.mrf.mxu0
        %v4449 = vadd.f32 0.0, %v4448
        %v4450 = vpop.f32.mrf.mxu0
        %4451 = vdwg.mxu0
        %4452 = vmatprep.subr.mxu0 0.0
        %4453 = vmatpush1.msra.mxu0 0.0
        %4454 = vmatprep.subr.mxu0 0.0
        %4455 = vmatpush1.msra.mxu0 0.0
        %4456 = vmatprep.subr.mxu0 0.0
        %4457 = vmatpush1.msra.mxu0 0.0
        %4458 = vmatprep.subr.mxu0 0.0
        %4459 = vmatpush1.msra.mxu0 0.0
        %4460 = vmatprep.subr.mxu0 0.0
        %4461 = vmatpush1.msra.mxu0 0.0
        %4462 = vmatprep.subr.mxu0 0.0
        %4463 = vmatpush1.msra.mxu0 0.0
        %4464 = vmatprep.subr.mxu0 0.0
        %4465 = vmatpush1.msra.mxu0 0.0
        %4466 = vmatprep.subr.mxu0 0.0
        %4467 = vmatpush1.msra.mxu0 0.0
        %4468 = vmatprep.subr.mxu0 0.0
        %4469 = vmatpush1.msra.mxu0 0.0
        %4470 = vmatprep.subr.mxu0 0.0
        %4471 = vmatpush1.msra.mxu0 0.0
        %4472 = vmatprep.subr.mxu0 0.0
        %4473 = vmatpush1.msra.mxu0 0.0
        %4474 = vmatprep.subr.mxu0 0.0
        %4475 = vmatpush1.msra.mxu0 0.0
        %4476 = vmatprep.subr.mxu0 0.0
        %4477 = vmatpush1.msra.mxu0 0.0
        %4478 = vmatprep.subr.mxu0 0.0
        %4479 = vmatpush1.msra.mxu0 0.0
        %4480 = vmatprep.subr.mxu0 0.0
        %4481 = vmatpush1.msra.mxu0 0.0
        %4482 = vmatprep.subr.mxu0 0.0
        %4483 = vmatpush1.msra.mxu0 %v3327
        %4484 = vmatprep.subr.mxu0 0.0
        %4485 = vmatpush2.msra.mxu0 0.0
        %4486 = vmatprep.subr.mxu0 0.0
        %4487 = vmatpush2.msra.mxu0 0.0
        %4488 = vmatprep.subr.mxu0 0.0
        %4489 = vmatpush2.msra.mxu0 0.0
        %4490 = vmatprep.subr.mxu0 0.0
        %4491 = vmatpush2.msra.mxu0 0.0
        %4492 = vmatprep.subr.mxu0 0.0
        %4493 = vmatpush2.msra.mxu0 0.0
        %4494 = vmatprep.subr.mxu0 0.0
        %4495 = vmatpush2.msra.mxu0 0.0
        %4496 = vmatprep.subr.mxu0 0.0
        %4497 = vmatpush2.msra.mxu0 0.0
        %4498 = vmatprep.subr.mxu0 0.0
        %4499 = vmatpush2.msra.mxu0 0.0
        %4500 = vmatprep.subr.mxu0 0.0
        %4501 = vmatpush2.msra.mxu0 0.0
        %4502 = vmatprep.subr.mxu0 0.0
        %4503 = vmatpush2.msra.mxu0 0.0
        %4504 = vmatprep.subr.mxu0 0.0
        %4505 = vmatpush2.msra.mxu0 0.0
        %4506 = vmatprep.subr.mxu0 0.0
        %4507 = vmatpush2.msra.mxu0 0.0
        %4508 = vmatprep.subr.mxu0 0.0
        %4509 = vmatpush2.msra.mxu0 0.0
        %4510 = vmatprep.subr.mxu0 0.0
        %4511 = vmatpush2.msra.mxu0 0.0
        %4512 = vmatprep.subr.mxu0 0.0
        %4513 = vmatpush2.msra.mxu0 0.0
        %4514 = vmatprep.subr.mxu0 0.0
        %4515 = vmatpush2.msra.mxu0 0.0
        %4516 = vmatprep.mubr.f32.mxu0 0.0
        %4517 = vmatmul.mubr.f32.gmra.mxu0 %v430
        %v4518 = vpop.f32.mrf.mxu0
        %v4519 = vadd.f32 0.0, %v4518
        %v4520 = vpop.f32.mrf.mxu0
        %4521 = vdwg.mxu0
        %4522 = vmatprep.subr.mxu0 0.0
        %4523 = vmatpush1.msra.mxu0 0.0
        %4524 = vmatprep.subr.mxu0 0.0
        %4525 = vmatpush1.msra.mxu0 0.0
        %4526 = vmatprep.subr.mxu0 0.0
        %4527 = vmatpush1.msra.mxu0 0.0
        %4528 = vmatprep.subr.mxu0 0.0
        %4529 = vmatpush1.msra.mxu0 0.0
        %4530 = vmatprep.subr.mxu0 0.0
        %4531 = vmatpush1.msra.mxu0 0.0
        %4532 = vmatprep.subr.mxu0 0.0
        %4533 = vmatpush1.msra.mxu0 0.0
        %4534 = vmatprep.subr.mxu0 0.0
        %4535 = vmatpush1.msra.mxu0 0.0
        %4536 = vmatprep.subr.mxu0 0.0
        %4537 = vmatpush1.msra.mxu0 0.0
        %4538 = vmatprep.subr.mxu0 0.0
        %4539 = vmatpush1.msra.mxu0 0.0
        %4540 = vmatprep.subr.mxu0 0.0
        %4541 = vmatpush1.msra.mxu0 0.0
        %4542 = vmatprep.subr.mxu0 0.0
        %4543 = vmatpush1.msra.mxu0 0.0
        %4544 = vmatprep.subr.mxu0 0.0
        %4545 = vmatpush1.msra.mxu0 0.0
        %4546 = vmatprep.subr.mxu0 0.0
        %4547 = vmatpush1.msra.mxu0 0.0
        %4548 = vmatprep.subr.mxu0 0.0
        %4549 = vmatpush1.msra.mxu0 0.0
        %4550 = vmatprep.subr.mxu0 0.0
        %4551 = vmatpush1.msra.mxu0 0.0
        %4552 = vmatprep.subr.mxu0 0.0
        %4553 = vmatpush1.msra.mxu0 %v3403
        %4554 = vmatprep.subr.mxu0 0.0
        %4555 = vmatpush2.msra.mxu0 0.0
        %4556 = vmatprep.subr.mxu0 0.0
        %4557 = vmatpush2.msra.mxu0 0.0
        %4558 = vmatprep.subr.mxu0 0.0
        %4559 = vmatpush2.msra.mxu0 0.0
        %4560 = vmatprep.subr.mxu0 0.0
        %4561 = vmatpush2.msra.mxu0 0.0
        %4562 = vmatprep.subr.mxu0 0.0
        %4563 = vmatpush2.msra.mxu0 0.0
        %4564 = vmatprep.subr.mxu0 0.0
        %4565 = vmatpush2.msra.mxu0 0.0
        %4566 = vmatprep.subr.mxu0 0.0
        %4567 = vmatpush2.msra.mxu0 0.0
        %4568 = vmatprep.subr.mxu0 0.0
        %4569 = vmatpush2.msra.mxu0 0.0
        %4570 = vmatprep.subr.mxu0 0.0
        %4571 = vmatpush2.msra.mxu0 0.0
        %4572 = vmatprep.subr.mxu0 0.0
        %4573 = vmatpush2.msra.mxu0 0.0
        %4574 = vmatprep.subr.mxu0 0.0
        %4575 = vmatpush2.msra.mxu0 0.0
        %4576 = vmatprep.subr.mxu0 0.0
        %4577 = vmatpush2.msra.mxu0 0.0
        %4578 = vmatprep.subr.mxu0 0.0
        %4579 = vmatpush2.msra.mxu0 0.0
        %4580 = vmatprep.subr.mxu0 0.0
        %4581 = vmatpush2.msra.mxu0 0.0
        %4582 = vmatprep.subr.mxu0 0.0
        %4583 = vmatpush2.msra.mxu0 0.0
        %4584 = vmatprep.subr.mxu0 0.0
        %4585 = vmatpush2.msra.mxu0 0.0
        %4586 = vmatprep.mubr.f32.mxu0 0.0
        %4587 = vmatmul.mubr.f32.gmra.mxu0 %v506
        %v4588 = vpop.f32.mrf.mxu0
        %v4589 = vadd.f32 0.0, %v4588
        %v4590 = vpop.f32.mrf.mxu0
        %4591 = vdwg.mxu0
        %4592 = vmatprep.subr.mxu0 0.0
        %4593 = vmatpush1.msra.mxu0 0.0
        %4594 = vmatprep.subr.mxu0 0.0
        %4595 = vmatpush1.msra.mxu0 0.0
        %4596 = vmatprep.subr.mxu0 0.0
        %4597 = vmatpush1.msra.mxu0 0.0
        %4598 = vmatprep.subr.mxu0 0.0
        %4599 = vmatpush1.msra.mxu0 0.0
        %4600 = vmatprep.subr.mxu0 0.0
        %4601 = vmatpush1.msra.mxu0 0.0
        %4602 = vmatprep.subr.mxu0 0.0
        %4603 = vmatpush1.msra.mxu0 0.0
        %4604 = vmatprep.subr.mxu0 0.0
        %4605 = vmatpush1.msra.mxu0 0.0
        %4606 = vmatprep.subr.mxu0 0.0
        %4607 = vmatpush1.msra.mxu0 0.0
        %4608 = vmatprep.subr.mxu0 0.0
        %4609 = vmatpush1.msra.mxu0 0.0
        %4610 = vmatprep.subr.mxu0 0.0
        %4611 = vmatpush1.msra.mxu0 0.0
        %4612 = vmatprep.subr.mxu0 0.0
        %4613 = vmatpush1.msra.mxu0 0.0
        %4614 = vmatprep.subr.mxu0 0.0
        %4615 = vmatpush1.msra.mxu0 0.0
        %4616 = vmatprep.subr.mxu0 0.0
        %4617 = vmatpush1.msra.mxu0 0.0
        %4618 = vmatprep.subr.mxu0 0.0
        %4619 = vmatpush1.msra.mxu0 0.0
        %4620 = vmatprep.subr.mxu0 0.0
        %4621 = vmatpush1.msra.mxu0 0.0
        %4622 = vmatprep.subr.mxu0 0.0
        %4623 = vmatpush1.msra.mxu0 %v3479
        %4624 = vmatprep.subr.mxu0 0.0
        %4625 = vmatpush2.msra.mxu0 0.0
        %4626 = vmatprep.subr.mxu0 0.0
        %4627 = vmatpush2.msra.mxu0 0.0
        %4628 = vmatprep.subr.mxu0 0.0
        %4629 = vmatpush2.msra.mxu0 0.0
        %4630 = vmatprep.subr.mxu0 0.0
        %4631 = vmatpush2.msra.mxu0 0.0
        %4632 = vmatprep.subr.mxu0 0.0
        %4633 = vmatpush2.msra.mxu0 0.0
        %4634 = vmatprep.subr.mxu0 0.0
        %4635 = vmatpush2.msra.mxu0 0.0
        %4636 = vmatprep.subr.mxu0 0.0
        %4637 = vmatpush2.msra.mxu0 0.0
        %4638 = vmatprep.subr.mxu0 0.0
        %4639 = vmatpush2.msra.mxu0 0.0
        %4640 = vmatprep.subr.mxu0 0.0
        %4641 = vmatpush2.msra.mxu0 0.0
        %4642 = vmatprep.subr.mxu0 0.0
        %4643 = vmatpush2.msra.mxu0 0.0
        %4644 = vmatprep.subr.mxu0 0.0
        %4645 = vmatpush2.msra.mxu0 0.0
        %4646 = vmatprep.subr.mxu0 0.0
        %4647 = vmatpush2.msra.mxu0 0.0
        %4648 = vmatprep.subr.mxu0 0.0
        %4649 = vmatpush2.msra.mxu0 0.0
        %4650 = vmatprep.subr.mxu0 0.0
        %4651 = vmatpush2.msra.mxu0 0.0
        %4652 = vmatprep.subr.mxu0 0.0
        %4653 = vmatpush2.msra.mxu0 0.0
        %4654 = vmatprep.subr.mxu0 0.0
        %4655 = vmatpush2.msra.mxu0 0.0
        %4656 = vmatprep.mubr.f32.mxu0 0.0
        %4657 = vmatmul.mubr.f32.gmra.mxu0 %v582
        %v4658 = vpop.f32.mrf.mxu0
        %v4659 = vadd.f32 0.0, %v4658
        %v4660 = vpop.f32.mrf.mxu0
        %4661 = vdwg.mxu0
        %4662 = vmatprep.subr.mxu0 0.0
        %4663 = vmatpush1.msra.mxu0 0.0
        %4664 = vmatprep.subr.mxu0 0.0
        %4665 = vmatpush1.msra.mxu0 0.0
        %4666 = vmatprep.subr.mxu0 0.0
        %4667 = vmatpush1.msra.mxu0 0.0
        %4668 = vmatprep.subr.mxu0 0.0
        %4669 = vmatpush1.msra.mxu0 0.0
        %4670 = vmatprep.subr.mxu0 0.0
        %4671 = vmatpush1.msra.mxu0 0.0
        %4672 = vmatprep.subr.mxu0 0.0
        %4673 = vmatpush1.msra.mxu0 0.0
        %4674 = vmatprep.subr.mxu0 0.0
        %4675 = vmatpush1.msra.mxu0 0.0
        %4676 = vmatprep.subr.mxu0 0.0
        %4677 = vmatpush1.msra.mxu0 0.0
        %4678 = vmatprep.subr.mxu0 0.0
        %4679 = vmatpush1.msra.mxu0 0.0
        %4680 = vmatprep.subr.mxu0 0.0
        %4681 = vmatpush1.msra.mxu0 0.0
        %4682 = vmatprep.subr.mxu0 0.0
        %4683 = vmatpush1.msra.mxu0 0.0
        %4684 = vmatprep.subr.mxu0 0.0
        %4685 = vmatpush1.msra.mxu0 0.0
        %4686 = vmatprep.subr.mxu0 0.0
        %4687 = vmatpush1.msra.mxu0 0.0
        %4688 = vmatprep.subr.mxu0 0.0
        %4689 = vmatpush1.msra.mxu0 0.0
        %4690 = vmatprep.subr.mxu0 0.0
        %4691 = vmatpush1.msra.mxu0 0.0
        %4692 = vmatprep.subr.mxu0 0.0
        %4693 = vmatpush1.msra.mxu0 %v3555
        %4694 = vmatprep.subr.mxu0 0.0
        %4695 = vmatpush2.msra.mxu0 0.0
        %4696 = vmatprep.subr.mxu0 0.0
        %4697 = vmatpush2.msra.mxu0 0.0
        %4698 = vmatprep.subr.mxu0 0.0
        %4699 = vmatpush2.msra.mxu0 0.0
        %4700 = vmatprep.subr.mxu0 0.0
        %4701 = vmatpush2.msra.mxu0 0.0
        %4702 = vmatprep.subr.mxu0 0.0
        %4703 = vmatpush2.msra.mxu0 0.0
        %4704 = vmatprep.subr.mxu0 0.0
        %4705 = vmatpush2.msra.mxu0 0.0
        %4706 = vmatprep.subr.mxu0 0.0
        %4707 = vmatpush2.msra.mxu0 0.0
        %4708 = vmatprep.subr.mxu0 0.0
        %4709 = vmatpush2.msra.mxu0 0.0
        %4710 = vmatprep.subr.mxu0 0.0
        %4711 = vmatpush2.msra.mxu0 0.0
        %4712 = vmatprep.subr.mxu0 0.0
        %4713 = vmatpush2.msra.mxu0 0.0
        %4714 = vmatprep.subr.mxu0 0.0
        %4715 = vmatpush2.msra.mxu0 0.0
        %4716 = vmatprep.subr.mxu0 0.0
        %4717 = vmatpush2.msra.mxu0 0.0
        %4718 = vmatprep.subr.mxu0 0.0
        %4719 = vmatpush2.msra.mxu0 0.0
        %4720 = vmatprep.subr.mxu0 0.0
        %4721 = vmatpush2.msra.mxu0 0.0
        %4722 = vmatprep.subr.mxu0 0.0
        %4723 = vmatpush2.msra.mxu0 0.0
        %4724 = vmatprep.subr.mxu0 0.0
        %4725 = vmatpush2.msra.mxu0 0.0
        %4726 = vmatprep.mubr.f32.mxu0 0.0
        %4727 = vmatmul.mubr.f32.gmra.mxu0 %v658
        %v4728 = vpop.f32.mrf.mxu0
        %v4729 = vadd.f32 0.0, %v4728
        %v4730 = vpop.f32.mrf.mxu0
        %4731 = vdwg.mxu0
        %4732 = vmatprep.subr.mxu0 0.0
        %4733 = vmatpush1.msra.mxu0 0.0
        %4734 = vmatprep.subr.mxu0 0.0
        %4735 = vmatpush1.msra.mxu0 0.0
        %4736 = vmatprep.subr.mxu0 0.0
        %4737 = vmatpush1.msra.mxu0 0.0
        %4738 = vmatprep.subr.mxu0 0.0
        %4739 = vmatpush1.msra.mxu0 0.0
        %4740 = vmatprep.subr.mxu0 0.0
        %4741 = vmatpush1.msra.mxu0 0.0
        %4742 = vmatprep.subr.mxu0 0.0
        %4743 = vmatpush1.msra.mxu0 0.0
        %4744 = vmatprep.subr.mxu0 0.0
        %4745 = vmatpush1.msra.mxu0 0.0
        %4746 = vmatprep.subr.mxu0 0.0
        %4747 = vmatpush1.msra.mxu0 0.0
        %4748 = vmatprep.subr.mxu0 0.0
        %4749 = vmatpush1.msra.mxu0 0.0
        %4750 = vmatprep.subr.mxu0 0.0
        %4751 = vmatpush1.msra.mxu0 0.0
        %4752 = vmatprep.subr.mxu0 0.0
        %4753 = vmatpush1.msra.mxu0 0.0
        %4754 = vmatprep.subr.mxu0 0.0
        %4755 = vmatpush1.msra.mxu0 0.0
        %4756 = vmatprep.subr.mxu0 0.0
        %4757 = vmatpush1.msra.mxu0 0.0
        %4758 = vmatprep.subr.mxu0 0.0
        %4759 = vmatpush1.msra.mxu0 0.0
        %4760 = vmatprep.subr.mxu0 0.0
        %4761 = vmatpush1.msra.mxu0 0.0
        %4762 = vmatprep.subr.mxu0 0.0
        %4763 = vmatpush1.msra.mxu0 %v3631
        %4764 = vmatprep.subr.mxu0 0.0
        %4765 = vmatpush2.msra.mxu0 0.0
        %4766 = vmatprep.subr.mxu0 0.0
        %4767 = vmatpush2.msra.mxu0 0.0
        %4768 = vmatprep.subr.mxu0 0.0
        %4769 = vmatpush2.msra.mxu0 0.0
        %4770 = vmatprep.subr.mxu0 0.0
        %4771 = vmatpush2.msra.mxu0 0.0
        %4772 = vmatprep.subr.mxu0 0.0
        %4773 = vmatpush2.msra.mxu0 0.0
        %4774 = vmatprep.subr.mxu0 0.0
        %4775 = vmatpush2.msra.mxu0 0.0
        %4776 = vmatprep.subr.mxu0 0.0
        %4777 = vmatpush2.msra.mxu0 0.0
        %4778 = vmatprep.subr.mxu0 0.0
        %4779 = vmatpush2.msra.mxu0 0.0
        %4780 = vmatprep.subr.mxu0 0.0
        %4781 = vmatpush2.msra.mxu0 0.0
        %4782 = vmatprep.subr.mxu0 0.0
        %4783 = vmatpush2.msra.mxu0 0.0
        %4784 = vmatprep.subr.mxu0 0.0
        %4785 = vmatpush2.msra.mxu0 0.0
        %4786 = vmatprep.subr.mxu0 0.0
        %4787 = vmatpush2.msra.mxu0 0.0
        %4788 = vmatprep.subr.mxu0 0.0
        %4789 = vmatpush2.msra.mxu0 0.0
        %4790 = vmatprep.subr.mxu0 0.0
        %4791 = vmatpush2.msra.mxu0 0.0
        %4792 = vmatprep.subr.mxu0 0.0
        %4793 = vmatpush2.msra.mxu0 0.0
        %4794 = vmatprep.subr.mxu0 0.0
        %4795 = vmatpush2.msra.mxu0 0.0
        %4796 = vmatprep.mubr.f32.mxu0 0.0
        %4797 = vmatmul.mubr.f32.gmra.mxu0 %v734
        %v4798 = vpop.f32.mrf.mxu0
        %v4799 = vadd.f32 0.0, %v4798
        %v4800 = vpop.f32.mrf.mxu0
        %4801 = vdwg.mxu0
        %4802 = vmatprep.subr.mxu0 0.0
        %4803 = vmatpush1.msra.mxu0 0.0
        %4804 = vmatprep.subr.mxu0 0.0
        %4805 = vmatpush1.msra.mxu0 0.0
        %4806 = vmatprep.subr.mxu0 0.0
        %4807 = vmatpush1.msra.mxu0 0.0
        %4808 = vmatprep.subr.mxu0 0.0
        %4809 = vmatpush1.msra.mxu0 0.0
        %4810 = vmatprep.subr.mxu0 0.0
        %4811 = vmatpush1.msra.mxu0 0.0
        %4812 = vmatprep.subr.mxu0 0.0
        %4813 = vmatpush1.msra.mxu0 0.0
        %4814 = vmatprep.subr.mxu0 0.0
        %4815 = vmatpush1.msra.mxu0 0.0
        %4816 = vmatprep.subr.mxu0 0.0
        %4817 = vmatpush1.msra.mxu0 0.0
        %4818 = vmatprep.subr.mxu0 0.0
        %4819 = vmatpush1.msra.mxu0 0.0
        %4820 = vmatprep.subr.mxu0 0.0
        %4821 = vmatpush1.msra.mxu0 0.0
        %4822 = vmatprep.subr.mxu0 0.0
        %4823 = vmatpush1.msra.mxu0 0.0
        %4824 = vmatprep.subr.mxu0 0.0
        %4825 = vmatpush1.msra.mxu0 0.0
        %4826 = vmatprep.subr.mxu0 0.0
        %4827 = vmatpush1.msra.mxu0 0.0
        %4828 = vmatprep.subr.mxu0 0.0
        %4829 = vmatpush1.msra.mxu0 0.0
        %4830 = vmatprep.subr.mxu0 0.0
        %4831 = vmatpush1.msra.mxu0 0.0
        %4832 = vmatprep.subr.mxu0 0.0
        %4833 = vmatpush1.msra.mxu0 %v3707
        %4834 = vmatprep.subr.mxu0 0.0
        %4835 = vmatpush2.msra.mxu0 0.0
        %4836 = vmatprep.subr.mxu0 0.0
        %4837 = vmatpush2.msra.mxu0 0.0
        %4838 = vmatprep.subr.mxu0 0.0
        %4839 = vmatpush2.msra.mxu0 0.0
        %4840 = vmatprep.subr.mxu0 0.0
        %4841 = vmatpush2.msra.mxu0 0.0
        %4842 = vmatprep.subr.mxu0 0.0
        %4843 = vmatpush2.msra.mxu0 0.0
        %4844 = vmatprep.subr.mxu0 0.0
        %4845 = vmatpush2.msra.mxu0 0.0
        %4846 = vmatprep.subr.mxu0 0.0
        %4847 = vmatpush2.msra.mxu0 0.0
        %4848 = vmatprep.subr.mxu0 0.0
        %4849 = vmatpush2.msra.mxu0 0.0
        %4850 = vmatprep.subr.mxu0 0.0
        %4851 = vmatpush2.msra.mxu0 0.0
        %4852 = vmatprep.subr.mxu0 0.0
        %4853 = vmatpush2.msra.mxu0 0.0
        %4854 = vmatprep.subr.mxu0 0.0
        %4855 = vmatpush2.msra.mxu0 0.0
        %4856 = vmatprep.subr.mxu0 0.0
        %4857 = vmatpush2.msra.mxu0 0.0
        %4858 = vmatprep.subr.mxu0 0.0
        %4859 = vmatpush2.msra.mxu0 0.0
        %4860 = vmatprep.subr.mxu0 0.0
        %4861 = vmatpush2.msra.mxu0 0.0
        %4862 = vmatprep.subr.mxu0 0.0
        %4863 = vmatpush2.msra.mxu0 0.0
        %4864 = vmatprep.subr.mxu0 0.0
        %4865 = vmatpush2.msra.mxu0 0.0
        %4866 = vmatprep.mubr.f32.mxu0 0.0
        %4867 = vmatmul.mubr.f32.gmra.mxu0 %v810
        %v4868 = vpop.f32.mrf.mxu0
        %v4869 = vadd.f32 0.0, %v4868
        %v4870 = vpop.f32.mrf.mxu0
        %4871 = vdwg.mxu0
        %4872 = vmatprep.subr.mxu0 0.0
        %4873 = vmatpush1.msra.mxu0 0.0
        %4874 = vmatprep.subr.mxu0 0.0
        %4875 = vmatpush1.msra.mxu0 0.0
        %4876 = vmatprep.subr.mxu0 0.0
        %4877 = vmatpush1.msra.mxu0 0.0
        %4878 = vmatprep.subr.mxu0 0.0
        %4879 = vmatpush1.msra.mxu0 0.0
        %4880 = vmatprep.subr.mxu0 0.0
        %4881 = vmatpush1.msra.mxu0 0.0
        %4882 = vmatprep.subr.mxu0 0.0
        %4883 = vmatpush1.msra.mxu0 0.0
        %4884 = vmatprep.subr.mxu0 0.0
        %4885 = vmatpush1.msra.mxu0 0.0
        %4886 = vmatprep.subr.mxu0 0.0
        %4887 = vmatpush1.msra.mxu0 0.0
        %4888 = vmatprep.subr.mxu0 0.0
        %4889 = vmatpush1.msra.mxu0 0.0
        %4890 = vmatprep.subr.mxu0 0.0
        %4891 = vmatpush1.msra.mxu0 0.0
        %4892 = vmatprep.subr.mxu0 0.0
        %4893 = vmatpush1.msra.mxu0 0.0
        %4894 = vmatprep.subr.mxu0 0.0
        %4895 = vmatpush1.msra.mxu0 0.0
        %4896 = vmatprep.subr.mxu0 0.0
        %4897 = vmatpush1.msra.mxu0 0.0
        %4898 = vmatprep.subr.mxu0 0.0
        %4899 = vmatpush1.msra.mxu0 0.0
        %4900 = vmatprep.subr.mxu0 0.0
        %4901 = vmatpush1.msra.mxu0 0.0
        %4902 = vmatprep.subr.mxu0 0.0
        %4903 = vmatpush1.msra.mxu0 %v3783
        %4904 = vmatprep.subr.mxu0 0.0
        %4905 = vmatpush2.msra.mxu0 0.0
        %4906 = vmatprep.subr.mxu0 0.0
        %4907 = vmatpush2.msra.mxu0 0.0
        %4908 = vmatprep.subr.mxu0 0.0
        %4909 = vmatpush2.msra.mxu0 0.0
        %4910 = vmatprep.subr.mxu0 0.0
        %4911 = vmatpush2.msra.mxu0 0.0
        %4912 = vmatprep.subr.mxu0 0.0
        %4913 = vmatpush2.msra.mxu0 0.0
        %4914 = vmatprep.subr.mxu0 0.0
        %4915 = vmatpush2.msra.mxu0 0.0
        %4916 = vmatprep.subr.mxu0 0.0
        %4917 = vmatpush2.msra.mxu0 0.0
        %4918 = vmatprep.subr.mxu0 0.0
        %4919 = vmatpush2.msra.mxu0 0.0
        %4920 = vmatprep.subr.mxu0 0.0
        %4921 = vmatpush2.msra.mxu0 0.0
        %4922 = vmatprep.subr.mxu0 0.0
        %4923 = vmatpush2.msra.mxu0 0.0
        %4924 = vmatprep.subr.mxu0 0.0
        %4925 = vmatpush2.msra.mxu0 0.0
        %4926 = vmatprep.subr.mxu0 0.0
        %4927 = vmatpush2.msra.mxu0 0.0
        %4928 = vmatprep.subr.mxu0 0.0
        %4929 = vmatpush2.msra.mxu0 0.0
        %4930 = vmatprep.subr.mxu0 0.0
        %4931 = vmatpush2.msra.mxu0 0.0
        %4932 = vmatprep.subr.mxu0 0.0
        %4933 = vmatpush2.msra.mxu0 0.0
        %4934 = vmatprep.subr.mxu0 0.0
        %4935 = vmatpush2.msra.mxu0 0.0
        %4936 = vmatprep.mubr.f32.mxu0 0.0
        %4937 = vmatmul.mubr.f32.gmra.mxu0 %v886
        %v4938 = vpop.f32.mrf.mxu0
        %v4939 = vadd.f32 0.0, %v4938
        %v4940 = vpop.f32.mrf.mxu0
        %4941 = vdwg.mxu0
        %4942 = vmatprep.subr.mxu0 0.0
        %4943 = vmatpush1.msra.mxu0 0.0
        %4944 = vmatprep.subr.mxu0 0.0
        %4945 = vmatpush1.msra.mxu0 0.0
        %4946 = vmatprep.subr.mxu0 0.0
        %4947 = vmatpush1.msra.mxu0 0.0
        %4948 = vmatprep.subr.mxu0 0.0
        %4949 = vmatpush1.msra.mxu0 0.0
        %4950 = vmatprep.subr.mxu0 0.0
        %4951 = vmatpush1.msra.mxu0 0.0
        %4952 = vmatprep.subr.mxu0 0.0
        %4953 = vmatpush1.msra.mxu0 0.0
        %4954 = vmatprep.subr.mxu0 0.0
        %4955 = vmatpush1.msra.mxu0 0.0
        %4956 = vmatprep.subr.mxu0 0.0
        %4957 = vmatpush1.msra.mxu0 0.0
        %4958 = vmatprep.subr.mxu0 0.0
        %4959 = vmatpush1.msra.mxu0 0.0
        %4960 = vmatprep.subr.mxu0 0.0
        %4961 = vmatpush1.msra.mxu0 0.0
        %4962 = vmatprep.subr.mxu0 0.0
        %4963 = vmatpush1.msra.mxu0 0.0
        %4964 = vmatprep.subr.mxu0 0.0
        %4965 = vmatpush1.msra.mxu0 0.0
        %4966 = vmatprep.subr.mxu0 0.0
        %4967 = vmatpush1.msra.mxu0 0.0
        %4968 = vmatprep.subr.mxu0 0.0
        %4969 = vmatpush1.msra.mxu0 0.0
        %4970 = vmatprep.subr.mxu0 0.0
        %4971 = vmatpush1.msra.mxu0 0.0
        %4972 = vmatprep.subr.mxu0 0.0
        %4973 = vmatpush1.msra.mxu0 %v3859
        %4974 = vmatprep.subr.mxu0 0.0
        %4975 = vmatpush2.msra.mxu0 0.0
        %4976 = vmatprep.subr.mxu0 0.0
        %4977 = vmatpush2.msra.mxu0 0.0
        %4978 = vmatprep.subr.mxu0 0.0
        %4979 = vmatpush2.msra.mxu0 0.0
        %4980 = vmatprep.subr.mxu0 0.0
        %4981 = vmatpush2.msra.mxu0 0.0
        %4982 = vmatprep.subr.mxu0 0.0
        %4983 = vmatpush2.msra.mxu0 0.0
        %4984 = vmatprep.subr.mxu0 0.0
        %4985 = vmatpush2.msra.mxu0 0.0
        %4986 = vmatprep.subr.mxu0 0.0
        %4987 = vmatpush2.msra.mxu0 0.0
        %4988 = vmatprep.subr.mxu0 0.0
        %4989 = vmatpush2.msra.mxu0 0.0
        %4990 = vmatprep.subr.mxu0 0.0
        %4991 = vmatpush2.msra.mxu0 0.0
        %4992 = vmatprep.subr.mxu0 0.0
        %4993 = vmatpush2.msra.mxu0 0.0
        %4994 = vmatprep.subr.mxu0 0.0
        %4995 = vmatpush2.msra.mxu0 0.0
        %4996 = vmatprep.subr.mxu0 0.0
        %4997 = vmatpush2.msra.mxu0 0.0
        %4998 = vmatprep.subr.mxu0 0.0
        %4999 = vmatpush2.msra.mxu0 0.0
        %5000 = vmatprep.subr.mxu0 0.0
        %5001 = vmatpush2.msra.mxu0 0.0
        %5002 = vmatprep.subr.mxu0 0.0
        %5003 = vmatpush2.msra.mxu0 0.0
        %5004 = vmatprep.subr.mxu0 0.0
        %5005 = vmatpush2.msra.mxu0 0.0
        %5006 = vmatprep.mubr.f32.mxu0 0.0
        %5007 = vmatmul.mubr.f32.gmra.mxu0 %v962
        %v5008 = vpop.f32.mrf.mxu0
        %v5009 = vadd.f32 0.0, %v5008
        %v5010 = vpop.f32.mrf.mxu0
        %5011 = vdwg.mxu0
        %5012 = vmatprep.subr.mxu0 0.0
        %5013 = vmatpush1.msra.mxu0 0.0
        %5014 = vmatprep.subr.mxu0 0.0
        %5015 = vmatpush1.msra.mxu0 0.0
        %5016 = vmatprep.subr.mxu0 0.0
        %5017 = vmatpush1.msra.mxu0 0.0
        %5018 = vmatprep.subr.mxu0 0.0
        %5019 = vmatpush1.msra.mxu0 0.0
        %5020 = vmatprep.subr.mxu0 0.0
        %5021 = vmatpush1.msra.mxu0 0.0
        %5022 = vmatprep.subr.mxu0 0.0
        %5023 = vmatpush1.msra.mxu0 0.0
        %5024 = vmatprep.subr.mxu0 0.0
        %5025 = vmatpush1.msra.mxu0 0.0
        %5026 = vmatprep.subr.mxu0 0.0
        %5027 = vmatpush1.msra.mxu0 0.0
        %5028 = vmatprep.subr.mxu0 0.0
        %5029 = vmatpush1.msra.mxu0 0.0
        %5030 = vmatprep.subr.mxu0 0.0
        %5031 = vmatpush1.msra.mxu0 0.0
        %5032 = vmatprep.subr.mxu0 0.0
        %5033 = vmatpush1.msra.mxu0 0.0
        %5034 = vmatprep.subr.mxu0 0.0
        %5035 = vmatpush1.msra.mxu0 0.0
        %5036 = vmatprep.subr.mxu0 0.0
        %5037 = vmatpush1.msra.mxu0 0.0
        %5038 = vmatprep.subr.mxu0 0.0
        %5039 = vmatpush1.msra.mxu0 0.0
        %5040 = vmatprep.subr.mxu0 0.0
        %5041 = vmatpush1.msra.mxu0 0.0
        %5042 = vmatprep.subr.mxu0 0.0
        %5043 = vmatpush1.msra.mxu0 %v3935
        %5044 = vmatprep.subr.mxu0 0.0
        %5045 = vmatpush2.msra.mxu0 0.0
        %5046 = vmatprep.subr.mxu0 0.0
        %5047 = vmatpush2.msra.mxu0 0.0
        %5048 = vmatprep.subr.mxu0 0.0
        %5049 = vmatpush2.msra.mxu0 0.0
        %5050 = vmatprep.subr.mxu0 0.0
        %5051 = vmatpush2.msra.mxu0 0.0
        %5052 = vmatprep.subr.mxu0 0.0
        %5053 = vmatpush2.msra.mxu0 0.0
        %5054 = vmatprep.subr.mxu0 0.0
        %5055 = vmatpush2.msra.mxu0 0.0
        %5056 = vmatprep.subr.mxu0 0.0
        %5057 = vmatpush2.msra.mxu0 0.0
        %5058 = vmatprep.subr.mxu0 0.0
        %5059 = vmatpush2.msra.mxu0 0.0
        %5060 = vmatprep.subr.mxu0 0.0
        %5061 = vmatpush2.msra.mxu0 0.0
        %5062 = vmatprep.subr.mxu0 0.0
        %5063 = vmatpush2.msra.mxu0 0.0
        %5064 = vmatprep.subr.mxu0 0.0
        %5065 = vmatpush2.msra.mxu0 0.0
        %5066 = vmatprep.subr.mxu0 0.0
        %5067 = vmatpush2.msra.mxu0 0.0
        %5068 = vmatprep.subr.mxu0 0.0
        %5069 = vmatpush2.msra.mxu0 0.0
        %5070 = vmatprep.subr.mxu0 0.0
        %5071 = vmatpush2.msra.mxu0 0.0
        %5072 = vmatprep.subr.mxu0 0.0
        %5073 = vmatpush2.msra.mxu0 0.0
        %5074 = vmatprep.subr.mxu0 0.0
        %5075 = vmatpush2.msra.mxu0 0.0
        %5076 = vmatprep.mubr.f32.mxu0 0.0
        %5077 = vmatmul.mubr.f32.gmra.mxu0 %v1038
        %v5078 = vpop.f32.mrf.mxu0
        %v5079 = vadd.f32 0.0, %v5078
        %v5080 = vpop.f32.mrf.mxu0
        %5081 = vdwg.mxu0
        %5082 = vmatprep.subr.mxu0 0.0
        %5083 = vmatpush1.msra.mxu0 0.0
        %5084 = vmatprep.subr.mxu0 0.0
        %5085 = vmatpush1.msra.mxu0 0.0
        %5086 = vmatprep.subr.mxu0 0.0
        %5087 = vmatpush1.msra.mxu0 0.0
        %5088 = vmatprep.subr.mxu0 0.0
        %5089 = vmatpush1.msra.mxu0 0.0
        %5090 = vmatprep.subr.mxu0 0.0
        %5091 = vmatpush1.msra.mxu0 0.0
        %5092 = vmatprep.subr.mxu0 0.0
        %5093 = vmatpush1.msra.mxu0 0.0
        %5094 = vmatprep.subr.mxu0 0.0
        %5095 = vmatpush1.msra.mxu0 0.0
        %5096 = vmatprep.subr.mxu0 0.0
        %5097 = vmatpush1.msra.mxu0 0.0
        %5098 = vmatprep.subr.mxu0 0.0
        %5099 = vmatpush1.msra.mxu0 0.0
        %5100 = vmatprep.subr.mxu0 0.0
        %5101 = vmatpush1.msra.mxu0 0.0
        %5102 = vmatprep.subr.mxu0 0.0
        %5103 = vmatpush1.msra.mxu0 0.0
        %5104 = vmatprep.subr.mxu0 0.0
        %5105 = vmatpush1.msra.mxu0 0.0
        %5106 = vmatprep.subr.mxu0 0.0
        %5107 = vmatpush1.msra.mxu0 0.0
        %5108 = vmatprep.subr.mxu0 0.0
        %5109 = vmatpush1.msra.mxu0 0.0
        %5110 = vmatprep.subr.mxu0 0.0
        %5111 = vmatpush1.msra.mxu0 0.0
        %5112 = vmatprep.subr.mxu0 0.0
        %5113 = vmatpush1.msra.mxu0 %v4011
        %5114 = vmatprep.subr.mxu0 0.0
        %5115 = vmatpush2.msra.mxu0 0.0
        %5116 = vmatprep.subr.mxu0 0.0
        %5117 = vmatpush2.msra.mxu0 0.0
        %5118 = vmatprep.subr.mxu0 0.0
        %5119 = vmatpush2.msra.mxu0 0.0
        %5120 = vmatprep.subr.mxu0 0.0
        %5121 = vmatpush2.msra.mxu0 0.0
        %5122 = vmatprep.subr.mxu0 0.0
        %5123 = vmatpush2.msra.mxu0 0.0
        %5124 = vmatprep.subr.mxu0 0.0
        %5125 = vmatpush2.msra.mxu0 0.0
        %5126 = vmatprep.subr.mxu0 0.0
        %5127 = vmatpush2.msra.mxu0 0.0
        %5128 = vmatprep.subr.mxu0 0.0
        %5129 = vmatpush2.msra.mxu0 0.0
        %5130 = vmatprep.subr.mxu0 0.0
        %5131 = vmatpush2.msra.mxu0 0.0
        %5132 = vmatprep.subr.mxu0 0.0
        %5133 = vmatpush2.msra.mxu0 0.0
        %5134 = vmatprep.subr.mxu0 0.0
        %5135 = vmatpush2.msra.mxu0 0.0
        %5136 = vmatprep.subr.mxu0 0.0
        %5137 = vmatpush2.msra.mxu0 0.0
        %5138 = vmatprep.subr.mxu0 0.0
        %5139 = vmatpush2.msra.mxu0 0.0
        %5140 = vmatprep.subr.mxu0 0.0
        %5141 = vmatpush2.msra.mxu0 0.0
        %5142 = vmatprep.subr.mxu0 0.0
        %5143 = vmatpush2.msra.mxu0 0.0
        %5144 = vmatprep.subr.mxu0 0.0
        %5145 = vmatpush2.msra.mxu0 0.0
        %5146 = vmatprep.mubr.f32.mxu0 0.0
        %5147 = vmatmul.mubr.f32.gmra.mxu0 %v1114
        %v5148 = vpop.f32.mrf.mxu0
        %v5149 = vadd.f32 0.0, %v5148
        %v5150 = vpop.f32.mrf.mxu0
        %5151 = vdwg.mxu0
        %5152 = vmatprep.subr.mxu0 0.0
        %5153 = vmatpush1.msra.mxu0 0.0
        %5154 = vmatprep.subr.mxu0 0.0
        %5155 = vmatpush1.msra.mxu0 0.0
        %5156 = vmatprep.subr.mxu0 0.0
        %5157 = vmatpush1.msra.mxu0 0.0
        %5158 = vmatprep.subr.mxu0 0.0
        %5159 = vmatpush1.msra.mxu0 0.0
        %5160 = vmatprep.subr.mxu0 0.0
        %5161 = vmatpush1.msra.mxu0 0.0
        %5162 = vmatprep.subr.mxu0 0.0
        %5163 = vmatpush1.msra.mxu0 0.0
        %5164 = vmatprep.subr.mxu0 0.0
        %5165 = vmatpush1.msra.mxu0 0.0
        %5166 = vmatprep.subr.mxu0 0.0
        %5167 = vmatpush1.msra.mxu0 0.0
        %5168 = vmatprep.subr.mxu0 0.0
        %5169 = vmatpush1.msra.mxu0 0.0
        %5170 = vmatprep.subr.mxu0 0.0
        %5171 = vmatpush1.msra.mxu0 0.0
        %5172 = vmatprep.subr.mxu0 0.0
        %5173 = vmatpush1.msra.mxu0 0.0
        %5174 = vmatprep.subr.mxu0 0.0
        %5175 = vmatpush1.msra.mxu0 0.0
        %5176 = vmatprep.subr.mxu0 0.0
        %5177 = vmatpush1.msra.mxu0 0.0
        %5178 = vmatprep.subr.mxu0 0.0
        %5179 = vmatpush1.msra.mxu0 0.0
        %5180 = vmatprep.subr.mxu0 0.0
        %5181 = vmatpush1.msra.mxu0 0.0
        %5182 = vmatprep.subr.mxu0 0.0
        %5183 = vmatpush1.msra.mxu0 %v4087
        %5184 = vmatprep.subr.mxu0 0.0
        %5185 = vmatpush2.msra.mxu0 0.0
        %5186 = vmatprep.subr.mxu0 0.0
        %5187 = vmatpush2.msra.mxu0 0.0
        %5188 = vmatprep.subr.mxu0 0.0
        %5189 = vmatpush2.msra.mxu0 0.0
        %5190 = vmatprep.subr.mxu0 0.0
        %5191 = vmatpush2.msra.mxu0 0.0
        %5192 = vmatprep.subr.mxu0 0.0
        %5193 = vmatpush2.msra.mxu0 0.0
        %5194 = vmatprep.subr.mxu0 0.0
        %5195 = vmatpush2.msra.mxu0 0.0
        %5196 = vmatprep.subr.mxu0 0.0
        %5197 = vmatpush2.msra.mxu0 0.0
        %5198 = vmatprep.subr.mxu0 0.0
        %5199 = vmatpush2.msra.mxu0 0.0
        %5200 = vmatprep.subr.mxu0 0.0
        %5201 = vmatpush2.msra.mxu0 0.0
        %5202 = vmatprep.subr.mxu0 0.0
        %5203 = vmatpush2.msra.mxu0 0.0
        %5204 = vmatprep.subr.mxu0 0.0
        %5205 = vmatpush2.msra.mxu0 0.0
        %5206 = vmatprep.subr.mxu0 0.0
        %5207 = vmatpush2.msra.mxu0 0.0
        %5208 = vmatprep.subr.mxu0 0.0
        %5209 = vmatpush2.msra.mxu0 0.0
        %5210 = vmatprep.subr.mxu0 0.0
        %5211 = vmatpush2.msra.mxu0 0.0
        %5212 = vmatprep.subr.mxu0 0.0
        %5213 = vmatpush2.msra.mxu0 0.0
        %5214 = vmatprep.subr.mxu0 0.0
        %5215 = vmatpush2.msra.mxu0 0.0
        %5216 = vmatprep.mubr.f32.mxu0 0.0
        %5217 = vmatmul.mubr.f32.gmra.mxu0 %v1190
        %v5218 = vpop.f32.mrf.mxu0
        %v5219 = vadd.f32 0.0, %v5218
        %v5220 = vpop.f32.mrf.mxu0
        %5221 = vdwg.mxu0
        %5222 = vmatprep.subr.mxu0 0.0
        %5223 = vmatpush1.msra.mxu0 0.0
        %5224 = vmatprep.subr.mxu0 0.0
        %5225 = vmatpush1.msra.mxu0 0.0
        %5226 = vmatprep.subr.mxu0 0.0
        %5227 = vmatpush1.msra.mxu0 0.0
        %5228 = vmatprep.subr.mxu0 0.0
        %5229 = vmatpush1.msra.mxu0 0.0
        %5230 = vmatprep.subr.mxu0 0.0
        %5231 = vmatpush1.msra.mxu0 0.0
        %5232 = vmatprep.subr.mxu0 0.0
        %5233 = vmatpush1.msra.mxu0 0.0
        %5234 = vmatprep.subr.mxu0 0.0
        %5235 = vmatpush1.msra.mxu0 0.0
        %5236 = vmatprep.subr.mxu0 0.0
        %5237 = vmatpush1.msra.mxu0 0.0
        %5238 = vmatprep.subr.mxu0 0.0
        %5239 = vmatpush1.msra.mxu0 0.0
        %5240 = vmatprep.subr.mxu0 0.0
        %5241 = vmatpush1.msra.mxu0 0.0
        %5242 = vmatprep.subr.mxu0 0.0
        %5243 = vmatpush1.msra.mxu0 0.0
        %5244 = vmatprep.subr.mxu0 0.0
        %5245 = vmatpush1.msra.mxu0 0.0
        %5246 = vmatprep.subr.mxu0 0.0
        %5247 = vmatpush1.msra.mxu0 0.0
        %5248 = vmatprep.subr.mxu0 0.0
        %5249 = vmatpush1.msra.mxu0 0.0
        %5250 = vmatprep.subr.mxu0 0.0
        %5251 = vmatpush1.msra.mxu0 0.0
        %5252 = vmatprep.subr.mxu0 0.0
        %5253 = vmatpush1.msra.mxu0 %v4163
        %5254 = vmatprep.subr.mxu0 0.0
        %5255 = vmatpush2.msra.mxu0 0.0
        %5256 = vmatprep.subr.mxu0 0.0
        %5257 = vmatpush2.msra.mxu0 0.0
        %5258 = vmatprep.subr.mxu0 0.0
        %5259 = vmatpush2.msra.mxu0 0.0
        %5260 = vmatprep.subr.mxu0 0.0
        %5261 = vmatpush2.msra.mxu0 0.0
        %5262 = vmatprep.subr.mxu0 0.0
        %5263 = vmatpush2.msra.mxu0 0.0
        %5264 = vmatprep.subr.mxu0 0.0
        %5265 = vmatpush2.msra.mxu0 0.0
        %5266 = vmatprep.subr.mxu0 0.0
        %5267 = vmatpush2.msra.mxu0 0.0
        %5268 = vmatprep.subr.mxu0 0.0
        %5269 = vmatpush2.msra.mxu0 0.0
        %5270 = vmatprep.subr.mxu0 0.0
        %5271 = vmatpush2.msra.mxu0 0.0
        %5272 = vmatprep.subr.mxu0 0.0
        %5273 = vmatpush2.msra.mxu0 0.0
        %5274 = vmatprep.subr.mxu0 0.0
        %5275 = vmatpush2.msra.mxu0 0.0
        %5276 = vmatprep.subr.mxu0 0.0
        %5277 = vmatpush2.msra.mxu0 0.0
        %5278 = vmatprep.subr.mxu0 0.0
        %5279 = vmatpush2.msra.mxu0 0.0
        %5280 = vmatprep.subr.mxu0 0.0
        %5281 = vmatpush2.msra.mxu0 0.0
        %5282 = vmatprep.subr.mxu0 0.0
        %5283 = vmatpush2.msra.mxu0 0.0
        %5284 = vmatprep.subr.mxu0 0.0
        %5285 = vmatpush2.msra.mxu0 0.0
        %5286 = vmatprep.mubr.f32.mxu0 0.0
        %5287 = vmatmul.mubr.f32.gmra.mxu0 %v1266
        %v5288 = vpop.f32.mrf.mxu0
        %v5289 = vadd.f32 0.0, %v5288
        %v5290 = vpop.f32.mrf.mxu0
        %5291 = vdwg.mxu0
        %5292 = vmatprep.subr.mxu0 0.0
        %5293 = vmatpush1.msra.mxu0 0.0
        %5294 = vmatprep.subr.mxu0 0.0
        %5295 = vmatpush1.msra.mxu0 0.0
        %5296 = vmatprep.subr.mxu0 0.0
        %5297 = vmatpush1.msra.mxu0 0.0
        %5298 = vmatprep.subr.mxu0 0.0
        %5299 = vmatpush1.msra.mxu0 0.0
        %5300 = vmatprep.subr.mxu0 0.0
        %5301 = vmatpush1.msra.mxu0 0.0
        %5302 = vmatprep.subr.mxu0 0.0
        %5303 = vmatpush1.msra.mxu0 0.0
        %5304 = vmatprep.subr.mxu0 0.0
        %5305 = vmatpush1.msra.mxu0 0.0
        %5306 = vmatprep.subr.mxu0 0.0
        %5307 = vmatpush1.msra.mxu0 0.0
        %5308 = vmatprep.subr.mxu0 0.0
        %5309 = vmatpush1.msra.mxu0 0.0
        %5310 = vmatprep.subr.mxu0 0.0
        %5311 = vmatpush1.msra.mxu0 0.0
        %5312 = vmatprep.subr.mxu0 0.0
        %5313 = vmatpush1.msra.mxu0 0.0
        %5314 = vmatprep.subr.mxu0 0.0
        %5315 = vmatpush1.msra.mxu0 0.0
        %5316 = vmatprep.subr.mxu0 0.0
        %5317 = vmatpush1.msra.mxu0 0.0
        %5318 = vmatprep.subr.mxu0 0.0
        %5319 = vmatpush1.msra.mxu0 0.0
        %5320 = vmatprep.subr.mxu0 0.0
        %5321 = vmatpush1.msra.mxu0 0.0
        %5322 = vmatprep.subr.mxu0 0.0
        %5323 = vmatpush1.msra.mxu0 %v4239
        %5324 = vmatprep.subr.mxu0 0.0
        %5325 = vmatpush2.msra.mxu0 0.0
        %5326 = vmatprep.subr.mxu0 0.0
        %5327 = vmatpush2.msra.mxu0 0.0
        %5328 = vmatprep.subr.mxu0 0.0
        %5329 = vmatpush2.msra.mxu0 0.0
        %5330 = vmatprep.subr.mxu0 0.0
        %5331 = vmatpush2.msra.mxu0 0.0
        %5332 = vmatprep.subr.mxu0 0.0
        %5333 = vmatpush2.msra.mxu0 0.0
        %5334 = vmatprep.subr.mxu0 0.0
        %5335 = vmatpush2.msra.mxu0 0.0
        %5336 = vmatprep.subr.mxu0 0.0
        %5337 = vmatpush2.msra.mxu0 0.0
        %5338 = vmatprep.subr.mxu0 0.0
        %5339 = vmatpush2.msra.mxu0 0.0
        %5340 = vmatprep.subr.mxu0 0.0
        %5341 = vmatpush2.msra.mxu0 0.0
        %5342 = vmatprep.subr.mxu0 0.0
        %5343 = vmatpush2.msra.mxu0 0.0
        %5344 = vmatprep.subr.mxu0 0.0
        %5345 = vmatpush2.msra.mxu0 0.0
        %5346 = vmatprep.subr.mxu0 0.0
        %5347 = vmatpush2.msra.mxu0 0.0
        %5348 = vmatprep.subr.mxu0 0.0
        %5349 = vmatpush2.msra.mxu0 0.0
        %5350 = vmatprep.subr.mxu0 0.0
        %5351 = vmatpush2.msra.mxu0 0.0
        %5352 = vmatprep.subr.mxu0 0.0
        %5353 = vmatpush2.msra.mxu0 0.0
        %5354 = vmatprep.subr.mxu0 0.0
        %5355 = vmatpush2.msra.mxu0 0.0
        %5356 = vmatprep.mubr.f32.mxu0 0.0
        %5357 = vmatmul.mubr.f32.gmra.mxu0 %v1342
        %v5358 = vpop.f32.mrf.mxu0
        %v5359 = vadd.f32 0.0, %v5358
        %v5360 = vpop.f32.mrf.mxu0
        %5361 = vdwg.mxu0
        %v5362 = vld [vmem:[#allocation5 + $0x28] sm:$0xff]
        %v5363 = vld [vmem:[#allocation5 + $0x30] sm:$0xff]
        %v5364 = vld [vmem:[#allocation5 + $0x1] sm:$0x1]
        %v5365 = vlaneseq
        %v5366 = vshrl.u32 %v5365, 7
        %v5367 = vsub.s32 0, %v5366
        %v5368 = vrot.slane %v5364, %v5367
        %v5370 = vsel %vm1620, %v4309, 0
        %v5373 = vsel %vm1620, %v4379, 0
        %v5376 = vsel %vm1620, %v4449, 0
        %v5379 = vsel %vm1620, %v4519, 0
        %v5382 = vsel %vm1620, %v4589, 0
        %v5385 = vsel %vm1620, %v4659, 0
        %v5388 = vsel %vm1620, %v4729, 0
        %v5391 = vsel %vm1620, %v4799, 0
        %v5394 = vsel %vm1620, %v4869, 0
        %v5397 = vsel %vm1620, %v4939, 0
        %v5400 = vsel %vm1620, %v5009, 0
        %v5403 = vsel %vm1620, %v5079, 0
        %v5406 = vsel %vm1620, %v5149, 0
        %v5409 = vsel %vm1620, %v5219, 0
        %v5412 = vsel %vm1620, %v5289, 0
        %v5415 = vsel %vm1620, %v5359, 0
        %5417 = vmatprep.subr.mxu0 0.0
        %5418 = vmatpush1.msra.mxu0 0.0
        %5419 = vmatprep.subr.mxu0 0.0
        %5420 = vmatpush1.msra.mxu0 0.0
        %5421 = vmatprep.subr.mxu0 0.0
        %5422 = vmatpush1.msra.mxu0 0.0
        %5423 = vmatprep.subr.mxu0 0.0
        %5424 = vmatpush1.msra.mxu0 0.0
        %5425 = vmatprep.subr.mxu0 0.0
        %5426 = vmatpush1.msra.mxu0 0.0
        %5427 = vmatprep.subr.mxu0 0.0
        %5428 = vmatpush1.msra.mxu0 0.0
        %5429 = vmatprep.subr.mxu0 0.0
        %5430 = vmatpush1.msra.mxu0 0.0
        %5431 = vmatprep.subr.mxu0 0.0
        %5432 = vmatpush1.msra.mxu0 0.0
        %5433 = vmatprep.subr.mxu0 0.0
        %5434 = vmatpush1.msra.mxu0 0.0
        %5435 = vmatprep.subr.mxu0 0.0
        %5436 = vmatpush1.msra.mxu0 0.0
        %5437 = vmatprep.subr.mxu0 0.0
        %5438 = vmatpush1.msra.mxu0 0.0
        %5439 = vmatprep.subr.mxu0 0.0
        %5440 = vmatpush1.msra.mxu0 0.0
        %5441 = vmatprep.subr.mxu0 0.0
        %5442 = vmatpush1.msra.mxu0 0.0
        %5443 = vmatprep.subr.mxu0 0.0
        %5444 = vmatpush1.msra.mxu0 0.0
        %5445 = vmatprep.subr.mxu0 0.0
        %5446 = vmatpush1.msra.mxu0 %v5363
        %5447 = vmatprep.subr.mxu0 0.0
        %5448 = vmatpush1.msra.mxu0 %v5362
        %5449 = vmatprep.subr.mxu0 0.0
        %5450 = vmatpush2.msra.mxu0 0.0
        %5451 = vmatprep.subr.mxu0 0.0
        %5452 = vmatpush2.msra.mxu0 0.0
        %5453 = vmatprep.subr.mxu0 0.0
        %5454 = vmatpush2.msra.mxu0 0.0
        %5455 = vmatprep.subr.mxu0 0.0
        %5456 = vmatpush2.msra.mxu0 0.0
        %5457 = vmatprep.subr.mxu0 0.0
        %5458 = vmatpush2.msra.mxu0 0.0
        %5459 = vmatprep.subr.mxu0 0.0
        %5460 = vmatpush2.msra.mxu0 0.0
        %5461 = vmatprep.subr.mxu0 0.0
        %5462 = vmatpush2.msra.mxu0 0.0
        %5463 = vmatprep.subr.mxu0 0.0
        %5464 = vmatpush2.msra.mxu0 0.0
        %5465 = vmatprep.subr.mxu0 0.0
        %5466 = vmatpush2.msra.mxu0 0.0
        %5467 = vmatprep.subr.mxu0 0.0
        %5468 = vmatpush2.msra.mxu0 0.0
        %5469 = vmatprep.subr.mxu0 0.0
        %5470 = vmatpush2.msra.mxu0 0.0
        %5471 = vmatprep.subr.mxu0 0.0
        %5472 = vmatpush2.msra.mxu0 0.0
        %5473 = vmatprep.subr.mxu0 0.0
        %5474 = vmatpush2.msra.mxu0 0.0
        %5475 = vmatprep.subr.mxu0 0.0
        %5476 = vmatpush2.msra.mxu0 0.0
        %5477 = vmatprep.subr.mxu0 0.0
        %5478 = vmatpush2.msra.mxu0 0.0
        %5479 = vmatprep.subr.mxu0 0.0
        %5480 = vmatpush2.msra.mxu0 0.0
        %5481 = vmatprep.mubr.f32.mxu0 0.0
        %5482 = vmatmul.mubr.f32.gmra.mxu0 %v5370
        %v5483 = vpop.f32.mrf.mxu0
        %v5484 = vadd.f32 %v5368, %v5483
        %v5485 = vpop.f32.mrf.mxu0
        %5486 = vmatprep.mubr.f32.mxu0 0.0
        %5487 = vmatmul.mubr.f32.gmra.mxu0 %v5373
        %v5488 = vpop.f32.mrf.mxu0
        %v5489 = vadd.f32 %v5368, %v5488
        %v5490 = vpop.f32.mrf.mxu0
        %5491 = vmatprep.mubr.f32.mxu0 0.0
        %5492 = vmatmul.mubr.f32.gmra.mxu0 %v5376
        %v5493 = vpop.f32.mrf.mxu0
        %v5494 = vadd.f32 %v5368, %v5493
        %v5495 = vpop.f32.mrf.mxu0
        %5496 = vmatprep.mubr.f32.mxu0 0.0
        %5497 = vmatmul.mubr.f32.gmra.mxu0 %v5379
        %v5498 = vpop.f32.mrf.mxu0
        %v5499 = vadd.f32 %v5368, %v5498
        %v5500 = vpop.f32.mrf.mxu0
        %5501 = vmatprep.mubr.f32.mxu0 0.0
        %5502 = vmatmul.mubr.f32.gmra.mxu0 %v5382
        %v5503 = vpop.f32.mrf.mxu0
        %v5504 = vadd.f32 %v5368, %v5503
        %v5505 = vpop.f32.mrf.mxu0
        %5506 = vmatprep.mubr.f32.mxu0 0.0
        %5507 = vmatmul.mubr.f32.gmra.mxu0 %v5385
        %v5508 = vpop.f32.mrf.mxu0
        %v5509 = vadd.f32 %v5368, %v5508
        %v5510 = vpop.f32.mrf.mxu0
        %5511 = vmatprep.mubr.f32.mxu0 0.0
        %5512 = vmatmul.mubr.f32.gmra.mxu0 %v5388
        %v5513 = vpop.f32.mrf.mxu0
        %v5514 = vadd.f32 %v5368, %v5513
        %v5515 = vpop.f32.mrf.mxu0
        %5516 = vmatprep.mubr.f32.mxu0 0.0
        %5517 = vmatmul.mubr.f32.gmra.mxu0 %v5391
        %v5518 = vpop.f32.mrf.mxu0
        %v5519 = vadd.f32 %v5368, %v5518
        %v5520 = vpop.f32.mrf.mxu0
        %5521 = vmatprep.mubr.f32.mxu0 0.0
        %5522 = vmatmul.mubr.f32.gmra.mxu0 %v5394
        %v5523 = vpop.f32.mrf.mxu0
        %v5524 = vadd.f32 %v5368, %v5523
        %v5525 = vpop.f32.mrf.mxu0
        %5526 = vmatprep.mubr.f32.mxu0 0.0
        %5527 = vmatmul.mubr.f32.gmra.mxu0 %v5397
        %v5528 = vpop.f32.mrf.mxu0
        %v5529 = vadd.f32 %v5368, %v5528
        %v5530 = vpop.f32.mrf.mxu0
        %5531 = vmatprep.mubr.f32.mxu0 0.0
        %5532 = vmatmul.mubr.f32.gmra.mxu0 %v5400
        %v5533 = vpop.f32.mrf.mxu0
        %v5534 = vadd.f32 %v5368, %v5533
        %v5535 = vpop.f32.mrf.mxu0
        %5536 = vmatprep.mubr.f32.mxu0 0.0
        %5537 = vmatmul.mubr.f32.gmra.mxu0 %v5403
        %v5538 = vpop.f32.mrf.mxu0
        %v5539 = vadd.f32 %v5368, %v5538
        %v5540 = vpop.f32.mrf.mxu0
        %5541 = vmatprep.mubr.f32.mxu0 0.0
        %5542 = vmatmul.mubr.f32.gmra.mxu0 %v5406
        %v5543 = vpop.f32.mrf.mxu0
        %v5544 = vadd.f32 %v5368, %v5543
        %v5545 = vpop.f32.mrf.mxu0
        %5546 = vmatprep.mubr.f32.mxu0 0.0
        %5547 = vmatmul.mubr.f32.gmra.mxu0 %v5409
        %v5548 = vpop.f32.mrf.mxu0
        %v5549 = vadd.f32 %v5368, %v5548
        %v5550 = vpop.f32.mrf.mxu0
        %5551 = vmatprep.mubr.f32.mxu0 0.0
        %5552 = vmatmul.mubr.f32.gmra.mxu0 %v5412
        %v5553 = vpop.f32.mrf.mxu0
        %v5554 = vadd.f32 %v5368, %v5553
        %v5555 = vpop.f32.mrf.mxu0
        %5556 = vmatprep.mubr.f32.mxu0 0.0
        %5557 = vmatmul.mubr.f32.gmra.mxu0 %v5415
        %v5558 = vpop.f32.mrf.mxu0
        %v5559 = vadd.f32 %v5368, %v5558
        %v5560 = vpop.f32.mrf.mxu0
        %5561 = vdwg.mxu0
        %v5562 = vsel %vm1423, %v5484, 0.0
        %5563 = vadd.xlane.f32.xlu0 %v5562
        %v5564 = vpop.xlane.xlu0 %5563
        %v5565 = vsel %vm1423, %v5489, 0.0
        %5566 = vadd.xlane.f32.xlu0 %v5565
        %v5567 = vpop.xlane.xlu0 %5566
        %v5568 = vsel %vm1423, %v5494, 0.0
        %5569 = vadd.xlane.f32.xlu0 %v5568
        %v5570 = vpop.xlane.xlu0 %5569
        %v5571 = vsel %vm1423, %v5499, 0.0
        %5572 = vadd.xlane.f32.xlu0 %v5571
        %v5573 = vpop.xlane.xlu0 %5572
        %v5574 = vsel %vm1423, %v5504, 0.0
        %5575 = vadd.xlane.f32.xlu0 %v5574
        %v5576 = vpop.xlane.xlu0 %5575
        %v5577 = vsel %vm1423, %v5509, 0.0
        %5578 = vadd.xlane.f32.xlu0 %v5577
        %v5579 = vpop.xlane.xlu0 %5578
        %v5580 = vsel %vm1423, %v5514, 0.0
        %5581 = vadd.xlane.f32.xlu0 %v5580
        %v5582 = vpop.xlane.xlu0 %5581
        %v5583 = vsel %vm1423, %v5519, 0.0
        %5584 = vadd.xlane.f32.xlu0 %v5583
        %v5585 = vpop.xlane.xlu0 %5584
        %v5586 = vsel %vm1423, %v5524, 0.0
        %5587 = vadd.xlane.f32.xlu0 %v5586
        %v5588 = vpop.xlane.xlu0 %5587
        %v5589 = vsel %vm1423, %v5529, 0.0
        %5590 = vadd.xlane.f32.xlu0 %v5589
        %v5591 = vpop.xlane.xlu0 %5590
        %v5592 = vsel %vm1423, %v5534, 0.0
        %5593 = vadd.xlane.f32.xlu0 %v5592
        %v5594 = vpop.xlane.xlu0 %5593
        %v5595 = vsel %vm1423, %v5539, 0.0
        %5596 = vadd.xlane.f32.xlu0 %v5595
        %v5597 = vpop.xlane.xlu0 %5596
        %v5598 = vsel %vm1423, %v5544, 0.0
        %5599 = vadd.xlane.f32.xlu0 %v5598
        %v5600 = vpop.xlane.xlu0 %5599
        %v5601 = vsel %vm1423, %v5549, 0.0
        %5602 = vadd.xlane.f32.xlu0 %v5601
        %v5603 = vpop.xlane.xlu0 %5602
        %v5604 = vsel %vm1423, %v5554, 0.0
        %5605 = vadd.xlane.f32.xlu0 %v5604
        %v5606 = vpop.xlane.xlu0 %5605
        %v5607 = vsel %vm1423, %v5559, 0.0
        %5608 = vadd.xlane.f32.xlu0 %v5607
        %v5609 = vpop.xlane.xlu0 %5608
        %v5610 = vrcp.pop 32.0
        %v5611 = vmul.f32 %v5564, %v5610
        %v5612 = vmul.f32 %v5567, %v5610
        %v5613 = vmul.f32 %v5570, %v5610
        %v5614 = vmul.f32 %v5573, %v5610
        %v5615 = vmul.f32 %v5576, %v5610
        %v5616 = vmul.f32 %v5579, %v5610
        %v5617 = vmul.f32 %v5582, %v5610
        %v5618 = vmul.f32 %v5585, %v5610
        %v5619 = vmul.f32 %v5588, %v5610
        %v5620 = vmul.f32 %v5591, %v5610
        %v5621 = vmul.f32 %v5594, %v5610
        %v5622 = vmul.f32 %v5597, %v5610
        %v5623 = vmul.f32 %v5600, %v5610
        %v5624 = vmul.f32 %v5603, %v5610
        %v5625 = vmul.f32 %v5606, %v5610
        %v5626 = vmul.f32 %v5609, %v5610
        %v5627 = vsub.f32 %v5484, %v5611
        %v5628 = vsub.f32 %v5489, %v5612
        %v5629 = vsub.f32 %v5494, %v5613
        %v5630 = vsub.f32 %v5499, %v5614
        %v5631 = vsub.f32 %v5504, %v5615
        %v5632 = vsub.f32 %v5509, %v5616
        %v5633 = vsub.f32 %v5514, %v5617
        %v5634 = vsub.f32 %v5519, %v5618
        %v5635 = vsub.f32 %v5524, %v5619
        %v5636 = vsub.f32 %v5529, %v5620
        %v5637 = vsub.f32 %v5534, %v5621
        %v5638 = vsub.f32 %v5539, %v5622
        %v5639 = vsub.f32 %v5544, %v5623
        %v5640 = vsub.f32 %v5549, %v5624
        %v5641 = vsub.f32 %v5554, %v5625
        %v5642 = vsub.f32 %v5559, %v5626
        %v5643 = vmul.f32 %v5627, %v5627
        %v5644 = vmul.f32 %v5628, %v5628
        %v5645 = vmul.f32 %v5629, %v5629
        %v5646 = vmul.f32 %v5630, %v5630
        %v5647 = vmul.f32 %v5631, %v5631
        %v5648 = vmul.f32 %v5632, %v5632
        %v5649 = vmul.f32 %v5633, %v5633
        %v5650 = vmul.f32 %v5634, %v5634
        %v5651 = vmul.f32 %v5635, %v5635
        %v5652 = vmul.f32 %v5636, %v5636
        %v5653 = vmul.f32 %v5637, %v5637
        %v5654 = vmul.f32 %v5638, %v5638
        %v5655 = vmul.f32 %v5639, %v5639
        %v5656 = vmul.f32 %v5640, %v5640
        %v5657 = vmul.f32 %v5641, %v5641
        %v5658 = vmul.f32 %v5642, %v5642
        %v5659 = vsel %vm1423, %v5643, 0.0
        %5660 = vadd.xlane.f32.xlu0 %v5659
        %v5661 = vpop.xlane.xlu0 %5660
        %v5662 = vsel %vm1423, %v5644, 0.0
        %5663 = vadd.xlane.f32.xlu0 %v5662
        %v5664 = vpop.xlane.xlu0 %5663
        %v5665 = vsel %vm1423, %v5645, 0.0
        %5666 = vadd.xlane.f32.xlu0 %v5665
        %v5667 = vpop.xlane.xlu0 %5666
        %v5668 = vsel %vm1423, %v5646, 0.0
        %5669 = vadd.xlane.f32.xlu0 %v5668
        %v5670 = vpop.xlane.xlu0 %5669
        %v5671 = vsel %vm1423, %v5647, 0.0
        %5672 = vadd.xlane.f32.xlu0 %v5671
        %v5673 = vpop.xlane.xlu0 %5672
        %v5674 = vsel %vm1423, %v5648, 0.0
        %5675 = vadd.xlane.f32.xlu0 %v5674
        %v5676 = vpop.xlane.xlu0 %5675
        %v5677 = vsel %vm1423, %v5649, 0.0
        %5678 = vadd.xlane.f32.xlu0 %v5677
        %v5679 = vpop.xlane.xlu0 %5678
        %v5680 = vsel %vm1423, %v5650, 0.0
        %5681 = vadd.xlane.f32.xlu0 %v5680
        %v5682 = vpop.xlane.xlu0 %5681
        %v5683 = vsel %vm1423, %v5651, 0.0
        %5684 = vadd.xlane.f32.xlu0 %v5683
        %v5685 = vpop.xlane.xlu0 %5684
        %v5686 = vsel %vm1423, %v5652, 0.0
        %5687 = vadd.xlane.f32.xlu0 %v5686
        %v5688 = vpop.xlane.xlu0 %5687
        %v5689 = vsel %vm1423, %v5653, 0.0
        %5690 = vadd.xlane.f32.xlu0 %v5689
        %v5691 = vpop.xlane.xlu0 %5690
        %v5692 = vsel %vm1423, %v5654, 0.0
        %5693 = vadd.xlane.f32.xlu0 %v5692
        %v5694 = vpop.xlane.xlu0 %5693
        %v5695 = vsel %vm1423, %v5655, 0.0
        %5696 = vadd.xlane.f32.xlu0 %v5695
        %v5697 = vpop.xlane.xlu0 %5696
        %v5698 = vsel %vm1423, %v5656, 0.0
        %5699 = vadd.xlane.f32.xlu0 %v5698
        %v5700 = vpop.xlane.xlu0 %5699
        %v5701 = vsel %vm1423, %v5657, 0.0
        %5702 = vadd.xlane.f32.xlu0 %v5701
        %v5703 = vpop.xlane.xlu0 %5702
        %v5704 = vsel %vm1423, %v5658, 0.0
        %5705 = vadd.xlane.f32.xlu0 %v5704
        %v5706 = vpop.xlane.xlu0 %5705
        %v5707 = vmul.f32 %v5661, %v5610
        %v5708 = vmul.f32 %v5664, %v5610
        %v5709 = vmul.f32 %v5667, %v5610
        %v5710 = vmul.f32 %v5670, %v5610
        %v5711 = vmul.f32 %v5673, %v5610
        %v5712 = vmul.f32 %v5676, %v5610
        %v5713 = vmul.f32 %v5679, %v5610
        %v5714 = vmul.f32 %v5682, %v5610
        %v5715 = vmul.f32 %v5685, %v5610
        %v5716 = vmul.f32 %v5688, %v5610
        %v5717 = vmul.f32 %v5691, %v5610
        %v5718 = vmul.f32 %v5694, %v5610
        %v5719 = vmul.f32 %v5697, %v5610
        %v5720 = vmul.f32 %v5700, %v5610
        %v5721 = vmul.f32 %v5703, %v5610
        %v5722 = vmul.f32 %v5706, %v5610
        %v5723 = vadd.f32 %v5707, 1e-05
        %v5724 = vadd.f32 %v5708, 1e-05
        %v5725 = vadd.f32 %v5709, 1e-05
        %v5726 = vadd.f32 %v5710, 1e-05
        %v5727 = vadd.f32 %v5711, 1e-05
        %v5728 = vadd.f32 %v5712, 1e-05
        %v5729 = vadd.f32 %v5713, 1e-05
        %v5730 = vadd.f32 %v5714, 1e-05
        %v5731 = vadd.f32 %v5715, 1e-05
        %v5732 = vadd.f32 %v5716, 1e-05
        %v5733 = vadd.f32 %v5717, 1e-05
        %v5734 = vadd.f32 %v5718, 1e-05
        %v5735 = vadd.f32 %v5719, 1e-05
        %v5736 = vadd.f32 %v5720, 1e-05
        %v5737 = vadd.f32 %v5721, 1e-05
        %v5738 = vadd.f32 %v5722, 1e-05
        %v5739 = vrsqrt.pop %v5723
        %v5740 = vrsqrt.pop %v5724
        %v5741 = vrsqrt.pop %v5725
        %v5742 = vrsqrt.pop %v5726
        %v5743 = vrsqrt.pop %v5727
        %v5744 = vrsqrt.pop %v5728
        %v5745 = vrsqrt.pop %v5729
        %v5746 = vrsqrt.pop %v5730
        %v5747 = vrsqrt.pop %v5731
        %v5748 = vrsqrt.pop %v5732
        %v5749 = vrsqrt.pop %v5733
        %v5750 = vrsqrt.pop %v5734
        %v5751 = vrsqrt.pop %v5735
        %v5752 = vrsqrt.pop %v5736
        %v5753 = vrsqrt.pop %v5737
        %v5754 = vrsqrt.pop %v5738
        %v5755 = vmul.f32 %v5627, %v5739
        %v5756 = vmul.f32 %v5628, %v5740
        %v5757 = vmul.f32 %v5629, %v5741
        %v5758 = vmul.f32 %v5630, %v5742
        %v5759 = vmul.f32 %v5631, %v5743
        %v5760 = vmul.f32 %v5632, %v5744
        %v5761 = vmul.f32 %v5633, %v5745
        %v5762 = vmul.f32 %v5634, %v5746
        %v5763 = vmul.f32 %v5635, %v5747
        %v5764 = vmul.f32 %v5636, %v5748
        %v5765 = vmul.f32 %v5637, %v5749
        %v5766 = vmul.f32 %v5638, %v5750
        %v5767 = vmul.f32 %v5639, %v5751
        %v5768 = vmul.f32 %v5640, %v5752
        %v5769 = vmul.f32 %v5641, %v5753
        %v5770 = vmul.f32 %v5642, %v5754
        %v5771 = vlaneseq
        %v5772 = vshrl.u32 %v5771, 7
        %v5773 = vsub.s32 0, %v5772
        %v5774 = vrot.slane %v195, %v5773
        %v5775 = vmul.f32 %v5755, %v5774
        %v5776 = vmul.f32 %v5756, %v5774
        %v5777 = vmul.f32 %v5757, %v5774
        %v5778 = vmul.f32 %v5758, %v5774
        %v5779 = vmul.f32 %v5759, %v5774
        %v5780 = vmul.f32 %v5760, %v5774
        %v5781 = vmul.f32 %v5761, %v5774
        %v5782 = vmul.f32 %v5762, %v5774
        %v5783 = vmul.f32 %v5763, %v5774
        %v5784 = vmul.f32 %v5764, %v5774
        %v5785 = vmul.f32 %v5765, %v5774
        %v5786 = vmul.f32 %v5766, %v5774
        %v5787 = vmul.f32 %v5767, %v5774
        %v5788 = vmul.f32 %v5768, %v5774
        %v5789 = vmul.f32 %v5769, %v5774
        %v5790 = vmul.f32 %v5770, %v5774
        %v5791 = vlaneseq
        %v5792 = vshrl.u32 %v5791, 7
        %v5793 = vsub.s32 0, %v5792
        %v5794 = vrot.slane %v196, %v5793
        %v5795 = vadd.f32 %v5775, %v5794
        %v5796 = vadd.f32 %v5776, %v5794
        %v5797 = vadd.f32 %v5777, %v5794
        %v5798 = vadd.f32 %v5778, %v5794
        %v5799 = vadd.f32 %v5779, %v5794
        %v5800 = vadd.f32 %v5780, %v5794
        %v5801 = vadd.f32 %v5781, %v5794
        %v5802 = vadd.f32 %v5782, %v5794
        %v5803 = vadd.f32 %v5783, %v5794
        %v5804 = vadd.f32 %v5784, %v5794
        %v5805 = vadd.f32 %v5785, %v5794
        %v5806 = vadd.f32 %v5786, %v5794
        %v5807 = vadd.f32 %v5787, %v5794
        %v5808 = vadd.f32 %v5788, %v5794
        %v5809 = vadd.f32 %v5789, %v5794
        %v5810 = vadd.f32 %v5790, %v5794
        %v5811 = vadd.f32 %v5795, %v199
        %v5812 = vadd.f32 %v5796, %v276
        %v5813 = vadd.f32 %v5797, %v352
        %v5814 = vadd.f32 %v5798, %v428
        %v5815 = vadd.f32 %v5799, %v504
        %v5816 = vadd.f32 %v5800, %v580
        %v5817 = vadd.f32 %v5801, %v656
        %v5818 = vadd.f32 %v5802, %v732
        %v5819 = vadd.f32 %v5803, %v808
        %v5820 = vadd.f32 %v5804, %v884
        %v5821 = vadd.f32 %v5805, %v960
        %v5822 = vadd.f32 %v5806, %v1036
        %v5823 = vadd.f32 %v5807, %v1112
        %v5824 = vadd.f32 %v5808, %v1188
        %v5825 = vadd.f32 %v5809, %v1264
        %v5826 = vadd.f32 %v5810, %v1340
        %v5827 = vld [vmem:[#allocation5 + $0x38] sm:$0xff]
        %v5828 = vld [vmem:[#allocation5 + $0x40] sm:$0xff]
        %v5829 = vld [vmem:[#allocation5 + $0x48] sm:$0xff]
        %v5830 = vld [vmem:[#allocation5 + $0x50] sm:$0xff]
        %v5832 = vsel %vm1423, %v5811, 0
        %v5835 = vsel %vm1423, %v5812, 0
        %v5838 = vsel %vm1423, %v5813, 0
        %v5841 = vsel %vm1423, %v5814, 0
        %v5844 = vsel %vm1423, %v5815, 0
        %v5847 = vsel %vm1423, %v5816, 0
        %v5850 = vsel %vm1423, %v5817, 0
        %v5853 = vsel %vm1423, %v5818, 0
        %v5856 = vsel %vm1423, %v5819, 0
        %v5859 = vsel %vm1423, %v5820, 0
        %v5862 = vsel %vm1423, %v5821, 0
        %v5865 = vsel %vm1423, %v5822, 0
        %v5868 = vsel %vm1423, %v5823, 0
        %v5871 = vsel %vm1423, %v5824, 0
        %v5874 = vsel %vm1423, %v5825, 0
        %v5877 = vsel %vm1423, %v5826, 0
        %5879 = vmatprep.subr.mxu0 0.0
        %5880 = vmatpush1.msra.mxu0 0.0
        %5881 = vmatprep.subr.mxu0 0.0
        %5882 = vmatpush1.msra.mxu0 0.0
        %5883 = vmatprep.subr.mxu0 0.0
        %5884 = vmatpush1.msra.mxu0 0.0
        %5885 = vmatprep.subr.mxu0 0.0
        %5886 = vmatpush1.msra.mxu0 0.0
        %5887 = vmatprep.subr.mxu0 0.0
        %5888 = vmatpush1.msra.mxu0 0.0
        %5889 = vmatprep.subr.mxu0 0.0
        %5890 = vmatpush1.msra.mxu0 0.0
        %5891 = vmatprep.subr.mxu0 0.0
        %5892 = vmatpush1.msra.mxu0 0.0
        %5893 = vmatprep.subr.mxu0 0.0
        %5894 = vmatpush1.msra.mxu0 0.0
        %5895 = vmatprep.subr.mxu0 0.0
        %5896 = vmatpush1.msra.mxu0 0.0
        %5897 = vmatprep.subr.mxu0 0.0
        %5898 = vmatpush1.msra.mxu0 0.0
        %5899 = vmatprep.subr.mxu0 0.0
        %5900 = vmatpush1.msra.mxu0 0.0
        %5901 = vmatprep.subr.mxu0 0.0
        %5902 = vmatpush1.msra.mxu0 0.0
        %5903 = vmatprep.subr.mxu0 0.0
        %5904 = vmatpush1.msra.mxu0 %v5830
        %5905 = vmatprep.subr.mxu0 0.0
        %5906 = vmatpush1.msra.mxu0 %v5829
        %5907 = vmatprep.subr.mxu0 0.0
        %5908 = vmatpush1.msra.mxu0 %v5828
        %5909 = vmatprep.subr.mxu0 0.0
        %5910 = vmatpush1.msra.mxu0 %v5827
        %5911 = vmatprep.subr.mxu0 0.0
        %5912 = vmatpush2.msra.mxu0 0.0
        %5913 = vmatprep.subr.mxu0 0.0
        %5914 = vmatpush2.msra.mxu0 0.0
        %5915 = vmatprep.subr.mxu0 0.0
        %5916 = vmatpush2.msra.mxu0 0.0
        %5917 = vmatprep.subr.mxu0 0.0
        %5918 = vmatpush2.msra.mxu0 0.0
        %5919 = vmatprep.subr.mxu0 0.0
        %5920 = vmatpush2.msra.mxu0 0.0
        %5921 = vmatprep.subr.mxu0 0.0
        %5922 = vmatpush2.msra.mxu0 0.0
        %5923 = vmatprep.subr.mxu0 0.0
        %5924 = vmatpush2.msra.mxu0 0.0
        %5925 = vmatprep.subr.mxu0 0.0
        %5926 = vmatpush2.msra.mxu0 0.0
        %5927 = vmatprep.subr.mxu0 0.0
        %5928 = vmatpush2.msra.mxu0 0.0
        %5929 = vmatprep.subr.mxu0 0.0
        %5930 = vmatpush2.msra.mxu0 0.0
        %5931 = vmatprep.subr.mxu0 0.0
        %5932 = vmatpush2.msra.mxu0 0.0
        %5933 = vmatprep.subr.mxu0 0.0
        %5934 = vmatpush2.msra.mxu0 0.0
        %5935 = vmatprep.subr.mxu0 0.0
        %5936 = vmatpush2.msra.mxu0 0.0
        %5937 = vmatprep.subr.mxu0 0.0
        %5938 = vmatpush2.msra.mxu0 0.0
        %5939 = vmatprep.subr.mxu0 0.0
        %5940 = vmatpush2.msra.mxu0 0.0
        %5941 = vmatprep.subr.mxu0 0.0
        %5942 = vmatpush2.msra.mxu0 0.0
        %5943 = vmatprep.mubr.f32.mxu0 0.0
        %5944 = vmatmul.mubr.f32.gmra.mxu0 %v5832
        %v5945 = vpop.f32.mrf.mxu0
        %v5946 = vadd.f32 0.0, %v5945
        %v5947 = vpop.f32.mrf.mxu0
        %5948 = vmatprep.mubr.f32.mxu0 0.0
        %5949 = vmatmul.mubr.f32.gmra.mxu0 %v5835
        %v5950 = vpop.f32.mrf.mxu0
        %v5951 = vadd.f32 0.0, %v5950
        %v5952 = vpop.f32.mrf.mxu0
        %5953 = vmatprep.mubr.f32.mxu0 0.0
        %5954 = vmatmul.mubr.f32.gmra.mxu0 %v5838
        %v5955 = vpop.f32.mrf.mxu0
        %v5956 = vadd.f32 0.0, %v5955
        %v5957 = vpop.f32.mrf.mxu0
        %5958 = vmatprep.mubr.f32.mxu0 0.0
        %5959 = vmatmul.mubr.f32.gmra.mxu0 %v5841
        %v5960 = vpop.f32.mrf.mxu0
        %v5961 = vadd.f32 0.0, %v5960
        %v5962 = vpop.f32.mrf.mxu0
        %5963 = vmatprep.mubr.f32.mxu0 0.0
        %5964 = vmatmul.mubr.f32.gmra.mxu0 %v5844
        %v5965 = vpop.f32.mrf.mxu0
        %v5966 = vadd.f32 0.0, %v5965
        %v5967 = vpop.f32.mrf.mxu0
        %5968 = vmatprep.mubr.f32.mxu0 0.0
        %5969 = vmatmul.mubr.f32.gmra.mxu0 %v5847
        %v5970 = vpop.f32.mrf.mxu0
        %v5971 = vadd.f32 0.0, %v5970
        %v5972 = vpop.f32.mrf.mxu0
        %5973 = vmatprep.mubr.f32.mxu0 0.0
        %5974 = vmatmul.mubr.f32.gmra.mxu0 %v5850
        %v5975 = vpop.f32.mrf.mxu0
        %v5976 = vadd.f32 0.0, %v5975
        %v5977 = vpop.f32.mrf.mxu0
        %5978 = vmatprep.mubr.f32.mxu0 0.0
        %5979 = vmatmul.mubr.f32.gmra.mxu0 %v5853
        %v5980 = vpop.f32.mrf.mxu0
        %v5981 = vadd.f32 0.0, %v5980
        %v5982 = vpop.f32.mrf.mxu0
        %5983 = vmatprep.mubr.f32.mxu0 0.0
        %5984 = vmatmul.mubr.f32.gmra.mxu0 %v5856
        %v5985 = vpop.f32.mrf.mxu0
        %v5986 = vadd.f32 0.0, %v5985
        %v5987 = vpop.f32.mrf.mxu0
        %5988 = vmatprep.mubr.f32.mxu0 0.0
        %5989 = vmatmul.mubr.f32.gmra.mxu0 %v5859
        %v5990 = vpop.f32.mrf.mxu0
        %v5991 = vadd.f32 0.0, %v5990
        %v5992 = vpop.f32.mrf.mxu0
        %5993 = vmatprep.mubr.f32.mxu0 0.0
        %5994 = vmatmul.mubr.f32.gmra.mxu0 %v5862
        %v5995 = vpop.f32.mrf.mxu0
        %v5996 = vadd.f32 0.0, %v5995
        %v5997 = vpop.f32.mrf.mxu0
        %5998 = vmatprep.mubr.f32.mxu0 0.0
        %5999 = vmatmul.mubr.f32.gmra.mxu0 %v5865
        %v6000 = vpop.f32.mrf.mxu0
        %v6001 = vadd.f32 0.0, %v6000
        %v6002 = vpop.f32.mrf.mxu0
        %6003 = vmatprep.mubr.f32.mxu0 0.0
        %6004 = vmatmul.mubr.f32.gmra.mxu0 %v5868
        %v6005 = vpop.f32.mrf.mxu0
        %v6006 = vadd.f32 0.0, %v6005
        %v6007 = vpop.f32.mrf.mxu0
        %6008 = vmatprep.mubr.f32.mxu0 0.0
        %6009 = vmatmul.mubr.f32.gmra.mxu0 %v5871
        %v6010 = vpop.f32.mrf.mxu0
        %v6011 = vadd.f32 0.0, %v6010
        %v6012 = vpop.f32.mrf.mxu0
        %6013 = vmatprep.mubr.f32.mxu0 0.0
        %6014 = vmatmul.mubr.f32.gmra.mxu0 %v5874
        %v6015 = vpop.f32.mrf.mxu0
        %v6016 = vadd.f32 0.0, %v6015
        %v6017 = vpop.f32.mrf.mxu0
        %6018 = vmatprep.mubr.f32.mxu0 0.0
        %6019 = vmatmul.mubr.f32.gmra.mxu0 %v5877
        %v6020 = vpop.f32.mrf.mxu0
        %v6021 = vadd.f32 0.0, %v6020
        %v6022 = vpop.f32.mrf.mxu0
        %6023 = vdwg.mxu0
        %v6024 = vld [vmem:[#allocation5 + $0x2] sm:$0x1]
        %v6025 = vlaneseq
        %v6026 = vshrl.u32 %v6025, 7
        %v6027 = vsub.s32 0, %v6026
        %v6028 = vrot.slane %v6024, %v6027
        %6029 = vmatprep.subr.mxu0 0.0
        %6030 = vmatpush1.msra.mxu0 0.0
        %6031 = vmatprep.subr.mxu0 0.0
        %6032 = vmatpush1.msra.mxu0 0.0
        %6033 = vmatprep.subr.mxu0 0.0
        %6034 = vmatpush1.msra.mxu0 0.0
        %6035 = vmatprep.subr.mxu0 0.0
        %6036 = vmatpush1.msra.mxu0 0.0
        %6037 = vmatprep.subr.mxu0 0.0
        %6038 = vmatpush1.msra.mxu0 0.0
        %6039 = vmatprep.subr.mxu0 0.0
        %6040 = vmatpush1.msra.mxu0 0.0
        %6041 = vmatprep.subr.mxu0 0.0
        %6042 = vmatpush1.msra.mxu0 0.0
        %6043 = vmatprep.subr.mxu0 0.0
        %6044 = vmatpush1.msra.mxu0 0.0
        %6045 = vmatprep.subr.mxu0 0.0
        %6046 = vmatpush1.msra.mxu0 0.0
        %6047 = vmatprep.subr.mxu0 0.0
        %6048 = vmatpush1.msra.mxu0 0.0
        %6049 = vmatprep.subr.mxu0 0.0
        %6050 = vmatpush1.msra.mxu0 0.0
        %6051 = vmatprep.subr.mxu0 0.0
        %6052 = vmatpush1.msra.mxu0 0.0
        %6053 = vmatprep.subr.mxu0 0.0
        %6054 = vmatpush1.msra.mxu0 0.0
        %6055 = vmatprep.subr.mxu0 0.0
        %6056 = vmatpush1.msra.mxu0 0.0
        %6057 = vmatprep.subr.mxu0 0.0
        %6058 = vmatpush1.msra.mxu0 0.0
        %6059 = vmatprep.subr.mxu0 0.0
        %6060 = vmatpush1.msra.mxu0 %v5946
        %6061 = vmatprep.subr.mxu0 0.0
        %6062 = vmatpush2.msra.mxu0 0.0
        %6063 = vmatprep.subr.mxu0 0.0
        %6064 = vmatpush2.msra.mxu0 0.0
        %6065 = vmatprep.subr.mxu0 0.0
        %6066 = vmatpush2.msra.mxu0 0.0
        %6067 = vmatprep.subr.mxu0 0.0
        %6068 = vmatpush2.msra.mxu0 0.0
        %6069 = vmatprep.subr.mxu0 0.0
        %6070 = vmatpush2.msra.mxu0 0.0
        %6071 = vmatprep.subr.mxu0 0.0
        %6072 = vmatpush2.msra.mxu0 0.0
        %6073 = vmatprep.subr.mxu0 0.0
        %6074 = vmatpush2.msra.mxu0 0.0
        %6075 = vmatprep.subr.mxu0 0.0
        %6076 = vmatpush2.msra.mxu0 0.0
        %6077 = vmatprep.subr.mxu0 0.0
        %6078 = vmatpush2.msra.mxu0 0.0
        %6079 = vmatprep.subr.mxu0 0.0
        %6080 = vmatpush2.msra.mxu0 0.0
        %6081 = vmatprep.subr.mxu0 0.0
        %6082 = vmatpush2.msra.mxu0 0.0
        %6083 = vmatprep.subr.mxu0 0.0
        %6084 = vmatpush2.msra.mxu0 0.0
        %6085 = vmatprep.subr.mxu0 0.0
        %6086 = vmatpush2.msra.mxu0 0.0
        %6087 = vmatprep.subr.mxu0 0.0
        %6088 = vmatpush2.msra.mxu0 0.0
        %6089 = vmatprep.subr.mxu0 0.0
        %6090 = vmatpush2.msra.mxu0 0.0
        %6091 = vmatprep.subr.mxu0 0.0
        %6092 = vmatpush2.msra.mxu0 0.0
        %6093 = vmatprep.mubr.f32.mxu0 0.0
        %6094 = vmatmul.mubr.f32.gmra.mxu0 %v202
        %v6095 = vpop.f32.mrf.mxu0
        %v6096 = vadd.f32 %v6028, %v6095
        %v6097 = vpop.f32.mrf.mxu0
        %6098 = vdwg.mxu0
        %6099 = vmatprep.subr.mxu0 0.0
        %6100 = vmatpush1.msra.mxu0 0.0
        %6101 = vmatprep.subr.mxu0 0.0
        %6102 = vmatpush1.msra.mxu0 0.0
        %6103 = vmatprep.subr.mxu0 0.0
        %6104 = vmatpush1.msra.mxu0 0.0
        %6105 = vmatprep.subr.mxu0 0.0
        %6106 = vmatpush1.msra.mxu0 0.0
        %6107 = vmatprep.subr.mxu0 0.0
        %6108 = vmatpush1.msra.mxu0 0.0
        %6109 = vmatprep.subr.mxu0 0.0
        %6110 = vmatpush1.msra.mxu0 0.0
        %6111 = vmatprep.subr.mxu0 0.0
        %6112 = vmatpush1.msra.mxu0 0.0
        %6113 = vmatprep.subr.mxu0 0.0
        %6114 = vmatpush1.msra.mxu0 0.0
        %6115 = vmatprep.subr.mxu0 0.0
        %6116 = vmatpush1.msra.mxu0 0.0
        %6117 = vmatprep.subr.mxu0 0.0
        %6118 = vmatpush1.msra.mxu0 0.0
        %6119 = vmatprep.subr.mxu0 0.0
        %6120 = vmatpush1.msra.mxu0 0.0
        %6121 = vmatprep.subr.mxu0 0.0
        %6122 = vmatpush1.msra.mxu0 0.0
        %6123 = vmatprep.subr.mxu0 0.0
        %6124 = vmatpush1.msra.mxu0 0.0
        %6125 = vmatprep.subr.mxu0 0.0
        %6126 = vmatpush1.msra.mxu0 0.0
        %6127 = vmatprep.subr.mxu0 0.0
        %6128 = vmatpush1.msra.mxu0 0.0
        %6129 = vmatprep.subr.mxu0 0.0
        %6130 = vmatpush1.msra.mxu0 %v5951
        %6131 = vmatprep.subr.mxu0 0.0
        %6132 = vmatpush2.msra.mxu0 0.0
        %6133 = vmatprep.subr.mxu0 0.0
        %6134 = vmatpush2.msra.mxu0 0.0
        %6135 = vmatprep.subr.mxu0 0.0
        %6136 = vmatpush2.msra.mxu0 0.0
        %6137 = vmatprep.subr.mxu0 0.0
        %6138 = vmatpush2.msra.mxu0 0.0
        %6139 = vmatprep.subr.mxu0 0.0
        %6140 = vmatpush2.msra.mxu0 0.0
        %6141 = vmatprep.subr.mxu0 0.0
        %6142 = vmatpush2.msra.mxu0 0.0
        %6143 = vmatprep.subr.mxu0 0.0
        %6144 = vmatpush2.msra.mxu0 0.0
        %6145 = vmatprep.subr.mxu0 0.0
        %6146 = vmatpush2.msra.mxu0 0.0
        %6147 = vmatprep.subr.mxu0 0.0
        %6148 = vmatpush2.msra.mxu0 0.0
        %6149 = vmatprep.subr.mxu0 0.0
        %6150 = vmatpush2.msra.mxu0 0.0
        %6151 = vmatprep.subr.mxu0 0.0
        %6152 = vmatpush2.msra.mxu0 0.0
        %6153 = vmatprep.subr.mxu0 0.0
        %6154 = vmatpush2.msra.mxu0 0.0
        %6155 = vmatprep.subr.mxu0 0.0
        %6156 = vmatpush2.msra.mxu0 0.0
        %6157 = vmatprep.subr.mxu0 0.0
        %6158 = vmatpush2.msra.mxu0 0.0
        %6159 = vmatprep.subr.mxu0 0.0
        %6160 = vmatpush2.msra.mxu0 0.0
        %6161 = vmatprep.subr.mxu0 0.0
        %6162 = vmatpush2.msra.mxu0 0.0
        %6163 = vmatprep.mubr.f32.mxu0 0.0
        %6164 = vmatmul.mubr.f32.gmra.mxu0 %v278
        %v6165 = vpop.f32.mrf.mxu0
        %v6166 = vadd.f32 %v6028, %v6165
        %v6167 = vpop.f32.mrf.mxu0
        %6168 = vdwg.mxu0
        %6169 = vmatprep.subr.mxu0 0.0
        %6170 = vmatpush1.msra.mxu0 0.0
        %6171 = vmatprep.subr.mxu0 0.0
        %6172 = vmatpush1.msra.mxu0 0.0
        %6173 = vmatprep.subr.mxu0 0.0
        %6174 = vmatpush1.msra.mxu0 0.0
        %6175 = vmatprep.subr.mxu0 0.0
        %6176 = vmatpush1.msra.mxu0 0.0
        %6177 = vmatprep.subr.mxu0 0.0
        %6178 = vmatpush1.msra.mxu0 0.0
        %6179 = vmatprep.subr.mxu0 0.0
        %6180 = vmatpush1.msra.mxu0 0.0
        %6181 = vmatprep.subr.mxu0 0.0
        %6182 = vmatpush1.msra.mxu0 0.0
        %6183 = vmatprep.subr.mxu0 0.0
        %6184 = vmatpush1.msra.mxu0 0.0
        %6185 = vmatprep.subr.mxu0 0.0
        %6186 = vmatpush1.msra.mxu0 0.0
        %6187 = vmatprep.subr.mxu0 0.0
        %6188 = vmatpush1.msra.mxu0 0.0
        %6189 = vmatprep.subr.mxu0 0.0
        %6190 = vmatpush1.msra.mxu0 0.0
        %6191 = vmatprep.subr.mxu0 0.0
        %6192 = vmatpush1.msra.mxu0 0.0
        %6193 = vmatprep.subr.mxu0 0.0
        %6194 = vmatpush1.msra.mxu0 0.0
        %6195 = vmatprep.subr.mxu0 0.0
        %6196 = vmatpush1.msra.mxu0 0.0
        %6197 = vmatprep.subr.mxu0 0.0
        %6198 = vmatpush1.msra.mxu0 0.0
        %6199 = vmatprep.subr.mxu0 0.0
        %6200 = vmatpush1.msra.mxu0 %v5956
        %6201 = vmatprep.subr.mxu0 0.0
        %6202 = vmatpush2.msra.mxu0 0.0
        %6203 = vmatprep.subr.mxu0 0.0
        %6204 = vmatpush2.msra.mxu0 0.0
        %6205 = vmatprep.subr.mxu0 0.0
        %6206 = vmatpush2.msra.mxu0 0.0
        %6207 = vmatprep.subr.mxu0 0.0
        %6208 = vmatpush2.msra.mxu0 0.0
        %6209 = vmatprep.subr.mxu0 0.0
        %6210 = vmatpush2.msra.mxu0 0.0
        %6211 = vmatprep.subr.mxu0 0.0
        %6212 = vmatpush2.msra.mxu0 0.0
        %6213 = vmatprep.subr.mxu0 0.0
        %6214 = vmatpush2.msra.mxu0 0.0
        %6215 = vmatprep.subr.mxu0 0.0
        %6216 = vmatpush2.msra.mxu0 0.0
        %6217 = vmatprep.subr.mxu0 0.0
        %6218 = vmatpush2.msra.mxu0 0.0
        %6219 = vmatprep.subr.mxu0 0.0
        %6220 = vmatpush2.msra.mxu0 0.0
        %6221 = vmatprep.subr.mxu0 0.0
        %6222 = vmatpush2.msra.mxu0 0.0
        %6223 = vmatprep.subr.mxu0 0.0
        %6224 = vmatpush2.msra.mxu0 0.0
        %6225 = vmatprep.subr.mxu0 0.0
        %6226 = vmatpush2.msra.mxu0 0.0
        %6227 = vmatprep.subr.mxu0 0.0
        %6228 = vmatpush2.msra.mxu0 0.0
        %6229 = vmatprep.subr.mxu0 0.0
        %6230 = vmatpush2.msra.mxu0 0.0
        %6231 = vmatprep.subr.mxu0 0.0
        %6232 = vmatpush2.msra.mxu0 0.0
        %6233 = vmatprep.mubr.f32.mxu0 0.0
        %6234 = vmatmul.mubr.f32.gmra.mxu0 %v354
        %v6235 = vpop.f32.mrf.mxu0
        %v6236 = vadd.f32 %v6028, %v6235
        %v6237 = vpop.f32.mrf.mxu0
        %6238 = vdwg.mxu0
        %6239 = vmatprep.subr.mxu0 0.0
        %6240 = vmatpush1.msra.mxu0 0.0
        %6241 = vmatprep.subr.mxu0 0.0
        %6242 = vmatpush1.msra.mxu0 0.0
        %6243 = vmatprep.subr.mxu0 0.0
        %6244 = vmatpush1.msra.mxu0 0.0
        %6245 = vmatprep.subr.mxu0 0.0
        %6246 = vmatpush1.msra.mxu0 0.0
        %6247 = vmatprep.subr.mxu0 0.0
        %6248 = vmatpush1.msra.mxu0 0.0
        %6249 = vmatprep.subr.mxu0 0.0
        %6250 = vmatpush1.msra.mxu0 0.0
        %6251 = vmatprep.subr.mxu0 0.0
        %6252 = vmatpush1.msra.mxu0 0.0
        %6253 = vmatprep.subr.mxu0 0.0
        %6254 = vmatpush1.msra.mxu0 0.0
        %6255 = vmatprep.subr.mxu0 0.0
        %6256 = vmatpush1.msra.mxu0 0.0
        %6257 = vmatprep.subr.mxu0 0.0
        %6258 = vmatpush1.msra.mxu0 0.0
        %6259 = vmatprep.subr.mxu0 0.0
        %6260 = vmatpush1.msra.mxu0 0.0
        %6261 = vmatprep.subr.mxu0 0.0
        %6262 = vmatpush1.msra.mxu0 0.0
        %6263 = vmatprep.subr.mxu0 0.0
        %6264 = vmatpush1.msra.mxu0 0.0
        %6265 = vmatprep.subr.mxu0 0.0
        %6266 = vmatpush1.msra.mxu0 0.0
        %6267 = vmatprep.subr.mxu0 0.0
        %6268 = vmatpush1.msra.mxu0 0.0
        %6269 = vmatprep.subr.mxu0 0.0
        %6270 = vmatpush1.msra.mxu0 %v5961
        %6271 = vmatprep.subr.mxu0 0.0
        %6272 = vmatpush2.msra.mxu0 0.0
        %6273 = vmatprep.subr.mxu0 0.0
        %6274 = vmatpush2.msra.mxu0 0.0
        %6275 = vmatprep.subr.mxu0 0.0
        %6276 = vmatpush2.msra.mxu0 0.0
        %6277 = vmatprep.subr.mxu0 0.0
        %6278 = vmatpush2.msra.mxu0 0.0
        %6279 = vmatprep.subr.mxu0 0.0
        %6280 = vmatpush2.msra.mxu0 0.0
        %6281 = vmatprep.subr.mxu0 0.0
        %6282 = vmatpush2.msra.mxu0 0.0
        %6283 = vmatprep.subr.mxu0 0.0
        %6284 = vmatpush2.msra.mxu0 0.0
        %6285 = vmatprep.subr.mxu0 0.0
        %6286 = vmatpush2.msra.mxu0 0.0
        %6287 = vmatprep.subr.mxu0 0.0
        %6288 = vmatpush2.msra.mxu0 0.0
        %6289 = vmatprep.subr.mxu0 0.0
        %6290 = vmatpush2.msra.mxu0 0.0
        %6291 = vmatprep.subr.mxu0 0.0
        %6292 = vmatpush2.msra.mxu0 0.0
        %6293 = vmatprep.subr.mxu0 0.0
        %6294 = vmatpush2.msra.mxu0 0.0
        %6295 = vmatprep.subr.mxu0 0.0
        %6296 = vmatpush2.msra.mxu0 0.0
        %6297 = vmatprep.subr.mxu0 0.0
        %6298 = vmatpush2.msra.mxu0 0.0
        %6299 = vmatprep.subr.mxu0 0.0
        %6300 = vmatpush2.msra.mxu0 0.0
        %6301 = vmatprep.subr.mxu0 0.0
        %6302 = vmatpush2.msra.mxu0 0.0
        %6303 = vmatprep.mubr.f32.mxu0 0.0
        %6304 = vmatmul.mubr.f32.gmra.mxu0 %v430
        %v6305 = vpop.f32.mrf.mxu0
        %v6306 = vadd.f32 %v6028, %v6305
        %v6307 = vpop.f32.mrf.mxu0
        %6308 = vdwg.mxu0
        %6309 = vmatprep.subr.mxu0 0.0
        %6310 = vmatpush1.msra.mxu0 0.0
        %6311 = vmatprep.subr.mxu0 0.0
        %6312 = vmatpush1.msra.mxu0 0.0
        %6313 = vmatprep.subr.mxu0 0.0
        %6314 = vmatpush1.msra.mxu0 0.0
        %6315 = vmatprep.subr.mxu0 0.0
        %6316 = vmatpush1.msra.mxu0 0.0
        %6317 = vmatprep.subr.mxu0 0.0
        %6318 = vmatpush1.msra.mxu0 0.0
        %6319 = vmatprep.subr.mxu0 0.0
        %6320 = vmatpush1.msra.mxu0 0.0
        %6321 = vmatprep.subr.mxu0 0.0
        %6322 = vmatpush1.msra.mxu0 0.0
        %6323 = vmatprep.subr.mxu0 0.0
        %6324 = vmatpush1.msra.mxu0 0.0
        %6325 = vmatprep.subr.mxu0 0.0
        %6326 = vmatpush1.msra.mxu0 0.0
        %6327 = vmatprep.subr.mxu0 0.0
        %6328 = vmatpush1.msra.mxu0 0.0
        %6329 = vmatprep.subr.mxu0 0.0
        %6330 = vmatpush1.msra.mxu0 0.0
        %6331 = vmatprep.subr.mxu0 0.0
        %6332 = vmatpush1.msra.mxu0 0.0
        %6333 = vmatprep.subr.mxu0 0.0
        %6334 = vmatpush1.msra.mxu0 0.0
        %6335 = vmatprep.subr.mxu0 0.0
        %6336 = vmatpush1.msra.mxu0 0.0
        %6337 = vmatprep.subr.mxu0 0.0
        %6338 = vmatpush1.msra.mxu0 0.0
        %6339 = vmatprep.subr.mxu0 0.0
        %6340 = vmatpush1.msra.mxu0 %v5966
        %6341 = vmatprep.subr.mxu0 0.0
        %6342 = vmatpush2.msra.mxu0 0.0
        %6343 = vmatprep.subr.mxu0 0.0
        %6344 = vmatpush2.msra.mxu0 0.0
        %6345 = vmatprep.subr.mxu0 0.0
        %6346 = vmatpush2.msra.mxu0 0.0
        %6347 = vmatprep.subr.mxu0 0.0
        %6348 = vmatpush2.msra.mxu0 0.0
        %6349 = vmatprep.subr.mxu0 0.0
        %6350 = vmatpush2.msra.mxu0 0.0
        %6351 = vmatprep.subr.mxu0 0.0
        %6352 = vmatpush2.msra.mxu0 0.0
        %6353 = vmatprep.subr.mxu0 0.0
        %6354 = vmatpush2.msra.mxu0 0.0
        %6355 = vmatprep.subr.mxu0 0.0
        %6356 = vmatpush2.msra.mxu0 0.0
        %6357 = vmatprep.subr.mxu0 0.0
        %6358 = vmatpush2.msra.mxu0 0.0
        %6359 = vmatprep.subr.mxu0 0.0
        %6360 = vmatpush2.msra.mxu0 0.0
        %6361 = vmatprep.subr.mxu0 0.0
        %6362 = vmatpush2.msra.mxu0 0.0
        %6363 = vmatprep.subr.mxu0 0.0
        %6364 = vmatpush2.msra.mxu0 0.0
        %6365 = vmatprep.subr.mxu0 0.0
        %6366 = vmatpush2.msra.mxu0 0.0
        %6367 = vmatprep.subr.mxu0 0.0
        %6368 = vmatpush2.msra.mxu0 0.0
        %6369 = vmatprep.subr.mxu0 0.0
        %6370 = vmatpush2.msra.mxu0 0.0
        %6371 = vmatprep.subr.mxu0 0.0
        %6372 = vmatpush2.msra.mxu0 0.0
        %6373 = vmatprep.mubr.f32.mxu0 0.0
        %6374 = vmatmul.mubr.f32.gmra.mxu0 %v506
        %v6375 = vpop.f32.mrf.mxu0
        %v6376 = vadd.f32 %v6028, %v6375
        %v6377 = vpop.f32.mrf.mxu0
        %6378 = vdwg.mxu0
        %6379 = vmatprep.subr.mxu0 0.0
        %6380 = vmatpush1.msra.mxu0 0.0
        %6381 = vmatprep.subr.mxu0 0.0
        %6382 = vmatpush1.msra.mxu0 0.0
        %6383 = vmatprep.subr.mxu0 0.0
        %6384 = vmatpush1.msra.mxu0 0.0
        %6385 = vmatprep.subr.mxu0 0.0
        %6386 = vmatpush1.msra.mxu0 0.0
        %6387 = vmatprep.subr.mxu0 0.0
        %6388 = vmatpush1.msra.mxu0 0.0
        %6389 = vmatprep.subr.mxu0 0.0
        %6390 = vmatpush1.msra.mxu0 0.0
        %6391 = vmatprep.subr.mxu0 0.0
        %6392 = vmatpush1.msra.mxu0 0.0
        %6393 = vmatprep.subr.mxu0 0.0
        %6394 = vmatpush1.msra.mxu0 0.0
        %6395 = vmatprep.subr.mxu0 0.0
        %6396 = vmatpush1.msra.mxu0 0.0
        %6397 = vmatprep.subr.mxu0 0.0
        %6398 = vmatpush1.msra.mxu0 0.0
        %6399 = vmatprep.subr.mxu0 0.0
        %6400 = vmatpush1.msra.mxu0 0.0
        %6401 = vmatprep.subr.mxu0 0.0
        %6402 = vmatpush1.msra.mxu0 0.0
        %6403 = vmatprep.subr.mxu0 0.0
        %6404 = vmatpush1.msra.mxu0 0.0
        %6405 = vmatprep.subr.mxu0 0.0
        %6406 = vmatpush1.msra.mxu0 0.0
        %6407 = vmatprep.subr.mxu0 0.0
        %6408 = vmatpush1.msra.mxu0 0.0
        %6409 = vmatprep.subr.mxu0 0.0
        %6410 = vmatpush1.msra.mxu0 %v5971
        %6411 = vmatprep.subr.mxu0 0.0
        %6412 = vmatpush2.msra.mxu0 0.0
        %6413 = vmatprep.subr.mxu0 0.0
        %6414 = vmatpush2.msra.mxu0 0.0
        %6415 = vmatprep.subr.mxu0 0.0
        %6416 = vmatpush2.msra.mxu0 0.0
        %6417 = vmatprep.subr.mxu0 0.0
        %6418 = vmatpush2.msra.mxu0 0.0
        %6419 = vmatprep.subr.mxu0 0.0
        %6420 = vmatpush2.msra.mxu0 0.0
        %6421 = vmatprep.subr.mxu0 0.0
        %6422 = vmatpush2.msra.mxu0 0.0
        %6423 = vmatprep.subr.mxu0 0.0
        %6424 = vmatpush2.msra.mxu0 0.0
        %6425 = vmatprep.subr.mxu0 0.0
        %6426 = vmatpush2.msra.mxu0 0.0
        %6427 = vmatprep.subr.mxu0 0.0
        %6428 = vmatpush2.msra.mxu0 0.0
        %6429 = vmatprep.subr.mxu0 0.0
        %6430 = vmatpush2.msra.mxu0 0.0
        %6431 = vmatprep.subr.mxu0 0.0
        %6432 = vmatpush2.msra.mxu0 0.0
        %6433 = vmatprep.subr.mxu0 0.0
        %6434 = vmatpush2.msra.mxu0 0.0
        %6435 = vmatprep.subr.mxu0 0.0
        %6436 = vmatpush2.msra.mxu0 0.0
        %6437 = vmatprep.subr.mxu0 0.0
        %6438 = vmatpush2.msra.mxu0 0.0
        %6439 = vmatprep.subr.mxu0 0.0
        %6440 = vmatpush2.msra.mxu0 0.0
        %6441 = vmatprep.subr.mxu0 0.0
        %6442 = vmatpush2.msra.mxu0 0.0
        %6443 = vmatprep.mubr.f32.mxu0 0.0
        %6444 = vmatmul.mubr.f32.gmra.mxu0 %v582
        %v6445 = vpop.f32.mrf.mxu0
        %v6446 = vadd.f32 %v6028, %v6445
        %v6447 = vpop.f32.mrf.mxu0
        %6448 = vdwg.mxu0
        %6449 = vmatprep.subr.mxu0 0.0
        %6450 = vmatpush1.msra.mxu0 0.0
        %6451 = vmatprep.subr.mxu0 0.0
        %6452 = vmatpush1.msra.mxu0 0.0
        %6453 = vmatprep.subr.mxu0 0.0
        %6454 = vmatpush1.msra.mxu0 0.0
        %6455 = vmatprep.subr.mxu0 0.0
        %6456 = vmatpush1.msra.mxu0 0.0
        %6457 = vmatprep.subr.mxu0 0.0
        %6458 = vmatpush1.msra.mxu0 0.0
        %6459 = vmatprep.subr.mxu0 0.0
        %6460 = vmatpush1.msra.mxu0 0.0
        %6461 = vmatprep.subr.mxu0 0.0
        %6462 = vmatpush1.msra.mxu0 0.0
        %6463 = vmatprep.subr.mxu0 0.0
        %6464 = vmatpush1.msra.mxu0 0.0
        %6465 = vmatprep.subr.mxu0 0.0
        %6466 = vmatpush1.msra.mxu0 0.0
        %6467 = vmatprep.subr.mxu0 0.0
        %6468 = vmatpush1.msra.mxu0 0.0
        %6469 = vmatprep.subr.mxu0 0.0
        %6470 = vmatpush1.msra.mxu0 0.0
        %6471 = vmatprep.subr.mxu0 0.0
        %6472 = vmatpush1.msra.mxu0 0.0
        %6473 = vmatprep.subr.mxu0 0.0
        %6474 = vmatpush1.msra.mxu0 0.0
        %6475 = vmatprep.subr.mxu0 0.0
        %6476 = vmatpush1.msra.mxu0 0.0
        %6477 = vmatprep.subr.mxu0 0.0
        %6478 = vmatpush1.msra.mxu0 0.0
        %6479 = vmatprep.subr.mxu0 0.0
        %6480 = vmatpush1.msra.mxu0 %v5976
        %6481 = vmatprep.subr.mxu0 0.0
        %6482 = vmatpush2.msra.mxu0 0.0
        %6483 = vmatprep.subr.mxu0 0.0
        %6484 = vmatpush2.msra.mxu0 0.0
        %6485 = vmatprep.subr.mxu0 0.0
        %6486 = vmatpush2.msra.mxu0 0.0
        %6487 = vmatprep.subr.mxu0 0.0
        %6488 = vmatpush2.msra.mxu0 0.0
        %6489 = vmatprep.subr.mxu0 0.0
        %6490 = vmatpush2.msra.mxu0 0.0
        %6491 = vmatprep.subr.mxu0 0.0
        %6492 = vmatpush2.msra.mxu0 0.0
        %6493 = vmatprep.subr.mxu0 0.0
        %6494 = vmatpush2.msra.mxu0 0.0
        %6495 = vmatprep.subr.mxu0 0.0
        %6496 = vmatpush2.msra.mxu0 0.0
        %6497 = vmatprep.subr.mxu0 0.0
        %6498 = vmatpush2.msra.mxu0 0.0
        %6499 = vmatprep.subr.mxu0 0.0
        %6500 = vmatpush2.msra.mxu0 0.0
        %6501 = vmatprep.subr.mxu0 0.0
        %6502 = vmatpush2.msra.mxu0 0.0
        %6503 = vmatprep.subr.mxu0 0.0
        %6504 = vmatpush2.msra.mxu0 0.0
        %6505 = vmatprep.subr.mxu0 0.0
        %6506 = vmatpush2.msra.mxu0 0.0
        %6507 = vmatprep.subr.mxu0 0.0
        %6508 = vmatpush2.msra.mxu0 0.0
        %6509 = vmatprep.subr.mxu0 0.0
        %6510 = vmatpush2.msra.mxu0 0.0
        %6511 = vmatprep.subr.mxu0 0.0
        %6512 = vmatpush2.msra.mxu0 0.0
        %6513 = vmatprep.mubr.f32.mxu0 0.0
        %6514 = vmatmul.mubr.f32.gmra.mxu0 %v658
        %v6515 = vpop.f32.mrf.mxu0
        %v6516 = vadd.f32 %v6028, %v6515
        %v6517 = vpop.f32.mrf.mxu0
        %6518 = vdwg.mxu0
        %6519 = vmatprep.subr.mxu0 0.0
        %6520 = vmatpush1.msra.mxu0 0.0
        %6521 = vmatprep.subr.mxu0 0.0
        %6522 = vmatpush1.msra.mxu0 0.0
        %6523 = vmatprep.subr.mxu0 0.0
        %6524 = vmatpush1.msra.mxu0 0.0
        %6525 = vmatprep.subr.mxu0 0.0
        %6526 = vmatpush1.msra.mxu0 0.0
        %6527 = vmatprep.subr.mxu0 0.0
        %6528 = vmatpush1.msra.mxu0 0.0
        %6529 = vmatprep.subr.mxu0 0.0
        %6530 = vmatpush1.msra.mxu0 0.0
        %6531 = vmatprep.subr.mxu0 0.0
        %6532 = vmatpush1.msra.mxu0 0.0
        %6533 = vmatprep.subr.mxu0 0.0
        %6534 = vmatpush1.msra.mxu0 0.0
        %6535 = vmatprep.subr.mxu0 0.0
        %6536 = vmatpush1.msra.mxu0 0.0
        %6537 = vmatprep.subr.mxu0 0.0
        %6538 = vmatpush1.msra.mxu0 0.0
        %6539 = vmatprep.subr.mxu0 0.0
        %6540 = vmatpush1.msra.mxu0 0.0
        %6541 = vmatprep.subr.mxu0 0.0
        %6542 = vmatpush1.msra.mxu0 0.0
        %6543 = vmatprep.subr.mxu0 0.0
        %6544 = vmatpush1.msra.mxu0 0.0
        %6545 = vmatprep.subr.mxu0 0.0
        %6546 = vmatpush1.msra.mxu0 0.0
        %6547 = vmatprep.subr.mxu0 0.0
        %6548 = vmatpush1.msra.mxu0 0.0
        %6549 = vmatprep.subr.mxu0 0.0
        %6550 = vmatpush1.msra.mxu0 %v5981
        %6551 = vmatprep.subr.mxu0 0.0
        %6552 = vmatpush2.msra.mxu0 0.0
        %6553 = vmatprep.subr.mxu0 0.0
        %6554 = vmatpush2.msra.mxu0 0.0
        %6555 = vmatprep.subr.mxu0 0.0
        %6556 = vmatpush2.msra.mxu0 0.0
        %6557 = vmatprep.subr.mxu0 0.0
        %6558 = vmatpush2.msra.mxu0 0.0
        %6559 = vmatprep.subr.mxu0 0.0
        %6560 = vmatpush2.msra.mxu0 0.0
        %6561 = vmatprep.subr.mxu0 0.0
        %6562 = vmatpush2.msra.mxu0 0.0
        %6563 = vmatprep.subr.mxu0 0.0
        %6564 = vmatpush2.msra.mxu0 0.0
        %6565 = vmatprep.subr.mxu0 0.0
        %6566 = vmatpush2.msra.mxu0 0.0
        %6567 = vmatprep.subr.mxu0 0.0
        %6568 = vmatpush2.msra.mxu0 0.0
        %6569 = vmatprep.subr.mxu0 0.0
        %6570 = vmatpush2.msra.mxu0 0.0
        %6571 = vmatprep.subr.mxu0 0.0
        %6572 = vmatpush2.msra.mxu0 0.0
        %6573 = vmatprep.subr.mxu0 0.0
        %6574 = vmatpush2.msra.mxu0 0.0
        %6575 = vmatprep.subr.mxu0 0.0
        %6576 = vmatpush2.msra.mxu0 0.0
        %6577 = vmatprep.subr.mxu0 0.0
        %6578 = vmatpush2.msra.mxu0 0.0
        %6579 = vmatprep.subr.mxu0 0.0
        %6580 = vmatpush2.msra.mxu0 0.0
        %6581 = vmatprep.subr.mxu0 0.0
        %6582 = vmatpush2.msra.mxu0 0.0
        %6583 = vmatprep.mubr.f32.mxu0 0.0
        %6584 = vmatmul.mubr.f32.gmra.mxu0 %v734
        %v6585 = vpop.f32.mrf.mxu0
        %v6586 = vadd.f32 %v6028, %v6585
        %v6587 = vpop.f32.mrf.mxu0
        %6588 = vdwg.mxu0
        %6589 = vmatprep.subr.mxu0 0.0
        %6590 = vmatpush1.msra.mxu0 0.0
        %6591 = vmatprep.subr.mxu0 0.0
        %6592 = vmatpush1.msra.mxu0 0.0
        %6593 = vmatprep.subr.mxu0 0.0
        %6594 = vmatpush1.msra.mxu0 0.0
        %6595 = vmatprep.subr.mxu0 0.0
        %6596 = vmatpush1.msra.mxu0 0.0
        %6597 = vmatprep.subr.mxu0 0.0
        %6598 = vmatpush1.msra.mxu0 0.0
        %6599 = vmatprep.subr.mxu0 0.0
        %6600 = vmatpush1.msra.mxu0 0.0
        %6601 = vmatprep.subr.mxu0 0.0
        %6602 = vmatpush1.msra.mxu0 0.0
        %6603 = vmatprep.subr.mxu0 0.0
        %6604 = vmatpush1.msra.mxu0 0.0
        %6605 = vmatprep.subr.mxu0 0.0
        %6606 = vmatpush1.msra.mxu0 0.0
        %6607 = vmatprep.subr.mxu0 0.0
        %6608 = vmatpush1.msra.mxu0 0.0
        %6609 = vmatprep.subr.mxu0 0.0
        %6610 = vmatpush1.msra.mxu0 0.0
        %6611 = vmatprep.subr.mxu0 0.0
        %6612 = vmatpush1.msra.mxu0 0.0
        %6613 = vmatprep.subr.mxu0 0.0
        %6614 = vmatpush1.msra.mxu0 0.0
        %6615 = vmatprep.subr.mxu0 0.0
        %6616 = vmatpush1.msra.mxu0 0.0
        %6617 = vmatprep.subr.mxu0 0.0
        %6618 = vmatpush1.msra.mxu0 0.0
        %6619 = vmatprep.subr.mxu0 0.0
        %6620 = vmatpush1.msra.mxu0 %v5986
        %6621 = vmatprep.subr.mxu0 0.0
        %6622 = vmatpush2.msra.mxu0 0.0
        %6623 = vmatprep.subr.mxu0 0.0
        %6624 = vmatpush2.msra.mxu0 0.0
        %6625 = vmatprep.subr.mxu0 0.0
        %6626 = vmatpush2.msra.mxu0 0.0
        %6627 = vmatprep.subr.mxu0 0.0
        %6628 = vmatpush2.msra.mxu0 0.0
        %6629 = vmatprep.subr.mxu0 0.0
        %6630 = vmatpush2.msra.mxu0 0.0
        %6631 = vmatprep.subr.mxu0 0.0
        %6632 = vmatpush2.msra.mxu0 0.0
        %6633 = vmatprep.subr.mxu0 0.0
        %6634 = vmatpush2.msra.mxu0 0.0
        %6635 = vmatprep.subr.mxu0 0.0
        %6636 = vmatpush2.msra.mxu0 0.0
        %6637 = vmatprep.subr.mxu0 0.0
        %6638 = vmatpush2.msra.mxu0 0.0
        %6639 = vmatprep.subr.mxu0 0.0
        %6640 = vmatpush2.msra.mxu0 0.0
        %6641 = vmatprep.subr.mxu0 0.0
        %6642 = vmatpush2.msra.mxu0 0.0
        %6643 = vmatprep.subr.mxu0 0.0
        %6644 = vmatpush2.msra.mxu0 0.0
        %6645 = vmatprep.subr.mxu0 0.0
        %6646 = vmatpush2.msra.mxu0 0.0
        %6647 = vmatprep.subr.mxu0 0.0
        %6648 = vmatpush2.msra.mxu0 0.0
        %6649 = vmatprep.subr.mxu0 0.0
        %6650 = vmatpush2.msra.mxu0 0.0
        %6651 = vmatprep.subr.mxu0 0.0
        %6652 = vmatpush2.msra.mxu0 0.0
        %6653 = vmatprep.mubr.f32.mxu0 0.0
        %6654 = vmatmul.mubr.f32.gmra.mxu0 %v810
        %v6655 = vpop.f32.mrf.mxu0
        %v6656 = vadd.f32 %v6028, %v6655
        %v6657 = vpop.f32.mrf.mxu0
        %6658 = vdwg.mxu0
        %6659 = vmatprep.subr.mxu0 0.0
        %6660 = vmatpush1.msra.mxu0 0.0
        %6661 = vmatprep.subr.mxu0 0.0
        %6662 = vmatpush1.msra.mxu0 0.0
        %6663 = vmatprep.subr.mxu0 0.0
        %6664 = vmatpush1.msra.mxu0 0.0
        %6665 = vmatprep.subr.mxu0 0.0
        %6666 = vmatpush1.msra.mxu0 0.0
        %6667 = vmatprep.subr.mxu0 0.0
        %6668 = vmatpush1.msra.mxu0 0.0
        %6669 = vmatprep.subr.mxu0 0.0
        %6670 = vmatpush1.msra.mxu0 0.0
        %6671 = vmatprep.subr.mxu0 0.0
        %6672 = vmatpush1.msra.mxu0 0.0
        %6673 = vmatprep.subr.mxu0 0.0
        %6674 = vmatpush1.msra.mxu0 0.0
        %6675 = vmatprep.subr.mxu0 0.0
        %6676 = vmatpush1.msra.mxu0 0.0
        %6677 = vmatprep.subr.mxu0 0.0
        %6678 = vmatpush1.msra.mxu0 0.0
        %6679 = vmatprep.subr.mxu0 0.0
        %6680 = vmatpush1.msra.mxu0 0.0
        %6681 = vmatprep.subr.mxu0 0.0
        %6682 = vmatpush1.msra.mxu0 0.0
        %6683 = vmatprep.subr.mxu0 0.0
        %6684 = vmatpush1.msra.mxu0 0.0
        %6685 = vmatprep.subr.mxu0 0.0
        %6686 = vmatpush1.msra.mxu0 0.0
        %6687 = vmatprep.subr.mxu0 0.0
        %6688 = vmatpush1.msra.mxu0 0.0
        %6689 = vmatprep.subr.mxu0 0.0
        %6690 = vmatpush1.msra.mxu0 %v5991
        %6691 = vmatprep.subr.mxu0 0.0
        %6692 = vmatpush2.msra.mxu0 0.0
        %6693 = vmatprep.subr.mxu0 0.0
        %6694 = vmatpush2.msra.mxu0 0.0
        %6695 = vmatprep.subr.mxu0 0.0
        %6696 = vmatpush2.msra.mxu0 0.0
        %6697 = vmatprep.subr.mxu0 0.0
        %6698 = vmatpush2.msra.mxu0 0.0
        %6699 = vmatprep.subr.mxu0 0.0
        %6700 = vmatpush2.msra.mxu0 0.0
        %6701 = vmatprep.subr.mxu0 0.0
        %6702 = vmatpush2.msra.mxu0 0.0
        %6703 = vmatprep.subr.mxu0 0.0
        %6704 = vmatpush2.msra.mxu0 0.0
        %6705 = vmatprep.subr.mxu0 0.0
        %6706 = vmatpush2.msra.mxu0 0.0
        %6707 = vmatprep.subr.mxu0 0.0
        %6708 = vmatpush2.msra.mxu0 0.0
        %6709 = vmatprep.subr.mxu0 0.0
        %6710 = vmatpush2.msra.mxu0 0.0
        %6711 = vmatprep.subr.mxu0 0.0
        %6712 = vmatpush2.msra.mxu0 0.0
        %6713 = vmatprep.subr.mxu0 0.0
        %6714 = vmatpush2.msra.mxu0 0.0
        %6715 = vmatprep.subr.mxu0 0.0
        %6716 = vmatpush2.msra.mxu0 0.0
        %6717 = vmatprep.subr.mxu0 0.0
        %6718 = vmatpush2.msra.mxu0 0.0
        %6719 = vmatprep.subr.mxu0 0.0
        %6720 = vmatpush2.msra.mxu0 0.0
        %6721 = vmatprep.subr.mxu0 0.0
        %6722 = vmatpush2.msra.mxu0 0.0
        %6723 = vmatprep.mubr.f32.mxu0 0.0
        %6724 = vmatmul.mubr.f32.gmra.mxu0 %v886
        %v6725 = vpop.f32.mrf.mxu0
        %v6726 = vadd.f32 %v6028, %v6725
        %v6727 = vpop.f32.mrf.mxu0
        %6728 = vdwg.mxu0
        %6729 = vmatprep.subr.mxu0 0.0
        %6730 = vmatpush1.msra.mxu0 0.0
        %6731 = vmatprep.subr.mxu0 0.0
        %6732 = vmatpush1.msra.mxu0 0.0
        %6733 = vmatprep.subr.mxu0 0.0
        %6734 = vmatpush1.msra.mxu0 0.0
        %6735 = vmatprep.subr.mxu0 0.0
        %6736 = vmatpush1.msra.mxu0 0.0
        %6737 = vmatprep.subr.mxu0 0.0
        %6738 = vmatpush1.msra.mxu0 0.0
        %6739 = vmatprep.subr.mxu0 0.0
        %6740 = vmatpush1.msra.mxu0 0.0
        %6741 = vmatprep.subr.mxu0 0.0
        %6742 = vmatpush1.msra.mxu0 0.0
        %6743 = vmatprep.subr.mxu0 0.0
        %6744 = vmatpush1.msra.mxu0 0.0
        %6745 = vmatprep.subr.mxu0 0.0
        %6746 = vmatpush1.msra.mxu0 0.0
        %6747 = vmatprep.subr.mxu0 0.0
        %6748 = vmatpush1.msra.mxu0 0.0
        %6749 = vmatprep.subr.mxu0 0.0
        %6750 = vmatpush1.msra.mxu0 0.0
        %6751 = vmatprep.subr.mxu0 0.0
        %6752 = vmatpush1.msra.mxu0 0.0
        %6753 = vmatprep.subr.mxu0 0.0
        %6754 = vmatpush1.msra.mxu0 0.0
        %6755 = vmatprep.subr.mxu0 0.0
        %6756 = vmatpush1.msra.mxu0 0.0
        %6757 = vmatprep.subr.mxu0 0.0
        %6758 = vmatpush1.msra.mxu0 0.0
        %6759 = vmatprep.subr.mxu0 0.0
        %6760 = vmatpush1.msra.mxu0 %v5996
        %6761 = vmatprep.subr.mxu0 0.0
        %6762 = vmatpush2.msra.mxu0 0.0
        %6763 = vmatprep.subr.mxu0 0.0
        %6764 = vmatpush2.msra.mxu0 0.0
        %6765 = vmatprep.subr.mxu0 0.0
        %6766 = vmatpush2.msra.mxu0 0.0
        %6767 = vmatprep.subr.mxu0 0.0
        %6768 = vmatpush2.msra.mxu0 0.0
        %6769 = vmatprep.subr.mxu0 0.0
        %6770 = vmatpush2.msra.mxu0 0.0
        %6771 = vmatprep.subr.mxu0 0.0
        %6772 = vmatpush2.msra.mxu0 0.0
        %6773 = vmatprep.subr.mxu0 0.0
        %6774 = vmatpush2.msra.mxu0 0.0
        %6775 = vmatprep.subr.mxu0 0.0
        %6776 = vmatpush2.msra.mxu0 0.0
        %6777 = vmatprep.subr.mxu0 0.0
        %6778 = vmatpush2.msra.mxu0 0.0
        %6779 = vmatprep.subr.mxu0 0.0
        %6780 = vmatpush2.msra.mxu0 0.0
        %6781 = vmatprep.subr.mxu0 0.0
        %6782 = vmatpush2.msra.mxu0 0.0
        %6783 = vmatprep.subr.mxu0 0.0
        %6784 = vmatpush2.msra.mxu0 0.0
        %6785 = vmatprep.subr.mxu0 0.0
        %6786 = vmatpush2.msra.mxu0 0.0
        %6787 = vmatprep.subr.mxu0 0.0
        %6788 = vmatpush2.msra.mxu0 0.0
        %6789 = vmatprep.subr.mxu0 0.0
        %6790 = vmatpush2.msra.mxu0 0.0
        %6791 = vmatprep.subr.mxu0 0.0
        %6792 = vmatpush2.msra.mxu0 0.0
        %6793 = vmatprep.mubr.f32.mxu0 0.0
        %6794 = vmatmul.mubr.f32.gmra.mxu0 %v962
        %v6795 = vpop.f32.mrf.mxu0
        %v6796 = vadd.f32 %v6028, %v6795
        %v6797 = vpop.f32.mrf.mxu0
        %6798 = vdwg.mxu0
        %6799 = vmatprep.subr.mxu0 0.0
        %6800 = vmatpush1.msra.mxu0 0.0
        %6801 = vmatprep.subr.mxu0 0.0
        %6802 = vmatpush1.msra.mxu0 0.0
        %6803 = vmatprep.subr.mxu0 0.0
        %6804 = vmatpush1.msra.mxu0 0.0
        %6805 = vmatprep.subr.mxu0 0.0
        %6806 = vmatpush1.msra.mxu0 0.0
        %6807 = vmatprep.subr.mxu0 0.0
        %6808 = vmatpush1.msra.mxu0 0.0
        %6809 = vmatprep.subr.mxu0 0.0
        %6810 = vmatpush1.msra.mxu0 0.0
        %6811 = vmatprep.subr.mxu0 0.0
        %6812 = vmatpush1.msra.mxu0 0.0
        %6813 = vmatprep.subr.mxu0 0.0
        %6814 = vmatpush1.msra.mxu0 0.0
        %6815 = vmatprep.subr.mxu0 0.0
        %6816 = vmatpush1.msra.mxu0 0.0
        %6817 = vmatprep.subr.mxu0 0.0
        %6818 = vmatpush1.msra.mxu0 0.0
        %6819 = vmatprep.subr.mxu0 0.0
        %6820 = vmatpush1.msra.mxu0 0.0
        %6821 = vmatprep.subr.mxu0 0.0
        %6822 = vmatpush1.msra.mxu0 0.0
        %6823 = vmatprep.subr.mxu0 0.0
        %6824 = vmatpush1.msra.mxu0 0.0
        %6825 = vmatprep.subr.mxu0 0.0
        %6826 = vmatpush1.msra.mxu0 0.0
        %6827 = vmatprep.subr.mxu0 0.0
        %6828 = vmatpush1.msra.mxu0 0.0
        %6829 = vmatprep.subr.mxu0 0.0
        %6830 = vmatpush1.msra.mxu0 %v6001
        %6831 = vmatprep.subr.mxu0 0.0
        %6832 = vmatpush2.msra.mxu0 0.0
        %6833 = vmatprep.subr.mxu0 0.0
        %6834 = vmatpush2.msra.mxu0 0.0
        %6835 = vmatprep.subr.mxu0 0.0
        %6836 = vmatpush2.msra.mxu0 0.0
        %6837 = vmatprep.subr.mxu0 0.0
        %6838 = vmatpush2.msra.mxu0 0.0
        %6839 = vmatprep.subr.mxu0 0.0
        %6840 = vmatpush2.msra.mxu0 0.0
        %6841 = vmatprep.subr.mxu0 0.0
        %6842 = vmatpush2.msra.mxu0 0.0
        %6843 = vmatprep.subr.mxu0 0.0
        %6844 = vmatpush2.msra.mxu0 0.0
        %6845 = vmatprep.subr.mxu0 0.0
        %6846 = vmatpush2.msra.mxu0 0.0
        %6847 = vmatprep.subr.mxu0 0.0
        %6848 = vmatpush2.msra.mxu0 0.0
        %6849 = vmatprep.subr.mxu0 0.0
        %6850 = vmatpush2.msra.mxu0 0.0
        %6851 = vmatprep.subr.mxu0 0.0
        %6852 = vmatpush2.msra.mxu0 0.0
        %6853 = vmatprep.subr.mxu0 0.0
        %6854 = vmatpush2.msra.mxu0 0.0
        %6855 = vmatprep.subr.mxu0 0.0
        %6856 = vmatpush2.msra.mxu0 0.0
        %6857 = vmatprep.subr.mxu0 0.0
        %6858 = vmatpush2.msra.mxu0 0.0
        %6859 = vmatprep.subr.mxu0 0.0
        %6860 = vmatpush2.msra.mxu0 0.0
        %6861 = vmatprep.subr.mxu0 0.0
        %6862 = vmatpush2.msra.mxu0 0.0
        %6863 = vmatprep.mubr.f32.mxu0 0.0
        %6864 = vmatmul.mubr.f32.gmra.mxu0 %v1038
        %v6865 = vpop.f32.mrf.mxu0
        %v6866 = vadd.f32 %v6028, %v6865
        %v6867 = vpop.f32.mrf.mxu0
        %6868 = vdwg.mxu0
        %6869 = vmatprep.subr.mxu0 0.0
        %6870 = vmatpush1.msra.mxu0 0.0
        %6871 = vmatprep.subr.mxu0 0.0
        %6872 = vmatpush1.msra.mxu0 0.0
        %6873 = vmatprep.subr.mxu0 0.0
        %6874 = vmatpush1.msra.mxu0 0.0
        %6875 = vmatprep.subr.mxu0 0.0
        %6876 = vmatpush1.msra.mxu0 0.0
        %6877 = vmatprep.subr.mxu0 0.0
        %6878 = vmatpush1.msra.mxu0 0.0
        %6879 = vmatprep.subr.mxu0 0.0
        %6880 = vmatpush1.msra.mxu0 0.0
        %6881 = vmatprep.subr.mxu0 0.0
        %6882 = vmatpush1.msra.mxu0 0.0
        %6883 = vmatprep.subr.mxu0 0.0
        %6884 = vmatpush1.msra.mxu0 0.0
        %6885 = vmatprep.subr.mxu0 0.0
        %6886 = vmatpush1.msra.mxu0 0.0
        %6887 = vmatprep.subr.mxu0 0.0
        %6888 = vmatpush1.msra.mxu0 0.0
        %6889 = vmatprep.subr.mxu0 0.0
        %6890 = vmatpush1.msra.mxu0 0.0
        %6891 = vmatprep.subr.mxu0 0.0
        %6892 = vmatpush1.msra.mxu0 0.0
        %6893 = vmatprep.subr.mxu0 0.0
        %6894 = vmatpush1.msra.mxu0 0.0
        %6895 = vmatprep.subr.mxu0 0.0
        %6896 = vmatpush1.msra.mxu0 0.0
        %6897 = vmatprep.subr.mxu0 0.0
        %6898 = vmatpush1.msra.mxu0 0.0
        %6899 = vmatprep.subr.mxu0 0.0
        %6900 = vmatpush1.msra.mxu0 %v6006
        %6901 = vmatprep.subr.mxu0 0.0
        %6902 = vmatpush2.msra.mxu0 0.0
        %6903 = vmatprep.subr.mxu0 0.0
        %6904 = vmatpush2.msra.mxu0 0.0
        %6905 = vmatprep.subr.mxu0 0.0
        %6906 = vmatpush2.msra.mxu0 0.0
        %6907 = vmatprep.subr.mxu0 0.0
        %6908 = vmatpush2.msra.mxu0 0.0
        %6909 = vmatprep.subr.mxu0 0.0
        %6910 = vmatpush2.msra.mxu0 0.0
        %6911 = vmatprep.subr.mxu0 0.0
        %6912 = vmatpush2.msra.mxu0 0.0
        %6913 = vmatprep.subr.mxu0 0.0
        %6914 = vmatpush2.msra.mxu0 0.0
        %6915 = vmatprep.subr.mxu0 0.0
        %6916 = vmatpush2.msra.mxu0 0.0
        %6917 = vmatprep.subr.mxu0 0.0
        %6918 = vmatpush2.msra.mxu0 0.0
        %6919 = vmatprep.subr.mxu0 0.0
        %6920 = vmatpush2.msra.mxu0 0.0
        %6921 = vmatprep.subr.mxu0 0.0
        %6922 = vmatpush2.msra.mxu0 0.0
        %6923 = vmatprep.subr.mxu0 0.0
        %6924 = vmatpush2.msra.mxu0 0.0
        %6925 = vmatprep.subr.mxu0 0.0
        %6926 = vmatpush2.msra.mxu0 0.0
        %6927 = vmatprep.subr.mxu0 0.0
        %6928 = vmatpush2.msra.mxu0 0.0
        %6929 = vmatprep.subr.mxu0 0.0
        %6930 = vmatpush2.msra.mxu0 0.0
        %6931 = vmatprep.subr.mxu0 0.0
        %6932 = vmatpush2.msra.mxu0 0.0
        %6933 = vmatprep.mubr.f32.mxu0 0.0
        %6934 = vmatmul.mubr.f32.gmra.mxu0 %v1114
        %v6935 = vpop.f32.mrf.mxu0
        %v6936 = vadd.f32 %v6028, %v6935
        %v6937 = vpop.f32.mrf.mxu0
        %6938 = vdwg.mxu0
        %6939 = vmatprep.subr.mxu0 0.0
        %6940 = vmatpush1.msra.mxu0 0.0
        %6941 = vmatprep.subr.mxu0 0.0
        %6942 = vmatpush1.msra.mxu0 0.0
        %6943 = vmatprep.subr.mxu0 0.0
        %6944 = vmatpush1.msra.mxu0 0.0
        %6945 = vmatprep.subr.mxu0 0.0
        %6946 = vmatpush1.msra.mxu0 0.0
        %6947 = vmatprep.subr.mxu0 0.0
        %6948 = vmatpush1.msra.mxu0 0.0
        %6949 = vmatprep.subr.mxu0 0.0
        %6950 = vmatpush1.msra.mxu0 0.0
        %6951 = vmatprep.subr.mxu0 0.0
        %6952 = vmatpush1.msra.mxu0 0.0
        %6953 = vmatprep.subr.mxu0 0.0
        %6954 = vmatpush1.msra.mxu0 0.0
        %6955 = vmatprep.subr.mxu0 0.0
        %6956 = vmatpush1.msra.mxu0 0.0
        %6957 = vmatprep.subr.mxu0 0.0
        %6958 = vmatpush1.msra.mxu0 0.0
        %6959 = vmatprep.subr.mxu0 0.0
        %6960 = vmatpush1.msra.mxu0 0.0
        %6961 = vmatprep.subr.mxu0 0.0
        %6962 = vmatpush1.msra.mxu0 0.0
        %6963 = vmatprep.subr.mxu0 0.0
        %6964 = vmatpush1.msra.mxu0 0.0
        %6965 = vmatprep.subr.mxu0 0.0
        %6966 = vmatpush1.msra.mxu0 0.0
        %6967 = vmatprep.subr.mxu0 0.0
        %6968 = vmatpush1.msra.mxu0 0.0
        %6969 = vmatprep.subr.mxu0 0.0
        %6970 = vmatpush1.msra.mxu0 %v6011
        %6971 = vmatprep.subr.mxu0 0.0
        %6972 = vmatpush2.msra.mxu0 0.0
        %6973 = vmatprep.subr.mxu0 0.0
        %6974 = vmatpush2.msra.mxu0 0.0
        %6975 = vmatprep.subr.mxu0 0.0
        %6976 = vmatpush2.msra.mxu0 0.0
        %6977 = vmatprep.subr.mxu0 0.0
        %6978 = vmatpush2.msra.mxu0 0.0
        %6979 = vmatprep.subr.mxu0 0.0
        %6980 = vmatpush2.msra.mxu0 0.0
        %6981 = vmatprep.subr.mxu0 0.0
        %6982 = vmatpush2.msra.mxu0 0.0
        %6983 = vmatprep.subr.mxu0 0.0
        %6984 = vmatpush2.msra.mxu0 0.0
        %6985 = vmatprep.subr.mxu0 0.0
        %6986 = vmatpush2.msra.mxu0 0.0
        %6987 = vmatprep.subr.mxu0 0.0
        %6988 = vmatpush2.msra.mxu0 0.0
        %6989 = vmatprep.subr.mxu0 0.0
        %6990 = vmatpush2.msra.mxu0 0.0
        %6991 = vmatprep.subr.mxu0 0.0
        %6992 = vmatpush2.msra.mxu0 0.0
        %6993 = vmatprep.subr.mxu0 0.0
        %6994 = vmatpush2.msra.mxu0 0.0
        %6995 = vmatprep.subr.mxu0 0.0
        %6996 = vmatpush2.msra.mxu0 0.0
        %6997 = vmatprep.subr.mxu0 0.0
        %6998 = vmatpush2.msra.mxu0 0.0
        %6999 = vmatprep.subr.mxu0 0.0
        %7000 = vmatpush2.msra.mxu0 0.0
        %7001 = vmatprep.subr.mxu0 0.0
        %7002 = vmatpush2.msra.mxu0 0.0
        %7003 = vmatprep.mubr.f32.mxu0 0.0
        %7004 = vmatmul.mubr.f32.gmra.mxu0 %v1190
        %v7005 = vpop.f32.mrf.mxu0
        %v7006 = vadd.f32 %v6028, %v7005
        %v7007 = vpop.f32.mrf.mxu0
        %7008 = vdwg.mxu0
        %7009 = vmatprep.subr.mxu0 0.0
        %7010 = vmatpush1.msra.mxu0 0.0
        %7011 = vmatprep.subr.mxu0 0.0
        %7012 = vmatpush1.msra.mxu0 0.0
        %7013 = vmatprep.subr.mxu0 0.0
        %7014 = vmatpush1.msra.mxu0 0.0
        %7015 = vmatprep.subr.mxu0 0.0
        %7016 = vmatpush1.msra.mxu0 0.0
        %7017 = vmatprep.subr.mxu0 0.0
        %7018 = vmatpush1.msra.mxu0 0.0
        %7019 = vmatprep.subr.mxu0 0.0
        %7020 = vmatpush1.msra.mxu0 0.0
        %7021 = vmatprep.subr.mxu0 0.0
        %7022 = vmatpush1.msra.mxu0 0.0
        %7023 = vmatprep.subr.mxu0 0.0
        %7024 = vmatpush1.msra.mxu0 0.0
        %7025 = vmatprep.subr.mxu0 0.0
        %7026 = vmatpush1.msra.mxu0 0.0
        %7027 = vmatprep.subr.mxu0 0.0
        %7028 = vmatpush1.msra.mxu0 0.0
        %7029 = vmatprep.subr.mxu0 0.0
        %7030 = vmatpush1.msra.mxu0 0.0
        %7031 = vmatprep.subr.mxu0 0.0
        %7032 = vmatpush1.msra.mxu0 0.0
        %7033 = vmatprep.subr.mxu0 0.0
        %7034 = vmatpush1.msra.mxu0 0.0
        %7035 = vmatprep.subr.mxu0 0.0
        %7036 = vmatpush1.msra.mxu0 0.0
        %7037 = vmatprep.subr.mxu0 0.0
        %7038 = vmatpush1.msra.mxu0 0.0
        %7039 = vmatprep.subr.mxu0 0.0
        %7040 = vmatpush1.msra.mxu0 %v6016
        %7041 = vmatprep.subr.mxu0 0.0
        %7042 = vmatpush2.msra.mxu0 0.0
        %7043 = vmatprep.subr.mxu0 0.0
        %7044 = vmatpush2.msra.mxu0 0.0
        %7045 = vmatprep.subr.mxu0 0.0
        %7046 = vmatpush2.msra.mxu0 0.0
        %7047 = vmatprep.subr.mxu0 0.0
        %7048 = vmatpush2.msra.mxu0 0.0
        %7049 = vmatprep.subr.mxu0 0.0
        %7050 = vmatpush2.msra.mxu0 0.0
        %7051 = vmatprep.subr.mxu0 0.0
        %7052 = vmatpush2.msra.mxu0 0.0
        %7053 = vmatprep.subr.mxu0 0.0
        %7054 = vmatpush2.msra.mxu0 0.0
        %7055 = vmatprep.subr.mxu0 0.0
        %7056 = vmatpush2.msra.mxu0 0.0
        %7057 = vmatprep.subr.mxu0 0.0
        %7058 = vmatpush2.msra.mxu0 0.0
        %7059 = vmatprep.subr.mxu0 0.0
        %7060 = vmatpush2.msra.mxu0 0.0
        %7061 = vmatprep.subr.mxu0 0.0
        %7062 = vmatpush2.msra.mxu0 0.0
        %7063 = vmatprep.subr.mxu0 0.0
        %7064 = vmatpush2.msra.mxu0 0.0
        %7065 = vmatprep.subr.mxu0 0.0
        %7066 = vmatpush2.msra.mxu0 0.0
        %7067 = vmatprep.subr.mxu0 0.0
        %7068 = vmatpush2.msra.mxu0 0.0
        %7069 = vmatprep.subr.mxu0 0.0
        %7070 = vmatpush2.msra.mxu0 0.0
        %7071 = vmatprep.subr.mxu0 0.0
        %7072 = vmatpush2.msra.mxu0 0.0
        %7073 = vmatprep.mubr.f32.mxu0 0.0
        %7074 = vmatmul.mubr.f32.gmra.mxu0 %v1266
        %v7075 = vpop.f32.mrf.mxu0
        %v7076 = vadd.f32 %v6028, %v7075
        %v7077 = vpop.f32.mrf.mxu0
        %7078 = vdwg.mxu0
        %7079 = vmatprep.subr.mxu0 0.0
        %7080 = vmatpush1.msra.mxu0 0.0
        %7081 = vmatprep.subr.mxu0 0.0
        %7082 = vmatpush1.msra.mxu0 0.0
        %7083 = vmatprep.subr.mxu0 0.0
        %7084 = vmatpush1.msra.mxu0 0.0
        %7085 = vmatprep.subr.mxu0 0.0
        %7086 = vmatpush1.msra.mxu0 0.0
        %7087 = vmatprep.subr.mxu0 0.0
        %7088 = vmatpush1.msra.mxu0 0.0
        %7089 = vmatprep.subr.mxu0 0.0
        %7090 = vmatpush1.msra.mxu0 0.0
        %7091 = vmatprep.subr.mxu0 0.0
        %7092 = vmatpush1.msra.mxu0 0.0
        %7093 = vmatprep.subr.mxu0 0.0
        %7094 = vmatpush1.msra.mxu0 0.0
        %7095 = vmatprep.subr.mxu0 0.0
        %7096 = vmatpush1.msra.mxu0 0.0
        %7097 = vmatprep.subr.mxu0 0.0
        %7098 = vmatpush1.msra.mxu0 0.0
        %7099 = vmatprep.subr.mxu0 0.0
        %7100 = vmatpush1.msra.mxu0 0.0
        %7101 = vmatprep.subr.mxu0 0.0
        %7102 = vmatpush1.msra.mxu0 0.0
        %7103 = vmatprep.subr.mxu0 0.0
        %7104 = vmatpush1.msra.mxu0 0.0
        %7105 = vmatprep.subr.mxu0 0.0
        %7106 = vmatpush1.msra.mxu0 0.0
        %7107 = vmatprep.subr.mxu0 0.0
        %7108 = vmatpush1.msra.mxu0 0.0
        %7109 = vmatprep.subr.mxu0 0.0
        %7110 = vmatpush1.msra.mxu0 %v6021
        %7111 = vmatprep.subr.mxu0 0.0
        %7112 = vmatpush2.msra.mxu0 0.0
        %7113 = vmatprep.subr.mxu0 0.0
        %7114 = vmatpush2.msra.mxu0 0.0
        %7115 = vmatprep.subr.mxu0 0.0
        %7116 = vmatpush2.msra.mxu0 0.0
        %7117 = vmatprep.subr.mxu0 0.0
        %7118 = vmatpush2.msra.mxu0 0.0
        %7119 = vmatprep.subr.mxu0 0.0
        %7120 = vmatpush2.msra.mxu0 0.0
        %7121 = vmatprep.subr.mxu0 0.0
        %7122 = vmatpush2.msra.mxu0 0.0
        %7123 = vmatprep.subr.mxu0 0.0
        %7124 = vmatpush2.msra.mxu0 0.0
        %7125 = vmatprep.subr.mxu0 0.0
        %7126 = vmatpush2.msra.mxu0 0.0
        %7127 = vmatprep.subr.mxu0 0.0
        %7128 = vmatpush2.msra.mxu0 0.0
        %7129 = vmatprep.subr.mxu0 0.0
        %7130 = vmatpush2.msra.mxu0 0.0
        %7131 = vmatprep.subr.mxu0 0.0
        %7132 = vmatpush2.msra.mxu0 0.0
        %7133 = vmatprep.subr.mxu0 0.0
        %7134 = vmatpush2.msra.mxu0 0.0
        %7135 = vmatprep.subr.mxu0 0.0
        %7136 = vmatpush2.msra.mxu0 0.0
        %7137 = vmatprep.subr.mxu0 0.0
        %7138 = vmatpush2.msra.mxu0 0.0
        %7139 = vmatprep.subr.mxu0 0.0
        %7140 = vmatpush2.msra.mxu0 0.0
        %7141 = vmatprep.subr.mxu0 0.0
        %7142 = vmatpush2.msra.mxu0 0.0
        %7143 = vmatprep.mubr.f32.mxu0 0.0
        %7144 = vmatmul.mubr.f32.gmra.mxu0 %v1342
        %v7145 = vpop.f32.mrf.mxu0
        %v7146 = vadd.f32 %v6028, %v7145
        %v7147 = vpop.f32.mrf.mxu0
        %7148 = vdwg.mxu0
        %v7149 = vmax.f32 %v6096, 0.0
        %v7150 = vmax.f32 %v6166, 0.0
        %v7151 = vmax.f32 %v6236, 0.0
        %v7152 = vmax.f32 %v6306, 0.0
        %v7153 = vmax.f32 %v6376, 0.0
        %v7154 = vmax.f32 %v6446, 0.0
        %v7155 = vmax.f32 %v6516, 0.0
        %v7156 = vmax.f32 %v6586, 0.0
        %v7157 = vmax.f32 %v6656, 0.0
        %v7158 = vmax.f32 %v6726, 0.0
        %v7159 = vmax.f32 %v6796, 0.0
        %v7160 = vmax.f32 %v6866, 0.0
        %v7161 = vmax.f32 %v6936, 0.0
        %v7162 = vmax.f32 %v7006, 0.0
        %v7163 = vmax.f32 %v7076, 0.0
        %v7164 = vmax.f32 %v7146, 0.0
        %v7165 = vld [vmem:[#allocation5 + $0x58] sm:$0xff]
        %v7166 = vld [vmem:[#allocation5 + $0x60] sm:$0xff]
        %v7167 = vld [vmem:[#allocation5 + $0x68] sm:$0xff]
        %v7168 = vld [vmem:[#allocation5 + $0x70] sm:$0xff]
        %v7170 = vsel %vm1423, %v7149, 0
        %v7173 = vsel %vm1423, %v7150, 0
        %v7176 = vsel %vm1423, %v7151, 0
        %v7179 = vsel %vm1423, %v7152, 0
        %v7182 = vsel %vm1423, %v7153, 0
        %v7185 = vsel %vm1423, %v7154, 0
        %v7188 = vsel %vm1423, %v7155, 0
        %v7191 = vsel %vm1423, %v7156, 0
        %v7194 = vsel %vm1423, %v7157, 0
        %v7197 = vsel %vm1423, %v7158, 0
        %v7200 = vsel %vm1423, %v7159, 0
        %v7203 = vsel %vm1423, %v7160, 0
        %v7206 = vsel %vm1423, %v7161, 0
        %v7209 = vsel %vm1423, %v7162, 0
        %v7212 = vsel %vm1423, %v7163, 0
        %v7215 = vsel %vm1423, %v7164, 0
        %7217 = vmatprep.subr.mxu0 0.0
        %7218 = vmatpush1.msra.mxu0 0.0
        %7219 = vmatprep.subr.mxu0 0.0
        %7220 = vmatpush1.msra.mxu0 0.0
        %7221 = vmatprep.subr.mxu0 0.0
        %7222 = vmatpush1.msra.mxu0 0.0
        %7223 = vmatprep.subr.mxu0 0.0
        %7224 = vmatpush1.msra.mxu0 0.0
        %7225 = vmatprep.subr.mxu0 0.0
        %7226 = vmatpush1.msra.mxu0 0.0
        %7227 = vmatprep.subr.mxu0 0.0
        %7228 = vmatpush1.msra.mxu0 0.0
        %7229 = vmatprep.subr.mxu0 0.0
        %7230 = vmatpush1.msra.mxu0 0.0
        %7231 = vmatprep.subr.mxu0 0.0
        %7232 = vmatpush1.msra.mxu0 0.0
        %7233 = vmatprep.subr.mxu0 0.0
        %7234 = vmatpush1.msra.mxu0 0.0
        %7235 = vmatprep.subr.mxu0 0.0
        %7236 = vmatpush1.msra.mxu0 0.0
        %7237 = vmatprep.subr.mxu0 0.0
        %7238 = vmatpush1.msra.mxu0 0.0
        %7239 = vmatprep.subr.mxu0 0.0
        %7240 = vmatpush1.msra.mxu0 0.0
        %7241 = vmatprep.subr.mxu0 0.0
        %7242 = vmatpush1.msra.mxu0 %v7168
        %7243 = vmatprep.subr.mxu0 0.0
        %7244 = vmatpush1.msra.mxu0 %v7167
        %7245 = vmatprep.subr.mxu0 0.0
        %7246 = vmatpush1.msra.mxu0 %v7166
        %7247 = vmatprep.subr.mxu0 0.0
        %7248 = vmatpush1.msra.mxu0 %v7165
        %7249 = vmatprep.subr.mxu0 0.0
        %7250 = vmatpush2.msra.mxu0 0.0
        %7251 = vmatprep.subr.mxu0 0.0
        %7252 = vmatpush2.msra.mxu0 0.0
        %7253 = vmatprep.subr.mxu0 0.0
        %7254 = vmatpush2.msra.mxu0 0.0
        %7255 = vmatprep.subr.mxu0 0.0
        %7256 = vmatpush2.msra.mxu0 0.0
        %7257 = vmatprep.subr.mxu0 0.0
        %7258 = vmatpush2.msra.mxu0 0.0
        %7259 = vmatprep.subr.mxu0 0.0
        %7260 = vmatpush2.msra.mxu0 0.0
        %7261 = vmatprep.subr.mxu0 0.0
        %7262 = vmatpush2.msra.mxu0 0.0
        %7263 = vmatprep.subr.mxu0 0.0
        %7264 = vmatpush2.msra.mxu0 0.0
        %7265 = vmatprep.subr.mxu0 0.0
        %7266 = vmatpush2.msra.mxu0 0.0
        %7267 = vmatprep.subr.mxu0 0.0
        %7268 = vmatpush2.msra.mxu0 0.0
        %7269 = vmatprep.subr.mxu0 0.0
        %7270 = vmatpush2.msra.mxu0 0.0
        %7271 = vmatprep.subr.mxu0 0.0
        %7272 = vmatpush2.msra.mxu0 0.0
        %7273 = vmatprep.subr.mxu0 0.0
        %7274 = vmatpush2.msra.mxu0 0.0
        %7275 = vmatprep.subr.mxu0 0.0
        %7276 = vmatpush2.msra.mxu0 0.0
        %7277 = vmatprep.subr.mxu0 0.0
        %7278 = vmatpush2.msra.mxu0 0.0
        %7279 = vmatprep.subr.mxu0 0.0
        %7280 = vmatpush2.msra.mxu0 0.0
        %7281 = vmatprep.mubr.f32.mxu0 0.0
        %7282 = vmatmul.mubr.f32.gmra.mxu0 %v7170
        %v7283 = vpop.f32.mrf.mxu0
        %v7284 = vadd.f32 0.0, %v7283
        %v7285 = vpop.f32.mrf.mxu0
        %7286 = vmatprep.mubr.f32.mxu0 0.0
        %7287 = vmatmul.mubr.f32.gmra.mxu0 %v7173
        %v7288 = vpop.f32.mrf.mxu0
        %v7289 = vadd.f32 0.0, %v7288
        %v7290 = vpop.f32.mrf.mxu0
        %7291 = vmatprep.mubr.f32.mxu0 0.0
        %7292 = vmatmul.mubr.f32.gmra.mxu0 %v7176
        %v7293 = vpop.f32.mrf.mxu0
        %v7294 = vadd.f32 0.0, %v7293
        %v7295 = vpop.f32.mrf.mxu0
        %7296 = vmatprep.mubr.f32.mxu0 0.0
        %7297 = vmatmul.mubr.f32.gmra.mxu0 %v7179
        %v7298 = vpop.f32.mrf.mxu0
        %v7299 = vadd.f32 0.0, %v7298
        %v7300 = vpop.f32.mrf.mxu0
        %7301 = vmatprep.mubr.f32.mxu0 0.0
        %7302 = vmatmul.mubr.f32.gmra.mxu0 %v7182
        %v7303 = vpop.f32.mrf.mxu0
        %v7304 = vadd.f32 0.0, %v7303
        %v7305 = vpop.f32.mrf.mxu0
        %7306 = vmatprep.mubr.f32.mxu0 0.0
        %7307 = vmatmul.mubr.f32.gmra.mxu0 %v7185
        %v7308 = vpop.f32.mrf.mxu0
        %v7309 = vadd.f32 0.0, %v7308
        %v7310 = vpop.f32.mrf.mxu0
        %7311 = vmatprep.mubr.f32.mxu0 0.0
        %7312 = vmatmul.mubr.f32.gmra.mxu0 %v7188
        %v7313 = vpop.f32.mrf.mxu0
        %v7314 = vadd.f32 0.0, %v7313
        %v7315 = vpop.f32.mrf.mxu0
        %7316 = vmatprep.mubr.f32.mxu0 0.0
        %7317 = vmatmul.mubr.f32.gmra.mxu0 %v7191
        %v7318 = vpop.f32.mrf.mxu0
        %v7319 = vadd.f32 0.0, %v7318
        %v7320 = vpop.f32.mrf.mxu0
        %7321 = vmatprep.mubr.f32.mxu0 0.0
        %7322 = vmatmul.mubr.f32.gmra.mxu0 %v7194
        %v7323 = vpop.f32.mrf.mxu0
        %v7324 = vadd.f32 0.0, %v7323
        %v7325 = vpop.f32.mrf.mxu0
        %7326 = vmatprep.mubr.f32.mxu0 0.0
        %7327 = vmatmul.mubr.f32.gmra.mxu0 %v7197
        %v7328 = vpop.f32.mrf.mxu0
        %v7329 = vadd.f32 0.0, %v7328
        %v7330 = vpop.f32.mrf.mxu0
        %7331 = vmatprep.mubr.f32.mxu0 0.0
        %7332 = vmatmul.mubr.f32.gmra.mxu0 %v7200
        %v7333 = vpop.f32.mrf.mxu0
        %v7334 = vadd.f32 0.0, %v7333
        %v7335 = vpop.f32.mrf.mxu0
        %7336 = vmatprep.mubr.f32.mxu0 0.0
        %7337 = vmatmul.mubr.f32.gmra.mxu0 %v7203
        %v7338 = vpop.f32.mrf.mxu0
        %v7339 = vadd.f32 0.0, %v7338
        %v7340 = vpop.f32.mrf.mxu0
        %7341 = vmatprep.mubr.f32.mxu0 0.0
        %7342 = vmatmul.mubr.f32.gmra.mxu0 %v7206
        %v7343 = vpop.f32.mrf.mxu0
        %v7344 = vadd.f32 0.0, %v7343
        %v7345 = vpop.f32.mrf.mxu0
        %7346 = vmatprep.mubr.f32.mxu0 0.0
        %7347 = vmatmul.mubr.f32.gmra.mxu0 %v7209
        %v7348 = vpop.f32.mrf.mxu0
        %v7349 = vadd.f32 0.0, %v7348
        %v7350 = vpop.f32.mrf.mxu0
        %7351 = vmatprep.mubr.f32.mxu0 0.0
        %7352 = vmatmul.mubr.f32.gmra.mxu0 %v7212
        %v7353 = vpop.f32.mrf.mxu0
        %v7354 = vadd.f32 0.0, %v7353
        %v7355 = vpop.f32.mrf.mxu0
        %7356 = vmatprep.mubr.f32.mxu0 0.0
        %7357 = vmatmul.mubr.f32.gmra.mxu0 %v7215
        %v7358 = vpop.f32.mrf.mxu0
        %v7359 = vadd.f32 0.0, %v7358
        %v7360 = vpop.f32.mrf.mxu0
        %7361 = vdwg.mxu0
        %v7362 = vld [vmem:[#allocation5 + $0x3] sm:$0x1]
        %v7363 = vlaneseq
        %v7364 = vshrl.u32 %v7363, 7
        %v7365 = vsub.s32 0, %v7364
        %v7366 = vrot.slane %v7362, %v7365
        %7367 = vmatprep.subr.mxu0 0.0
        %7368 = vmatpush1.msra.mxu0 0.0
        %7369 = vmatprep.subr.mxu0 0.0
        %7370 = vmatpush1.msra.mxu0 0.0
        %7371 = vmatprep.subr.mxu0 0.0
        %7372 = vmatpush1.msra.mxu0 0.0
        %7373 = vmatprep.subr.mxu0 0.0
        %7374 = vmatpush1.msra.mxu0 0.0
        %7375 = vmatprep.subr.mxu0 0.0
        %7376 = vmatpush1.msra.mxu0 0.0
        %7377 = vmatprep.subr.mxu0 0.0
        %7378 = vmatpush1.msra.mxu0 0.0
        %7379 = vmatprep.subr.mxu0 0.0
        %7380 = vmatpush1.msra.mxu0 0.0
        %7381 = vmatprep.subr.mxu0 0.0
        %7382 = vmatpush1.msra.mxu0 0.0
        %7383 = vmatprep.subr.mxu0 0.0
        %7384 = vmatpush1.msra.mxu0 0.0
        %7385 = vmatprep.subr.mxu0 0.0
        %7386 = vmatpush1.msra.mxu0 0.0
        %7387 = vmatprep.subr.mxu0 0.0
        %7388 = vmatpush1.msra.mxu0 0.0
        %7389 = vmatprep.subr.mxu0 0.0
        %7390 = vmatpush1.msra.mxu0 0.0
        %7391 = vmatprep.subr.mxu0 0.0
        %7392 = vmatpush1.msra.mxu0 0.0
        %7393 = vmatprep.subr.mxu0 0.0
        %7394 = vmatpush1.msra.mxu0 0.0
        %7395 = vmatprep.subr.mxu0 0.0
        %7396 = vmatpush1.msra.mxu0 0.0
        %7397 = vmatprep.subr.mxu0 0.0
        %7398 = vmatpush1.msra.mxu0 %v7284
        %7399 = vmatprep.subr.mxu0 0.0
        %7400 = vmatpush2.msra.mxu0 0.0
        %7401 = vmatprep.subr.mxu0 0.0
        %7402 = vmatpush2.msra.mxu0 0.0
        %7403 = vmatprep.subr.mxu0 0.0
        %7404 = vmatpush2.msra.mxu0 0.0
        %7405 = vmatprep.subr.mxu0 0.0
        %7406 = vmatpush2.msra.mxu0 0.0
        %7407 = vmatprep.subr.mxu0 0.0
        %7408 = vmatpush2.msra.mxu0 0.0
        %7409 = vmatprep.subr.mxu0 0.0
        %7410 = vmatpush2.msra.mxu0 0.0
        %7411 = vmatprep.subr.mxu0 0.0
        %7412 = vmatpush2.msra.mxu0 0.0
        %7413 = vmatprep.subr.mxu0 0.0
        %7414 = vmatpush2.msra.mxu0 0.0
        %7415 = vmatprep.subr.mxu0 0.0
        %7416 = vmatpush2.msra.mxu0 0.0
        %7417 = vmatprep.subr.mxu0 0.0
        %7418 = vmatpush2.msra.mxu0 0.0
        %7419 = vmatprep.subr.mxu0 0.0
        %7420 = vmatpush2.msra.mxu0 0.0
        %7421 = vmatprep.subr.mxu0 0.0
        %7422 = vmatpush2.msra.mxu0 0.0
        %7423 = vmatprep.subr.mxu0 0.0
        %7424 = vmatpush2.msra.mxu0 0.0
        %7425 = vmatprep.subr.mxu0 0.0
        %7426 = vmatpush2.msra.mxu0 0.0
        %7427 = vmatprep.subr.mxu0 0.0
        %7428 = vmatpush2.msra.mxu0 0.0
        %7429 = vmatprep.subr.mxu0 0.0
        %7430 = vmatpush2.msra.mxu0 0.0
        %7431 = vmatprep.mubr.f32.mxu0 0.0
        %7432 = vmatmul.mubr.f32.gmra.mxu0 %v202
        %v7433 = vpop.f32.mrf.mxu0
        %v7434 = vadd.f32 %v7366, %v7433
        %v7435 = vpop.f32.mrf.mxu0
        %7436 = vdwg.mxu0
        %7437 = vmatprep.subr.mxu0 0.0
        %7438 = vmatpush1.msra.mxu0 0.0
        %7439 = vmatprep.subr.mxu0 0.0
        %7440 = vmatpush1.msra.mxu0 0.0
        %7441 = vmatprep.subr.mxu0 0.0
        %7442 = vmatpush1.msra.mxu0 0.0
        %7443 = vmatprep.subr.mxu0 0.0
        %7444 = vmatpush1.msra.mxu0 0.0
        %7445 = vmatprep.subr.mxu0 0.0
        %7446 = vmatpush1.msra.mxu0 0.0
        %7447 = vmatprep.subr.mxu0 0.0
        %7448 = vmatpush1.msra.mxu0 0.0
        %7449 = vmatprep.subr.mxu0 0.0
        %7450 = vmatpush1.msra.mxu0 0.0
        %7451 = vmatprep.subr.mxu0 0.0
        %7452 = vmatpush1.msra.mxu0 0.0
        %7453 = vmatprep.subr.mxu0 0.0
        %7454 = vmatpush1.msra.mxu0 0.0
        %7455 = vmatprep.subr.mxu0 0.0
        %7456 = vmatpush1.msra.mxu0 0.0
        %7457 = vmatprep.subr.mxu0 0.0
        %7458 = vmatpush1.msra.mxu0 0.0
        %7459 = vmatprep.subr.mxu0 0.0
        %7460 = vmatpush1.msra.mxu0 0.0
        %7461 = vmatprep.subr.mxu0 0.0
        %7462 = vmatpush1.msra.mxu0 0.0
        %7463 = vmatprep.subr.mxu0 0.0
        %7464 = vmatpush1.msra.mxu0 0.0
        %7465 = vmatprep.subr.mxu0 0.0
        %7466 = vmatpush1.msra.mxu0 0.0
        %7467 = vmatprep.subr.mxu0 0.0
        %7468 = vmatpush1.msra.mxu0 %v7289
        %7469 = vmatprep.subr.mxu0 0.0
        %7470 = vmatpush2.msra.mxu0 0.0
        %7471 = vmatprep.subr.mxu0 0.0
        %7472 = vmatpush2.msra.mxu0 0.0
        %7473 = vmatprep.subr.mxu0 0.0
        %7474 = vmatpush2.msra.mxu0 0.0
        %7475 = vmatprep.subr.mxu0 0.0
        %7476 = vmatpush2.msra.mxu0 0.0
        %7477 = vmatprep.subr.mxu0 0.0
        %7478 = vmatpush2.msra.mxu0 0.0
        %7479 = vmatprep.subr.mxu0 0.0
        %7480 = vmatpush2.msra.mxu0 0.0
        %7481 = vmatprep.subr.mxu0 0.0
        %7482 = vmatpush2.msra.mxu0 0.0
        %7483 = vmatprep.subr.mxu0 0.0
        %7484 = vmatpush2.msra.mxu0 0.0
        %7485 = vmatprep.subr.mxu0 0.0
        %7486 = vmatpush2.msra.mxu0 0.0
        %7487 = vmatprep.subr.mxu0 0.0
        %7488 = vmatpush2.msra.mxu0 0.0
        %7489 = vmatprep.subr.mxu0 0.0
        %7490 = vmatpush2.msra.mxu0 0.0
        %7491 = vmatprep.subr.mxu0 0.0
        %7492 = vmatpush2.msra.mxu0 0.0
        %7493 = vmatprep.subr.mxu0 0.0
        %7494 = vmatpush2.msra.mxu0 0.0
        %7495 = vmatprep.subr.mxu0 0.0
        %7496 = vmatpush2.msra.mxu0 0.0
        %7497 = vmatprep.subr.mxu0 0.0
        %7498 = vmatpush2.msra.mxu0 0.0
        %7499 = vmatprep.subr.mxu0 0.0
        %7500 = vmatpush2.msra.mxu0 0.0
        %7501 = vmatprep.mubr.f32.mxu0 0.0
        %7502 = vmatmul.mubr.f32.gmra.mxu0 %v278
        %v7503 = vpop.f32.mrf.mxu0
        %v7504 = vadd.f32 %v7366, %v7503
        %v7505 = vpop.f32.mrf.mxu0
        %7506 = vdwg.mxu0
        %7507 = vmatprep.subr.mxu0 0.0
        %7508 = vmatpush1.msra.mxu0 0.0
        %7509 = vmatprep.subr.mxu0 0.0
        %7510 = vmatpush1.msra.mxu0 0.0
        %7511 = vmatprep.subr.mxu0 0.0
        %7512 = vmatpush1.msra.mxu0 0.0
        %7513 = vmatprep.subr.mxu0 0.0
        %7514 = vmatpush1.msra.mxu0 0.0
        %7515 = vmatprep.subr.mxu0 0.0
        %7516 = vmatpush1.msra.mxu0 0.0
        %7517 = vmatprep.subr.mxu0 0.0
        %7518 = vmatpush1.msra.mxu0 0.0
        %7519 = vmatprep.subr.mxu0 0.0
        %7520 = vmatpush1.msra.mxu0 0.0
        %7521 = vmatprep.subr.mxu0 0.0
        %7522 = vmatpush1.msra.mxu0 0.0
        %7523 = vmatprep.subr.mxu0 0.0
        %7524 = vmatpush1.msra.mxu0 0.0
        %7525 = vmatprep.subr.mxu0 0.0
        %7526 = vmatpush1.msra.mxu0 0.0
        %7527 = vmatprep.subr.mxu0 0.0
        %7528 = vmatpush1.msra.mxu0 0.0
        %7529 = vmatprep.subr.mxu0 0.0
        %7530 = vmatpush1.msra.mxu0 0.0
        %7531 = vmatprep.subr.mxu0 0.0
        %7532 = vmatpush1.msra.mxu0 0.0
        %7533 = vmatprep.subr.mxu0 0.0
        %7534 = vmatpush1.msra.mxu0 0.0
        %7535 = vmatprep.subr.mxu0 0.0
        %7536 = vmatpush1.msra.mxu0 0.0
        %7537 = vmatprep.subr.mxu0 0.0
        %7538 = vmatpush1.msra.mxu0 %v7294
        %7539 = vmatprep.subr.mxu0 0.0
        %7540 = vmatpush2.msra.mxu0 0.0
        %7541 = vmatprep.subr.mxu0 0.0
        %7542 = vmatpush2.msra.mxu0 0.0
        %7543 = vmatprep.subr.mxu0 0.0
        %7544 = vmatpush2.msra.mxu0 0.0
        %7545 = vmatprep.subr.mxu0 0.0
        %7546 = vmatpush2.msra.mxu0 0.0
        %7547 = vmatprep.subr.mxu0 0.0
        %7548 = vmatpush2.msra.mxu0 0.0
        %7549 = vmatprep.subr.mxu0 0.0
        %7550 = vmatpush2.msra.mxu0 0.0
        %7551 = vmatprep.subr.mxu0 0.0
        %7552 = vmatpush2.msra.mxu0 0.0
        %7553 = vmatprep.subr.mxu0 0.0
        %7554 = vmatpush2.msra.mxu0 0.0
        %7555 = vmatprep.subr.mxu0 0.0
        %7556 = vmatpush2.msra.mxu0 0.0
        %7557 = vmatprep.subr.mxu0 0.0
        %7558 = vmatpush2.msra.mxu0 0.0
        %7559 = vmatprep.subr.mxu0 0.0
        %7560 = vmatpush2.msra.mxu0 0.0
        %7561 = vmatprep.subr.mxu0 0.0
        %7562 = vmatpush2.msra.mxu0 0.0
        %7563 = vmatprep.subr.mxu0 0.0
        %7564 = vmatpush2.msra.mxu0 0.0
        %7565 = vmatprep.subr.mxu0 0.0
        %7566 = vmatpush2.msra.mxu0 0.0
        %7567 = vmatprep.subr.mxu0 0.0
        %7568 = vmatpush2.msra.mxu0 0.0
        %7569 = vmatprep.subr.mxu0 0.0
        %7570 = vmatpush2.msra.mxu0 0.0
        %7571 = vmatprep.mubr.f32.mxu0 0.0
        %7572 = vmatmul.mubr.f32.gmra.mxu0 %v354
        %v7573 = vpop.f32.mrf.mxu0
        %v7574 = vadd.f32 %v7366, %v7573
        %v7575 = vpop.f32.mrf.mxu0
        %7576 = vdwg.mxu0
        %7577 = vmatprep.subr.mxu0 0.0
        %7578 = vmatpush1.msra.mxu0 0.0
        %7579 = vmatprep.subr.mxu0 0.0
        %7580 = vmatpush1.msra.mxu0 0.0
        %7581 = vmatprep.subr.mxu0 0.0
        %7582 = vmatpush1.msra.mxu0 0.0
        %7583 = vmatprep.subr.mxu0 0.0
        %7584 = vmatpush1.msra.mxu0 0.0
        %7585 = vmatprep.subr.mxu0 0.0
        %7586 = vmatpush1.msra.mxu0 0.0
        %7587 = vmatprep.subr.mxu0 0.0
        %7588 = vmatpush1.msra.mxu0 0.0
        %7589 = vmatprep.subr.mxu0 0.0
        %7590 = vmatpush1.msra.mxu0 0.0
        %7591 = vmatprep.subr.mxu0 0.0
        %7592 = vmatpush1.msra.mxu0 0.0
        %7593 = vmatprep.subr.mxu0 0.0
        %7594 = vmatpush1.msra.mxu0 0.0
        %7595 = vmatprep.subr.mxu0 0.0
        %7596 = vmatpush1.msra.mxu0 0.0
        %7597 = vmatprep.subr.mxu0 0.0
        %7598 = vmatpush1.msra.mxu0 0.0
        %7599 = vmatprep.subr.mxu0 0.0
        %7600 = vmatpush1.msra.mxu0 0.0
        %7601 = vmatprep.subr.mxu0 0.0
        %7602 = vmatpush1.msra.mxu0 0.0
        %7603 = vmatprep.subr.mxu0 0.0
        %7604 = vmatpush1.msra.mxu0 0.0
        %7605 = vmatprep.subr.mxu0 0.0
        %7606 = vmatpush1.msra.mxu0 0.0
        %7607 = vmatprep.subr.mxu0 0.0
        %7608 = vmatpush1.msra.mxu0 %v7299
        %7609 = vmatprep.subr.mxu0 0.0
        %7610 = vmatpush2.msra.mxu0 0.0
        %7611 = vmatprep.subr.mxu0 0.0
        %7612 = vmatpush2.msra.mxu0 0.0
        %7613 = vmatprep.subr.mxu0 0.0
        %7614 = vmatpush2.msra.mxu0 0.0
        %7615 = vmatprep.subr.mxu0 0.0
        %7616 = vmatpush2.msra.mxu0 0.0
        %7617 = vmatprep.subr.mxu0 0.0
        %7618 = vmatpush2.msra.mxu0 0.0
        %7619 = vmatprep.subr.mxu0 0.0
        %7620 = vmatpush2.msra.mxu0 0.0
        %7621 = vmatprep.subr.mxu0 0.0
        %7622 = vmatpush2.msra.mxu0 0.0
        %7623 = vmatprep.subr.mxu0 0.0
        %7624 = vmatpush2.msra.mxu0 0.0
        %7625 = vmatprep.subr.mxu0 0.0
        %7626 = vmatpush2.msra.mxu0 0.0
        %7627 = vmatprep.subr.mxu0 0.0
        %7628 = vmatpush2.msra.mxu0 0.0
        %7629 = vmatprep.subr.mxu0 0.0
        %7630 = vmatpush2.msra.mxu0 0.0
        %7631 = vmatprep.subr.mxu0 0.0
        %7632 = vmatpush2.msra.mxu0 0.0
        %7633 = vmatprep.subr.mxu0 0.0
        %7634 = vmatpush2.msra.mxu0 0.0
        %7635 = vmatprep.subr.mxu0 0.0
        %7636 = vmatpush2.msra.mxu0 0.0
        %7637 = vmatprep.subr.mxu0 0.0
        %7638 = vmatpush2.msra.mxu0 0.0
        %7639 = vmatprep.subr.mxu0 0.0
        %7640 = vmatpush2.msra.mxu0 0.0
        %7641 = vmatprep.mubr.f32.mxu0 0.0
        %7642 = vmatmul.mubr.f32.gmra.mxu0 %v430
        %v7643 = vpop.f32.mrf.mxu0
        %v7644 = vadd.f32 %v7366, %v7643
        %v7645 = vpop.f32.mrf.mxu0
        %7646 = vdwg.mxu0
        %7647 = vmatprep.subr.mxu0 0.0
        %7648 = vmatpush1.msra.mxu0 0.0
        %7649 = vmatprep.subr.mxu0 0.0
        %7650 = vmatpush1.msra.mxu0 0.0
        %7651 = vmatprep.subr.mxu0 0.0
        %7652 = vmatpush1.msra.mxu0 0.0
        %7653 = vmatprep.subr.mxu0 0.0
        %7654 = vmatpush1.msra.mxu0 0.0
        %7655 = vmatprep.subr.mxu0 0.0
        %7656 = vmatpush1.msra.mxu0 0.0
        %7657 = vmatprep.subr.mxu0 0.0
        %7658 = vmatpush1.msra.mxu0 0.0
        %7659 = vmatprep.subr.mxu0 0.0
        %7660 = vmatpush1.msra.mxu0 0.0
        %7661 = vmatprep.subr.mxu0 0.0
        %7662 = vmatpush1.msra.mxu0 0.0
        %7663 = vmatprep.subr.mxu0 0.0
        %7664 = vmatpush1.msra.mxu0 0.0
        %7665 = vmatprep.subr.mxu0 0.0
        %7666 = vmatpush1.msra.mxu0 0.0
        %7667 = vmatprep.subr.mxu0 0.0
        %7668 = vmatpush1.msra.mxu0 0.0
        %7669 = vmatprep.subr.mxu0 0.0
        %7670 = vmatpush1.msra.mxu0 0.0
        %7671 = vmatprep.subr.mxu0 0.0
        %7672 = vmatpush1.msra.mxu0 0.0
        %7673 = vmatprep.subr.mxu0 0.0
        %7674 = vmatpush1.msra.mxu0 0.0
        %7675 = vmatprep.subr.mxu0 0.0
        %7676 = vmatpush1.msra.mxu0 0.0
        %7677 = vmatprep.subr.mxu0 0.0
        %7678 = vmatpush1.msra.mxu0 %v7304
        %7679 = vmatprep.subr.mxu0 0.0
        %7680 = vmatpush2.msra.mxu0 0.0
        %7681 = vmatprep.subr.mxu0 0.0
        %7682 = vmatpush2.msra.mxu0 0.0
        %7683 = vmatprep.subr.mxu0 0.0
        %7684 = vmatpush2.msra.mxu0 0.0
        %7685 = vmatprep.subr.mxu0 0.0
        %7686 = vmatpush2.msra.mxu0 0.0
        %7687 = vmatprep.subr.mxu0 0.0
        %7688 = vmatpush2.msra.mxu0 0.0
        %7689 = vmatprep.subr.mxu0 0.0
        %7690 = vmatpush2.msra.mxu0 0.0
        %7691 = vmatprep.subr.mxu0 0.0
        %7692 = vmatpush2.msra.mxu0 0.0
        %7693 = vmatprep.subr.mxu0 0.0
        %7694 = vmatpush2.msra.mxu0 0.0
        %7695 = vmatprep.subr.mxu0 0.0
        %7696 = vmatpush2.msra.mxu0 0.0
        %7697 = vmatprep.subr.mxu0 0.0
        %7698 = vmatpush2.msra.mxu0 0.0
        %7699 = vmatprep.subr.mxu0 0.0
        %7700 = vmatpush2.msra.mxu0 0.0
        %7701 = vmatprep.subr.mxu0 0.0
        %7702 = vmatpush2.msra.mxu0 0.0
        %7703 = vmatprep.subr.mxu0 0.0
        %7704 = vmatpush2.msra.mxu0 0.0
        %7705 = vmatprep.subr.mxu0 0.0
        %7706 = vmatpush2.msra.mxu0 0.0
        %7707 = vmatprep.subr.mxu0 0.0
        %7708 = vmatpush2.msra.mxu0 0.0
        %7709 = vmatprep.subr.mxu0 0.0
        %7710 = vmatpush2.msra.mxu0 0.0
        %7711 = vmatprep.mubr.f32.mxu0 0.0
        %7712 = vmatmul.mubr.f32.gmra.mxu0 %v506
        %v7713 = vpop.f32.mrf.mxu0
        %v7714 = vadd.f32 %v7366, %v7713
        %v7715 = vpop.f32.mrf.mxu0
        %7716 = vdwg.mxu0
        %7717 = vmatprep.subr.mxu0 0.0
        %7718 = vmatpush1.msra.mxu0 0.0
        %7719 = vmatprep.subr.mxu0 0.0
        %7720 = vmatpush1.msra.mxu0 0.0
        %7721 = vmatprep.subr.mxu0 0.0
        %7722 = vmatpush1.msra.mxu0 0.0
        %7723 = vmatprep.subr.mxu0 0.0
        %7724 = vmatpush1.msra.mxu0 0.0
        %7725 = vmatprep.subr.mxu0 0.0
        %7726 = vmatpush1.msra.mxu0 0.0
        %7727 = vmatprep.subr.mxu0 0.0
        %7728 = vmatpush1.msra.mxu0 0.0
        %7729 = vmatprep.subr.mxu0 0.0
        %7730 = vmatpush1.msra.mxu0 0.0
        %7731 = vmatprep.subr.mxu0 0.0
        %7732 = vmatpush1.msra.mxu0 0.0
        %7733 = vmatprep.subr.mxu0 0.0
        %7734 = vmatpush1.msra.mxu0 0.0
        %7735 = vmatprep.subr.mxu0 0.0
        %7736 = vmatpush1.msra.mxu0 0.0
        %7737 = vmatprep.subr.mxu0 0.0
        %7738 = vmatpush1.msra.mxu0 0.0
        %7739 = vmatprep.subr.mxu0 0.0
        %7740 = vmatpush1.msra.mxu0 0.0
        %7741 = vmatprep.subr.mxu0 0.0
        %7742 = vmatpush1.msra.mxu0 0.0
        %7743 = vmatprep.subr.mxu0 0.0
        %7744 = vmatpush1.msra.mxu0 0.0
        %7745 = vmatprep.subr.mxu0 0.0
        %7746 = vmatpush1.msra.mxu0 0.0
        %7747 = vmatprep.subr.mxu0 0.0
        %7748 = vmatpush1.msra.mxu0 %v7309
        %7749 = vmatprep.subr.mxu0 0.0
        %7750 = vmatpush2.msra.mxu0 0.0
        %7751 = vmatprep.subr.mxu0 0.0
        %7752 = vmatpush2.msra.mxu0 0.0
        %7753 = vmatprep.subr.mxu0 0.0
        %7754 = vmatpush2.msra.mxu0 0.0
        %7755 = vmatprep.subr.mxu0 0.0
        %7756 = vmatpush2.msra.mxu0 0.0
        %7757 = vmatprep.subr.mxu0 0.0
        %7758 = vmatpush2.msra.mxu0 0.0
        %7759 = vmatprep.subr.mxu0 0.0
        %7760 = vmatpush2.msra.mxu0 0.0
        %7761 = vmatprep.subr.mxu0 0.0
        %7762 = vmatpush2.msra.mxu0 0.0
        %7763 = vmatprep.subr.mxu0 0.0
        %7764 = vmatpush2.msra.mxu0 0.0
        %7765 = vmatprep.subr.mxu0 0.0
        %7766 = vmatpush2.msra.mxu0 0.0
        %7767 = vmatprep.subr.mxu0 0.0
        %7768 = vmatpush2.msra.mxu0 0.0
        %7769 = vmatprep.subr.mxu0 0.0
        %7770 = vmatpush2.msra.mxu0 0.0
        %7771 = vmatprep.subr.mxu0 0.0
        %7772 = vmatpush2.msra.mxu0 0.0
        %7773 = vmatprep.subr.mxu0 0.0
        %7774 = vmatpush2.msra.mxu0 0.0
        %7775 = vmatprep.subr.mxu0 0.0
        %7776 = vmatpush2.msra.mxu0 0.0
        %7777 = vmatprep.subr.mxu0 0.0
        %7778 = vmatpush2.msra.mxu0 0.0
        %7779 = vmatprep.subr.mxu0 0.0
        %7780 = vmatpush2.msra.mxu0 0.0
        %7781 = vmatprep.mubr.f32.mxu0 0.0
        %7782 = vmatmul.mubr.f32.gmra.mxu0 %v582
        %v7783 = vpop.f32.mrf.mxu0
        %v7784 = vadd.f32 %v7366, %v7783
        %v7785 = vpop.f32.mrf.mxu0
        %7786 = vdwg.mxu0
        %7787 = vmatprep.subr.mxu0 0.0
        %7788 = vmatpush1.msra.mxu0 0.0
        %7789 = vmatprep.subr.mxu0 0.0
        %7790 = vmatpush1.msra.mxu0 0.0
        %7791 = vmatprep.subr.mxu0 0.0
        %7792 = vmatpush1.msra.mxu0 0.0
        %7793 = vmatprep.subr.mxu0 0.0
        %7794 = vmatpush1.msra.mxu0 0.0
        %7795 = vmatprep.subr.mxu0 0.0
        %7796 = vmatpush1.msra.mxu0 0.0
        %7797 = vmatprep.subr.mxu0 0.0
        %7798 = vmatpush1.msra.mxu0 0.0
        %7799 = vmatprep.subr.mxu0 0.0
        %7800 = vmatpush1.msra.mxu0 0.0
        %7801 = vmatprep.subr.mxu0 0.0
        %7802 = vmatpush1.msra.mxu0 0.0
        %7803 = vmatprep.subr.mxu0 0.0
        %7804 = vmatpush1.msra.mxu0 0.0
        %7805 = vmatprep.subr.mxu0 0.0
        %7806 = vmatpush1.msra.mxu0 0.0
        %7807 = vmatprep.subr.mxu0 0.0
        %7808 = vmatpush1.msra.mxu0 0.0
        %7809 = vmatprep.subr.mxu0 0.0
        %7810 = vmatpush1.msra.mxu0 0.0
        %7811 = vmatprep.subr.mxu0 0.0
        %7812 = vmatpush1.msra.mxu0 0.0
        %7813 = vmatprep.subr.mxu0 0.0
        %7814 = vmatpush1.msra.mxu0 0.0
        %7815 = vmatprep.subr.mxu0 0.0
        %7816 = vmatpush1.msra.mxu0 0.0
        %7817 = vmatprep.subr.mxu0 0.0
        %7818 = vmatpush1.msra.mxu0 %v7314
        %7819 = vmatprep.subr.mxu0 0.0
        %7820 = vmatpush2.msra.mxu0 0.0
        %7821 = vmatprep.subr.mxu0 0.0
        %7822 = vmatpush2.msra.mxu0 0.0
        %7823 = vmatprep.subr.mxu0 0.0
        %7824 = vmatpush2.msra.mxu0 0.0
        %7825 = vmatprep.subr.mxu0 0.0
        %7826 = vmatpush2.msra.mxu0 0.0
        %7827 = vmatprep.subr.mxu0 0.0
        %7828 = vmatpush2.msra.mxu0 0.0
        %7829 = vmatprep.subr.mxu0 0.0
        %7830 = vmatpush2.msra.mxu0 0.0
        %7831 = vmatprep.subr.mxu0 0.0
        %7832 = vmatpush2.msra.mxu0 0.0
        %7833 = vmatprep.subr.mxu0 0.0
        %7834 = vmatpush2.msra.mxu0 0.0
        %7835 = vmatprep.subr.mxu0 0.0
        %7836 = vmatpush2.msra.mxu0 0.0
        %7837 = vmatprep.subr.mxu0 0.0
        %7838 = vmatpush2.msra.mxu0 0.0
        %7839 = vmatprep.subr.mxu0 0.0
        %7840 = vmatpush2.msra.mxu0 0.0
        %7841 = vmatprep.subr.mxu0 0.0
        %7842 = vmatpush2.msra.mxu0 0.0
        %7843 = vmatprep.subr.mxu0 0.0
        %7844 = vmatpush2.msra.mxu0 0.0
        %7845 = vmatprep.subr.mxu0 0.0
        %7846 = vmatpush2.msra.mxu0 0.0
        %7847 = vmatprep.subr.mxu0 0.0
        %7848 = vmatpush2.msra.mxu0 0.0
        %7849 = vmatprep.subr.mxu0 0.0
        %7850 = vmatpush2.msra.mxu0 0.0
        %7851 = vmatprep.mubr.f32.mxu0 0.0
        %7852 = vmatmul.mubr.f32.gmra.mxu0 %v658
        %v7853 = vpop.f32.mrf.mxu0
        %v7854 = vadd.f32 %v7366, %v7853
        %v7855 = vpop.f32.mrf.mxu0
        %7856 = vdwg.mxu0
        %7857 = vmatprep.subr.mxu0 0.0
        %7858 = vmatpush1.msra.mxu0 0.0
        %7859 = vmatprep.subr.mxu0 0.0
        %7860 = vmatpush1.msra.mxu0 0.0
        %7861 = vmatprep.subr.mxu0 0.0
        %7862 = vmatpush1.msra.mxu0 0.0
        %7863 = vmatprep.subr.mxu0 0.0
        %7864 = vmatpush1.msra.mxu0 0.0
        %7865 = vmatprep.subr.mxu0 0.0
        %7866 = vmatpush1.msra.mxu0 0.0
        %7867 = vmatprep.subr.mxu0 0.0
        %7868 = vmatpush1.msra.mxu0 0.0
        %7869 = vmatprep.subr.mxu0 0.0
        %7870 = vmatpush1.msra.mxu0 0.0
        %7871 = vmatprep.subr.mxu0 0.0
        %7872 = vmatpush1.msra.mxu0 0.0
        %7873 = vmatprep.subr.mxu0 0.0
        %7874 = vmatpush1.msra.mxu0 0.0
        %7875 = vmatprep.subr.mxu0 0.0
        %7876 = vmatpush1.msra.mxu0 0.0
        %7877 = vmatprep.subr.mxu0 0.0
        %7878 = vmatpush1.msra.mxu0 0.0
        %7879 = vmatprep.subr.mxu0 0.0
        %7880 = vmatpush1.msra.mxu0 0.0
        %7881 = vmatprep.subr.mxu0 0.0
        %7882 = vmatpush1.msra.mxu0 0.0
        %7883 = vmatprep.subr.mxu0 0.0
        %7884 = vmatpush1.msra.mxu0 0.0
        %7885 = vmatprep.subr.mxu0 0.0
        %7886 = vmatpush1.msra.mxu0 0.0
        %7887 = vmatprep.subr.mxu0 0.0
        %7888 = vmatpush1.msra.mxu0 %v7319
        %7889 = vmatprep.subr.mxu0 0.0
        %7890 = vmatpush2.msra.mxu0 0.0
        %7891 = vmatprep.subr.mxu0 0.0
        %7892 = vmatpush2.msra.mxu0 0.0
        %7893 = vmatprep.subr.mxu0 0.0
        %7894 = vmatpush2.msra.mxu0 0.0
        %7895 = vmatprep.subr.mxu0 0.0
        %7896 = vmatpush2.msra.mxu0 0.0
        %7897 = vmatprep.subr.mxu0 0.0
        %7898 = vmatpush2.msra.mxu0 0.0
        %7899 = vmatprep.subr.mxu0 0.0
        %7900 = vmatpush2.msra.mxu0 0.0
        %7901 = vmatprep.subr.mxu0 0.0
        %7902 = vmatpush2.msra.mxu0 0.0
        %7903 = vmatprep.subr.mxu0 0.0
        %7904 = vmatpush2.msra.mxu0 0.0
        %7905 = vmatprep.subr.mxu0 0.0
        %7906 = vmatpush2.msra.mxu0 0.0
        %7907 = vmatprep.subr.mxu0 0.0
        %7908 = vmatpush2.msra.mxu0 0.0
        %7909 = vmatprep.subr.mxu0 0.0
        %7910 = vmatpush2.msra.mxu0 0.0
        %7911 = vmatprep.subr.mxu0 0.0
        %7912 = vmatpush2.msra.mxu0 0.0
        %7913 = vmatprep.subr.mxu0 0.0
        %7914 = vmatpush2.msra.mxu0 0.0
        %7915 = vmatprep.subr.mxu0 0.0
        %7916 = vmatpush2.msra.mxu0 0.0
        %7917 = vmatprep.subr.mxu0 0.0
        %7918 = vmatpush2.msra.mxu0 0.0
        %7919 = vmatprep.subr.mxu0 0.0
        %7920 = vmatpush2.msra.mxu0 0.0
        %7921 = vmatprep.mubr.f32.mxu0 0.0
        %7922 = vmatmul.mubr.f32.gmra.mxu0 %v734
        %v7923 = vpop.f32.mrf.mxu0
        %v7924 = vadd.f32 %v7366, %v7923
        %v7925 = vpop.f32.mrf.mxu0
        %7926 = vdwg.mxu0
        %7927 = vmatprep.subr.mxu0 0.0
        %7928 = vmatpush1.msra.mxu0 0.0
        %7929 = vmatprep.subr.mxu0 0.0
        %7930 = vmatpush1.msra.mxu0 0.0
        %7931 = vmatprep.subr.mxu0 0.0
        %7932 = vmatpush1.msra.mxu0 0.0
        %7933 = vmatprep.subr.mxu0 0.0
        %7934 = vmatpush1.msra.mxu0 0.0
        %7935 = vmatprep.subr.mxu0 0.0
        %7936 = vmatpush1.msra.mxu0 0.0
        %7937 = vmatprep.subr.mxu0 0.0
        %7938 = vmatpush1.msra.mxu0 0.0
        %7939 = vmatprep.subr.mxu0 0.0
        %7940 = vmatpush1.msra.mxu0 0.0
        %7941 = vmatprep.subr.mxu0 0.0
        %7942 = vmatpush1.msra.mxu0 0.0
        %7943 = vmatprep.subr.mxu0 0.0
        %7944 = vmatpush1.msra.mxu0 0.0
        %7945 = vmatprep.subr.mxu0 0.0
        %7946 = vmatpush1.msra.mxu0 0.0
        %7947 = vmatprep.subr.mxu0 0.0
        %7948 = vmatpush1.msra.mxu0 0.0
        %7949 = vmatprep.subr.mxu0 0.0
        %7950 = vmatpush1.msra.mxu0 0.0
        %7951 = vmatprep.subr.mxu0 0.0
        %7952 = vmatpush1.msra.mxu0 0.0
        %7953 = vmatprep.subr.mxu0 0.0
        %7954 = vmatpush1.msra.mxu0 0.0
        %7955 = vmatprep.subr.mxu0 0.0
        %7956 = vmatpush1.msra.mxu0 0.0
        %7957 = vmatprep.subr.mxu0 0.0
        %7958 = vmatpush1.msra.mxu0 %v7324
        %7959 = vmatprep.subr.mxu0 0.0
        %7960 = vmatpush2.msra.mxu0 0.0
        %7961 = vmatprep.subr.mxu0 0.0
        %7962 = vmatpush2.msra.mxu0 0.0
        %7963 = vmatprep.subr.mxu0 0.0
        %7964 = vmatpush2.msra.mxu0 0.0
        %7965 = vmatprep.subr.mxu0 0.0
        %7966 = vmatpush2.msra.mxu0 0.0
        %7967 = vmatprep.subr.mxu0 0.0
        %7968 = vmatpush2.msra.mxu0 0.0
        %7969 = vmatprep.subr.mxu0 0.0
        %7970 = vmatpush2.msra.mxu0 0.0
        %7971 = vmatprep.subr.mxu0 0.0
        %7972 = vmatpush2.msra.mxu0 0.0
        %7973 = vmatprep.subr.mxu0 0.0
        %7974 = vmatpush2.msra.mxu0 0.0
        %7975 = vmatprep.subr.mxu0 0.0
        %7976 = vmatpush2.msra.mxu0 0.0
        %7977 = vmatprep.subr.mxu0 0.0
        %7978 = vmatpush2.msra.mxu0 0.0
        %7979 = vmatprep.subr.mxu0 0.0
        %7980 = vmatpush2.msra.mxu0 0.0
        %7981 = vmatprep.subr.mxu0 0.0
        %7982 = vmatpush2.msra.mxu0 0.0
        %7983 = vmatprep.subr.mxu0 0.0
        %7984 = vmatpush2.msra.mxu0 0.0
        %7985 = vmatprep.subr.mxu0 0.0
        %7986 = vmatpush2.msra.mxu0 0.0
        %7987 = vmatprep.subr.mxu0 0.0
        %7988 = vmatpush2.msra.mxu0 0.0
        %7989 = vmatprep.subr.mxu0 0.0
        %7990 = vmatpush2.msra.mxu0 0.0
        %7991 = vmatprep.mubr.f32.mxu0 0.0
        %7992 = vmatmul.mubr.f32.gmra.mxu0 %v810
        %v7993 = vpop.f32.mrf.mxu0
        %v7994 = vadd.f32 %v7366, %v7993
        %v7995 = vpop.f32.mrf.mxu0
        %7996 = vdwg.mxu0
        %7997 = vmatprep.subr.mxu0 0.0
        %7998 = vmatpush1.msra.mxu0 0.0
        %7999 = vmatprep.subr.mxu0 0.0
        %8000 = vmatpush1.msra.mxu0 0.0
        %8001 = vmatprep.subr.mxu0 0.0
        %8002 = vmatpush1.msra.mxu0 0.0
        %8003 = vmatprep.subr.mxu0 0.0
        %8004 = vmatpush1.msra.mxu0 0.0
        %8005 = vmatprep.subr.mxu0 0.0
        %8006 = vmatpush1.msra.mxu0 0.0
        %8007 = vmatprep.subr.mxu0 0.0
        %8008 = vmatpush1.msra.mxu0 0.0
        %8009 = vmatprep.subr.mxu0 0.0
        %8010 = vmatpush1.msra.mxu0 0.0
        %8011 = vmatprep.subr.mxu0 0.0
        %8012 = vmatpush1.msra.mxu0 0.0
        %8013 = vmatprep.subr.mxu0 0.0
        %8014 = vmatpush1.msra.mxu0 0.0
        %8015 = vmatprep.subr.mxu0 0.0
        %8016 = vmatpush1.msra.mxu0 0.0
        %8017 = vmatprep.subr.mxu0 0.0
        %8018 = vmatpush1.msra.mxu0 0.0
        %8019 = vmatprep.subr.mxu0 0.0
        %8020 = vmatpush1.msra.mxu0 0.0
        %8021 = vmatprep.subr.mxu0 0.0
        %8022 = vmatpush1.msra.mxu0 0.0
        %8023 = vmatprep.subr.mxu0 0.0
        %8024 = vmatpush1.msra.mxu0 0.0
        %8025 = vmatprep.subr.mxu0 0.0
        %8026 = vmatpush1.msra.mxu0 0.0
        %8027 = vmatprep.subr.mxu0 0.0
        %8028 = vmatpush1.msra.mxu0 %v7329
        %8029 = vmatprep.subr.mxu0 0.0
        %8030 = vmatpush2.msra.mxu0 0.0
        %8031 = vmatprep.subr.mxu0 0.0
        %8032 = vmatpush2.msra.mxu0 0.0
        %8033 = vmatprep.subr.mxu0 0.0
        %8034 = vmatpush2.msra.mxu0 0.0
        %8035 = vmatprep.subr.mxu0 0.0
        %8036 = vmatpush2.msra.mxu0 0.0
        %8037 = vmatprep.subr.mxu0 0.0
        %8038 = vmatpush2.msra.mxu0 0.0
        %8039 = vmatprep.subr.mxu0 0.0
        %8040 = vmatpush2.msra.mxu0 0.0
        %8041 = vmatprep.subr.mxu0 0.0
        %8042 = vmatpush2.msra.mxu0 0.0
        %8043 = vmatprep.subr.mxu0 0.0
        %8044 = vmatpush2.msra.mxu0 0.0
        %8045 = vmatprep.subr.mxu0 0.0
        %8046 = vmatpush2.msra.mxu0 0.0
        %8047 = vmatprep.subr.mxu0 0.0
        %8048 = vmatpush2.msra.mxu0 0.0
        %8049 = vmatprep.subr.mxu0 0.0
        %8050 = vmatpush2.msra.mxu0 0.0
        %8051 = vmatprep.subr.mxu0 0.0
        %8052 = vmatpush2.msra.mxu0 0.0
        %8053 = vmatprep.subr.mxu0 0.0
        %8054 = vmatpush2.msra.mxu0 0.0
        %8055 = vmatprep.subr.mxu0 0.0
        %8056 = vmatpush2.msra.mxu0 0.0
        %8057 = vmatprep.subr.mxu0 0.0
        %8058 = vmatpush2.msra.mxu0 0.0
        %8059 = vmatprep.subr.mxu0 0.0
        %8060 = vmatpush2.msra.mxu0 0.0
        %8061 = vmatprep.mubr.f32.mxu0 0.0
        %8062 = vmatmul.mubr.f32.gmra.mxu0 %v886
        %v8063 = vpop.f32.mrf.mxu0
        %v8064 = vadd.f32 %v7366, %v8063
        %v8065 = vpop.f32.mrf.mxu0
        %8066 = vdwg.mxu0
        %8067 = vmatprep.subr.mxu0 0.0
        %8068 = vmatpush1.msra.mxu0 0.0
        %8069 = vmatprep.subr.mxu0 0.0
        %8070 = vmatpush1.msra.mxu0 0.0
        %8071 = vmatprep.subr.mxu0 0.0
        %8072 = vmatpush1.msra.mxu0 0.0
        %8073 = vmatprep.subr.mxu0 0.0
        %8074 = vmatpush1.msra.mxu0 0.0
        %8075 = vmatprep.subr.mxu0 0.0
        %8076 = vmatpush1.msra.mxu0 0.0
        %8077 = vmatprep.subr.mxu0 0.0
        %8078 = vmatpush1.msra.mxu0 0.0
        %8079 = vmatprep.subr.mxu0 0.0
        %8080 = vmatpush1.msra.mxu0 0.0
        %8081 = vmatprep.subr.mxu0 0.0
        %8082 = vmatpush1.msra.mxu0 0.0
        %8083 = vmatprep.subr.mxu0 0.0
        %8084 = vmatpush1.msra.mxu0 0.0
        %8085 = vmatprep.subr.mxu0 0.0
        %8086 = vmatpush1.msra.mxu0 0.0
        %8087 = vmatprep.subr.mxu0 0.0
        %8088 = vmatpush1.msra.mxu0 0.0
        %8089 = vmatprep.subr.mxu0 0.0
        %8090 = vmatpush1.msra.mxu0 0.0
        %8091 = vmatprep.subr.mxu0 0.0
        %8092 = vmatpush1.msra.mxu0 0.0
        %8093 = vmatprep.subr.mxu0 0.0
        %8094 = vmatpush1.msra.mxu0 0.0
        %8095 = vmatprep.subr.mxu0 0.0
        %8096 = vmatpush1.msra.mxu0 0.0
        %8097 = vmatprep.subr.mxu0 0.0
        %8098 = vmatpush1.msra.mxu0 %v7334
        %8099 = vmatprep.subr.mxu0 0.0
        %8100 = vmatpush2.msra.mxu0 0.0
        %8101 = vmatprep.subr.mxu0 0.0
        %8102 = vmatpush2.msra.mxu0 0.0
        %8103 = vmatprep.subr.mxu0 0.0
        %8104 = vmatpush2.msra.mxu0 0.0
        %8105 = vmatprep.subr.mxu0 0.0
        %8106 = vmatpush2.msra.mxu0 0.0
        %8107 = vmatprep.subr.mxu0 0.0
        %8108 = vmatpush2.msra.mxu0 0.0
        %8109 = vmatprep.subr.mxu0 0.0
        %8110 = vmatpush2.msra.mxu0 0.0
        %8111 = vmatprep.subr.mxu0 0.0
        %8112 = vmatpush2.msra.mxu0 0.0
        %8113 = vmatprep.subr.mxu0 0.0
        %8114 = vmatpush2.msra.mxu0 0.0
        %8115 = vmatprep.subr.mxu0 0.0
        %8116 = vmatpush2.msra.mxu0 0.0
        %8117 = vmatprep.subr.mxu0 0.0
        %8118 = vmatpush2.msra.mxu0 0.0
        %8119 = vmatprep.subr.mxu0 0.0
        %8120 = vmatpush2.msra.mxu0 0.0
        %8121 = vmatprep.subr.mxu0 0.0
        %8122 = vmatpush2.msra.mxu0 0.0
        %8123 = vmatprep.subr.mxu0 0.0
        %8124 = vmatpush2.msra.mxu0 0.0
        %8125 = vmatprep.subr.mxu0 0.0
        %8126 = vmatpush2.msra.mxu0 0.0
        %8127 = vmatprep.subr.mxu0 0.0
        %8128 = vmatpush2.msra.mxu0 0.0
        %8129 = vmatprep.subr.mxu0 0.0
        %8130 = vmatpush2.msra.mxu0 0.0
        %8131 = vmatprep.mubr.f32.mxu0 0.0
        %8132 = vmatmul.mubr.f32.gmra.mxu0 %v962
        %v8133 = vpop.f32.mrf.mxu0
        %v8134 = vadd.f32 %v7366, %v8133
        %v8135 = vpop.f32.mrf.mxu0
        %8136 = vdwg.mxu0
        %8137 = vmatprep.subr.mxu0 0.0
        %8138 = vmatpush1.msra.mxu0 0.0
        %8139 = vmatprep.subr.mxu0 0.0
        %8140 = vmatpush1.msra.mxu0 0.0
        %8141 = vmatprep.subr.mxu0 0.0
        %8142 = vmatpush1.msra.mxu0 0.0
        %8143 = vmatprep.subr.mxu0 0.0
        %8144 = vmatpush1.msra.mxu0 0.0
        %8145 = vmatprep.subr.mxu0 0.0
        %8146 = vmatpush1.msra.mxu0 0.0
        %8147 = vmatprep.subr.mxu0 0.0
        %8148 = vmatpush1.msra.mxu0 0.0
        %8149 = vmatprep.subr.mxu0 0.0
        %8150 = vmatpush1.msra.mxu0 0.0
        %8151 = vmatprep.subr.mxu0 0.0
        %8152 = vmatpush1.msra.mxu0 0.0
        %8153 = vmatprep.subr.mxu0 0.0
        %8154 = vmatpush1.msra.mxu0 0.0
        %8155 = vmatprep.subr.mxu0 0.0
        %8156 = vmatpush1.msra.mxu0 0.0
        %8157 = vmatprep.subr.mxu0 0.0
        %8158 = vmatpush1.msra.mxu0 0.0
        %8159 = vmatprep.subr.mxu0 0.0
        %8160 = vmatpush1.msra.mxu0 0.0
        %8161 = vmatprep.subr.mxu0 0.0
        %8162 = vmatpush1.msra.mxu0 0.0
        %8163 = vmatprep.subr.mxu0 0.0
        %8164 = vmatpush1.msra.mxu0 0.0
        %8165 = vmatprep.subr.mxu0 0.0
        %8166 = vmatpush1.msra.mxu0 0.0
        %8167 = vmatprep.subr.mxu0 0.0
        %8168 = vmatpush1.msra.mxu0 %v7339
        %8169 = vmatprep.subr.mxu0 0.0
        %8170 = vmatpush2.msra.mxu0 0.0
        %8171 = vmatprep.subr.mxu0 0.0
        %8172 = vmatpush2.msra.mxu0 0.0
        %8173 = vmatprep.subr.mxu0 0.0
        %8174 = vmatpush2.msra.mxu0 0.0
        %8175 = vmatprep.subr.mxu0 0.0
        %8176 = vmatpush2.msra.mxu0 0.0
        %8177 = vmatprep.subr.mxu0 0.0
        %8178 = vmatpush2.msra.mxu0 0.0
        %8179 = vmatprep.subr.mxu0 0.0
        %8180 = vmatpush2.msra.mxu0 0.0
        %8181 = vmatprep.subr.mxu0 0.0
        %8182 = vmatpush2.msra.mxu0 0.0
        %8183 = vmatprep.subr.mxu0 0.0
        %8184 = vmatpush2.msra.mxu0 0.0
        %8185 = vmatprep.subr.mxu0 0.0
        %8186 = vmatpush2.msra.mxu0 0.0
        %8187 = vmatprep.subr.mxu0 0.0
        %8188 = vmatpush2.msra.mxu0 0.0
        %8189 = vmatprep.subr.mxu0 0.0
        %8190 = vmatpush2.msra.mxu0 0.0
        %8191 = vmatprep.subr.mxu0 0.0
        %8192 = vmatpush2.msra.mxu0 0.0
        %8193 = vmatprep.subr.mxu0 0.0
        %8194 = vmatpush2.msra.mxu0 0.0
        %8195 = vmatprep.subr.mxu0 0.0
        %8196 = vmatpush2.msra.mxu0 0.0
        %8197 = vmatprep.subr.mxu0 0.0
        %8198 = vmatpush2.msra.mxu0 0.0
        %8199 = vmatprep.subr.mxu0 0.0
        %8200 = vmatpush2.msra.mxu0 0.0
        %8201 = vmatprep.mubr.f32.mxu0 0.0
        %8202 = vmatmul.mubr.f32.gmra.mxu0 %v1038
        %v8203 = vpop.f32.mrf.mxu0
        %v8204 = vadd.f32 %v7366, %v8203
        %v8205 = vpop.f32.mrf.mxu0
        %8206 = vdwg.mxu0
        %8207 = vmatprep.subr.mxu0 0.0
        %8208 = vmatpush1.msra.mxu0 0.0
        %8209 = vmatprep.subr.mxu0 0.0
        %8210 = vmatpush1.msra.mxu0 0.0
        %8211 = vmatprep.subr.mxu0 0.0
        %8212 = vmatpush1.msra.mxu0 0.0
        %8213 = vmatprep.subr.mxu0 0.0
        %8214 = vmatpush1.msra.mxu0 0.0
        %8215 = vmatprep.subr.mxu0 0.0
        %8216 = vmatpush1.msra.mxu0 0.0
        %8217 = vmatprep.subr.mxu0 0.0
        %8218 = vmatpush1.msra.mxu0 0.0
        %8219 = vmatprep.subr.mxu0 0.0
        %8220 = vmatpush1.msra.mxu0 0.0
        %8221 = vmatprep.subr.mxu0 0.0
        %8222 = vmatpush1.msra.mxu0 0.0
        %8223 = vmatprep.subr.mxu0 0.0
        %8224 = vmatpush1.msra.mxu0 0.0
        %8225 = vmatprep.subr.mxu0 0.0
        %8226 = vmatpush1.msra.mxu0 0.0
        %8227 = vmatprep.subr.mxu0 0.0
        %8228 = vmatpush1.msra.mxu0 0.0
        %8229 = vmatprep.subr.mxu0 0.0
        %8230 = vmatpush1.msra.mxu0 0.0
        %8231 = vmatprep.subr.mxu0 0.0
        %8232 = vmatpush1.msra.mxu0 0.0
        %8233 = vmatprep.subr.mxu0 0.0
        %8234 = vmatpush1.msra.mxu0 0.0
        %8235 = vmatprep.subr.mxu0 0.0
        %8236 = vmatpush1.msra.mxu0 0.0
        %8237 = vmatprep.subr.mxu0 0.0
        %8238 = vmatpush1.msra.mxu0 %v7344
        %8239 = vmatprep.subr.mxu0 0.0
        %8240 = vmatpush2.msra.mxu0 0.0
        %8241 = vmatprep.subr.mxu0 0.0
        %8242 = vmatpush2.msra.mxu0 0.0
        %8243 = vmatprep.subr.mxu0 0.0
        %8244 = vmatpush2.msra.mxu0 0.0
        %8245 = vmatprep.subr.mxu0 0.0
        %8246 = vmatpush2.msra.mxu0 0.0
        %8247 = vmatprep.subr.mxu0 0.0
        %8248 = vmatpush2.msra.mxu0 0.0
        %8249 = vmatprep.subr.mxu0 0.0
        %8250 = vmatpush2.msra.mxu0 0.0
        %8251 = vmatprep.subr.mxu0 0.0
        %8252 = vmatpush2.msra.mxu0 0.0
        %8253 = vmatprep.subr.mxu0 0.0
        %8254 = vmatpush2.msra.mxu0 0.0
        %8255 = vmatprep.subr.mxu0 0.0
        %8256 = vmatpush2.msra.mxu0 0.0
        %8257 = vmatprep.subr.mxu0 0.0
        %8258 = vmatpush2.msra.mxu0 0.0
        %8259 = vmatprep.subr.mxu0 0.0
        %8260 = vmatpush2.msra.mxu0 0.0
        %8261 = vmatprep.subr.mxu0 0.0
        %8262 = vmatpush2.msra.mxu0 0.0
        %8263 = vmatprep.subr.mxu0 0.0
        %8264 = vmatpush2.msra.mxu0 0.0
        %8265 = vmatprep.subr.mxu0 0.0
        %8266 = vmatpush2.msra.mxu0 0.0
        %8267 = vmatprep.subr.mxu0 0.0
        %8268 = vmatpush2.msra.mxu0 0.0
        %8269 = vmatprep.subr.mxu0 0.0
        %8270 = vmatpush2.msra.mxu0 0.0
        %8271 = vmatprep.mubr.f32.mxu0 0.0
        %8272 = vmatmul.mubr.f32.gmra.mxu0 %v1114
        %v8273 = vpop.f32.mrf.mxu0
        %v8274 = vadd.f32 %v7366, %v8273
        %v8275 = vpop.f32.mrf.mxu0
        %8276 = vdwg.mxu0
        %8277 = vmatprep.subr.mxu0 0.0
        %8278 = vmatpush1.msra.mxu0 0.0
        %8279 = vmatprep.subr.mxu0 0.0
        %8280 = vmatpush1.msra.mxu0 0.0
        %8281 = vmatprep.subr.mxu0 0.0
        %8282 = vmatpush1.msra.mxu0 0.0
        %8283 = vmatprep.subr.mxu0 0.0
        %8284 = vmatpush1.msra.mxu0 0.0
        %8285 = vmatprep.subr.mxu0 0.0
        %8286 = vmatpush1.msra.mxu0 0.0
        %8287 = vmatprep.subr.mxu0 0.0
        %8288 = vmatpush1.msra.mxu0 0.0
        %8289 = vmatprep.subr.mxu0 0.0
        %8290 = vmatpush1.msra.mxu0 0.0
        %8291 = vmatprep.subr.mxu0 0.0
        %8292 = vmatpush1.msra.mxu0 0.0
        %8293 = vmatprep.subr.mxu0 0.0
        %8294 = vmatpush1.msra.mxu0 0.0
        %8295 = vmatprep.subr.mxu0 0.0
        %8296 = vmatpush1.msra.mxu0 0.0
        %8297 = vmatprep.subr.mxu0 0.0
        %8298 = vmatpush1.msra.mxu0 0.0
        %8299 = vmatprep.subr.mxu0 0.0
        %8300 = vmatpush1.msra.mxu0 0.0
        %8301 = vmatprep.subr.mxu0 0.0
        %8302 = vmatpush1.msra.mxu0 0.0
        %8303 = vmatprep.subr.mxu0 0.0
        %8304 = vmatpush1.msra.mxu0 0.0
        %8305 = vmatprep.subr.mxu0 0.0
        %8306 = vmatpush1.msra.mxu0 0.0
        %8307 = vmatprep.subr.mxu0 0.0
        %8308 = vmatpush1.msra.mxu0 %v7349
        %8309 = vmatprep.subr.mxu0 0.0
        %8310 = vmatpush2.msra.mxu0 0.0
        %8311 = vmatprep.subr.mxu0 0.0
        %8312 = vmatpush2.msra.mxu0 0.0
        %8313 = vmatprep.subr.mxu0 0.0
        %8314 = vmatpush2.msra.mxu0 0.0
        %8315 = vmatprep.subr.mxu0 0.0
        %8316 = vmatpush2.msra.mxu0 0.0
        %8317 = vmatprep.subr.mxu0 0.0
        %8318 = vmatpush2.msra.mxu0 0.0
        %8319 = vmatprep.subr.mxu0 0.0
        %8320 = vmatpush2.msra.mxu0 0.0
        %8321 = vmatprep.subr.mxu0 0.0
        %8322 = vmatpush2.msra.mxu0 0.0
        %8323 = vmatprep.subr.mxu0 0.0
        %8324 = vmatpush2.msra.mxu0 0.0
        %8325 = vmatprep.subr.mxu0 0.0
        %8326 = vmatpush2.msra.mxu0 0.0
        %8327 = vmatprep.subr.mxu0 0.0
        %8328 = vmatpush2.msra.mxu0 0.0
        %8329 = vmatprep.subr.mxu0 0.0
        %8330 = vmatpush2.msra.mxu0 0.0
        %8331 = vmatprep.subr.mxu0 0.0
        %8332 = vmatpush2.msra.mxu0 0.0
        %8333 = vmatprep.subr.mxu0 0.0
        %8334 = vmatpush2.msra.mxu0 0.0
        %8335 = vmatprep.subr.mxu0 0.0
        %8336 = vmatpush2.msra.mxu0 0.0
        %8337 = vmatprep.subr.mxu0 0.0
        %8338 = vmatpush2.msra.mxu0 0.0
        %8339 = vmatprep.subr.mxu0 0.0
        %8340 = vmatpush2.msra.mxu0 0.0
        %8341 = vmatprep.mubr.f32.mxu0 0.0
        %8342 = vmatmul.mubr.f32.gmra.mxu0 %v1190
        %v8343 = vpop.f32.mrf.mxu0
        %v8344 = vadd.f32 %v7366, %v8343
        %v8345 = vpop.f32.mrf.mxu0
        %8346 = vdwg.mxu0
        %8347 = vmatprep.subr.mxu0 0.0
        %8348 = vmatpush1.msra.mxu0 0.0
        %8349 = vmatprep.subr.mxu0 0.0
        %8350 = vmatpush1.msra.mxu0 0.0
        %8351 = vmatprep.subr.mxu0 0.0
        %8352 = vmatpush1.msra.mxu0 0.0
        %8353 = vmatprep.subr.mxu0 0.0
        %8354 = vmatpush1.msra.mxu0 0.0
        %8355 = vmatprep.subr.mxu0 0.0
        %8356 = vmatpush1.msra.mxu0 0.0
        %8357 = vmatprep.subr.mxu0 0.0
        %8358 = vmatpush1.msra.mxu0 0.0
        %8359 = vmatprep.subr.mxu0 0.0
        %8360 = vmatpush1.msra.mxu0 0.0
        %8361 = vmatprep.subr.mxu0 0.0
        %8362 = vmatpush1.msra.mxu0 0.0
        %8363 = vmatprep.subr.mxu0 0.0
        %8364 = vmatpush1.msra.mxu0 0.0
        %8365 = vmatprep.subr.mxu0 0.0
        %8366 = vmatpush1.msra.mxu0 0.0
        %8367 = vmatprep.subr.mxu0 0.0
        %8368 = vmatpush1.msra.mxu0 0.0
        %8369 = vmatprep.subr.mxu0 0.0
        %8370 = vmatpush1.msra.mxu0 0.0
        %8371 = vmatprep.subr.mxu0 0.0
        %8372 = vmatpush1.msra.mxu0 0.0
        %8373 = vmatprep.subr.mxu0 0.0
        %8374 = vmatpush1.msra.mxu0 0.0
        %8375 = vmatprep.subr.mxu0 0.0
        %8376 = vmatpush1.msra.mxu0 0.0
        %8377 = vmatprep.subr.mxu0 0.0
        %8378 = vmatpush1.msra.mxu0 %v7354
        %8379 = vmatprep.subr.mxu0 0.0
        %8380 = vmatpush2.msra.mxu0 0.0
        %8381 = vmatprep.subr.mxu0 0.0
        %8382 = vmatpush2.msra.mxu0 0.0
        %8383 = vmatprep.subr.mxu0 0.0
        %8384 = vmatpush2.msra.mxu0 0.0
        %8385 = vmatprep.subr.mxu0 0.0
        %8386 = vmatpush2.msra.mxu0 0.0
        %8387 = vmatprep.subr.mxu0 0.0
        %8388 = vmatpush2.msra.mxu0 0.0
        %8389 = vmatprep.subr.mxu0 0.0
        %8390 = vmatpush2.msra.mxu0 0.0
        %8391 = vmatprep.subr.mxu0 0.0
        %8392 = vmatpush2.msra.mxu0 0.0
        %8393 = vmatprep.subr.mxu0 0.0
        %8394 = vmatpush2.msra.mxu0 0.0
        %8395 = vmatprep.subr.mxu0 0.0
        %8396 = vmatpush2.msra.mxu0 0.0
        %8397 = vmatprep.subr.mxu0 0.0
        %8398 = vmatpush2.msra.mxu0 0.0
        %8399 = vmatprep.subr.mxu0 0.0
        %8400 = vmatpush2.msra.mxu0 0.0
        %8401 = vmatprep.subr.mxu0 0.0
        %8402 = vmatpush2.msra.mxu0 0.0
        %8403 = vmatprep.subr.mxu0 0.0
        %8404 = vmatpush2.msra.mxu0 0.0
        %8405 = vmatprep.subr.mxu0 0.0
        %8406 = vmatpush2.msra.mxu0 0.0
        %8407 = vmatprep.subr.mxu0 0.0
        %8408 = vmatpush2.msra.mxu0 0.0
        %8409 = vmatprep.subr.mxu0 0.0
        %8410 = vmatpush2.msra.mxu0 0.0
        %8411 = vmatprep.mubr.f32.mxu0 0.0
        %8412 = vmatmul.mubr.f32.gmra.mxu0 %v1266
        %v8413 = vpop.f32.mrf.mxu0
        %v8414 = vadd.f32 %v7366, %v8413
        %v8415 = vpop.f32.mrf.mxu0
        %8416 = vdwg.mxu0
        %8417 = vmatprep.subr.mxu0 0.0
        %8418 = vmatpush1.msra.mxu0 0.0
        %8419 = vmatprep.subr.mxu0 0.0
        %8420 = vmatpush1.msra.mxu0 0.0
        %8421 = vmatprep.subr.mxu0 0.0
        %8422 = vmatpush1.msra.mxu0 0.0
        %8423 = vmatprep.subr.mxu0 0.0
        %8424 = vmatpush1.msra.mxu0 0.0
        %8425 = vmatprep.subr.mxu0 0.0
        %8426 = vmatpush1.msra.mxu0 0.0
        %8427 = vmatprep.subr.mxu0 0.0
        %8428 = vmatpush1.msra.mxu0 0.0
        %8429 = vmatprep.subr.mxu0 0.0
        %8430 = vmatpush1.msra.mxu0 0.0
        %8431 = vmatprep.subr.mxu0 0.0
        %8432 = vmatpush1.msra.mxu0 0.0
        %8433 = vmatprep.subr.mxu0 0.0
        %8434 = vmatpush1.msra.mxu0 0.0
        %8435 = vmatprep.subr.mxu0 0.0
        %8436 = vmatpush1.msra.mxu0 0.0
        %8437 = vmatprep.subr.mxu0 0.0
        %8438 = vmatpush1.msra.mxu0 0.0
        %8439 = vmatprep.subr.mxu0 0.0
        %8440 = vmatpush1.msra.mxu0 0.0
        %8441 = vmatprep.subr.mxu0 0.0
        %8442 = vmatpush1.msra.mxu0 0.0
        %8443 = vmatprep.subr.mxu0 0.0
        %8444 = vmatpush1.msra.mxu0 0.0
        %8445 = vmatprep.subr.mxu0 0.0
        %8446 = vmatpush1.msra.mxu0 0.0
        %8447 = vmatprep.subr.mxu0 0.0
        %8448 = vmatpush1.msra.mxu0 %v7359
        %8449 = vmatprep.subr.mxu0 0.0
        %8450 = vmatpush2.msra.mxu0 0.0
        %8451 = vmatprep.subr.mxu0 0.0
        %8452 = vmatpush2.msra.mxu0 0.0
        %8453 = vmatprep.subr.mxu0 0.0
        %8454 = vmatpush2.msra.mxu0 0.0
        %8455 = vmatprep.subr.mxu0 0.0
        %8456 = vmatpush2.msra.mxu0 0.0
        %8457 = vmatprep.subr.mxu0 0.0
        %8458 = vmatpush2.msra.mxu0 0.0
        %8459 = vmatprep.subr.mxu0 0.0
        %8460 = vmatpush2.msra.mxu0 0.0
        %8461 = vmatprep.subr.mxu0 0.0
        %8462 = vmatpush2.msra.mxu0 0.0
        %8463 = vmatprep.subr.mxu0 0.0
        %8464 = vmatpush2.msra.mxu0 0.0
        %8465 = vmatprep.subr.mxu0 0.0
        %8466 = vmatpush2.msra.mxu0 0.0
        %8467 = vmatprep.subr.mxu0 0.0
        %8468 = vmatpush2.msra.mxu0 0.0
        %8469 = vmatprep.subr.mxu0 0.0
        %8470 = vmatpush2.msra.mxu0 0.0
        %8471 = vmatprep.subr.mxu0 0.0
        %8472 = vmatpush2.msra.mxu0 0.0
        %8473 = vmatprep.subr.mxu0 0.0
        %8474 = vmatpush2.msra.mxu0 0.0
        %8475 = vmatprep.subr.mxu0 0.0
        %8476 = vmatpush2.msra.mxu0 0.0
        %8477 = vmatprep.subr.mxu0 0.0
        %8478 = vmatpush2.msra.mxu0 0.0
        %8479 = vmatprep.subr.mxu0 0.0
        %8480 = vmatpush2.msra.mxu0 0.0
        %8481 = vmatprep.mubr.f32.mxu0 0.0
        %8482 = vmatmul.mubr.f32.gmra.mxu0 %v1342
        %v8483 = vpop.f32.mrf.mxu0
        %v8484 = vadd.f32 %v7366, %v8483
        %v8485 = vpop.f32.mrf.mxu0
        %8486 = vdwg.mxu0
        %v8487 = vsel %vm1423, %v7434, 0.0
        %8488 = vadd.xlane.f32.xlu0 %v8487
        %v8489 = vpop.xlane.xlu0 %8488
        %v8490 = vsel %vm1423, %v7504, 0.0
        %8491 = vadd.xlane.f32.xlu0 %v8490
        %v8492 = vpop.xlane.xlu0 %8491
        %v8493 = vsel %vm1423, %v7574, 0.0
        %8494 = vadd.xlane.f32.xlu0 %v8493
        %v8495 = vpop.xlane.xlu0 %8494
        %v8496 = vsel %vm1423, %v7644, 0.0
        %8497 = vadd.xlane.f32.xlu0 %v8496
        %v8498 = vpop.xlane.xlu0 %8497
        %v8499 = vsel %vm1423, %v7714, 0.0
        %8500 = vadd.xlane.f32.xlu0 %v8499
        %v8501 = vpop.xlane.xlu0 %8500
        %v8502 = vsel %vm1423, %v7784, 0.0
        %8503 = vadd.xlane.f32.xlu0 %v8502
        %v8504 = vpop.xlane.xlu0 %8503
        %v8505 = vsel %vm1423, %v7854, 0.0
        %8506 = vadd.xlane.f32.xlu0 %v8505
        %v8507 = vpop.xlane.xlu0 %8506
        %v8508 = vsel %vm1423, %v7924, 0.0
        %8509 = vadd.xlane.f32.xlu0 %v8508
        %v8510 = vpop.xlane.xlu0 %8509
        %v8511 = vsel %vm1423, %v7994, 0.0
        %8512 = vadd.xlane.f32.xlu0 %v8511
        %v8513 = vpop.xlane.xlu0 %8512
        %v8514 = vsel %vm1423, %v8064, 0.0
        %8515 = vadd.xlane.f32.xlu0 %v8514
        %v8516 = vpop.xlane.xlu0 %8515
        %v8517 = vsel %vm1423, %v8134, 0.0
        %8518 = vadd.xlane.f32.xlu0 %v8517
        %v8519 = vpop.xlane.xlu0 %8518
        %v8520 = vsel %vm1423, %v8204, 0.0
        %8521 = vadd.xlane.f32.xlu0 %v8520
        %v8522 = vpop.xlane.xlu0 %8521
        %v8523 = vsel %vm1423, %v8274, 0.0
        %8524 = vadd.xlane.f32.xlu0 %v8523
        %v8525 = vpop.xlane.xlu0 %8524
        %v8526 = vsel %vm1423, %v8344, 0.0
        %8527 = vadd.xlane.f32.xlu0 %v8526
        %v8528 = vpop.xlane.xlu0 %8527
        %v8529 = vsel %vm1423, %v8414, 0.0
        %8530 = vadd.xlane.f32.xlu0 %v8529
        %v8531 = vpop.xlane.xlu0 %8530
        %v8532 = vsel %vm1423, %v8484, 0.0
        %8533 = vadd.xlane.f32.xlu0 %v8532
        %v8534 = vpop.xlane.xlu0 %8533
        %v8535 = vmul.f32 %v8489, %v5610
        %v8536 = vmul.f32 %v8492, %v5610
        %v8537 = vmul.f32 %v8495, %v5610
        %v8538 = vmul.f32 %v8498, %v5610
        %v8539 = vmul.f32 %v8501, %v5610
        %v8540 = vmul.f32 %v8504, %v5610
        %v8541 = vmul.f32 %v8507, %v5610
        %v8542 = vmul.f32 %v8510, %v5610
        %v8543 = vmul.f32 %v8513, %v5610
        %v8544 = vmul.f32 %v8516, %v5610
        %v8545 = vmul.f32 %v8519, %v5610
        %v8546 = vmul.f32 %v8522, %v5610
        %v8547 = vmul.f32 %v8525, %v5610
        %v8548 = vmul.f32 %v8528, %v5610
        %v8549 = vmul.f32 %v8531, %v5610
        %v8550 = vmul.f32 %v8534, %v5610
        %v8551 = vsub.f32 %v7434, %v8535
        %v8552 = vsub.f32 %v7504, %v8536
        %v8553 = vsub.f32 %v7574, %v8537
        %v8554 = vsub.f32 %v7644, %v8538
        %v8555 = vsub.f32 %v7714, %v8539
        %v8556 = vsub.f32 %v7784, %v8540
        %v8557 = vsub.f32 %v7854, %v8541
        %v8558 = vsub.f32 %v7924, %v8542
        %v8559 = vsub.f32 %v7994, %v8543
        %v8560 = vsub.f32 %v8064, %v8544
        %v8561 = vsub.f32 %v8134, %v8545
        %v8562 = vsub.f32 %v8204, %v8546
        %v8563 = vsub.f32 %v8274, %v8547
        %v8564 = vsub.f32 %v8344, %v8548
        %v8565 = vsub.f32 %v8414, %v8549
        %v8566 = vsub.f32 %v8484, %v8550
        %v8567 = vmul.f32 %v8551, %v8551
        %v8568 = vmul.f32 %v8552, %v8552
        %v8569 = vmul.f32 %v8553, %v8553
        %v8570 = vmul.f32 %v8554, %v8554
        %v8571 = vmul.f32 %v8555, %v8555
        %v8572 = vmul.f32 %v8556, %v8556
        %v8573 = vmul.f32 %v8557, %v8557
        %v8574 = vmul.f32 %v8558, %v8558
        %v8575 = vmul.f32 %v8559, %v8559
        %v8576 = vmul.f32 %v8560, %v8560
        %v8577 = vmul.f32 %v8561, %v8561
        %v8578 = vmul.f32 %v8562, %v8562
        %v8579 = vmul.f32 %v8563, %v8563
        %v8580 = vmul.f32 %v8564, %v8564
        %v8581 = vmul.f32 %v8565, %v8565
        %v8582 = vmul.f32 %v8566, %v8566
        %v8583 = vsel %vm1423, %v8567, 0.0
        %8584 = vadd.xlane.f32.xlu0 %v8583
        %v8585 = vpop.xlane.xlu0 %8584
        %v8586 = vsel %vm1423, %v8568, 0.0
        %8587 = vadd.xlane.f32.xlu0 %v8586
        %v8588 = vpop.xlane.xlu0 %8587
        %v8589 = vsel %vm1423, %v8569, 0.0
        %8590 = vadd.xlane.f32.xlu0 %v8589
        %v8591 = vpop.xlane.xlu0 %8590
        %v8592 = vsel %vm1423, %v8570, 0.0
        %8593 = vadd.xlane.f32.xlu0 %v8592
        %v8594 = vpop.xlane.xlu0 %8593
        %v8595 = vsel %vm1423, %v8571, 0.0
        %8596 = vadd.xlane.f32.xlu0 %v8595
        %v8597 = vpop.xlane.xlu0 %8596
        %v8598 = vsel %vm1423, %v8572, 0.0
        %8599 = vadd.xlane.f32.xlu0 %v8598
        %v8600 = vpop.xlane.xlu0 %8599
        %v8601 = vsel %vm1423, %v8573, 0.0
        %8602 = vadd.xlane.f32.xlu0 %v8601
        %v8603 = vpop.xlane.xlu0 %8602
        %v8604 = vsel %vm1423, %v8574, 0.0
        %8605 = vadd.xlane.f32.xlu0 %v8604
        %v8606 = vpop.xlane.xlu0 %8605
        %v8607 = vsel %vm1423, %v8575, 0.0
        %8608 = vadd.xlane.f32.xlu0 %v8607
        %v8609 = vpop.xlane.xlu0 %8608
        %v8610 = vsel %vm1423, %v8576, 0.0
        %8611 = vadd.xlane.f32.xlu0 %v8610
        %v8612 = vpop.xlane.xlu0 %8611
        %v8613 = vsel %vm1423, %v8577, 0.0
        %8614 = vadd.xlane.f32.xlu0 %v8613
        %v8615 = vpop.xlane.xlu0 %8614
        %v8616 = vsel %vm1423, %v8578, 0.0
        %8617 = vadd.xlane.f32.xlu0 %v8616
        %v8618 = vpop.xlane.xlu0 %8617
        %v8619 = vsel %vm1423, %v8579, 0.0
        %8620 = vadd.xlane.f32.xlu0 %v8619
        %v8621 = vpop.xlane.xlu0 %8620
        %v8622 = vsel %vm1423, %v8580, 0.0
        %8623 = vadd.xlane.f32.xlu0 %v8622
        %v8624 = vpop.xlane.xlu0 %8623
        %v8625 = vsel %vm1423, %v8581, 0.0
        %8626 = vadd.xlane.f32.xlu0 %v8625
        %v8627 = vpop.xlane.xlu0 %8626
        %v8628 = vsel %vm1423, %v8582, 0.0
        %8629 = vadd.xlane.f32.xlu0 %v8628
        %v8630 = vpop.xlane.xlu0 %8629
        %v8631 = vmul.f32 %v8585, %v5610
        %v8632 = vmul.f32 %v8588, %v5610
        %v8633 = vmul.f32 %v8591, %v5610
        %v8634 = vmul.f32 %v8594, %v5610
        %v8635 = vmul.f32 %v8597, %v5610
        %v8636 = vmul.f32 %v8600, %v5610
        %v8637 = vmul.f32 %v8603, %v5610
        %v8638 = vmul.f32 %v8606, %v5610
        %v8639 = vmul.f32 %v8609, %v5610
        %v8640 = vmul.f32 %v8612, %v5610
        %v8641 = vmul.f32 %v8615, %v5610
        %v8642 = vmul.f32 %v8618, %v5610
        %v8643 = vmul.f32 %v8621, %v5610
        %v8644 = vmul.f32 %v8624, %v5610
        %v8645 = vmul.f32 %v8627, %v5610
        %v8646 = vmul.f32 %v8630, %v5610
        %v8647 = vadd.f32 %v8631, 1e-05
        %v8648 = vadd.f32 %v8632, 1e-05
        %v8649 = vadd.f32 %v8633, 1e-05
        %v8650 = vadd.f32 %v8634, 1e-05
        %v8651 = vadd.f32 %v8635, 1e-05
        %v8652 = vadd.f32 %v8636, 1e-05
        %v8653 = vadd.f32 %v8637, 1e-05
        %v8654 = vadd.f32 %v8638, 1e-05
        %v8655 = vadd.f32 %v8639, 1e-05
        %v8656 = vadd.f32 %v8640, 1e-05
        %v8657 = vadd.f32 %v8641, 1e-05
        %v8658 = vadd.f32 %v8642, 1e-05
        %v8659 = vadd.f32 %v8643, 1e-05
        %v8660 = vadd.f32 %v8644, 1e-05
        %v8661 = vadd.f32 %v8645, 1e-05
        %v8662 = vadd.f32 %v8646, 1e-05
        %v8663 = vrsqrt.pop %v8647
        %v8664 = vrsqrt.pop %v8648
        %v8665 = vrsqrt.pop %v8649
        %v8666 = vrsqrt.pop %v8650
        %v8667 = vrsqrt.pop %v8651
        %v8668 = vrsqrt.pop %v8652
        %v8669 = vrsqrt.pop %v8653
        %v8670 = vrsqrt.pop %v8654
        %v8671 = vrsqrt.pop %v8655
        %v8672 = vrsqrt.pop %v8656
        %v8673 = vrsqrt.pop %v8657
        %v8674 = vrsqrt.pop %v8658
        %v8675 = vrsqrt.pop %v8659
        %v8676 = vrsqrt.pop %v8660
        %v8677 = vrsqrt.pop %v8661
        %v8678 = vrsqrt.pop %v8662
        %v8679 = vmul.f32 %v8551, %v8663
        %v8680 = vmul.f32 %v8552, %v8664
        %v8681 = vmul.f32 %v8553, %v8665
        %v8682 = vmul.f32 %v8554, %v8666
        %v8683 = vmul.f32 %v8555, %v8667
        %v8684 = vmul.f32 %v8556, %v8668
        %v8685 = vmul.f32 %v8557, %v8669
        %v8686 = vmul.f32 %v8558, %v8670
        %v8687 = vmul.f32 %v8559, %v8671
        %v8688 = vmul.f32 %v8560, %v8672
        %v8689 = vmul.f32 %v8561, %v8673
        %v8690 = vmul.f32 %v8562, %v8674
        %v8691 = vmul.f32 %v8563, %v8675
        %v8692 = vmul.f32 %v8564, %v8676
        %v8693 = vmul.f32 %v8565, %v8677
        %v8694 = vmul.f32 %v8566, %v8678
        %v8695 = vmul.f32 %v8679, %v5774
        %v8696 = vmul.f32 %v8680, %v5774
        %v8697 = vmul.f32 %v8681, %v5774
        %v8698 = vmul.f32 %v8682, %v5774
        %v8699 = vmul.f32 %v8683, %v5774
        %v8700 = vmul.f32 %v8684, %v5774
        %v8701 = vmul.f32 %v8685, %v5774
        %v8702 = vmul.f32 %v8686, %v5774
        %v8703 = vmul.f32 %v8687, %v5774
        %v8704 = vmul.f32 %v8688, %v5774
        %v8705 = vmul.f32 %v8689, %v5774
        %v8706 = vmul.f32 %v8690, %v5774
        %v8707 = vmul.f32 %v8691, %v5774
        %v8708 = vmul.f32 %v8692, %v5774
        %v8709 = vmul.f32 %v8693, %v5774
        %v8710 = vmul.f32 %v8694, %v5774
        %v8711 = vadd.f32 %v8695, %v5794
        %v8712 = vadd.f32 %v8696, %v5794
        %v8713 = vadd.f32 %v8697, %v5794
        %v8714 = vadd.f32 %v8698, %v5794
        %v8715 = vadd.f32 %v8699, %v5794
        %v8716 = vadd.f32 %v8700, %v5794
        %v8717 = vadd.f32 %v8701, %v5794
        %v8718 = vadd.f32 %v8702, %v5794
        %v8719 = vadd.f32 %v8703, %v5794
        %v8720 = vadd.f32 %v8704, %v5794
        %v8721 = vadd.f32 %v8705, %v5794
        %v8722 = vadd.f32 %v8706, %v5794
        %v8723 = vadd.f32 %v8707, %v5794
        %v8724 = vadd.f32 %v8708, %v5794
        %v8725 = vadd.f32 %v8709, %v5794
        %v8726 = vadd.f32 %v8710, %v5794
        %8727 = vrot.lane.b32.xlu0 %v3010, 32
        %v8728 = vpop.permute.xlu0 %8727
        %8729 = vrot.lane.b32.xlu0 %v3011, 32
        %v8730 = vpop.permute.xlu0 %8729
        %8731 = vrot.lane.b32.xlu0 %v3012, 32
        %v8732 = vpop.permute.xlu0 %8731
        %8733 = vrot.lane.b32.xlu0 %v3013, 32
        %v8734 = vpop.permute.xlu0 %8733
        %8735 = vrot.lane.b32.xlu0 %v3014, 32
        %v8736 = vpop.permute.xlu0 %8735
        %8737 = vrot.lane.b32.xlu0 %v3015, 32
        %v8738 = vpop.permute.xlu0 %8737
        %8739 = vrot.lane.b32.xlu0 %v3016, 32
        %v8740 = vpop.permute.xlu0 %8739
        %8741 = vrot.lane.b32.xlu0 %v3017, 32
        %v8742 = vpop.permute.xlu0 %8741
        %8743 = vrot.lane.b32.xlu0 %v3018, 32
        %v8744 = vpop.permute.xlu0 %8743
        %8745 = vrot.lane.b32.xlu0 %v3019, 32
        %v8746 = vpop.permute.xlu0 %8745
        %8747 = vrot.lane.b32.xlu0 %v3020, 32
        %v8748 = vpop.permute.xlu0 %8747
        %8749 = vrot.lane.b32.xlu0 %v3021, 32
        %v8750 = vpop.permute.xlu0 %8749
        %8751 = vrot.lane.b32.xlu0 %v3022, 32
        %v8752 = vpop.permute.xlu0 %8751
        %8753 = vrot.lane.b32.xlu0 %v3023, 32
        %v8754 = vpop.permute.xlu0 %8753
        %8755 = vrot.lane.b32.xlu0 %v3024, 32
        %v8756 = vpop.permute.xlu0 %8755
        %8757 = vrot.lane.b32.xlu0 %v3025, 32
        %v8758 = vpop.permute.xlu0 %8757
        %v8775 = vsel %vm1423, %v8711, %v8728
        %v8776 = vsel %vm1423, %v8712, %v8730
        %v8777 = vsel %vm1423, %v8713, %v8732
        %v8778 = vsel %vm1423, %v8714, %v8734
        %v8779 = vsel %vm1423, %v8715, %v8736
        %v8780 = vsel %vm1423, %v8716, %v8738
        %v8781 = vsel %vm1423, %v8717, %v8740
        %v8782 = vsel %vm1423, %v8718, %v8742
        %v8783 = vsel %vm1423, %v8719, %v8744
        %v8784 = vsel %vm1423, %v8720, %v8746
        %v8785 = vsel %vm1423, %v8721, %v8748
        %v8786 = vsel %vm1423, %v8722, %v8750
        %v8787 = vsel %vm1423, %v8723, %v8752
        %v8788 = vsel %vm1423, %v8724, %v8754
        %v8789 = vsel %vm1423, %v8725, %v8756
        %v8790 = vsel %vm1423, %v8726, %v8758
        %vm8791 = vcmask 326656
        %v8792 = vsel %vm8791, %v8775, 0.0
        %v8793 = vsel %vm8791, %v8776, 0.0
        %v8794 = vsel %vm8791, %v8777, 0.0
        %v8795 = vsel %vm8791, %v8778, 0.0
        %v8796 = vsel %vm8791, %v8779, 0.0
        %v8797 = vsel %vm8791, %v8780, 0.0
        %v8798 = vsel %vm8791, %v8781, 0.0
        %v8799 = vsel %vm8791, %v8782, 0.0
        %v8800 = vsel %vm8791, %v8783, 0.0
        %v8801 = vsel %vm8791, %v8784, 0.0
        %v8802 = vsel %vm8791, %v8785, 0.0
        %v8803 = vsel %vm8791, %v8786, 0.0
        %v8804 = vsel %vm8791, %v8787, 0.0
        %v8805 = vsel %vm8791, %v8788, 0.0
        %v8806 = vsel %vm8791, %v8789, 0.0
        %v8807 = vsel %vm8791, %v8790, 0.0
        %8808 = vst [vmem:[%s176] sm:$0xff] %v8792
        %8809 = vst [vmem:[%s176 + $0x8] sm:$0xff] %v8793
        %8810 = vst [vmem:[%s176 + $0x10] sm:$0xff] %v8794
        %8811 = vst [vmem:[%s176 + $0x18] sm:$0xff] %v8795
        %8812 = vst [vmem:[%s176 + $0x20] sm:$0xff] %v8796
        %8813 = vst [vmem:[%s176 + $0x28] sm:$0xff] %v8797
        %8814 = vst [vmem:[%s176 + $0x30] sm:$0xff] %v8798
        %8815 = vst [vmem:[%s176 + $0x38] sm:$0xff] %v8799
        %8816 = vst [vmem:[%s176 + $0x40] sm:$0xff] %v8800
        %8817 = vst [vmem:[%s176 + $0x48] sm:$0xff] %v8801
        %8818 = vst [vmem:[%s176 + $0x50] sm:$0xff] %v8802
        %8819 = vst [vmem:[%s176 + $0x58] sm:$0xff] %v8803
        %8820 = vst [vmem:[%s176 + $0x60] sm:$0xff] %v8804
        %8821 = vst [vmem:[%s176 + $0x68] sm:$0xff] %v8805
        %8822 = vst [vmem:[%s176 + $0x70] sm:$0xff] %v8806
        %8823 = vst [vmem:[%s176 + $0x78] sm:$0xff] %v8807
        %s8824 = sand.u32 %s75, 1
        %s8825 = scalar_lea.sflag [#allocation4], %s8824
        %s8826 = sand.u32 %s75, 1
        %s8827 = smul.addr %s8826, 128
        %s8828 = scalar_lea.vmem [#allocation7], %s8827
        // Predicated region
        $region37: #{tpu_custom_call.1} parent=27 // pred_check
          %p8829 = pneg %p85
        $region38: #{tpu_custom_call.1} parent=27 // pred_check_branch
          %8831 = sbr.rel (%p8829) target = $region40
        $region39: #{tpu_custom_call.1} parent=27 // pred_region
          %s8832 = smul.u32 16, %s20
          %s8834 = ssub.s32 2048, 2048
          %8835 = vsyncadd %s8825, %s8834
          %s8836 = smul.addr %s8832, 128
          %s8837 = scalar_lea.hbm %s2, %s8836
          %s8838 = sshll.u32 %s8828, 4
          %s8839 = int_to_ptr.vmem [resolvable:$true] %s8838
          %8844 = dma.vmem_to_hbm [thread:$0]  %s8839, 2048, %s8837, %s8825, 128, 128, 8
        $region40: #{tpu_custom_call.1} parent=27 // pred_fallthru
          _
      $region28: #{tpu_custom_call.1} parent=5 // pred_fallthru
        _
      %p8845 = scmp.le.s32.totalorder 2, %s15
      // Predicated region
      $region41: #{tpu_custom_call.1} parent=5 // pred_check
        %p8846 = pneg %p8845
      $region42: #{tpu_custom_call.1} parent=5 // pred_check_branch
        %8848 = sbr.rel (%p8846) target = $region44
      $region43: #{tpu_custom_call.1} parent=5 // pred_region
        %s8849 = ssub.s32 %s15, 2
        // Predicated region
        $region45: #{tpu_custom_call.1} parent=43 // pred_check
          %p8850 = pneg %p91
        $region46: #{tpu_custom_call.1} parent=43 // pred_check_branch
          %8852 = sbr.rel (%p8850) target = $region48
        $region47: #{tpu_custom_call.1} parent=43 // pred_region
          %s8853 = sand.u32 %s76, 1
          %s8854 = scalar_lea.sflag [#allocation4], %s8853
          %s8855 = sand.u32 %s76, 1
          %s8856 = smul.addr %s8855, 128
          %s8857 = scalar_lea.vmem [#allocation7], %s8856
          %8858 = dma.done %s8854, 2048
        $region48: #{tpu_custom_call.1} parent=43 // pred_fallthru
          _
      $region44: #{tpu_custom_call.1} parent=5 // pred_fallthru
        _
    $region6: #{tpu_custom_call.1} parent=1 // loop_footer
      %s19 = sadd.s32 1, %s15
    $region7: #{tpu_custom_call.1} parent=1 // loop_footer_branch
      %14 = sbr.rel target = $region3
    $region8: #{tpu_custom_call.1} parent=1 // loop_exit
      _
    %8859 = vsyncpa [#allocation3], 1
    %s8860 = scalar_lea.sflag [#allocation3], 1
    %8861 = vsyncpa %s8860, 1
    %8862 = vsyncpa [#allocation6], 1
    %8863 = vsyncpa [#allocation4], 1
    %s8864 = scalar_lea.sflag [#allocation4], 1
    %8865 = vsyncpa %s8864, 1

</llo_original>
